<compile_context>
chip_gen: v6e
topology: v6e:2x2x1
jax: 0.10.0
libtpu: 0.0.40
codegen_flags: <defaults>
</compile_context>

<pallas_src>
import jax
import jax.numpy as jnp
from jax.experimental import pallas as pl
from jax.experimental.pallas import tpu as pltpu


# ------------------------------ Pallas kernels ------------------------------

def _conv_bn_relu_kernel(p_ref, w_ref, shift_ref, o_ref):
    # p:     (TP, K)     bf16 im2col patch rows for this tile
    # w:     (K, Cout)   bf16 conv weights with the BN scale folded in
    # shift: (1, Cout)   f32 folded conv-bias + BN shift
    # o:     (TP, Cout)  bf16 — NHWC falls out of this orientation for free
    acc = jnp.dot(p_ref[...], w_ref[...], preferred_element_type=jnp.float32)
    o_ref[...] = jnp.maximum(acc + shift_ref[...], 0.0).astype(o_ref.dtype)


def _mlp_kernel(x_ref, wh_ref, bh_ref, wm_ref, bm_ref, wt_ref, bt_ref, o_ref):
    # head -> relu -> hidden -> relu -> tail; bf16 matmuls, f32 epilogues.
    h = jnp.dot(x_ref[...], wh_ref[...], preferred_element_type=jnp.float32)
    h = jnp.maximum(h + bh_ref[...], 0.0).astype(jnp.bfloat16)
    m = jnp.dot(h, wm_ref[...], preferred_element_type=jnp.float32)
    m = jnp.maximum(m + bm_ref[...], 0.0).astype(jnp.bfloat16)
    o_ref[...] = (jnp.dot(m, wt_ref[...], preferred_element_type=jnp.float32)
                  + bt_ref[...])


# ------------------------------ glue / wrappers ------------------------------

def _im2col_nhwc(x, k, s):
    """x: (B, H, W, C) -> patches (B, OH, OW, k*k*C); feature order (kh, kw, c)."""
    B, H, W, C = x.shape
    OH = (H - k) // s + 1
    OW = (W - k) // s + 1
    taps = [x[:, kh:kh + OH * s:s, kw:kw + OW * s:s, :]
            for kh in range(k) for kw in range(k)]
    p = jnp.stack(taps, axis=3)                      # (B, OH, OW, k*k, C)
    return p.reshape(B, OH, OW, k * k * C), OH, OW


def _pick_p_tile(P, tp_target):
    """Largest balanced tile: one full block if it fits, otherwise an even
    number of near-equal, multiple-of-8 tiles (even step count shards cleanly
    across the two v7x TensorCores; ragged last tile is a masked store)."""
    if P <= tp_target:
        return P, 1
    n = pl.cdiv(P, tp_target)
    n += n & 1                                       # even number of steps
    tp = ((pl.cdiv(P, n) + 7) // 8) * 8              # sublane-aligned tile
    return tp, pl.cdiv(P, tp)


def conv_bn_relu(x_nhwc, w_f, shift, *, k, s, tp_target=2048):
    """Fused Conv2d + BatchNorm(eval) + ReLU.

    x_nhwc: (B, H, W, Cin) bf16; w_f: (K, Cout) bf16 (BN scale folded);
    shift: (1, Cout) f32.  Returns NHWC (B, OH, OW, Cout) bf16 (free reshape
    of the (P, Cout) kernel output — no post-conv relayout pass).
    """
    B = x_nhwc.shape[0]
    p, OH, OW = _im2col_nhwc(x_nhwc, k, s)
    K = p.shape[-1]
    P = B * OH * OW
    p = p.reshape(P, K)
    Cout = w_f.shape[1]

    tp, steps = _pick_p_tile(P, tp_target)

    out = pl.pallas_call(
        _conv_bn_relu_kernel,
        out_shape=jax.ShapeDtypeStruct((P, Cout), jnp.bfloat16),
        grid=(steps,),
        in_specs=[
            pl.BlockSpec((tp, K), lambda i: (i, 0)),
            pl.BlockSpec((K, Cout), lambda i: (0, 0)),
            pl.BlockSpec((1, Cout), lambda i: (0, 0)),
        ],
        out_specs=pl.BlockSpec((tp, Cout), lambda i: (i, 0)),
        compiler_params=pltpu.CompilerParams(
            dimension_semantics=("parallel",),
            vmem_limit_bytes=64 << 20),
    )(p, w_f, shift)

    return out.reshape(B, OH, OW, Cout)              # free: NHWC for next layer


def mlp_head(x_flat, mlp, *, tb_target=128):
    """Fused head->relu->hidden->relu->tail.  Weights stay VMEM-resident
    (constant block index); batch tiles stream only when B is large."""
    wh, bh, wm, bm, wt, bt = mlp
    B, F = x_flat.shape
    n_out = wt.shape[1]
    tb = B if B <= tb_target else tb_target
    steps = pl.cdiv(B, tb)

    return pl.pallas_call(
        _mlp_kernel,
        out_shape=jax.ShapeDtypeStruct((B, n_out), jnp.float32),
        grid=(steps,),
        in_specs=[
            pl.BlockSpec((tb, F), lambda i: (i, 0)),
            pl.BlockSpec(wh.shape, lambda i: (0, 0)),
            pl.BlockSpec(bh.shape, lambda i: (0, 0)),
            pl.BlockSpec(wm.shape, lambda i: (0, 0)),
            pl.BlockSpec(bm.shape, lambda i: (0, 0)),
            pl.BlockSpec(wt.shape, lambda i: (0, 0)),
            pl.BlockSpec(bt.shape, lambda i: (0, 0)),
        ],
        out_specs=pl.BlockSpec((tb, n_out), lambda i: (i, 0)),
        compiler_params=pltpu.CompilerParams(
            dimension_semantics=("parallel",)),
    )(x_flat, wh, bh, wm, bm, wt, bt)


# --------------------------------- parameters --------------------------------

def init_params(key, inputs, outputs):
    ks = jax.random.split(key, 12)

    def conv_init(k1, k2, cout, cin, ksz):
        fan_in = cin * ksz * ksz
        bound = 1.0 / jnp.sqrt(fan_in)
        w = jax.random.uniform(k1, (cout, cin, ksz, ksz), jnp.float32, -bound, bound)
        b = jax.random.uniform(k2, (cout,), jnp.float32, -bound, bound)
        return w, b

    def xavier_linear(k1, k2, fan_in, fan_out):
        limit = jnp.sqrt(6.0 / (fan_in + fan_out))
        w = jax.random.uniform(k1, (fan_in, fan_out), jnp.float32, -limit, limit)
        b_bound = 1.0 / jnp.sqrt(fan_in)
        b = jax.random.uniform(k2, (fan_out,), jnp.float32, -b_bound, b_bound)
        return w, b

    def bn_init(c):
        # gamma, beta, running_mean, running_var (fresh init => inference stats)
        return (jnp.ones((c,), jnp.float32), jnp.zeros((c,), jnp.float32),
                jnp.zeros((c,), jnp.float32), jnp.ones((c,), jnp.float32))

    w1, b1 = conv_init(ks[0], ks[1], 16, inputs, 6)
    w2, b2 = conv_init(ks[2], ks[3], 32, 16, 6)
    w3, b3 = conv_init(ks[4], ks[5], 32, 32, 3)
    wh, bh = xavier_linear(ks[6], ks[7], 10 * 10 * 32, 256)
    wm, bm = xavier_linear(ks[8], ks[9], 256, 16)
    wt, bt = xavier_linear(ks[10], ks[11], 16, outputs)
    return dict(conv1=(w1, b1), bn1=bn_init(16),
                conv2=(w2, b2), bn2=bn_init(32),
                conv3=(w3, b3), bn3=bn_init(32),
                mlp=(wh, bh, wm, bm, wt, bt))


def prepare_params(params, eps=1e-5):
    """One-time: fold inference BN into conv weights (K, Cout orientation),
    permute the head-weight rows to absorb the torch NCHW flatten order, and
    cast all matmul operands to bf16 (bias / shift stay f32)."""
    def fold_conv(conv, bn):
        w, b = conv
        gamma, beta, mean, var = bn
        cout, cin, ksz, _ = w.shape
        scale = gamma / jnp.sqrt(var + eps)                          # (Cout,)
        # feature order (kh, kw, cin) to match the NHWC im2col patches
        w_km = w.transpose(2, 3, 1, 0).reshape(ksz * ksz * cin, cout)
        w_f = (w_km * scale[None, :]).astype(jnp.bfloat16)           # (K, Cout)
        shift = (beta + (b - mean) * scale).reshape(1, cout).astype(jnp.float32)
        return w_f, shift

    wh, bh, wm, bm, wt, bt = params["mlp"]
    # torch flattens NCHW: feature index = c*100 + q  (q = oh*10 + ow);
    # the Pallas conv3 NHWC flatten gives   feature index = q*32 + c.
    # Absorb the permutation into the head-weight rows once, here.
    n_hidden = wh.shape[1]
    whp = (wh.reshape(32, 10 * 10, n_hidden)
             .transpose(1, 0, 2)
             .reshape(32 * 10 * 10, n_hidden))
    mlp = (whp.astype(jnp.bfloat16), bh.reshape(1, -1).astype(jnp.float32),
           wm.astype(jnp.bfloat16), bm.reshape(1, -1).astype(jnp.float32),
           wt.astype(jnp.bfloat16), bt.reshape(1, -1).astype(jnp.float32))
    return dict(conv1=fold_conv(params["conv1"], params["bn1"]),
                conv2=fold_conv(params["conv2"], params["bn2"]),
                conv3=fold_conv(params["conv3"], params["bn3"]),
                mlp=mlp)


# ---------------------------------- forward ----------------------------------

@jax.jit
def cnno_forward(x_nchw, kp):
    # NCHW (torch convention) -> NHWC once; bf16 activations from here on.
    x = x_nchw.astype(jnp.bfloat16).transpose(0, 2, 3, 1)
    x = conv_bn_relu(x, *kp["conv1"], k=6, s=2)          # (B, 46, 46, 16)
    x = conv_bn_relu(x, *kp["conv2"], k=6, s=2)          # (B, 21, 21, 32)
    x = conv_bn_relu(x, *kp["conv3"], k=3, s=2)          # (B, 10, 10, 32)
    B = x.shape[0]
    x_flat = x.reshape(B, -1)        # NHWC flatten; head rows pre-permuted to match
    # Dropout(p=0.5) in eval mode == identity.
    # TODO(synk): training-mode dropout mask / batch-statistics BN not implemented.
    return mlp_head(x_flat, kp["mlp"])


if __name__ == "__main__":
    INPUTS, OUTPUTS, BATCH = 4, 5, 2
    # Spatial size must be 96x96 so the flatten yields 10*10*32 = 3200,
    # as hard-coded by the module (linear_input_size).
    key = jax.random.PRNGKey(0)
    kx, kp_key = jax.random.split(key)
    x = jax.random.uniform(kx, (BATCH, INPUTS, 96, 96), jnp.float32)
    params = init_params(kp_key, INPUTS, OUTPUTS)
    kparams = prepare_params(params)

    out = cnno_forward(x, kparams)
    out = jax.block_until_ready(out)
    assert out.shape == (BATCH, OUTPUTS), out.shape
    assert bool(jnp.all(jnp.isfinite(out)))
    print("KERNEL_OK")
</pallas_src>

<mosaic_0001>
module attributes {stable_mosaic.version = 11 : i64} {
  func.func @_conv_bn_relu_kernel(%arg0: i32, %arg1: memref<1064x144xbf16, #tpu.memory_space<vmem>>, %arg2: memref<144x16xbf16, #tpu.memory_space<vmem>>, %arg3: memref<1x16xf32, #tpu.memory_space<vmem>>, %arg4: memref<1064x16xbf16, #tpu.memory_space<vmem>>) attributes {dimension_semantics = [#tpu.dimension_semantics<parallel>], iteration_bounds = array<i64: 4>, scalar_prefetch = 0 : i64, scratch_operands = 0 : i64, tpu.core_type = #tpu.core_type<tc>, window_params = [{transform_indices = @transform_0, window_bounds = array<i64: 1064, 144>}, {pipeline_mode = #tpu.pipeline_mode<synchronous>, transform_indices = @transform_1, window_bounds = array<i64: 144, 16>}, {pipeline_mode = #tpu.pipeline_mode<synchronous>, transform_indices = @transform_2, window_bounds = array<i64: 1, 16>}, {transform_indices = @transform_3, window_bounds = array<i64: 1064, 16>}]} {
    %c0 = arith.constant 0 : index
    %c0_0 = arith.constant 0 : index
    %0 = vector.load %arg1[%c0, %c0_0] : memref<1064x144xbf16, #tpu.memory_space<vmem>>, vector<1064x144xbf16>
    %c0_1 = arith.constant 0 : index
    %c0_2 = arith.constant 0 : index
    %1 = vector.load %arg2[%c0_1, %c0_2] : memref<144x16xbf16, #tpu.memory_space<vmem>>, vector<144x16xbf16>
    %cst = arith.constant dense<0.000000e+00> : vector<1064x16xf32>
    %2 = tpu.matmul %0, %1, %cst {dimension_numbers = #tpu.dot_dimension_numbers<[1], [0], [0], [1], [0, 0, 1, 1], [], []>} : vector<1064x144xbf16>, vector<144x16xbf16>, vector<1064x16xf32> -> vector<1064x16xf32>
    %c0_3 = arith.constant 0 : index
    %c0_4 = arith.constant 0 : index
    %3 = vector.load %arg3[%c0_3, %c0_4] : memref<1x16xf32, #tpu.memory_space<vmem>>, vector<1x16xf32>
    %4 = vector.broadcast %3 : vector<1x16xf32> to vector<1064x16xf32>
    %5 = arith.addf %2, %4 : vector<1064x16xf32>
    %cst_5 = arith.constant 0.000000e+00 : f32
    %6 = vector.broadcast %cst_5 : f32 to vector<1064x16xf32>
    %7 = arith.maximumf %5, %6 : vector<1064x16xf32>
    %8 = arith.truncf %7 : vector<1064x16xf32> to vector<1064x16xbf16>
    %c0_6 = arith.constant 0 : index
    %c0_7 = arith.constant 0 : index
    %9 = vector.load %arg4[%c0_6, %c0_7] : memref<1064x16xbf16, #tpu.memory_space<vmem>>, vector<1064x16xbf16>
    tpu.vector_store %arg4[%c0_6, %c0_7], %8 {strides = array<i32>} : memref<1064x16xbf16, #tpu.memory_space<vmem>>, vector<1064x16xbf16>,
    return
  }
  func.func @transform_0(%arg0: i32) -> (i32, i32) {
    %c0_i32 = arith.constant 0 : i32
    %c0_i32_0 = arith.constant 0 : i32
    return %arg0, %c0_i32 : i32, i32
  }
  func.func @transform_1(%arg0: i32) -> (i32, i32) {
    %c0_i32 = arith.constant 0 : i32
    %c0_i32_0 = arith.constant 0 : i32
    %c0_i32_1 = arith.constant 0 : i32
    return %c0_i32, %c0_i32_0 : i32, i32
  }
  func.func @transform_2(%arg0: i32) -> (i32, i32) {
    %c0_i32 = arith.constant 0 : i32
    %c0_i32_0 = arith.constant 0 : i32
    %c0_i32_1 = arith.constant 0 : i32
    return %c0_i32, %c0_i32_0 : i32, i32
  }
  func.func @transform_3(%arg0: i32) -> (i32, i32) {
    %c0_i32 = arith.constant 0 : i32
    %c0_i32_0 = arith.constant 0 : i32
    return %arg0, %c0_i32 : i32, i32
  }
}

module attributes {stable_mosaic.version = 11 : i64} {
  func.func @_conv_bn_relu_kernel(%arg0: i32, %arg1: memref<882x576xbf16, #tpu.memory_space<vmem>>, %arg2: memref<576x32xbf16, #tpu.memory_space<vmem>>, %arg3: memref<1x32xf32, #tpu.memory_space<vmem>>, %arg4: memref<882x32xbf16, #tpu.memory_space<vmem>>) attributes {dimension_semantics = [#tpu.dimension_semantics<parallel>], iteration_bounds = array<i64: 1>, scalar_prefetch = 0 : i64, scratch_operands = 0 : i64, tpu.core_type = #tpu.core_type<tc>, window_params = [{transform_indices = @transform_0, window_bounds = array<i64: 882, 576>}, {pipeline_mode = #tpu.pipeline_mode<synchronous>, transform_indices = @transform_1, window_bounds = array<i64: 576, 32>}, {pipeline_mode = #tpu.pipeline_mode<synchronous>, transform_indices = @transform_2, window_bounds = array<i64: 1, 32>}, {transform_indices = @transform_3, window_bounds = array<i64: 882, 32>}]} {
    %c0 = arith.constant 0 : index
    %c0_0 = arith.constant 0 : index
    %0 = vector.load %arg1[%c0, %c0_0] : memref<882x576xbf16, #tpu.memory_space<vmem>>, vector<882x576xbf16>
    %c0_1 = arith.constant 0 : index
    %c0_2 = arith.constant 0 : index
    %1 = vector.load %arg2[%c0_1, %c0_2] : memref<576x32xbf16, #tpu.memory_space<vmem>>, vector<576x32xbf16>
    %cst = arith.constant dense<0.000000e+00> : vector<882x32xf32>
    %2 = tpu.matmul %0, %1, %cst {dimension_numbers = #tpu.dot_dimension_numbers<[1], [0], [0], [1], [0, 0, 1, 1], [], []>} : vector<882x576xbf16>, vector<576x32xbf16>, vector<882x32xf32> -> vector<882x32xf32>
    %c0_3 = arith.constant 0 : index
    %c0_4 = arith.constant 0 : index
    %3 = vector.load %arg3[%c0_3, %c0_4] : memref<1x32xf32, #tpu.memory_space<vmem>>, vector<1x32xf32>
    %4 = vector.broadcast %3 : vector<1x32xf32> to vector<882x32xf32>
    %5 = arith.addf %2, %4 : vector<882x32xf32>
    %cst_5 = arith.constant 0.000000e+00 : f32
    %6 = vector.broadcast %cst_5 : f32 to vector<882x32xf32>
    %7 = arith.maximumf %5, %6 : vector<882x32xf32>
    %8 = arith.truncf %7 : vector<882x32xf32> to vector<882x32xbf16>
    %c0_6 = arith.constant 0 : index
    %c0_7 = arith.constant 0 : index
    %9 = vector.load %arg4[%c0_6, %c0_7] : memref<882x32xbf16, #tpu.memory_space<vmem>>, vector<882x32xbf16>
    tpu.vector_store %arg4[%c0_6, %c0_7], %8 {strides = array<i32>} : memref<882x32xbf16, #tpu.memory_space<vmem>>, vector<882x32xbf16>,
    return
  }
  func.func @transform_0(%arg0: i32) -> (i32, i32) {
    %c0_i32 = arith.constant 0 : i32
    %c0_i32_0 = arith.constant 0 : i32
    return %arg0, %c0_i32 : i32, i32
  }
  func.func @transform_1(%arg0: i32) -> (i32, i32) {
    %c0_i32 = arith.constant 0 : i32
    %c0_i32_0 = arith.constant 0 : i32
    %c0_i32_1 = arith.constant 0 : i32
    return %c0_i32, %c0_i32_0 : i32, i32
  }
  func.func @transform_2(%arg0: i32) -> (i32, i32) {
    %c0_i32 = arith.constant 0 : i32
    %c0_i32_0 = arith.constant 0 : i32
    %c0_i32_1 = arith.constant 0 : i32
    return %c0_i32, %c0_i32_0 : i32, i32
  }
  func.func @transform_3(%arg0: i32) -> (i32, i32) {
    %c0_i32 = arith.constant 0 : i32
    %c0_i32_0 = arith.constant 0 : i32
    return %arg0, %c0_i32 : i32, i32
  }
}

module attributes {stable_mosaic.version = 11 : i64} {
  func.func @_conv_bn_relu_kernel(%arg0: i32, %arg1: memref<200x288xbf16, #tpu.memory_space<vmem>>, %arg2: memref<288x32xbf16, #tpu.memory_space<vmem>>, %arg3: memref<1x32xf32, #tpu.memory_space<vmem>>, %arg4: memref<200x32xbf16, #tpu.memory_space<vmem>>) attributes {dimension_semantics = [#tpu.dimension_semantics<parallel>], iteration_bounds = array<i64: 1>, scalar_prefetch = 0 : i64, scratch_operands = 0 : i64, tpu.core_type = #tpu.core_type<tc>, window_params = [{transform_indices = @transform_0, window_bounds = array<i64: 200, 288>}, {pipeline_mode = #tpu.pipeline_mode<synchronous>, transform_indices = @transform_1, window_bounds = array<i64: 288, 32>}, {pipeline_mode = #tpu.pipeline_mode<synchronous>, transform_indices = @transform_2, window_bounds = array<i64: 1, 32>}, {transform_indices = @transform_3, window_bounds = array<i64: 200, 32>}]} {
    %c0 = arith.constant 0 : index
    %c0_0 = arith.constant 0 : index
    %0 = vector.load %arg1[%c0, %c0_0] : memref<200x288xbf16, #tpu.memory_space<vmem>>, vector<200x288xbf16>
    %c0_1 = arith.constant 0 : index
    %c0_2 = arith.constant 0 : index
    %1 = vector.load %arg2[%c0_1, %c0_2] : memref<288x32xbf16, #tpu.memory_space<vmem>>, vector<288x32xbf16>
    %cst = arith.constant dense<0.000000e+00> : vector<200x32xf32>
    %2 = tpu.matmul %0, %1, %cst {dimension_numbers = #tpu.dot_dimension_numbers<[1], [0], [0], [1], [0, 0, 1, 1], [], []>} : vector<200x288xbf16>, vector<288x32xbf16>, vector<200x32xf32> -> vector<200x32xf32>
    %c0_3 = arith.constant 0 : index
    %c0_4 = arith.constant 0 : index
    %3 = vector.load %arg3[%c0_3, %c0_4] : memref<1x32xf32, #tpu.memory_space<vmem>>, vector<1x32xf32>
    %4 = vector.broadcast %3 : vector<1x32xf32> to vector<200x32xf32>
    %5 = arith.addf %2, %4 : vector<200x32xf32>
    %cst_5 = arith.constant 0.000000e+00 : f32
    %6 = vector.broadcast %cst_5 : f32 to vector<200x32xf32>
    %7 = arith.maximumf %5, %6 : vector<200x32xf32>
    %8 = arith.truncf %7 : vector<200x32xf32> to vector<200x32xbf16>
    %c0_6 = arith.constant 0 : index
    %c0_7 = arith.constant 0 : index
    %9 = vector.load %arg4[%c0_6, %c0_7] : memref<200x32xbf16, #tpu.memory_space<vmem>>, vector<200x32xbf16>
    tpu.vector_store %arg4[%c0_6, %c0_7], %8 {strides = array<i32>} : memref<200x32xbf16, #tpu.memory_space<vmem>>, vector<200x32xbf16>,
    return
  }
  func.func @transform_0(%arg0: i32) -> (i32, i32) {
    %c0_i32 = arith.constant 0 : i32
    %c0_i32_0 = arith.constant 0 : i32
    return %arg0, %c0_i32 : i32, i32
  }
  func.func @transform_1(%arg0: i32) -> (i32, i32) {
    %c0_i32 = arith.constant 0 : i32
    %c0_i32_0 = arith.constant 0 : i32
    %c0_i32_1 = arith.constant 0 : i32
    return %c0_i32, %c0_i32_0 : i32, i32
  }
  func.func @transform_2(%arg0: i32) -> (i32, i32) {
    %c0_i32 = arith.constant 0 : i32
    %c0_i32_0 = arith.constant 0 : i32
    %c0_i32_1 = arith.constant 0 : i32
    return %c0_i32, %c0_i32_0 : i32, i32
  }
  func.func @transform_3(%arg0: i32) -> (i32, i32) {
    %c0_i32 = arith.constant 0 : i32
    %c0_i32_0 = arith.constant 0 : i32
    return %arg0, %c0_i32 : i32, i32
  }
}

module attributes {stable_mosaic.version = 11 : i64} {
  func.func @_mlp_kernel(%arg0: i32, %arg1: memref<2x3200xbf16, #tpu.memory_space<vmem>>, %arg2: memref<3200x256xbf16, #tpu.memory_space<vmem>>, %arg3: memref<1x256xf32, #tpu.memory_space<vmem>>, %arg4: memref<256x16xbf16, #tpu.memory_space<vmem>>, %arg5: memref<1x16xf32, #tpu.memory_space<vmem>>, %arg6: memref<16x5xbf16, #tpu.memory_space<vmem>>, %arg7: memref<1x5xf32, #tpu.memory_space<vmem>>, %arg8: memref<2x5xf32, #tpu.memory_space<vmem>>) attributes {dimension_semantics = [#tpu.dimension_semantics<parallel>], iteration_bounds = array<i64: 1>, scalar_prefetch = 0 : i64, scratch_operands = 0 : i64, tpu.core_type = #tpu.core_type<tc>, window_params = [{transform_indices = @transform_0, window_bounds = array<i64: 2, 3200>}, {pipeline_mode = #tpu.pipeline_mode<synchronous>, transform_indices = @transform_1, window_bounds = array<i64: 3200, 256>}, {pipeline_mode = #tpu.pipeline_mode<synchronous>, transform_indices = @transform_2, window_bounds = array<i64: 1, 256>}, {pipeline_mode = #tpu.pipeline_mode<synchronous>, transform_indices = @transform_3, window_bounds = array<i64: 256, 16>}, {pipeline_mode = #tpu.pipeline_mode<synchronous>, transform_indices = @transform_4, window_bounds = array<i64: 1, 16>}, {pipeline_mode = #tpu.pipeline_mode<synchronous>, transform_indices = @transform_5, window_bounds = array<i64: 16, 5>}, {pipeline_mode = #tpu.pipeline_mode<synchronous>, transform_indices = @transform_6, window_bounds = array<i64: 1, 5>}, {transform_indices = @transform_7, window_bounds = array<i64: 2, 5>}]} {
    %c0 = arith.constant 0 : index
    %c0_0 = arith.constant 0 : index
    %0 = vector.load %arg1[%c0, %c0_0] : memref<2x3200xbf16, #tpu.memory_space<vmem>>, vector<2x3200xbf16>
    %c0_1 = arith.constant 0 : index
    %c0_2 = arith.constant 0 : index
    %1 = vector.load %arg2[%c0_1, %c0_2] : memref<3200x256xbf16, #tpu.memory_space<vmem>>, vector<3200x256xbf16>
    %cst = arith.constant dense<0.000000e+00> : vector<2x256xf32>
    %2 = tpu.matmul %0, %1, %cst {dimension_numbers = #tpu.dot_dimension_numbers<[1], [0], [0], [1], [0, 0, 1, 1], [], []>} : vector<2x3200xbf16>, vector<3200x256xbf16>, vector<2x256xf32> -> vector<2x256xf32>
    %c0_3 = arith.constant 0 : index
    %c0_4 = arith.constant 0 : index
    %3 = vector.load %arg3[%c0_3, %c0_4] : memref<1x256xf32, #tpu.memory_space<vmem>>, vector<1x256xf32>
    %4 = vector.broadcast %3 : vector<1x256xf32> to vector<2x256xf32>
    %5 = arith.addf %2, %4 : vector<2x256xf32>
    %cst_5 = arith.constant 0.000000e+00 : f32
    %6 = vector.broadcast %cst_5 : f32 to vector<2x256xf32>
    %7 = arith.maximumf %5, %6 : vector<2x256xf32>
    %8 = arith.truncf %7 : vector<2x256xf32> to vector<2x256xbf16>
    %c0_6 = arith.constant 0 : index
    %c0_7 = arith.constant 0 : index
    %9 = vector.load %arg4[%c0_6, %c0_7] : memref<256x16xbf16, #tpu.memory_space<vmem>>, vector<256x16xbf16>
    %cst_8 = arith.constant dense<0.000000e+00> : vector<2x16xf32>
    %10 = tpu.matmul %8, %9, %cst_8 {dimension_numbers = #tpu.dot_dimension_numbers<[1], [0], [0], [1], [0, 0, 1, 1], [], []>} : vector<2x256xbf16>, vector<256x16xbf16>, vector<2x16xf32> -> vector<2x16xf32>
    %c0_9 = arith.constant 0 : index
    %c0_10 = arith.constant 0 : index
    %11 = vector.load %arg5[%c0_9, %c0_10] : memref<1x16xf32, #tpu.memory_space<vmem>>, vector<1x16xf32>
    %12 = vector.broadcast %11 : vector<1x16xf32> to vector<2x16xf32>
    %13 = arith.addf %10, %12 : vector<2x16xf32>
    %cst_11 = arith.constant 0.000000e+00 : f32
    %14 = vector.broadcast %cst_11 : f32 to vector<2x16xf32>
    %15 = arith.maximumf %13, %14 : vector<2x16xf32>
    %16 = arith.truncf %15 : vector<2x16xf32> to vector<2x16xbf16>
    %c0_12 = arith.constant 0 : index
    %c0_13 = arith.constant 0 : index
    %17 = vector.load %arg6[%c0_12, %c0_13] : memref<16x5xbf16, #tpu.memory_space<vmem>>, vector<16x5xbf16>
    %cst_14 = arith.constant dense<0.000000e+00> : vector<2x5xf32>
    %18 = tpu.matmul %16, %17, %cst_14 {dimension_numbers = #tpu.dot_dimension_numbers<[1], [0], [0], [1], [0, 0, 1, 1], [], []>} : vector<2x16xbf16>, vector<16x5xbf16>, vector<2x5xf32> -> vector<2x5xf32>
    %c0_15 = arith.constant 0 : index
    %c0_16 = arith.constant 0 : index
    %19 = vector.load %arg7[%c0_15, %c0_16] : memref<1x5xf32, #tpu.memory_space<vmem>>, vector<1x5xf32>
    %20 = vector.broadcast %19 : vector<1x5xf32> to vector<2x5xf32>
    %21 = arith.addf %18, %20 : vector<2x5xf32>
    %c0_17 = arith.constant 0 : index
    %c0_18 = arith.constant 0 : index
    %22 = vector.load %arg8[%c0_17, %c0_18] : memref<2x5xf32, #tpu.memory_space<vmem>>, vector<2x5xf32>
    tpu.vector_store %arg8[%c0_17, %c0_18], %21 {strides = array<i32>} : memref<2x5xf32, #tpu.memory_space<vmem>>, vector<2x5xf32>,
    return
  }
  func.func @transform_0(%arg0: i32) -> (i32, i32) {
    %c0_i32 = arith.constant 0 : i32
    %c0_i32_0 = arith.constant 0 : i32
    return %arg0, %c0_i32 : i32, i32
  }
  func.func @transform_1(%arg0: i32) -> (i32, i32) {
    %c0_i32 = arith.constant 0 : i32
    %c0_i32_0 = arith.constant 0 : i32
    %c0_i32_1 = arith.constant 0 : i32
    return %c0_i32, %c0_i32_0 : i32, i32
  }
  func.func @transform_2(%arg0: i32) -> (i32, i32) {
    %c0_i32 = arith.constant 0 : i32
    %c0_i32_0 = arith.constant 0 : i32
    %c0_i32_1 = arith.constant 0 : i32
    return %c0_i32, %c0_i32_0 : i32, i32
  }
  func.func @transform_3(%arg0: i32) -> (i32, i32) {
    %c0_i32 = arith.constant 0 : i32
    %c0_i32_0 = arith.constant 0 : i32
    %c0_i32_1 = arith.constant 0 : i32
    return %c0_i32, %c0_i32_0 : i32, i32
  }
  func.func @transform_4(%arg0: i32) -> (i32, i32) {
    %c0_i32 = arith.constant 0 : i32
    %c0_i32_0 = arith.constant 0 : i32
    %c0_i32_1 = arith.constant 0 : i32
    return %c0_i32, %c0_i32_0 : i32, i32
  }
  func.func @transform_5(%arg0: i32) -> (i32, i32) {
    %c0_i32 = arith.constant 0 : i32
    %c0_i32_0 = arith.constant 0 : i32
    %c0_i32_1 = arith.constant 0 : i32
    return %c0_i32, %c0_i32_0 : i32, i32
  }
  func.func @transform_6(%arg0: i32) -> (i32, i32) {
    %c0_i32 = arith.constant 0 : i32
    %c0_i32_0 = arith.constant 0 : i32
    %c0_i32_1 = arith.constant 0 : i32
    return %c0_i32, %c0_i32_0 : i32, i32
  }
  func.func @transform_7(%arg0: i32) -> (i32, i32) {
    %c0_i32 = arith.constant 0 : i32
    %c0_i32_0 = arith.constant 0 : i32
    return %arg0, %c0_i32 : i32, i32
  }
}

</mosaic_0001>

<llo_original>
// kernel: cnno_forward.4
$region0: #{cnno_forward.4}
  #allocation0 [shape = 'u32[]', space=smem, size = 0x4, offset = 0x4, fixed_abs, tag = 'smem constant byte address 0x4 - core index']
  #allocation1 [shape = 'u32[144,128]{1,0:T(1,128)}', space=vmem, size = 0x12000, scoped, tag = 'internal scratch']
  %s0 = inlined_call_operand.vmem [shape: bf16[4232,144], index: 0, kind: input, shape index: {}]
  %s1 = inlined_call_operand.vmem [shape: bf16[144,16], index: 1, kind: input, shape index: {}]
  %s2 = inlined_call_operand.vmem [shape: f32[1,16], index: 2, kind: input, shape index: {}]
  %s3 = inlined_call_operand.vmem [shape: bf16[4232,16], index: 3, kind: output, shape index: {}]
  %s4 = sld [smem:[#allocation0]]
  $region89: #{cnno_forward.4} parent=0
    _
  %s6 = ssub.s32 1, %s4
  %s7 = scalar_select 0, %s6, %s4
  $region1: #{cnno_forward.4} parent=0
    #allocation2 [shape = 'u8[544768]{0}', space=vmem, size = 0x85000, scoped, tag = 'output window, operand 0']
    loop: start=0, step=1, limit=6
    $region2: #{cnno_forward.4} parent=1 // loop_pre_header
      _
    $region3: #{cnno_forward.4} parent=1 // loop_header
      %s9 = sphi 0, %s13
      %p10 = scmp.ge.s32.totalorder %s9, 6
      %s19 = sphi 0, %s21
      %s22 = sphi 0, %s19
      %s23 = sphi 0, %s22
      %s39 = sphi 0, %s23
      %s43 = sphi 0, %s43
      %s45 = sphi 0, %s43
      %s46 = sphi 0, %s45
      %s60 = sphi 0, %s46
      %s64 = sphi 0, %s64
      %s66 = sphi 0, %s64
      %s67 = sphi 0, %s66
      %s81 = sphi 0, %s67
      %s87 = sphi 0, %s89
      %s90 = sphi 0, %s87
      %s91 = sphi 0, %s90
      %s107 = sphi 0, %s91
    $region4: #{cnno_forward.4} parent=1 // loop_header_branch
      %12 = sbr.rel (%p10) target = $region8
    $region5: #{cnno_forward.4} parent=1 // loop_body
      %s14 = ssub.s32 %s9, 1
      %s15 = ssub.s32 %s9, 2
      %s16 = sadd.s32 %s9, 1
      %s17 = ssub.s32 %s9, %s16
      %p18 = scmp.eq.s32.totalorder %s17, 0
      %s20 = sadd.s32 %s19, 1
      %s21 = scalar_select %p18, %s19, %s20
      %p24 = pneg %p18
      %p25 = scmp.eq.s32.totalorder %s9, 3
      %p26 = por %p24, %p25
      %p27 = scmp.ne.s32.totalorder %s19, %s22
      %p28 = scmp.eq.s32.totalorder %s9, 0
      %p29 = por %p27, %p28
      %p30 = scmp.ne.s32.totalorder %s19, %s22
      %p31 = scmp.eq.s32.totalorder %s14, 3
      %p32 = por %p30, %p31
      %p33 = scmp.ne.s32.totalorder %s22, %s23
      %p34 = scmp.eq.s32.totalorder %s14, 0
      %p35 = por %p33, %p34
      %p36 = scmp.ne.s32.totalorder %s22, %s23
      %p37 = scmp.eq.s32.totalorder %s15, 3
      %p38 = por %p36, %p37
      %p40 = scmp.ne.s32.totalorder %s23, %s39
      %p41 = scmp.eq.s32.totalorder %s15, 0
      %p42 = por %p40, %p41
      %s44 = sadd.s32 %s43, 1
      %p47 = scmp.eq.s32.totalorder %s9, 3
      %p48 = scmp.ne.s32.totalorder %s43, %s45
      %p49 = scmp.eq.s32.totalorder %s9, 0
      %p50 = por %p48, %p49
      %p51 = scmp.ne.s32.totalorder %s43, %s45
      %p52 = scmp.eq.s32.totalorder %s14, 3
      %p53 = por %p51, %p52
      %p54 = scmp.ne.s32.totalorder %s45, %s46
      %p55 = scmp.eq.s32.totalorder %s14, 0
      %p56 = por %p54, %p55
      %p57 = scmp.ne.s32.totalorder %s45, %s46
      %p58 = scmp.eq.s32.totalorder %s15, 3
      %p59 = por %p57, %p58
      %p61 = scmp.ne.s32.totalorder %s46, %s60
      %p62 = scmp.eq.s32.totalorder %s15, 0
      %p63 = por %p61, %p62
      %s65 = sadd.s32 %s64, 1
      %p68 = scmp.eq.s32.totalorder %s9, 3
      %p69 = scmp.ne.s32.totalorder %s64, %s66
      %p70 = scmp.eq.s32.totalorder %s9, 0
      %p71 = por %p69, %p70
      %p72 = scmp.ne.s32.totalorder %s64, %s66
      %p73 = scmp.eq.s32.totalorder %s14, 3
      %p74 = por %p72, %p73
      %p75 = scmp.ne.s32.totalorder %s66, %s67
      %p76 = scmp.eq.s32.totalorder %s14, 0
      %p77 = por %p75, %p76
      %p78 = scmp.ne.s32.totalorder %s66, %s67
      %p79 = scmp.eq.s32.totalorder %s15, 3
      %p80 = por %p78, %p79
      %p82 = scmp.ne.s32.totalorder %s67, %s81
      %p83 = scmp.eq.s32.totalorder %s15, 0
      %p84 = por %p82, %p83
      %s85 = ssub.s32 %s9, %s16
      %p86 = scmp.eq.s32.totalorder %s85, 0
      %s88 = sadd.s32 %s87, 1
      %s89 = scalar_select %p86, %s87, %s88
      %p92 = pneg %p86
      %p93 = scmp.eq.s32.totalorder %s9, 3
      %p94 = por %p92, %p93
      %p95 = scmp.ne.s32.totalorder %s87, %s90
      %p96 = scmp.eq.s32.totalorder %s9, 0
      %p97 = por %p95, %p96
      %p98 = scmp.ne.s32.totalorder %s87, %s90
      %p99 = scmp.eq.s32.totalorder %s14, 3
      %p100 = por %p98, %p99
      %p101 = scmp.ne.s32.totalorder %s90, %s91
      %p102 = scmp.eq.s32.totalorder %s14, 0
      %p103 = por %p101, %p102
      %p104 = scmp.ne.s32.totalorder %s90, %s91
      %p105 = scmp.eq.s32.totalorder %s15, 3
      %p106 = por %p104, %p105
      %p108 = scmp.ne.s32.totalorder %s91, %s107
      %p109 = scmp.eq.s32.totalorder %s15, 0
      %p110 = por %p108, %p109
      %p111 = scmp.le.s32.totalorder 1, %s9
      %p112 = scmp.lt.s32.totalorder %s9, 5
      %p113 = pnand %p111, %p112
      %p114 = pneg %p113
      // Predicated region
      $region9: #{cnno_forward.4} parent=5 // pred_check
        _
      $region10: #{cnno_forward.4} parent=5 // pred_check_branch
        %116 = sbr.rel (%p113) target = $region12
      $region11: #{cnno_forward.4} parent=5 // pred_region
        %s117 = ssub.s32 %s9, 1
        // Predicated region
        $region13: #{cnno_forward.4} parent=11 // pred_check
          %p118 = pneg %p56
        $region14: #{cnno_forward.4} parent=11 // pred_check_branch
          %120 = sbr.rel (%p118) target = $region16
        $region15: #{cnno_forward.4} parent=11 // pred_region
          _
        $region16: #{cnno_forward.4} parent=11 // pred_fallthru
          _
        // Predicated region
        $region17: #{cnno_forward.4} parent=11 // pred_check
          %p121 = pneg %p77
        $region18: #{cnno_forward.4} parent=11 // pred_check_branch
          %123 = sbr.rel (%p121) target = $region20
        $region19: #{cnno_forward.4} parent=11 // pred_region
          _
        $region20: #{cnno_forward.4} parent=11 // pred_fallthru
          _
      $region12: #{cnno_forward.4} parent=5 // pred_fallthru
        _
      %p124 = scmp.lt.s32.totalorder %s9, 4
      // Predicated region
      $region21: #{cnno_forward.4} parent=5 // pred_check
        %p125 = pneg %p124
      $region22: #{cnno_forward.4} parent=5 // pred_check_branch
        %127 = sbr.rel (%p125) target = $region24
      $region23: #{cnno_forward.4} parent=5 // pred_region
        // Predicated region
        $region25: #{cnno_forward.4} parent=23 // pred_check
          %p128 = pneg %p29
        $region26: #{cnno_forward.4} parent=23 // pred_check_branch
          %130 = sbr.rel (%p128) target = $region28
        $region27: #{cnno_forward.4} parent=23 // pred_region
          %s131 = smul.u32 133, %s9
          %s132 = ssub.s32 529, %s131
          %p133 = scmp.lt.s32.totalorder %s132, 133
          %s134 = scalar_select %p133, %s132, 133
          %s135 = smul.u32 64, %s134
          %s136 = smul.u32 %s135, 2
          %p137 = scmp.lt.s32.totalorder %s131, 528
          %s138 = scalar_select %p137, %s131, 528
          %s139 = smul.addr %s138, 2
          %s140 = smul.addr %s139, 4
          %s141 = scalar_lea.vmem %s0, %s140
          %s142 = smul.u32 133, %s9
          %s143 = ssub.s32 529, %s142
          %p144 = scmp.lt.s32.totalorder %s143, 133
          %s145 = scalar_select %p144, %s143, 133
          %s146 = smul.u32 64, %s145
          %s147 = smul.u32 %s146, 2
        $region28: #{cnno_forward.4} parent=23 // pred_fallthru
          _
      $region24: #{cnno_forward.4} parent=5 // pred_fallthru
        _
      %p148 = scmp.le.s32.totalorder 1, %s9
      %p149 = scmp.lt.s32.totalorder %s9, 5
      %p150 = pnand %p148, %p149
      %p151 = pneg %p150
      // Predicated region
      $region29: #{cnno_forward.4} parent=5 // pred_check
        _
      $region30: #{cnno_forward.4} parent=5 // pred_check_branch
        %153 = sbr.rel (%p150) target = $region32
      $region31: #{cnno_forward.4} parent=5 // pred_region
        %s154 = ssub.s32 %s9, 1
        %s155 = smul.u32 133, %s14
        %s156 = ssub.s32 529, %s155
        %p157 = scmp.lt.s32.totalorder %s156, 133
        %s158 = scalar_select %p157, %s156, 133
        %s159 = smul.u32 64, %s158
        %s160 = smul.u32 %s159, 2
        %p161 = scmp.lt.s32.totalorder %s155, 528
        %s162 = scalar_select %p161, %s155, 528
        %s163 = smul.addr %s162, 2
        %s164 = smul.addr %s163, 4
        %s165 = scalar_lea.vmem %s0, %s164
        %p166 = pneg %p35
        %p167 = pneg %p32
        %p168 = pneg %p56
        %p169 = pneg %p53
        %p170 = pneg %p77
        %p171 = pneg %p74
        %p172 = pneg %p103
        %p173 = pneg %p100
        %s174 = sand.u32 %s90, 1
        %s175 = sand.u32 %s90, 1
        %s176 = smul.addr %s175, 532
        %s177 = scalar_lea.vmem [#allocation2], %s176
        %s178 = smul.u32 133, %s14
        %s179 = ssub.s32 529, %s178
        %p180 = scmp.lt.s32.totalorder %s179, 133
        %s181 = scalar_select %p180, %s179, 133
        %s182 = smul.u32 64, %s181
        %s183 = smul.u32 %s182, 2
        %p184 = scmp.lt.s32.totalorder %s178, 528
        %s185 = scalar_select %p184, %s178, 528
        %s186 = smul.addr %s185, 2
        %s187 = smul.addr %s186, 4
        %s188 = scalar_lea.vmem %s0, %s187
        %s189 = smul.u32 133, %s14
        %s190 = ssub.s32 529, %s189
        %p191 = scmp.lt.s32.totalorder %s190, 133
        %s192 = scalar_select %p191, %s190, 133
        %s193 = smul.u32 64, %s192
        %s194 = smul.u32 %s193, 2
        %s195 = smul.u32 133, %s14
        %s196 = ssub.s32 529, %s195
        %p197 = scmp.lt.s32.totalorder %s196, 133
        %s198 = scalar_select %p197, %s196, 133
        %s199 = smul.u32 64, %s198
        %v201 = vld [vmem:[%s188] sm:$0xff]
        %v202 = vld [vmem:[%s188 + $0x8] sm:$0xff]
        %v203 = vld [vmem:[%s188 + $0x10] sm:$0xff]
        %v204 = vld [vmem:[%s188 + $0x18] sm:$0xff]
        %v205 = vld [vmem:[%s188 + $0x20] sm:$0xff]
        %v206 = vld [vmem:[%s188 + $0x28] sm:$0xff]
        %v207 = vld [vmem:[%s188 + $0x30] sm:$0xff]
        %v208 = vld [vmem:[%s188 + $0x38] sm:$0xff]
        %v209 = vld [vmem:[%s188 + $0x40] sm:$0xff]
        %v210 = vld [vmem:[%s188 + $0x48] sm:$0xff]
        %v211 = vld [vmem:[%s188 + $0x50] sm:$0xff]
        %v212 = vld [vmem:[%s188 + $0x58] sm:$0xff]
        %v213 = vld [vmem:[%s188 + $0x60] sm:$0xff]
        %v214 = vld [vmem:[%s188 + $0x68] sm:$0xff]
        %v215 = vld [vmem:[%s188 + $0x70] sm:$0xff]
        %v216 = vld [vmem:[%s188 + $0x78] sm:$0xff]
        %v217 = vld [vmem:[%s188 + $0x80] sm:$0xff]
        %v218 = vld [vmem:[%s188 + $0x88] sm:$0xff]
        %v219 = vld [vmem:[%s188 + $0x90] sm:$0xff]
        %v220 = vld [vmem:[%s188 + $0x98] sm:$0xff]
        %v221 = vld [vmem:[%s188 + $0xa0] sm:$0xff]
        %v222 = vld [vmem:[%s188 + $0xa8] sm:$0xff]
        %v223 = vld [vmem:[%s188 + $0xb0] sm:$0xff]
        %v224 = vld [vmem:[%s188 + $0xb8] sm:$0xff]
        %v225 = vld [vmem:[%s188 + $0xc0] sm:$0xff]
        %v226 = vld [vmem:[%s188 + $0xc8] sm:$0xff]
        %v227 = vld [vmem:[%s188 + $0xd0] sm:$0xff]
        %v228 = vld [vmem:[%s188 + $0xd8] sm:$0xff]
        %v229 = vld [vmem:[%s188 + $0xe0] sm:$0xff]
        %v230 = vld [vmem:[%s188 + $0xe8] sm:$0xff]
        %v231 = vld [vmem:[%s188 + $0xf0] sm:$0xff]
        %v232 = vld [vmem:[%s188 + $0xf8] sm:$0xff]
        %v233 = vld [vmem:[%s188 + $0x100] sm:$0xff]
        %v234 = vld [vmem:[%s188 + $0x108] sm:$0xff]
        %v235 = vld [vmem:[%s188 + $0x110] sm:$0xff]
        %v236 = vld [vmem:[%s188 + $0x118] sm:$0xff]
        %v237 = vld [vmem:[%s188 + $0x120] sm:$0xff]
        %v238 = vld [vmem:[%s188 + $0x128] sm:$0xff]
        %v239 = vld [vmem:[%s188 + $0x130] sm:$0xff]
        %v240 = vld [vmem:[%s188 + $0x138] sm:$0xff]
        %v241 = vld [vmem:[%s188 + $0x140] sm:$0xff]
        %v242 = vld [vmem:[%s188 + $0x148] sm:$0xff]
        %v243 = vld [vmem:[%s188 + $0x150] sm:$0xff]
        %v244 = vld [vmem:[%s188 + $0x158] sm:$0xff]
        %v245 = vld [vmem:[%s188 + $0x160] sm:$0xff]
        %v246 = vld [vmem:[%s188 + $0x168] sm:$0xff]
        %v247 = vld [vmem:[%s188 + $0x170] sm:$0xff]
        %v248 = vld [vmem:[%s188 + $0x178] sm:$0xff]
        %v249 = vld [vmem:[%s188 + $0x180] sm:$0xff]
        %v250 = vld [vmem:[%s188 + $0x188] sm:$0xff]
        %v251 = vld [vmem:[%s188 + $0x190] sm:$0xff]
        %v252 = vld [vmem:[%s188 + $0x198] sm:$0xff]
        %v253 = vld [vmem:[%s188 + $0x1a0] sm:$0xff]
        %v254 = vld [vmem:[%s188 + $0x1a8] sm:$0xff]
        %v255 = vld [vmem:[%s188 + $0x1b0] sm:$0xff]
        %v256 = vld [vmem:[%s188 + $0x1b8] sm:$0xff]
        %v257 = vld [vmem:[%s188 + $0x1c0] sm:$0xff]
        %v258 = vld [vmem:[%s188 + $0x1c8] sm:$0xff]
        %v259 = vld [vmem:[%s188 + $0x1d0] sm:$0xff]
        %v260 = vld [vmem:[%s188 + $0x1d8] sm:$0xff]
        %v261 = vld [vmem:[%s188 + $0x1e0] sm:$0xff]
        %v262 = vld [vmem:[%s188 + $0x1e8] sm:$0xff]
        %v263 = vld [vmem:[%s188 + $0x1f0] sm:$0xff]
        %v264 = vld [vmem:[%s188 + $0x1f8] sm:$0xff]
        %v265 = vld [vmem:[%s188 + $0x200] sm:$0xff]
        %v266 = vld [vmem:[%s188 + $0x208] sm:$0xff]
        %v267 = vld [vmem:[%s188 + $0x210] sm:$0xff]
        %v268 = vld [vmem:[%s188 + $0x218] sm:$0xff]
        %v269 = vld [vmem:[%s188 + $0x220] sm:$0xff]
        %v270 = vld [vmem:[%s188 + $0x228] sm:$0xff]
        %v271 = vld [vmem:[%s188 + $0x230] sm:$0xff]
        %v272 = vld [vmem:[%s188 + $0x238] sm:$0xff]
        %v273 = vld [vmem:[%s188 + $0x240] sm:$0xff]
        %v274 = vld [vmem:[%s188 + $0x248] sm:$0xff]
        %v275 = vld [vmem:[%s188 + $0x250] sm:$0xff]
        %v276 = vld [vmem:[%s188 + $0x258] sm:$0xff]
        %v277 = vld [vmem:[%s188 + $0x260] sm:$0xff]
        %v278 = vld [vmem:[%s188 + $0x268] sm:$0xff]
        %v279 = vld [vmem:[%s188 + $0x270] sm:$0xff]
        %v280 = vld [vmem:[%s188 + $0x278] sm:$0xff]
        %v281 = vld [vmem:[%s188 + $0x280] sm:$0xff]
        %v282 = vld [vmem:[%s188 + $0x288] sm:$0xff]
        %v283 = vld [vmem:[%s188 + $0x290] sm:$0xff]
        %v284 = vld [vmem:[%s188 + $0x298] sm:$0xff]
        %v285 = vld [vmem:[%s188 + $0x2a0] sm:$0xff]
        %v286 = vld [vmem:[%s188 + $0x2a8] sm:$0xff]
        %v287 = vld [vmem:[%s188 + $0x2b0] sm:$0xff]
        %v288 = vld [vmem:[%s188 + $0x2b8] sm:$0xff]
        %v289 = vld [vmem:[%s188 + $0x2c0] sm:$0xff]
        %v290 = vld [vmem:[%s188 + $0x2c8] sm:$0xff]
        %v291 = vld [vmem:[%s188 + $0x2d0] sm:$0xff]
        %v292 = vld [vmem:[%s188 + $0x2d8] sm:$0xff]
        %v293 = vld [vmem:[%s188 + $0x2e0] sm:$0xff]
        %v294 = vld [vmem:[%s188 + $0x2e8] sm:$0xff]
        %v295 = vld [vmem:[%s188 + $0x2f0] sm:$0xff]
        %v296 = vld [vmem:[%s188 + $0x2f8] sm:$0xff]
        %v297 = vld [vmem:[%s188 + $0x300] sm:$0xff]
        %v298 = vld [vmem:[%s188 + $0x308] sm:$0xff]
        %v299 = vld [vmem:[%s188 + $0x310] sm:$0xff]
        %v300 = vld [vmem:[%s188 + $0x318] sm:$0xff]
        %v301 = vld [vmem:[%s188 + $0x320] sm:$0xff]
        %v302 = vld [vmem:[%s188 + $0x328] sm:$0xff]
        %v303 = vld [vmem:[%s188 + $0x330] sm:$0xff]
        %v304 = vld [vmem:[%s188 + $0x338] sm:$0xff]
        %v305 = vld [vmem:[%s188 + $0x340] sm:$0xff]
        %v306 = vld [vmem:[%s188 + $0x348] sm:$0xff]
        %v307 = vld [vmem:[%s188 + $0x350] sm:$0xff]
        %v308 = vld [vmem:[%s188 + $0x358] sm:$0xff]
        %v309 = vld [vmem:[%s188 + $0x360] sm:$0xff]
        %v310 = vld [vmem:[%s188 + $0x368] sm:$0xff]
        %v311 = vld [vmem:[%s188 + $0x370] sm:$0xff]
        %v312 = vld [vmem:[%s188 + $0x378] sm:$0xff]
        %v313 = vld [vmem:[%s188 + $0x380] sm:$0xff]
        %v314 = vld [vmem:[%s188 + $0x388] sm:$0xff]
        %v315 = vld [vmem:[%s188 + $0x390] sm:$0xff]
        %v316 = vld [vmem:[%s188 + $0x398] sm:$0xff]
        %v317 = vld [vmem:[%s188 + $0x3a0] sm:$0xff]
        %v318 = vld [vmem:[%s188 + $0x3a8] sm:$0xff]
        %v319 = vld [vmem:[%s188 + $0x3b0] sm:$0xff]
        %v320 = vld [vmem:[%s188 + $0x3b8] sm:$0xff]
        %v321 = vld [vmem:[%s188 + $0x3c0] sm:$0xff]
        %v322 = vld [vmem:[%s188 + $0x3c8] sm:$0xff]
        %v323 = vld [vmem:[%s188 + $0x3d0] sm:$0xff]
        %v324 = vld [vmem:[%s188 + $0x3d8] sm:$0xff]
        %v325 = vld [vmem:[%s188 + $0x3e0] sm:$0xff]
        %v326 = vld [vmem:[%s188 + $0x3e8] sm:$0xff]
        %v327 = vld [vmem:[%s188 + $0x3f0] sm:$0xff]
        %v328 = vld [vmem:[%s188 + $0x3f8] sm:$0xff]
        %v329 = vld [vmem:[%s188 + $0x400] sm:$0xff]
        %v330 = vld [vmem:[%s188 + $0x408] sm:$0xff]
        %v331 = vld [vmem:[%s188 + $0x410] sm:$0xff]
        %v332 = vld [vmem:[%s188 + $0x418] sm:$0xff]
        %v333 = vld [vmem:[%s188 + $0x420] sm:$0xff]
        %v334 = vld [vmem:[%s1] sm:$0xf]
        %v335 = vld [vmem:[%s1 + $0x4] sm:$0xf]
        %v336 = vld [vmem:[%s1 + $0x8] sm:$0xf]
        %v337 = vld [vmem:[%s1 + $0xc] sm:$0xf]
        %v338 = vld [vmem:[%s1 + $0x10] sm:$0xf]
        %v339 = vld [vmem:[%s1 + $0x14] sm:$0xf]
        %v340 = vld [vmem:[%s1 + $0x18] sm:$0xf]
        %v341 = vld [vmem:[%s1 + $0x1c] sm:$0xf]
        %v342 = vld [vmem:[%s1 + $0x20] sm:$0xf]
        %v343 = vld [vmem:[%s1 + $0x24] sm:$0xf]
        %v344 = vld [vmem:[%s1 + $0x28] sm:$0xf]
        %v345 = vld [vmem:[%s1 + $0x2c] sm:$0xf]
        %v346 = vld [vmem:[%s1 + $0x30] sm:$0xf]
        %v347 = vld [vmem:[%s1 + $0x34] sm:$0xf]
        %v348 = vld [vmem:[%s1 + $0x38] sm:$0xf]
        %v349 = vld [vmem:[%s1 + $0x3c] sm:$0xf]
        %v350 = vld [vmem:[%s1 + $0x40] sm:$0xf]
        %v351 = vld [vmem:[%s1 + $0x44] sm:$0xf]
        %v352 = vld [vmem:[%s2] sm:$0x1]
        %v354 = vlaneseq
        %v355 = vshrl.u32 %v354, 7
        %v356 = vsub.s32 0, %v355
        %v357 = vrot.slane %v352, %v356
        %v492 = vunpack.c.l.b16 %v201
        %v493 = vunpack.c.h.b16 %v201
        %v494 = vunpack.c.l.b16 %v202
        %v495 = vunpack.c.h.b16 %v202
        %v496 = vunpack.c.l.b16 %v203
        %v497 = vunpack.c.h.b16 %v203
        %v498 = vunpack.c.l.b16 %v204
        %v499 = vunpack.c.h.b16 %v204
        %v500 = vunpack.c.l.b16 %v205
        %v501 = vunpack.c.h.b16 %v205
        %v502 = vunpack.c.l.b16 %v206
        %v503 = vunpack.c.h.b16 %v206
        %v504 = vunpack.c.l.b16 %v207
        %v505 = vunpack.c.h.b16 %v207
        %v506 = vunpack.c.l.b16 %v208
        %v507 = vunpack.c.h.b16 %v208
        %v508 = vunpack.c.l.b16 %v209
        %v509 = vunpack.c.h.b16 %v209
        %v510 = vunpack.c.l.b16 %v210
        %v511 = vunpack.c.h.b16 %v210
        %v512 = vunpack.c.l.b16 %v211
        %v513 = vunpack.c.h.b16 %v211
        %v514 = vunpack.c.l.b16 %v212
        %v515 = vunpack.c.h.b16 %v212
        %v516 = vunpack.c.l.b16 %v213
        %v517 = vunpack.c.h.b16 %v213
        %v518 = vunpack.c.l.b16 %v214
        %v519 = vunpack.c.h.b16 %v214
        %v520 = vunpack.c.l.b16 %v215
        %v521 = vunpack.c.h.b16 %v215
        %v522 = vunpack.c.l.b16 %v216
        %v523 = vunpack.c.h.b16 %v216
        %v524 = vunpack.c.l.b16 %v217
        %v525 = vunpack.c.h.b16 %v217
        %v526 = vunpack.c.l.b16 %v218
        %v527 = vunpack.c.h.b16 %v218
        %v528 = vunpack.c.l.b16 %v219
        %v529 = vunpack.c.h.b16 %v219
        %v530 = vunpack.c.l.b16 %v220
        %v531 = vunpack.c.h.b16 %v220
        %v532 = vunpack.c.l.b16 %v221
        %v533 = vunpack.c.h.b16 %v221
        %v534 = vunpack.c.l.b16 %v222
        %v535 = vunpack.c.h.b16 %v222
        %v536 = vunpack.c.l.b16 %v223
        %v537 = vunpack.c.h.b16 %v223
        %v538 = vunpack.c.l.b16 %v224
        %v539 = vunpack.c.h.b16 %v224
        %v540 = vunpack.c.l.b16 %v225
        %v541 = vunpack.c.h.b16 %v225
        %v542 = vunpack.c.l.b16 %v226
        %v543 = vunpack.c.h.b16 %v226
        %v544 = vunpack.c.l.b16 %v227
        %v545 = vunpack.c.h.b16 %v227
        %v546 = vunpack.c.l.b16 %v228
        %v547 = vunpack.c.h.b16 %v228
        %v548 = vunpack.c.l.b16 %v229
        %v549 = vunpack.c.h.b16 %v229
        %v550 = vunpack.c.l.b16 %v230
        %v551 = vunpack.c.h.b16 %v230
        %v552 = vunpack.c.l.b16 %v231
        %v553 = vunpack.c.h.b16 %v231
        %v554 = vunpack.c.l.b16 %v232
        %v555 = vunpack.c.h.b16 %v232
        %v556 = vunpack.c.l.b16 %v233
        %v557 = vunpack.c.h.b16 %v233
        %v558 = vunpack.c.l.b16 %v234
        %v559 = vunpack.c.h.b16 %v234
        %v560 = vunpack.c.l.b16 %v235
        %v561 = vunpack.c.h.b16 %v235
        %v562 = vunpack.c.l.b16 %v236
        %v563 = vunpack.c.h.b16 %v236
        %v564 = vunpack.c.l.b16 %v237
        %v565 = vunpack.c.h.b16 %v237
        %v566 = vunpack.c.l.b16 %v238
        %v567 = vunpack.c.h.b16 %v238
        %v568 = vunpack.c.l.b16 %v239
        %v569 = vunpack.c.h.b16 %v239
        %v570 = vunpack.c.l.b16 %v240
        %v571 = vunpack.c.h.b16 %v240
        %v572 = vunpack.c.l.b16 %v241
        %v573 = vunpack.c.h.b16 %v241
        %v574 = vunpack.c.l.b16 %v242
        %v575 = vunpack.c.h.b16 %v242
        %v576 = vunpack.c.l.b16 %v243
        %v577 = vunpack.c.h.b16 %v243
        %v578 = vunpack.c.l.b16 %v244
        %v579 = vunpack.c.h.b16 %v244
        %v580 = vunpack.c.l.b16 %v245
        %v581 = vunpack.c.h.b16 %v245
        %v582 = vunpack.c.l.b16 %v246
        %v583 = vunpack.c.h.b16 %v246
        %v584 = vunpack.c.l.b16 %v247
        %v585 = vunpack.c.h.b16 %v247
        %v586 = vunpack.c.l.b16 %v248
        %v587 = vunpack.c.h.b16 %v248
        %v588 = vunpack.c.l.b16 %v249
        %v589 = vunpack.c.h.b16 %v249
        %v590 = vunpack.c.l.b16 %v250
        %v591 = vunpack.c.h.b16 %v250
        %v592 = vunpack.c.l.b16 %v251
        %v593 = vunpack.c.h.b16 %v251
        %v594 = vunpack.c.l.b16 %v252
        %v595 = vunpack.c.h.b16 %v252
        %v596 = vunpack.c.l.b16 %v253
        %v597 = vunpack.c.h.b16 %v253
        %v598 = vunpack.c.l.b16 %v254
        %v599 = vunpack.c.h.b16 %v254
        %v600 = vunpack.c.l.b16 %v255
        %v601 = vunpack.c.h.b16 %v255
        %v602 = vunpack.c.l.b16 %v256
        %v603 = vunpack.c.h.b16 %v256
        %v604 = vunpack.c.l.b16 %v257
        %v605 = vunpack.c.h.b16 %v257
        %v606 = vunpack.c.l.b16 %v258
        %v607 = vunpack.c.h.b16 %v258
        %v608 = vunpack.c.l.b16 %v259
        %v609 = vunpack.c.h.b16 %v259
        %v610 = vunpack.c.l.b16 %v260
        %v611 = vunpack.c.h.b16 %v260
        %v612 = vunpack.c.l.b16 %v261
        %v613 = vunpack.c.h.b16 %v261
        %v614 = vunpack.c.l.b16 %v262
        %v615 = vunpack.c.h.b16 %v262
        %v616 = vunpack.c.l.b16 %v263
        %v617 = vunpack.c.h.b16 %v263
        %v618 = vunpack.c.l.b16 %v264
        %v619 = vunpack.c.h.b16 %v264
        %v620 = vunpack.c.l.b16 %v265
        %v621 = vunpack.c.h.b16 %v265
        %v622 = vunpack.c.l.b16 %v266
        %v623 = vunpack.c.h.b16 %v266
        %v624 = vunpack.c.l.b16 %v267
        %v625 = vunpack.c.h.b16 %v267
        %v626 = vunpack.c.l.b16 %v268
        %v627 = vunpack.c.h.b16 %v268
        %v628 = vunpack.c.l.b16 %v269
        %v629 = vunpack.c.h.b16 %v269
        %v630 = vunpack.c.l.b16 %v270
        %v631 = vunpack.c.h.b16 %v270
        %v632 = vunpack.c.l.b16 %v271
        %v633 = vunpack.c.h.b16 %v271
        %v634 = vunpack.c.l.b16 %v272
        %v635 = vunpack.c.h.b16 %v272
        %v636 = vunpack.c.l.b16 %v273
        %v637 = vunpack.c.h.b16 %v273
        %v638 = vunpack.c.l.b16 %v274
        %v639 = vunpack.c.h.b16 %v274
        %v640 = vunpack.c.l.b16 %v275
        %v641 = vunpack.c.h.b16 %v275
        %v642 = vunpack.c.l.b16 %v276
        %v643 = vunpack.c.h.b16 %v276
        %v644 = vunpack.c.l.b16 %v277
        %v645 = vunpack.c.h.b16 %v277
        %v646 = vunpack.c.l.b16 %v278
        %v647 = vunpack.c.h.b16 %v278
        %v648 = vunpack.c.l.b16 %v279
        %v649 = vunpack.c.h.b16 %v279
        %v650 = vunpack.c.l.b16 %v280
        %v651 = vunpack.c.h.b16 %v280
        %v652 = vunpack.c.l.b16 %v281
        %v653 = vunpack.c.h.b16 %v281
        %v654 = vunpack.c.l.b16 %v282
        %v655 = vunpack.c.h.b16 %v282
        %v656 = vunpack.c.l.b16 %v283
        %v657 = vunpack.c.h.b16 %v283
        %v658 = vunpack.c.l.b16 %v284
        %v659 = vunpack.c.h.b16 %v284
        %v660 = vunpack.c.l.b16 %v285
        %v661 = vunpack.c.h.b16 %v285
        %v662 = vunpack.c.l.b16 %v286
        %v663 = vunpack.c.h.b16 %v286
        %v664 = vunpack.c.l.b16 %v287
        %v665 = vunpack.c.h.b16 %v287
        %v666 = vunpack.c.l.b16 %v288
        %v667 = vunpack.c.h.b16 %v288
        %v668 = vunpack.c.l.b16 %v289
        %v669 = vunpack.c.h.b16 %v289
        %v670 = vunpack.c.l.b16 %v290
        %v671 = vunpack.c.h.b16 %v290
        %v672 = vunpack.c.l.b16 %v291
        %v673 = vunpack.c.h.b16 %v291
        %v674 = vunpack.c.l.b16 %v292
        %v675 = vunpack.c.h.b16 %v292
        %v676 = vunpack.c.l.b16 %v293
        %v677 = vunpack.c.h.b16 %v293
        %v678 = vunpack.c.l.b16 %v294
        %v679 = vunpack.c.h.b16 %v294
        %v680 = vunpack.c.l.b16 %v295
        %v681 = vunpack.c.h.b16 %v295
        %v682 = vunpack.c.l.b16 %v296
        %v683 = vunpack.c.h.b16 %v296
        %v684 = vunpack.c.l.b16 %v297
        %v685 = vunpack.c.h.b16 %v297
        %v686 = vunpack.c.l.b16 %v298
        %v687 = vunpack.c.h.b16 %v298
        %v688 = vunpack.c.l.b16 %v299
        %v689 = vunpack.c.h.b16 %v299
        %v690 = vunpack.c.l.b16 %v300
        %v691 = vunpack.c.h.b16 %v300
        %v692 = vunpack.c.l.b16 %v301
        %v693 = vunpack.c.h.b16 %v301
        %v694 = vunpack.c.l.b16 %v302
        %v695 = vunpack.c.h.b16 %v302
        %v696 = vunpack.c.l.b16 %v303
        %v697 = vunpack.c.h.b16 %v303
        %v698 = vunpack.c.l.b16 %v304
        %v699 = vunpack.c.h.b16 %v304
        %v700 = vunpack.c.l.b16 %v305
        %v701 = vunpack.c.h.b16 %v305
        %v702 = vunpack.c.l.b16 %v306
        %v703 = vunpack.c.h.b16 %v306
        %v704 = vunpack.c.l.b16 %v307
        %v705 = vunpack.c.h.b16 %v307
        %v706 = vunpack.c.l.b16 %v308
        %v707 = vunpack.c.h.b16 %v308
        %v708 = vunpack.c.l.b16 %v309
        %v709 = vunpack.c.h.b16 %v309
        %v710 = vunpack.c.l.b16 %v310
        %v711 = vunpack.c.h.b16 %v310
        %v712 = vunpack.c.l.b16 %v311
        %v713 = vunpack.c.h.b16 %v311
        %v714 = vunpack.c.l.b16 %v312
        %v715 = vunpack.c.h.b16 %v312
        %v716 = vunpack.c.l.b16 %v313
        %v717 = vunpack.c.h.b16 %v313
        %v718 = vunpack.c.l.b16 %v314
        %v719 = vunpack.c.h.b16 %v314
        %v720 = vunpack.c.l.b16 %v315
        %v721 = vunpack.c.h.b16 %v315
        %v722 = vunpack.c.l.b16 %v316
        %v723 = vunpack.c.h.b16 %v316
        %v724 = vunpack.c.l.b16 %v317
        %v725 = vunpack.c.h.b16 %v317
        %v726 = vunpack.c.l.b16 %v318
        %v727 = vunpack.c.h.b16 %v318
        %v728 = vunpack.c.l.b16 %v319
        %v729 = vunpack.c.h.b16 %v319
        %v730 = vunpack.c.l.b16 %v320
        %v731 = vunpack.c.h.b16 %v320
        %v732 = vunpack.c.l.b16 %v321
        %v733 = vunpack.c.h.b16 %v321
        %v734 = vunpack.c.l.b16 %v322
        %v735 = vunpack.c.h.b16 %v322
        %v736 = vunpack.c.l.b16 %v323
        %v737 = vunpack.c.h.b16 %v323
        %v738 = vunpack.c.l.b16 %v324
        %v739 = vunpack.c.h.b16 %v324
        %v740 = vunpack.c.l.b16 %v325
        %v741 = vunpack.c.h.b16 %v325
        %v742 = vunpack.c.l.b16 %v326
        %v743 = vunpack.c.h.b16 %v326
        %v744 = vunpack.c.l.b16 %v327
        %v745 = vunpack.c.h.b16 %v327
        %v746 = vunpack.c.l.b16 %v328
        %v747 = vunpack.c.h.b16 %v328
        %v748 = vunpack.c.l.b16 %v329
        %v749 = vunpack.c.h.b16 %v329
        %v750 = vunpack.c.l.b16 %v330
        %v751 = vunpack.c.h.b16 %v330
        %v752 = vunpack.c.l.b16 %v331
        %v753 = vunpack.c.h.b16 %v331
        %v754 = vunpack.c.l.b16 %v332
        %v755 = vunpack.c.h.b16 %v332
        %v756 = vunpack.c.l.b16 %v333
        %v757 = vunpack.c.h.b16 %v333
        %v758 = vpack.c.b16 %v494, %v492
        %v759 = vpack.c.b16 %v495, %v493
        %v760 = vpack.c.b16 %v498, %v496
        %v761 = vpack.c.b16 %v499, %v497
        %v762 = vpack.c.b16 %v502, %v500
        %v763 = vpack.c.b16 %v503, %v501
        %v764 = vpack.c.b16 %v506, %v504
        %v765 = vpack.c.b16 %v507, %v505
        %v766 = vpack.c.b16 %v510, %v508
        %v767 = vpack.c.b16 %v511, %v509
        %v768 = vpack.c.b16 %v514, %v512
        %v769 = vpack.c.b16 %v515, %v513
        %v770 = vpack.c.b16 %v518, %v516
        %v771 = vpack.c.b16 %v519, %v517
        %v772 = vpack.c.b16 %v522, %v520
        %v773 = vpack.c.b16 %v523, %v521
        %v774 = vpack.c.b16 %v526, %v524
        %v775 = vpack.c.b16 %v527, %v525
        %v776 = vpack.c.b16 %v530, %v528
        %v777 = vpack.c.b16 %v531, %v529
        %v778 = vpack.c.b16 %v534, %v532
        %v779 = vpack.c.b16 %v535, %v533
        %v780 = vpack.c.b16 %v538, %v536
        %v781 = vpack.c.b16 %v539, %v537
        %v782 = vpack.c.b16 %v542, %v540
        %v783 = vpack.c.b16 %v543, %v541
        %v784 = vpack.c.b16 %v546, %v544
        %v785 = vpack.c.b16 %v547, %v545
        %v786 = vpack.c.b16 %v550, %v548
        %v787 = vpack.c.b16 %v551, %v549
        %v788 = vpack.c.b16 %v554, %v552
        %v789 = vpack.c.b16 %v555, %v553
        %v790 = vpack.c.b16 %v558, %v556
        %v791 = vpack.c.b16 %v559, %v557
        %v792 = vpack.c.b16 %v562, %v560
        %v793 = vpack.c.b16 %v563, %v561
        %v794 = vpack.c.b16 %v566, %v564
        %v795 = vpack.c.b16 %v567, %v565
        %v796 = vpack.c.b16 %v570, %v568
        %v797 = vpack.c.b16 %v571, %v569
        %v798 = vpack.c.b16 %v574, %v572
        %v799 = vpack.c.b16 %v575, %v573
        %v800 = vpack.c.b16 %v578, %v576
        %v801 = vpack.c.b16 %v579, %v577
        %v802 = vpack.c.b16 %v582, %v580
        %v803 = vpack.c.b16 %v583, %v581
        %v804 = vpack.c.b16 %v586, %v584
        %v805 = vpack.c.b16 %v587, %v585
        %v806 = vpack.c.b16 %v590, %v588
        %v807 = vpack.c.b16 %v591, %v589
        %v808 = vpack.c.b16 %v594, %v592
        %v809 = vpack.c.b16 %v595, %v593
        %v810 = vpack.c.b16 %v598, %v596
        %v811 = vpack.c.b16 %v599, %v597
        %v812 = vpack.c.b16 %v602, %v600
        %v813 = vpack.c.b16 %v603, %v601
        %v814 = vpack.c.b16 %v606, %v604
        %v815 = vpack.c.b16 %v607, %v605
        %v816 = vpack.c.b16 %v610, %v608
        %v817 = vpack.c.b16 %v611, %v609
        %v818 = vpack.c.b16 %v614, %v612
        %v819 = vpack.c.b16 %v615, %v613
        %v820 = vpack.c.b16 %v618, %v616
        %v821 = vpack.c.b16 %v619, %v617
        %v822 = vpack.c.b16 %v622, %v620
        %v823 = vpack.c.b16 %v623, %v621
        %v824 = vpack.c.b16 %v626, %v624
        %v825 = vpack.c.b16 %v627, %v625
        %v826 = vpack.c.b16 %v630, %v628
        %v827 = vpack.c.b16 %v631, %v629
        %v828 = vpack.c.b16 %v634, %v632
        %v829 = vpack.c.b16 %v635, %v633
        %v830 = vpack.c.b16 %v638, %v636
        %v831 = vpack.c.b16 %v639, %v637
        %v832 = vpack.c.b16 %v642, %v640
        %v833 = vpack.c.b16 %v643, %v641
        %v834 = vpack.c.b16 %v646, %v644
        %v835 = vpack.c.b16 %v647, %v645
        %v836 = vpack.c.b16 %v650, %v648
        %v837 = vpack.c.b16 %v651, %v649
        %v838 = vpack.c.b16 %v654, %v652
        %v839 = vpack.c.b16 %v655, %v653
        %v840 = vpack.c.b16 %v658, %v656
        %v841 = vpack.c.b16 %v659, %v657
        %v842 = vpack.c.b16 %v662, %v660
        %v843 = vpack.c.b16 %v663, %v661
        %v844 = vpack.c.b16 %v666, %v664
        %v845 = vpack.c.b16 %v667, %v665
        %v846 = vpack.c.b16 %v670, %v668
        %v847 = vpack.c.b16 %v671, %v669
        %v848 = vpack.c.b16 %v674, %v672
        %v849 = vpack.c.b16 %v675, %v673
        %v850 = vpack.c.b16 %v678, %v676
        %v851 = vpack.c.b16 %v679, %v677
        %v852 = vpack.c.b16 %v682, %v680
        %v853 = vpack.c.b16 %v683, %v681
        %v854 = vpack.c.b16 %v686, %v684
        %v855 = vpack.c.b16 %v687, %v685
        %v856 = vpack.c.b16 %v690, %v688
        %v857 = vpack.c.b16 %v691, %v689
        %v858 = vpack.c.b16 %v694, %v692
        %v859 = vpack.c.b16 %v695, %v693
        %v860 = vpack.c.b16 %v698, %v696
        %v861 = vpack.c.b16 %v699, %v697
        %v862 = vpack.c.b16 %v702, %v700
        %v863 = vpack.c.b16 %v703, %v701
        %v864 = vpack.c.b16 %v706, %v704
        %v865 = vpack.c.b16 %v707, %v705
        %v866 = vpack.c.b16 %v710, %v708
        %v867 = vpack.c.b16 %v711, %v709
        %v868 = vpack.c.b16 %v714, %v712
        %v869 = vpack.c.b16 %v715, %v713
        %v870 = vpack.c.b16 %v718, %v716
        %v871 = vpack.c.b16 %v719, %v717
        %v872 = vpack.c.b16 %v722, %v720
        %v873 = vpack.c.b16 %v723, %v721
        %v874 = vpack.c.b16 %v726, %v724
        %v875 = vpack.c.b16 %v727, %v725
        %v876 = vpack.c.b16 %v730, %v728
        %v877 = vpack.c.b16 %v731, %v729
        %v878 = vpack.c.b16 %v734, %v732
        %v879 = vpack.c.b16 %v735, %v733
        %v880 = vpack.c.b16 %v738, %v736
        %v881 = vpack.c.b16 %v739, %v737
        %v882 = vpack.c.b16 %v742, %v740
        %v883 = vpack.c.b16 %v743, %v741
        %v884 = vpack.c.b16 %v746, %v744
        %v885 = vpack.c.b16 %v747, %v745
        %v886 = vpack.c.b16 %v750, %v748
        %v887 = vpack.c.b16 %v751, %v749
        %v888 = vpack.c.b16 %v754, %v752
        %v889 = vpack.c.b16 %v755, %v753
        %v890 = vpack.c.b16 %v756, %v756
        %v891 = vpack.c.b16 %v757, %v757
        %v977 = vunpack.c.l.b16 %v334
        %v978 = vunpack.c.l.b16 %v335
        %v979 = vunpack.c.l.b16 %v336
        %v980 = vunpack.c.l.b16 %v337
        %v981 = vunpack.c.l.b16 %v338
        %v982 = vunpack.c.l.b16 %v339
        %v983 = vunpack.c.l.b16 %v340
        %v984 = vunpack.c.l.b16 %v341
        %v985 = vunpack.c.l.b16 %v342
        %v986 = vunpack.c.l.b16 %v343
        %v987 = vunpack.c.l.b16 %v344
        %v988 = vunpack.c.l.b16 %v345
        %v989 = vunpack.c.l.b16 %v346
        %v990 = vunpack.c.l.b16 %v347
        %v991 = vunpack.c.l.b16 %v348
        %v992 = vunpack.c.l.b16 %v349
        %v993 = vunpack.c.l.b16 %v350
        %v994 = vunpack.c.l.b16 %v351
        %v995 = vpack.c.b16 %v978, %v977
        %v996 = vpack.c.b16 %v980, %v979
        %v997 = vpack.c.b16 %v982, %v981
        %v998 = vpack.c.b16 %v984, %v983
        %v999 = vpack.c.b16 %v986, %v985
        %v1000 = vpack.c.b16 %v988, %v987
        %v1001 = vpack.c.b16 %v990, %v989
        %v1002 = vpack.c.b16 %v992, %v991
        %v1003 = vpack.c.b16 %v994, %v993
        %vm1013 = vcmask 130048
        %v1015 = vsel %vm1013, %v759, 0
        %v1018 = vsel %vm1013, %v761, 0
        %v1021 = vsel %vm1013, %v763, 0
        %v1024 = vsel %vm1013, %v765, 0
        %v1027 = vsel %vm1013, %v767, 0
        %v1030 = vsel %vm1013, %v769, 0
        %v1033 = vsel %vm1013, %v771, 0
        %v1036 = vsel %vm1013, %v773, 0
        %v1039 = vsel %vm1013, %v775, 0
        %v1042 = vsel %vm1013, %v777, 0
        %v1045 = vsel %vm1013, %v779, 0
        %v1048 = vsel %vm1013, %v781, 0
        %v1051 = vsel %vm1013, %v783, 0
        %v1054 = vsel %vm1013, %v785, 0
        %v1057 = vsel %vm1013, %v787, 0
        %v1060 = vsel %vm1013, %v789, 0
        %v1063 = vsel %vm1013, %v791, 0
        %v1066 = vsel %vm1013, %v793, 0
        %v1069 = vsel %vm1013, %v795, 0
        %v1072 = vsel %vm1013, %v797, 0
        %v1075 = vsel %vm1013, %v799, 0
        %v1078 = vsel %vm1013, %v801, 0
        %v1081 = vsel %vm1013, %v803, 0
        %v1084 = vsel %vm1013, %v805, 0
        %v1087 = vsel %vm1013, %v807, 0
        %v1090 = vsel %vm1013, %v809, 0
        %v1093 = vsel %vm1013, %v811, 0
        %v1096 = vsel %vm1013, %v813, 0
        %v1099 = vsel %vm1013, %v815, 0
        %v1102 = vsel %vm1013, %v817, 0
        %v1105 = vsel %vm1013, %v819, 0
        %v1108 = vsel %vm1013, %v821, 0
        %v1111 = vsel %vm1013, %v823, 0
        %v1114 = vsel %vm1013, %v825, 0
        %v1117 = vsel %vm1013, %v827, 0
        %v1120 = vsel %vm1013, %v829, 0
        %v1123 = vsel %vm1013, %v831, 0
        %v1126 = vsel %vm1013, %v833, 0
        %v1129 = vsel %vm1013, %v835, 0
        %v1132 = vsel %vm1013, %v837, 0
        %v1135 = vsel %vm1013, %v839, 0
        %v1138 = vsel %vm1013, %v841, 0
        %v1141 = vsel %vm1013, %v843, 0
        %v1144 = vsel %vm1013, %v845, 0
        %v1147 = vsel %vm1013, %v847, 0
        %v1150 = vsel %vm1013, %v849, 0
        %v1153 = vsel %vm1013, %v851, 0
        %v1156 = vsel %vm1013, %v853, 0
        %v1159 = vsel %vm1013, %v855, 0
        %v1162 = vsel %vm1013, %v857, 0
        %v1165 = vsel %vm1013, %v859, 0
        %v1168 = vsel %vm1013, %v861, 0
        %v1171 = vsel %vm1013, %v863, 0
        %v1174 = vsel %vm1013, %v865, 0
        %v1177 = vsel %vm1013, %v867, 0
        %v1180 = vsel %vm1013, %v869, 0
        %v1183 = vsel %vm1013, %v871, 0
        %v1186 = vsel %vm1013, %v873, 0
        %v1189 = vsel %vm1013, %v875, 0
        %v1192 = vsel %vm1013, %v877, 0
        %v1195 = vsel %vm1013, %v879, 0
        %v1198 = vsel %vm1013, %v881, 0
        %v1201 = vsel %vm1013, %v883, 0
        %v1204 = vsel %vm1013, %v885, 0
        %v1207 = vsel %vm1013, %v887, 0
        %v1210 = vsel %vm1013, %v889, 0
        %v1213 = vsel %vm1013, %v891, 0
        %1215 = vmatprep.subr.bf16.mxu0 0
        %1216 = vmatpush1.bf16.msra.mxu0 %v1002
        %1217 = vmatprep.subr.bf16.mxu0 0
        %1218 = vmatpush1.bf16.msra.mxu0 %v1001
        %1219 = vmatprep.subr.bf16.mxu0 0
        %1220 = vmatpush1.bf16.msra.mxu0 %v1000
        %1221 = vmatprep.subr.bf16.mxu0 0
        %1222 = vmatpush1.bf16.msra.mxu0 %v999
        %1223 = vmatprep.subr.bf16.mxu0 0
        %1224 = vmatpush1.bf16.msra.mxu0 %v998
        %1225 = vmatprep.subr.bf16.mxu0 0
        %1226 = vmatpush1.bf16.msra.mxu0 %v997
        %1227 = vmatprep.subr.bf16.mxu0 0
        %1228 = vmatpush1.bf16.msra.mxu0 %v996
        %1229 = vmatprep.subr.bf16.mxu0 0
        %1230 = vmatpush1.bf16.msra.mxu0 %v995
        %1231 = vmatprep.subr.bf16.mxu0 0
        %1232 = vmatpush2.bf16.msra.mxu0 0
        %1233 = vmatprep.subr.bf16.mxu0 0
        %1234 = vmatpush2.bf16.msra.mxu0 0
        %1235 = vmatprep.subr.bf16.mxu0 0
        %1236 = vmatpush2.bf16.msra.mxu0 0
        %1237 = vmatprep.subr.bf16.mxu0 0
        %1238 = vmatpush2.bf16.msra.mxu0 0
        %1239 = vmatprep.subr.bf16.mxu0 0
        %1240 = vmatpush2.bf16.msra.mxu0 0
        %1241 = vmatprep.subr.bf16.mxu0 0
        %1242 = vmatpush2.bf16.msra.mxu0 0
        %1243 = vmatprep.subr.bf16.mxu0 0
        %1244 = vmatpush2.bf16.msra.mxu0 0
        %1245 = vmatprep.subr.bf16.mxu0 0
        %1246 = vmatpush2.bf16.msra.mxu0 %v1003
        %1247 = vmatprep.mubr.bf16.mxu0 %v1015
        %1248 = vmatmul.mubr.bf16.gmra.mxu0 %v758
        %v1249 = vpop.f32.mrf.mxu0
        %v1250 = vadd.f32 %v357, %v1249
        %v1251 = vpop.f32.mrf.mxu0
        %v1252 = vpop.f32.mrf.mxu0
        %v1253 = vadd.f32 %v357, %v1252
        %v1254 = vpop.f32.mrf.mxu0
        %1255 = vmatprep.mubr.bf16.mxu0 %v1018
        %1256 = vmatmul.mubr.bf16.gmra.mxu0 %v760
        %v1257 = vpop.f32.mrf.mxu0
        %v1258 = vadd.f32 %v357, %v1257
        %v1259 = vpop.f32.mrf.mxu0
        %v1260 = vpop.f32.mrf.mxu0
        %v1261 = vadd.f32 %v357, %v1260
        %v1262 = vpop.f32.mrf.mxu0
        %1263 = vmatprep.mubr.bf16.mxu0 %v1021
        %1264 = vmatmul.mubr.bf16.gmra.mxu0 %v762
        %v1265 = vpop.f32.mrf.mxu0
        %v1266 = vadd.f32 %v357, %v1265
        %v1267 = vpop.f32.mrf.mxu0
        %v1268 = vpop.f32.mrf.mxu0
        %v1269 = vadd.f32 %v357, %v1268
        %v1270 = vpop.f32.mrf.mxu0
        %1271 = vmatprep.mubr.bf16.mxu0 %v1024
        %1272 = vmatmul.mubr.bf16.gmra.mxu0 %v764
        %v1273 = vpop.f32.mrf.mxu0
        %v1274 = vadd.f32 %v357, %v1273
        %v1275 = vpop.f32.mrf.mxu0
        %v1276 = vpop.f32.mrf.mxu0
        %v1277 = vadd.f32 %v357, %v1276
        %v1278 = vpop.f32.mrf.mxu0
        %1279 = vmatprep.mubr.bf16.mxu0 %v1027
        %1280 = vmatmul.mubr.bf16.gmra.mxu0 %v766
        %v1281 = vpop.f32.mrf.mxu0
        %v1282 = vadd.f32 %v357, %v1281
        %v1283 = vpop.f32.mrf.mxu0
        %v1284 = vpop.f32.mrf.mxu0
        %v1285 = vadd.f32 %v357, %v1284
        %v1286 = vpop.f32.mrf.mxu0
        %1287 = vmatprep.mubr.bf16.mxu0 %v1030
        %1288 = vmatmul.mubr.bf16.gmra.mxu0 %v768
        %v1289 = vpop.f32.mrf.mxu0
        %v1290 = vadd.f32 %v357, %v1289
        %v1291 = vpop.f32.mrf.mxu0
        %v1292 = vpop.f32.mrf.mxu0
        %v1293 = vadd.f32 %v357, %v1292
        %v1294 = vpop.f32.mrf.mxu0
        %1295 = vmatprep.mubr.bf16.mxu0 %v1033
        %1296 = vmatmul.mubr.bf16.gmra.mxu0 %v770
        %v1297 = vpop.f32.mrf.mxu0
        %v1298 = vadd.f32 %v357, %v1297
        %v1299 = vpop.f32.mrf.mxu0
        %v1300 = vpop.f32.mrf.mxu0
        %v1301 = vadd.f32 %v357, %v1300
        %v1302 = vpop.f32.mrf.mxu0
        %1303 = vmatprep.mubr.bf16.mxu0 %v1036
        %1304 = vmatmul.mubr.bf16.gmra.mxu0 %v772
        %v1305 = vpop.f32.mrf.mxu0
        %v1306 = vadd.f32 %v357, %v1305
        %v1307 = vpop.f32.mrf.mxu0
        %v1308 = vpop.f32.mrf.mxu0
        %v1309 = vadd.f32 %v357, %v1308
        %v1310 = vpop.f32.mrf.mxu0
        %1311 = vmatprep.mubr.bf16.mxu0 %v1039
        %1312 = vmatmul.mubr.bf16.gmra.mxu0 %v774
        %v1313 = vpop.f32.mrf.mxu0
        %v1314 = vadd.f32 %v357, %v1313
        %v1315 = vpop.f32.mrf.mxu0
        %v1316 = vpop.f32.mrf.mxu0
        %v1317 = vadd.f32 %v357, %v1316
        %v1318 = vpop.f32.mrf.mxu0
        %1319 = vmatprep.mubr.bf16.mxu0 %v1042
        %1320 = vmatmul.mubr.bf16.gmra.mxu0 %v776
        %v1321 = vpop.f32.mrf.mxu0
        %v1322 = vadd.f32 %v357, %v1321
        %v1323 = vpop.f32.mrf.mxu0
        %v1324 = vpop.f32.mrf.mxu0
        %v1325 = vadd.f32 %v357, %v1324
        %v1326 = vpop.f32.mrf.mxu0
        %1327 = vmatprep.mubr.bf16.mxu0 %v1045
        %1328 = vmatmul.mubr.bf16.gmra.mxu0 %v778
        %v1329 = vpop.f32.mrf.mxu0
        %v1330 = vadd.f32 %v357, %v1329
        %v1331 = vpop.f32.mrf.mxu0
        %v1332 = vpop.f32.mrf.mxu0
        %v1333 = vadd.f32 %v357, %v1332
        %v1334 = vpop.f32.mrf.mxu0
        %1335 = vmatprep.mubr.bf16.mxu0 %v1048
        %1336 = vmatmul.mubr.bf16.gmra.mxu0 %v780
        %v1337 = vpop.f32.mrf.mxu0
        %v1338 = vadd.f32 %v357, %v1337
        %v1339 = vpop.f32.mrf.mxu0
        %v1340 = vpop.f32.mrf.mxu0
        %v1341 = vadd.f32 %v357, %v1340
        %v1342 = vpop.f32.mrf.mxu0
        %1343 = vmatprep.mubr.bf16.mxu0 %v1051
        %1344 = vmatmul.mubr.bf16.gmra.mxu0 %v782
        %v1345 = vpop.f32.mrf.mxu0
        %v1346 = vadd.f32 %v357, %v1345
        %v1347 = vpop.f32.mrf.mxu0
        %v1348 = vpop.f32.mrf.mxu0
        %v1349 = vadd.f32 %v357, %v1348
        %v1350 = vpop.f32.mrf.mxu0
        %1351 = vmatprep.mubr.bf16.mxu0 %v1054
        %1352 = vmatmul.mubr.bf16.gmra.mxu0 %v784
        %v1353 = vpop.f32.mrf.mxu0
        %v1354 = vadd.f32 %v357, %v1353
        %v1355 = vpop.f32.mrf.mxu0
        %v1356 = vpop.f32.mrf.mxu0
        %v1357 = vadd.f32 %v357, %v1356
        %v1358 = vpop.f32.mrf.mxu0
        %1359 = vmatprep.mubr.bf16.mxu0 %v1057
        %1360 = vmatmul.mubr.bf16.gmra.mxu0 %v786
        %v1361 = vpop.f32.mrf.mxu0
        %v1362 = vadd.f32 %v357, %v1361
        %v1363 = vpop.f32.mrf.mxu0
        %v1364 = vpop.f32.mrf.mxu0
        %v1365 = vadd.f32 %v357, %v1364
        %v1366 = vpop.f32.mrf.mxu0
        %1367 = vmatprep.mubr.bf16.mxu0 %v1060
        %1368 = vmatmul.mubr.bf16.gmra.mxu0 %v788
        %v1369 = vpop.f32.mrf.mxu0
        %v1370 = vadd.f32 %v357, %v1369
        %v1371 = vpop.f32.mrf.mxu0
        %v1372 = vpop.f32.mrf.mxu0
        %v1373 = vadd.f32 %v357, %v1372
        %v1374 = vpop.f32.mrf.mxu0
        %1375 = vmatprep.mubr.bf16.mxu0 %v1063
        %1376 = vmatmul.mubr.bf16.gmra.mxu0 %v790
        %v1377 = vpop.f32.mrf.mxu0
        %v1378 = vadd.f32 %v357, %v1377
        %v1379 = vpop.f32.mrf.mxu0
        %v1380 = vpop.f32.mrf.mxu0
        %v1381 = vadd.f32 %v357, %v1380
        %v1382 = vpop.f32.mrf.mxu0
        %1383 = vmatprep.mubr.bf16.mxu0 %v1066
        %1384 = vmatmul.mubr.bf16.gmra.mxu0 %v792
        %v1385 = vpop.f32.mrf.mxu0
        %v1386 = vadd.f32 %v357, %v1385
        %v1387 = vpop.f32.mrf.mxu0
        %v1388 = vpop.f32.mrf.mxu0
        %v1389 = vadd.f32 %v357, %v1388
        %v1390 = vpop.f32.mrf.mxu0
        %1391 = vmatprep.mubr.bf16.mxu0 %v1069
        %1392 = vmatmul.mubr.bf16.gmra.mxu0 %v794
        %v1393 = vpop.f32.mrf.mxu0
        %v1394 = vadd.f32 %v357, %v1393
        %v1395 = vpop.f32.mrf.mxu0
        %v1396 = vpop.f32.mrf.mxu0
        %v1397 = vadd.f32 %v357, %v1396
        %v1398 = vpop.f32.mrf.mxu0
        %1399 = vmatprep.mubr.bf16.mxu0 %v1072
        %1400 = vmatmul.mubr.bf16.gmra.mxu0 %v796
        %v1401 = vpop.f32.mrf.mxu0
        %v1402 = vadd.f32 %v357, %v1401
        %v1403 = vpop.f32.mrf.mxu0
        %v1404 = vpop.f32.mrf.mxu0
        %v1405 = vadd.f32 %v357, %v1404
        %v1406 = vpop.f32.mrf.mxu0
        %1407 = vmatprep.mubr.bf16.mxu0 %v1075
        %1408 = vmatmul.mubr.bf16.gmra.mxu0 %v798
        %v1409 = vpop.f32.mrf.mxu0
        %v1410 = vadd.f32 %v357, %v1409
        %v1411 = vpop.f32.mrf.mxu0
        %v1412 = vpop.f32.mrf.mxu0
        %v1413 = vadd.f32 %v357, %v1412
        %v1414 = vpop.f32.mrf.mxu0
        %1415 = vmatprep.mubr.bf16.mxu0 %v1078
        %1416 = vmatmul.mubr.bf16.gmra.mxu0 %v800
        %v1417 = vpop.f32.mrf.mxu0
        %v1418 = vadd.f32 %v357, %v1417
        %v1419 = vpop.f32.mrf.mxu0
        %v1420 = vpop.f32.mrf.mxu0
        %v1421 = vadd.f32 %v357, %v1420
        %v1422 = vpop.f32.mrf.mxu0
        %1423 = vmatprep.mubr.bf16.mxu0 %v1081
        %1424 = vmatmul.mubr.bf16.gmra.mxu0 %v802
        %v1425 = vpop.f32.mrf.mxu0
        %v1426 = vadd.f32 %v357, %v1425
        %v1427 = vpop.f32.mrf.mxu0
        %v1428 = vpop.f32.mrf.mxu0
        %v1429 = vadd.f32 %v357, %v1428
        %v1430 = vpop.f32.mrf.mxu0
        %1431 = vmatprep.mubr.bf16.mxu0 %v1084
        %1432 = vmatmul.mubr.bf16.gmra.mxu0 %v804
        %v1433 = vpop.f32.mrf.mxu0
        %v1434 = vadd.f32 %v357, %v1433
        %v1435 = vpop.f32.mrf.mxu0
        %v1436 = vpop.f32.mrf.mxu0
        %v1437 = vadd.f32 %v357, %v1436
        %v1438 = vpop.f32.mrf.mxu0
        %1439 = vmatprep.mubr.bf16.mxu0 %v1087
        %1440 = vmatmul.mubr.bf16.gmra.mxu0 %v806
        %v1441 = vpop.f32.mrf.mxu0
        %v1442 = vadd.f32 %v357, %v1441
        %v1443 = vpop.f32.mrf.mxu0
        %v1444 = vpop.f32.mrf.mxu0
        %v1445 = vadd.f32 %v357, %v1444
        %v1446 = vpop.f32.mrf.mxu0
        %1447 = vmatprep.mubr.bf16.mxu0 %v1090
        %1448 = vmatmul.mubr.bf16.gmra.mxu0 %v808
        %v1449 = vpop.f32.mrf.mxu0
        %v1450 = vadd.f32 %v357, %v1449
        %v1451 = vpop.f32.mrf.mxu0
        %v1452 = vpop.f32.mrf.mxu0
        %v1453 = vadd.f32 %v357, %v1452
        %v1454 = vpop.f32.mrf.mxu0
        %1455 = vmatprep.mubr.bf16.mxu0 %v1093
        %1456 = vmatmul.mubr.bf16.gmra.mxu0 %v810
        %v1457 = vpop.f32.mrf.mxu0
        %v1458 = vadd.f32 %v357, %v1457
        %v1459 = vpop.f32.mrf.mxu0
        %v1460 = vpop.f32.mrf.mxu0
        %v1461 = vadd.f32 %v357, %v1460
        %v1462 = vpop.f32.mrf.mxu0
        %1463 = vmatprep.mubr.bf16.mxu0 %v1096
        %1464 = vmatmul.mubr.bf16.gmra.mxu0 %v812
        %v1465 = vpop.f32.mrf.mxu0
        %v1466 = vadd.f32 %v357, %v1465
        %v1467 = vpop.f32.mrf.mxu0
        %v1468 = vpop.f32.mrf.mxu0
        %v1469 = vadd.f32 %v357, %v1468
        %v1470 = vpop.f32.mrf.mxu0
        %1471 = vmatprep.mubr.bf16.mxu0 %v1099
        %1472 = vmatmul.mubr.bf16.gmra.mxu0 %v814
        %v1473 = vpop.f32.mrf.mxu0
        %v1474 = vadd.f32 %v357, %v1473
        %v1475 = vpop.f32.mrf.mxu0
        %v1476 = vpop.f32.mrf.mxu0
        %v1477 = vadd.f32 %v357, %v1476
        %v1478 = vpop.f32.mrf.mxu0
        %1479 = vmatprep.mubr.bf16.mxu0 %v1102
        %1480 = vmatmul.mubr.bf16.gmra.mxu0 %v816
        %v1481 = vpop.f32.mrf.mxu0
        %v1482 = vadd.f32 %v357, %v1481
        %v1483 = vpop.f32.mrf.mxu0
        %v1484 = vpop.f32.mrf.mxu0
        %v1485 = vadd.f32 %v357, %v1484
        %v1486 = vpop.f32.mrf.mxu0
        %1487 = vmatprep.mubr.bf16.mxu0 %v1105
        %1488 = vmatmul.mubr.bf16.gmra.mxu0 %v818
        %v1489 = vpop.f32.mrf.mxu0
        %v1490 = vadd.f32 %v357, %v1489
        %v1491 = vpop.f32.mrf.mxu0
        %v1492 = vpop.f32.mrf.mxu0
        %v1493 = vadd.f32 %v357, %v1492
        %v1494 = vpop.f32.mrf.mxu0
        %1495 = vmatprep.mubr.bf16.mxu0 %v1108
        %1496 = vmatmul.mubr.bf16.gmra.mxu0 %v820
        %v1497 = vpop.f32.mrf.mxu0
        %v1498 = vadd.f32 %v357, %v1497
        %v1499 = vpop.f32.mrf.mxu0
        %v1500 = vpop.f32.mrf.mxu0
        %v1501 = vadd.f32 %v357, %v1500
        %v1502 = vpop.f32.mrf.mxu0
        %1503 = vmatprep.mubr.bf16.mxu0 %v1111
        %1504 = vmatmul.mubr.bf16.gmra.mxu0 %v822
        %v1505 = vpop.f32.mrf.mxu0
        %v1506 = vadd.f32 %v357, %v1505
        %v1507 = vpop.f32.mrf.mxu0
        %v1508 = vpop.f32.mrf.mxu0
        %v1509 = vadd.f32 %v357, %v1508
        %v1510 = vpop.f32.mrf.mxu0
        %1511 = vmatprep.mubr.bf16.mxu0 %v1114
        %1512 = vmatmul.mubr.bf16.gmra.mxu0 %v824
        %v1513 = vpop.f32.mrf.mxu0
        %v1514 = vadd.f32 %v357, %v1513
        %v1515 = vpop.f32.mrf.mxu0
        %v1516 = vpop.f32.mrf.mxu0
        %v1517 = vadd.f32 %v357, %v1516
        %v1518 = vpop.f32.mrf.mxu0
        %1519 = vmatprep.mubr.bf16.mxu0 %v1117
        %1520 = vmatmul.mubr.bf16.gmra.mxu0 %v826
        %v1521 = vpop.f32.mrf.mxu0
        %v1522 = vadd.f32 %v357, %v1521
        %v1523 = vpop.f32.mrf.mxu0
        %v1524 = vpop.f32.mrf.mxu0
        %v1525 = vadd.f32 %v357, %v1524
        %v1526 = vpop.f32.mrf.mxu0
        %1527 = vmatprep.mubr.bf16.mxu0 %v1120
        %1528 = vmatmul.mubr.bf16.gmra.mxu0 %v828
        %v1529 = vpop.f32.mrf.mxu0
        %v1530 = vadd.f32 %v357, %v1529
        %v1531 = vpop.f32.mrf.mxu0
        %v1532 = vpop.f32.mrf.mxu0
        %v1533 = vadd.f32 %v357, %v1532
        %v1534 = vpop.f32.mrf.mxu0
        %1535 = vmatprep.mubr.bf16.mxu0 %v1123
        %1536 = vmatmul.mubr.bf16.gmra.mxu0 %v830
        %v1537 = vpop.f32.mrf.mxu0
        %v1538 = vadd.f32 %v357, %v1537
        %v1539 = vpop.f32.mrf.mxu0
        %v1540 = vpop.f32.mrf.mxu0
        %v1541 = vadd.f32 %v357, %v1540
        %v1542 = vpop.f32.mrf.mxu0
        %1543 = vmatprep.mubr.bf16.mxu0 %v1126
        %1544 = vmatmul.mubr.bf16.gmra.mxu0 %v832
        %v1545 = vpop.f32.mrf.mxu0
        %v1546 = vadd.f32 %v357, %v1545
        %v1547 = vpop.f32.mrf.mxu0
        %v1548 = vpop.f32.mrf.mxu0
        %v1549 = vadd.f32 %v357, %v1548
        %v1550 = vpop.f32.mrf.mxu0
        %1551 = vmatprep.mubr.bf16.mxu0 %v1129
        %1552 = vmatmul.mubr.bf16.gmra.mxu0 %v834
        %v1553 = vpop.f32.mrf.mxu0
        %v1554 = vadd.f32 %v357, %v1553
        %v1555 = vpop.f32.mrf.mxu0
        %v1556 = vpop.f32.mrf.mxu0
        %v1557 = vadd.f32 %v357, %v1556
        %v1558 = vpop.f32.mrf.mxu0
        %1559 = vmatprep.mubr.bf16.mxu0 %v1132
        %1560 = vmatmul.mubr.bf16.gmra.mxu0 %v836
        %v1561 = vpop.f32.mrf.mxu0
        %v1562 = vadd.f32 %v357, %v1561
        %v1563 = vpop.f32.mrf.mxu0
        %v1564 = vpop.f32.mrf.mxu0
        %v1565 = vadd.f32 %v357, %v1564
        %v1566 = vpop.f32.mrf.mxu0
        %1567 = vmatprep.mubr.bf16.mxu0 %v1135
        %1568 = vmatmul.mubr.bf16.gmra.mxu0 %v838
        %v1569 = vpop.f32.mrf.mxu0
        %v1570 = vadd.f32 %v357, %v1569
        %v1571 = vpop.f32.mrf.mxu0
        %v1572 = vpop.f32.mrf.mxu0
        %v1573 = vadd.f32 %v357, %v1572
        %v1574 = vpop.f32.mrf.mxu0
        %1575 = vmatprep.mubr.bf16.mxu0 %v1138
        %1576 = vmatmul.mubr.bf16.gmra.mxu0 %v840
        %v1577 = vpop.f32.mrf.mxu0
        %v1578 = vadd.f32 %v357, %v1577
        %v1579 = vpop.f32.mrf.mxu0
        %v1580 = vpop.f32.mrf.mxu0
        %v1581 = vadd.f32 %v357, %v1580
        %v1582 = vpop.f32.mrf.mxu0
        %1583 = vmatprep.mubr.bf16.mxu0 %v1141
        %1584 = vmatmul.mubr.bf16.gmra.mxu0 %v842
        %v1585 = vpop.f32.mrf.mxu0
        %v1586 = vadd.f32 %v357, %v1585
        %v1587 = vpop.f32.mrf.mxu0
        %v1588 = vpop.f32.mrf.mxu0
        %v1589 = vadd.f32 %v357, %v1588
        %v1590 = vpop.f32.mrf.mxu0
        %1591 = vmatprep.mubr.bf16.mxu0 %v1144
        %1592 = vmatmul.mubr.bf16.gmra.mxu0 %v844
        %v1593 = vpop.f32.mrf.mxu0
        %v1594 = vadd.f32 %v357, %v1593
        %v1595 = vpop.f32.mrf.mxu0
        %v1596 = vpop.f32.mrf.mxu0
        %v1597 = vadd.f32 %v357, %v1596
        %v1598 = vpop.f32.mrf.mxu0
        %1599 = vmatprep.mubr.bf16.mxu0 %v1147
        %1600 = vmatmul.mubr.bf16.gmra.mxu0 %v846
        %v1601 = vpop.f32.mrf.mxu0
        %v1602 = vadd.f32 %v357, %v1601
        %v1603 = vpop.f32.mrf.mxu0
        %v1604 = vpop.f32.mrf.mxu0
        %v1605 = vadd.f32 %v357, %v1604
        %v1606 = vpop.f32.mrf.mxu0
        %1607 = vmatprep.mubr.bf16.mxu0 %v1150
        %1608 = vmatmul.mubr.bf16.gmra.mxu0 %v848
        %v1609 = vpop.f32.mrf.mxu0
        %v1610 = vadd.f32 %v357, %v1609
        %v1611 = vpop.f32.mrf.mxu0
        %v1612 = vpop.f32.mrf.mxu0
        %v1613 = vadd.f32 %v357, %v1612
        %v1614 = vpop.f32.mrf.mxu0
        %1615 = vmatprep.mubr.bf16.mxu0 %v1153
        %1616 = vmatmul.mubr.bf16.gmra.mxu0 %v850
        %v1617 = vpop.f32.mrf.mxu0
        %v1618 = vadd.f32 %v357, %v1617
        %v1619 = vpop.f32.mrf.mxu0
        %v1620 = vpop.f32.mrf.mxu0
        %v1621 = vadd.f32 %v357, %v1620
        %v1622 = vpop.f32.mrf.mxu0
        %1623 = vmatprep.mubr.bf16.mxu0 %v1156
        %1624 = vmatmul.mubr.bf16.gmra.mxu0 %v852
        %v1625 = vpop.f32.mrf.mxu0
        %v1626 = vadd.f32 %v357, %v1625
        %v1627 = vpop.f32.mrf.mxu0
        %v1628 = vpop.f32.mrf.mxu0
        %v1629 = vadd.f32 %v357, %v1628
        %v1630 = vpop.f32.mrf.mxu0
        %1631 = vmatprep.mubr.bf16.mxu0 %v1159
        %1632 = vmatmul.mubr.bf16.gmra.mxu0 %v854
        %v1633 = vpop.f32.mrf.mxu0
        %v1634 = vadd.f32 %v357, %v1633
        %v1635 = vpop.f32.mrf.mxu0
        %v1636 = vpop.f32.mrf.mxu0
        %v1637 = vadd.f32 %v357, %v1636
        %v1638 = vpop.f32.mrf.mxu0
        %1639 = vmatprep.mubr.bf16.mxu0 %v1162
        %1640 = vmatmul.mubr.bf16.gmra.mxu0 %v856
        %v1641 = vpop.f32.mrf.mxu0
        %v1642 = vadd.f32 %v357, %v1641
        %v1643 = vpop.f32.mrf.mxu0
        %v1644 = vpop.f32.mrf.mxu0
        %v1645 = vadd.f32 %v357, %v1644
        %v1646 = vpop.f32.mrf.mxu0
        %1647 = vmatprep.mubr.bf16.mxu0 %v1165
        %1648 = vmatmul.mubr.bf16.gmra.mxu0 %v858
        %v1649 = vpop.f32.mrf.mxu0
        %v1650 = vadd.f32 %v357, %v1649
        %v1651 = vpop.f32.mrf.mxu0
        %v1652 = vpop.f32.mrf.mxu0
        %v1653 = vadd.f32 %v357, %v1652
        %v1654 = vpop.f32.mrf.mxu0
        %1655 = vmatprep.mubr.bf16.mxu0 %v1168
        %1656 = vmatmul.mubr.bf16.gmra.mxu0 %v860
        %v1657 = vpop.f32.mrf.mxu0
        %v1658 = vadd.f32 %v357, %v1657
        %v1659 = vpop.f32.mrf.mxu0
        %v1660 = vpop.f32.mrf.mxu0
        %v1661 = vadd.f32 %v357, %v1660
        %v1662 = vpop.f32.mrf.mxu0
        %1663 = vmatprep.mubr.bf16.mxu0 %v1171
        %1664 = vmatmul.mubr.bf16.gmra.mxu0 %v862
        %v1665 = vpop.f32.mrf.mxu0
        %v1666 = vadd.f32 %v357, %v1665
        %v1667 = vpop.f32.mrf.mxu0
        %v1668 = vpop.f32.mrf.mxu0
        %v1669 = vadd.f32 %v357, %v1668
        %v1670 = vpop.f32.mrf.mxu0
        %1671 = vmatprep.mubr.bf16.mxu0 %v1174
        %1672 = vmatmul.mubr.bf16.gmra.mxu0 %v864
        %v1673 = vpop.f32.mrf.mxu0
        %v1674 = vadd.f32 %v357, %v1673
        %v1675 = vpop.f32.mrf.mxu0
        %v1676 = vpop.f32.mrf.mxu0
        %v1677 = vadd.f32 %v357, %v1676
        %v1678 = vpop.f32.mrf.mxu0
        %1679 = vmatprep.mubr.bf16.mxu0 %v1177
        %1680 = vmatmul.mubr.bf16.gmra.mxu0 %v866
        %v1681 = vpop.f32.mrf.mxu0
        %v1682 = vadd.f32 %v357, %v1681
        %v1683 = vpop.f32.mrf.mxu0
        %v1684 = vpop.f32.mrf.mxu0
        %v1685 = vadd.f32 %v357, %v1684
        %v1686 = vpop.f32.mrf.mxu0
        %1687 = vmatprep.mubr.bf16.mxu0 %v1180
        %1688 = vmatmul.mubr.bf16.gmra.mxu0 %v868
        %v1689 = vpop.f32.mrf.mxu0
        %v1690 = vadd.f32 %v357, %v1689
        %v1691 = vpop.f32.mrf.mxu0
        %v1692 = vpop.f32.mrf.mxu0
        %v1693 = vadd.f32 %v357, %v1692
        %v1694 = vpop.f32.mrf.mxu0
        %1695 = vmatprep.mubr.bf16.mxu0 %v1183
        %1696 = vmatmul.mubr.bf16.gmra.mxu0 %v870
        %v1697 = vpop.f32.mrf.mxu0
        %v1698 = vadd.f32 %v357, %v1697
        %v1699 = vpop.f32.mrf.mxu0
        %v1700 = vpop.f32.mrf.mxu0
        %v1701 = vadd.f32 %v357, %v1700
        %v1702 = vpop.f32.mrf.mxu0
        %1703 = vmatprep.mubr.bf16.mxu0 %v1186
        %1704 = vmatmul.mubr.bf16.gmra.mxu0 %v872
        %v1705 = vpop.f32.mrf.mxu0
        %v1706 = vadd.f32 %v357, %v1705
        %v1707 = vpop.f32.mrf.mxu0
        %v1708 = vpop.f32.mrf.mxu0
        %v1709 = vadd.f32 %v357, %v1708
        %v1710 = vpop.f32.mrf.mxu0
        %1711 = vmatprep.mubr.bf16.mxu0 %v1189
        %1712 = vmatmul.mubr.bf16.gmra.mxu0 %v874
        %v1713 = vpop.f32.mrf.mxu0
        %v1714 = vadd.f32 %v357, %v1713
        %v1715 = vpop.f32.mrf.mxu0
        %v1716 = vpop.f32.mrf.mxu0
        %v1717 = vadd.f32 %v357, %v1716
        %v1718 = vpop.f32.mrf.mxu0
        %1719 = vmatprep.mubr.bf16.mxu0 %v1192
        %1720 = vmatmul.mubr.bf16.gmra.mxu0 %v876
        %v1721 = vpop.f32.mrf.mxu0
        %v1722 = vadd.f32 %v357, %v1721
        %v1723 = vpop.f32.mrf.mxu0
        %v1724 = vpop.f32.mrf.mxu0
        %v1725 = vadd.f32 %v357, %v1724
        %v1726 = vpop.f32.mrf.mxu0
        %1727 = vmatprep.mubr.bf16.mxu0 %v1195
        %1728 = vmatmul.mubr.bf16.gmra.mxu0 %v878
        %v1729 = vpop.f32.mrf.mxu0
        %v1730 = vadd.f32 %v357, %v1729
        %v1731 = vpop.f32.mrf.mxu0
        %v1732 = vpop.f32.mrf.mxu0
        %v1733 = vadd.f32 %v357, %v1732
        %v1734 = vpop.f32.mrf.mxu0
        %1735 = vmatprep.mubr.bf16.mxu0 %v1198
        %1736 = vmatmul.mubr.bf16.gmra.mxu0 %v880
        %v1737 = vpop.f32.mrf.mxu0
        %v1738 = vadd.f32 %v357, %v1737
        %v1739 = vpop.f32.mrf.mxu0
        %v1740 = vpop.f32.mrf.mxu0
        %v1741 = vadd.f32 %v357, %v1740
        %v1742 = vpop.f32.mrf.mxu0
        %1743 = vmatprep.mubr.bf16.mxu0 %v1201
        %1744 = vmatmul.mubr.bf16.gmra.mxu0 %v882
        %v1745 = vpop.f32.mrf.mxu0
        %v1746 = vadd.f32 %v357, %v1745
        %v1747 = vpop.f32.mrf.mxu0
        %v1748 = vpop.f32.mrf.mxu0
        %v1749 = vadd.f32 %v357, %v1748
        %v1750 = vpop.f32.mrf.mxu0
        %1751 = vmatprep.mubr.bf16.mxu0 %v1204
        %1752 = vmatmul.mubr.bf16.gmra.mxu0 %v884
        %v1753 = vpop.f32.mrf.mxu0
        %v1754 = vadd.f32 %v357, %v1753
        %v1755 = vpop.f32.mrf.mxu0
        %v1756 = vpop.f32.mrf.mxu0
        %v1757 = vadd.f32 %v357, %v1756
        %v1758 = vpop.f32.mrf.mxu0
        %1759 = vmatprep.mubr.bf16.mxu0 %v1207
        %1760 = vmatmul.mubr.bf16.gmra.mxu0 %v886
        %v1761 = vpop.f32.mrf.mxu0
        %v1762 = vadd.f32 %v357, %v1761
        %v1763 = vpop.f32.mrf.mxu0
        %v1764 = vpop.f32.mrf.mxu0
        %v1765 = vadd.f32 %v357, %v1764
        %v1766 = vpop.f32.mrf.mxu0
        %1767 = vmatprep.mubr.bf16.mxu0 %v1210
        %1768 = vmatmul.mubr.bf16.gmra.mxu0 %v888
        %v1769 = vpop.f32.mrf.mxu0
        %v1770 = vadd.f32 %v357, %v1769
        %v1771 = vpop.f32.mrf.mxu0
        %v1772 = vpop.f32.mrf.mxu0
        %v1773 = vadd.f32 %v357, %v1772
        %v1774 = vpop.f32.mrf.mxu0
        %1775 = vmatprep.mubr.bf16.mxu0 %v1213
        %1776 = vmatmul.mubr.bf16.gmra.mxu0 %v890
        %v1777 = vpop.f32.mrf.mxu0
        %v1778 = vadd.f32 %v357, %v1777
        %v1779 = vpop.f32.mrf.mxu0
        %v1780 = vpop.f32.mrf.mxu0
        %v1781 = vpop.f32.mrf.mxu0
        %1782 = vdwg.mxu0
        %v1783 = vmax.f32 %v1250, 0.0
        %v1784 = vmax.f32 %v1253, 0.0
        %v1785 = vmax.f32 %v1258, 0.0
        %v1786 = vmax.f32 %v1261, 0.0
        %v1787 = vmax.f32 %v1266, 0.0
        %v1788 = vmax.f32 %v1269, 0.0
        %v1789 = vmax.f32 %v1274, 0.0
        %v1790 = vmax.f32 %v1277, 0.0
        %v1791 = vmax.f32 %v1282, 0.0
        %v1792 = vmax.f32 %v1285, 0.0
        %v1793 = vmax.f32 %v1290, 0.0
        %v1794 = vmax.f32 %v1293, 0.0
        %v1795 = vmax.f32 %v1298, 0.0
        %v1796 = vmax.f32 %v1301, 0.0
        %v1797 = vmax.f32 %v1306, 0.0
        %v1798 = vmax.f32 %v1309, 0.0
        %v1799 = vmax.f32 %v1314, 0.0
        %v1800 = vmax.f32 %v1317, 0.0
        %v1801 = vmax.f32 %v1322, 0.0
        %v1802 = vmax.f32 %v1325, 0.0
        %v1803 = vmax.f32 %v1330, 0.0
        %v1804 = vmax.f32 %v1333, 0.0
        %v1805 = vmax.f32 %v1338, 0.0
        %v1806 = vmax.f32 %v1341, 0.0
        %v1807 = vmax.f32 %v1346, 0.0
        %v1808 = vmax.f32 %v1349, 0.0
        %v1809 = vmax.f32 %v1354, 0.0
        %v1810 = vmax.f32 %v1357, 0.0
        %v1811 = vmax.f32 %v1362, 0.0
        %v1812 = vmax.f32 %v1365, 0.0
        %v1813 = vmax.f32 %v1370, 0.0
        %v1814 = vmax.f32 %v1373, 0.0
        %v1815 = vmax.f32 %v1378, 0.0
        %v1816 = vmax.f32 %v1381, 0.0
        %v1817 = vmax.f32 %v1386, 0.0
        %v1818 = vmax.f32 %v1389, 0.0
        %v1819 = vmax.f32 %v1394, 0.0
        %v1820 = vmax.f32 %v1397, 0.0
        %v1821 = vmax.f32 %v1402, 0.0
        %v1822 = vmax.f32 %v1405, 0.0
        %v1823 = vmax.f32 %v1410, 0.0
        %v1824 = vmax.f32 %v1413, 0.0
        %v1825 = vmax.f32 %v1418, 0.0
        %v1826 = vmax.f32 %v1421, 0.0
        %v1827 = vmax.f32 %v1426, 0.0
        %v1828 = vmax.f32 %v1429, 0.0
        %v1829 = vmax.f32 %v1434, 0.0
        %v1830 = vmax.f32 %v1437, 0.0
        %v1831 = vmax.f32 %v1442, 0.0
        %v1832 = vmax.f32 %v1445, 0.0
        %v1833 = vmax.f32 %v1450, 0.0
        %v1834 = vmax.f32 %v1453, 0.0
        %v1835 = vmax.f32 %v1458, 0.0
        %v1836 = vmax.f32 %v1461, 0.0
        %v1837 = vmax.f32 %v1466, 0.0
        %v1838 = vmax.f32 %v1469, 0.0
        %v1839 = vmax.f32 %v1474, 0.0
        %v1840 = vmax.f32 %v1477, 0.0
        %v1841 = vmax.f32 %v1482, 0.0
        %v1842 = vmax.f32 %v1485, 0.0
        %v1843 = vmax.f32 %v1490, 0.0
        %v1844 = vmax.f32 %v1493, 0.0
        %v1845 = vmax.f32 %v1498, 0.0
        %v1846 = vmax.f32 %v1501, 0.0
        %v1847 = vmax.f32 %v1506, 0.0
        %v1848 = vmax.f32 %v1509, 0.0
        %v1849 = vmax.f32 %v1514, 0.0
        %v1850 = vmax.f32 %v1517, 0.0
        %v1851 = vmax.f32 %v1522, 0.0
        %v1852 = vmax.f32 %v1525, 0.0
        %v1853 = vmax.f32 %v1530, 0.0
        %v1854 = vmax.f32 %v1533, 0.0
        %v1855 = vmax.f32 %v1538, 0.0
        %v1856 = vmax.f32 %v1541, 0.0
        %v1857 = vmax.f32 %v1546, 0.0
        %v1858 = vmax.f32 %v1549, 0.0
        %v1859 = vmax.f32 %v1554, 0.0
        %v1860 = vmax.f32 %v1557, 0.0
        %v1861 = vmax.f32 %v1562, 0.0
        %v1862 = vmax.f32 %v1565, 0.0
        %v1863 = vmax.f32 %v1570, 0.0
        %v1864 = vmax.f32 %v1573, 0.0
        %v1865 = vmax.f32 %v1578, 0.0
        %v1866 = vmax.f32 %v1581, 0.0
        %v1867 = vmax.f32 %v1586, 0.0
        %v1868 = vmax.f32 %v1589, 0.0
        %v1869 = vmax.f32 %v1594, 0.0
        %v1870 = vmax.f32 %v1597, 0.0
        %v1871 = vmax.f32 %v1602, 0.0
        %v1872 = vmax.f32 %v1605, 0.0
        %v1873 = vmax.f32 %v1610, 0.0
        %v1874 = vmax.f32 %v1613, 0.0
        %v1875 = vmax.f32 %v1618, 0.0
        %v1876 = vmax.f32 %v1621, 0.0
        %v1877 = vmax.f32 %v1626, 0.0
        %v1878 = vmax.f32 %v1629, 0.0
        %v1879 = vmax.f32 %v1634, 0.0
        %v1880 = vmax.f32 %v1637, 0.0
        %v1881 = vmax.f32 %v1642, 0.0
        %v1882 = vmax.f32 %v1645, 0.0
        %v1883 = vmax.f32 %v1650, 0.0
        %v1884 = vmax.f32 %v1653, 0.0
        %v1885 = vmax.f32 %v1658, 0.0
        %v1886 = vmax.f32 %v1661, 0.0
        %v1887 = vmax.f32 %v1666, 0.0
        %v1888 = vmax.f32 %v1669, 0.0
        %v1889 = vmax.f32 %v1674, 0.0
        %v1890 = vmax.f32 %v1677, 0.0
        %v1891 = vmax.f32 %v1682, 0.0
        %v1892 = vmax.f32 %v1685, 0.0
        %v1893 = vmax.f32 %v1690, 0.0
        %v1894 = vmax.f32 %v1693, 0.0
        %v1895 = vmax.f32 %v1698, 0.0
        %v1896 = vmax.f32 %v1701, 0.0
        %v1897 = vmax.f32 %v1706, 0.0
        %v1898 = vmax.f32 %v1709, 0.0
        %v1899 = vmax.f32 %v1714, 0.0
        %v1900 = vmax.f32 %v1717, 0.0
        %v1901 = vmax.f32 %v1722, 0.0
        %v1902 = vmax.f32 %v1725, 0.0
        %v1903 = vmax.f32 %v1730, 0.0
        %v1904 = vmax.f32 %v1733, 0.0
        %v1905 = vmax.f32 %v1738, 0.0
        %v1906 = vmax.f32 %v1741, 0.0
        %v1907 = vmax.f32 %v1746, 0.0
        %v1908 = vmax.f32 %v1749, 0.0
        %v1909 = vmax.f32 %v1754, 0.0
        %v1910 = vmax.f32 %v1757, 0.0
        %v1911 = vmax.f32 %v1762, 0.0
        %v1912 = vmax.f32 %v1765, 0.0
        %v1913 = vmax.f32 %v1770, 0.0
        %v1914 = vmax.f32 %v1773, 0.0
        %v1915 = vmax.f32 %v1778, 0.0
        %v1916 = vpack.c.bf16 %v1784, %v1783
        %v1917 = vpack.c.bf16 %v1786, %v1785
        %v1918 = vpack.c.bf16 %v1788, %v1787
        %v1919 = vpack.c.bf16 %v1790, %v1789
        %v1920 = vpack.c.bf16 %v1792, %v1791
        %v1921 = vpack.c.bf16 %v1794, %v1793
        %v1922 = vpack.c.bf16 %v1796, %v1795
        %v1923 = vpack.c.bf16 %v1798, %v1797
        %v1924 = vpack.c.bf16 %v1800, %v1799
        %v1925 = vpack.c.bf16 %v1802, %v1801
        %v1926 = vpack.c.bf16 %v1804, %v1803
        %v1927 = vpack.c.bf16 %v1806, %v1805
        %v1928 = vpack.c.bf16 %v1808, %v1807
        %v1929 = vpack.c.bf16 %v1810, %v1809
        %v1930 = vpack.c.bf16 %v1812, %v1811
        %v1931 = vpack.c.bf16 %v1814, %v1813
        %v1932 = vpack.c.bf16 %v1816, %v1815
        %v1933 = vpack.c.bf16 %v1818, %v1817
        %v1934 = vpack.c.bf16 %v1820, %v1819
        %v1935 = vpack.c.bf16 %v1822, %v1821
        %v1936 = vpack.c.bf16 %v1824, %v1823
        %v1937 = vpack.c.bf16 %v1826, %v1825
        %v1938 = vpack.c.bf16 %v1828, %v1827
        %v1939 = vpack.c.bf16 %v1830, %v1829
        %v1940 = vpack.c.bf16 %v1832, %v1831
        %v1941 = vpack.c.bf16 %v1834, %v1833
        %v1942 = vpack.c.bf16 %v1836, %v1835
        %v1943 = vpack.c.bf16 %v1838, %v1837
        %v1944 = vpack.c.bf16 %v1840, %v1839
        %v1945 = vpack.c.bf16 %v1842, %v1841
        %v1946 = vpack.c.bf16 %v1844, %v1843
        %v1947 = vpack.c.bf16 %v1846, %v1845
        %v1948 = vpack.c.bf16 %v1848, %v1847
        %v1949 = vpack.c.bf16 %v1850, %v1849
        %v1950 = vpack.c.bf16 %v1852, %v1851
        %v1951 = vpack.c.bf16 %v1854, %v1853
        %v1952 = vpack.c.bf16 %v1856, %v1855
        %v1953 = vpack.c.bf16 %v1858, %v1857
        %v1954 = vpack.c.bf16 %v1860, %v1859
        %v1955 = vpack.c.bf16 %v1862, %v1861
        %v1956 = vpack.c.bf16 %v1864, %v1863
        %v1957 = vpack.c.bf16 %v1866, %v1865
        %v1958 = vpack.c.bf16 %v1868, %v1867
        %v1959 = vpack.c.bf16 %v1870, %v1869
        %v1960 = vpack.c.bf16 %v1872, %v1871
        %v1961 = vpack.c.bf16 %v1874, %v1873
        %v1962 = vpack.c.bf16 %v1876, %v1875
        %v1963 = vpack.c.bf16 %v1878, %v1877
        %v1964 = vpack.c.bf16 %v1880, %v1879
        %v1965 = vpack.c.bf16 %v1882, %v1881
        %v1966 = vpack.c.bf16 %v1884, %v1883
        %v1967 = vpack.c.bf16 %v1886, %v1885
        %v1968 = vpack.c.bf16 %v1888, %v1887
        %v1969 = vpack.c.bf16 %v1890, %v1889
        %v1970 = vpack.c.bf16 %v1892, %v1891
        %v1971 = vpack.c.bf16 %v1894, %v1893
        %v1972 = vpack.c.bf16 %v1896, %v1895
        %v1973 = vpack.c.bf16 %v1898, %v1897
        %v1974 = vpack.c.bf16 %v1900, %v1899
        %v1975 = vpack.c.bf16 %v1902, %v1901
        %v1976 = vpack.c.bf16 %v1904, %v1903
        %v1977 = vpack.c.bf16 %v1906, %v1905
        %v1978 = vpack.c.bf16 %v1908, %v1907
        %v1979 = vpack.c.bf16 %v1910, %v1909
        %v1980 = vpack.c.bf16 %v1912, %v1911
        %v1981 = vpack.c.bf16 %v1914, %v1913
        %v1982 = vpack.c.bf16 %v1915, %v1915
        %v2050 = vunpack.c.l.b16 %v1916
        %v2051 = vunpack.c.h.b16 %v1916
        %v2052 = vunpack.c.l.b16 %v1917
        %v2053 = vunpack.c.h.b16 %v1917
        %v2054 = vunpack.c.l.b16 %v1918
        %v2055 = vunpack.c.h.b16 %v1918
        %v2056 = vunpack.c.l.b16 %v1919
        %v2057 = vunpack.c.h.b16 %v1919
        %v2058 = vunpack.c.l.b16 %v1920
        %v2059 = vunpack.c.h.b16 %v1920
        %v2060 = vunpack.c.l.b16 %v1921
        %v2061 = vunpack.c.h.b16 %v1921
        %v2062 = vunpack.c.l.b16 %v1922
        %v2063 = vunpack.c.h.b16 %v1922
        %v2064 = vunpack.c.l.b16 %v1923
        %v2065 = vunpack.c.h.b16 %v1923
        %v2066 = vunpack.c.l.b16 %v1924
        %v2067 = vunpack.c.h.b16 %v1924
        %v2068 = vunpack.c.l.b16 %v1925
        %v2069 = vunpack.c.h.b16 %v1925
        %v2070 = vunpack.c.l.b16 %v1926
        %v2071 = vunpack.c.h.b16 %v1926
        %v2072 = vunpack.c.l.b16 %v1927
        %v2073 = vunpack.c.h.b16 %v1927
        %v2074 = vunpack.c.l.b16 %v1928
        %v2075 = vunpack.c.h.b16 %v1928
        %v2076 = vunpack.c.l.b16 %v1929
        %v2077 = vunpack.c.h.b16 %v1929
        %v2078 = vunpack.c.l.b16 %v1930
        %v2079 = vunpack.c.h.b16 %v1930
        %v2080 = vunpack.c.l.b16 %v1931
        %v2081 = vunpack.c.h.b16 %v1931
        %v2082 = vunpack.c.l.b16 %v1932
        %v2083 = vunpack.c.h.b16 %v1932
        %v2084 = vunpack.c.l.b16 %v1933
        %v2085 = vunpack.c.h.b16 %v1933
        %v2086 = vunpack.c.l.b16 %v1934
        %v2087 = vunpack.c.h.b16 %v1934
        %v2088 = vunpack.c.l.b16 %v1935
        %v2089 = vunpack.c.h.b16 %v1935
        %v2090 = vunpack.c.l.b16 %v1936
        %v2091 = vunpack.c.h.b16 %v1936
        %v2092 = vunpack.c.l.b16 %v1937
        %v2093 = vunpack.c.h.b16 %v1937
        %v2094 = vunpack.c.l.b16 %v1938
        %v2095 = vunpack.c.h.b16 %v1938
        %v2096 = vunpack.c.l.b16 %v1939
        %v2097 = vunpack.c.h.b16 %v1939
        %v2098 = vunpack.c.l.b16 %v1940
        %v2099 = vunpack.c.h.b16 %v1940
        %v2100 = vunpack.c.l.b16 %v1941
        %v2101 = vunpack.c.h.b16 %v1941
        %v2102 = vunpack.c.l.b16 %v1942
        %v2103 = vunpack.c.h.b16 %v1942
        %v2104 = vunpack.c.l.b16 %v1943
        %v2105 = vunpack.c.h.b16 %v1943
        %v2106 = vunpack.c.l.b16 %v1944
        %v2107 = vunpack.c.h.b16 %v1944
        %v2108 = vunpack.c.l.b16 %v1945
        %v2109 = vunpack.c.h.b16 %v1945
        %v2110 = vunpack.c.l.b16 %v1946
        %v2111 = vunpack.c.h.b16 %v1946
        %v2112 = vunpack.c.l.b16 %v1947
        %v2113 = vunpack.c.h.b16 %v1947
        %v2114 = vunpack.c.l.b16 %v1948
        %v2115 = vunpack.c.h.b16 %v1948
        %v2116 = vunpack.c.l.b16 %v1949
        %v2117 = vunpack.c.h.b16 %v1949
        %v2118 = vunpack.c.l.b16 %v1950
        %v2119 = vunpack.c.h.b16 %v1950
        %v2120 = vunpack.c.l.b16 %v1951
        %v2121 = vunpack.c.h.b16 %v1951
        %v2122 = vunpack.c.l.b16 %v1952
        %v2123 = vunpack.c.h.b16 %v1952
        %v2124 = vunpack.c.l.b16 %v1953
        %v2125 = vunpack.c.h.b16 %v1953
        %v2126 = vunpack.c.l.b16 %v1954
        %v2127 = vunpack.c.h.b16 %v1954
        %v2128 = vunpack.c.l.b16 %v1955
        %v2129 = vunpack.c.h.b16 %v1955
        %v2130 = vunpack.c.l.b16 %v1956
        %v2131 = vunpack.c.h.b16 %v1956
        %v2132 = vunpack.c.l.b16 %v1957
        %v2133 = vunpack.c.h.b16 %v1957
        %v2134 = vunpack.c.l.b16 %v1958
        %v2135 = vunpack.c.h.b16 %v1958
        %v2136 = vunpack.c.l.b16 %v1959
        %v2137 = vunpack.c.h.b16 %v1959
        %v2138 = vunpack.c.l.b16 %v1960
        %v2139 = vunpack.c.h.b16 %v1960
        %v2140 = vunpack.c.l.b16 %v1961
        %v2141 = vunpack.c.h.b16 %v1961
        %v2142 = vunpack.c.l.b16 %v1962
        %v2143 = vunpack.c.h.b16 %v1962
        %v2144 = vunpack.c.l.b16 %v1963
        %v2145 = vunpack.c.h.b16 %v1963
        %v2146 = vunpack.c.l.b16 %v1964
        %v2147 = vunpack.c.h.b16 %v1964
        %v2148 = vunpack.c.l.b16 %v1965
        %v2149 = vunpack.c.h.b16 %v1965
        %v2150 = vunpack.c.l.b16 %v1966
        %v2151 = vunpack.c.h.b16 %v1966
        %v2152 = vunpack.c.l.b16 %v1967
        %v2153 = vunpack.c.h.b16 %v1967
        %v2154 = vunpack.c.l.b16 %v1968
        %v2155 = vunpack.c.h.b16 %v1968
        %v2156 = vunpack.c.l.b16 %v1969
        %v2157 = vunpack.c.h.b16 %v1969
        %v2158 = vunpack.c.l.b16 %v1970
        %v2159 = vunpack.c.h.b16 %v1970
        %v2160 = vunpack.c.l.b16 %v1971
        %v2161 = vunpack.c.h.b16 %v1971
        %v2162 = vunpack.c.l.b16 %v1972
        %v2163 = vunpack.c.h.b16 %v1972
        %v2164 = vunpack.c.l.b16 %v1973
        %v2165 = vunpack.c.h.b16 %v1973
        %v2166 = vunpack.c.l.b16 %v1974
        %v2167 = vunpack.c.h.b16 %v1974
        %v2168 = vunpack.c.l.b16 %v1975
        %v2169 = vunpack.c.h.b16 %v1975
        %v2170 = vunpack.c.l.b16 %v1976
        %v2171 = vunpack.c.h.b16 %v1976
        %v2172 = vunpack.c.l.b16 %v1977
        %v2173 = vunpack.c.h.b16 %v1977
        %v2174 = vunpack.c.l.b16 %v1978
        %v2175 = vunpack.c.h.b16 %v1978
        %v2176 = vunpack.c.l.b16 %v1979
        %v2177 = vunpack.c.h.b16 %v1979
        %v2178 = vunpack.c.l.b16 %v1980
        %v2179 = vunpack.c.h.b16 %v1980
        %v2180 = vunpack.c.l.b16 %v1981
        %v2181 = vunpack.c.h.b16 %v1981
        %v2182 = vunpack.c.l.b16 %v1982
        %v2183 = vpack.c.b16 %v2050, %v2050
        %v2184 = vpack.c.b16 %v2051, %v2051
        %v2185 = vpack.c.b16 %v2052, %v2052
        %v2186 = vpack.c.b16 %v2053, %v2053
        %v2187 = vpack.c.b16 %v2054, %v2054
        %v2188 = vpack.c.b16 %v2055, %v2055
        %v2189 = vpack.c.b16 %v2056, %v2056
        %v2190 = vpack.c.b16 %v2057, %v2057
        %v2191 = vpack.c.b16 %v2058, %v2058
        %v2192 = vpack.c.b16 %v2059, %v2059
        %v2193 = vpack.c.b16 %v2060, %v2060
        %v2194 = vpack.c.b16 %v2061, %v2061
        %v2195 = vpack.c.b16 %v2062, %v2062
        %v2196 = vpack.c.b16 %v2063, %v2063
        %v2197 = vpack.c.b16 %v2064, %v2064
        %v2198 = vpack.c.b16 %v2065, %v2065
        %v2199 = vpack.c.b16 %v2066, %v2066
        %v2200 = vpack.c.b16 %v2067, %v2067
        %v2201 = vpack.c.b16 %v2068, %v2068
        %v2202 = vpack.c.b16 %v2069, %v2069
        %v2203 = vpack.c.b16 %v2070, %v2070
        %v2204 = vpack.c.b16 %v2071, %v2071
        %v2205 = vpack.c.b16 %v2072, %v2072
        %v2206 = vpack.c.b16 %v2073, %v2073
        %v2207 = vpack.c.b16 %v2074, %v2074
        %v2208 = vpack.c.b16 %v2075, %v2075
        %v2209 = vpack.c.b16 %v2076, %v2076
        %v2210 = vpack.c.b16 %v2077, %v2077
        %v2211 = vpack.c.b16 %v2078, %v2078
        %v2212 = vpack.c.b16 %v2079, %v2079
        %v2213 = vpack.c.b16 %v2080, %v2080
        %v2214 = vpack.c.b16 %v2081, %v2081
        %v2215 = vpack.c.b16 %v2082, %v2082
        %v2216 = vpack.c.b16 %v2083, %v2083
        %v2217 = vpack.c.b16 %v2084, %v2084
        %v2218 = vpack.c.b16 %v2085, %v2085
        %v2219 = vpack.c.b16 %v2086, %v2086
        %v2220 = vpack.c.b16 %v2087, %v2087
        %v2221 = vpack.c.b16 %v2088, %v2088
        %v2222 = vpack.c.b16 %v2089, %v2089
        %v2223 = vpack.c.b16 %v2090, %v2090
        %v2224 = vpack.c.b16 %v2091, %v2091
        %v2225 = vpack.c.b16 %v2092, %v2092
        %v2226 = vpack.c.b16 %v2093, %v2093
        %v2227 = vpack.c.b16 %v2094, %v2094
        %v2228 = vpack.c.b16 %v2095, %v2095
        %v2229 = vpack.c.b16 %v2096, %v2096
        %v2230 = vpack.c.b16 %v2097, %v2097
        %v2231 = vpack.c.b16 %v2098, %v2098
        %v2232 = vpack.c.b16 %v2099, %v2099
        %v2233 = vpack.c.b16 %v2100, %v2100
        %v2234 = vpack.c.b16 %v2101, %v2101
        %v2235 = vpack.c.b16 %v2102, %v2102
        %v2236 = vpack.c.b16 %v2103, %v2103
        %v2237 = vpack.c.b16 %v2104, %v2104
        %v2238 = vpack.c.b16 %v2105, %v2105
        %v2239 = vpack.c.b16 %v2106, %v2106
        %v2240 = vpack.c.b16 %v2107, %v2107
        %v2241 = vpack.c.b16 %v2108, %v2108
        %v2242 = vpack.c.b16 %v2109, %v2109
        %v2243 = vpack.c.b16 %v2110, %v2110
        %v2244 = vpack.c.b16 %v2111, %v2111
        %v2245 = vpack.c.b16 %v2112, %v2112
        %v2246 = vpack.c.b16 %v2113, %v2113
        %v2247 = vpack.c.b16 %v2114, %v2114
        %v2248 = vpack.c.b16 %v2115, %v2115
        %v2249 = vpack.c.b16 %v2116, %v2116
        %v2250 = vpack.c.b16 %v2117, %v2117
        %v2251 = vpack.c.b16 %v2118, %v2118
        %v2252 = vpack.c.b16 %v2119, %v2119
        %v2253 = vpack.c.b16 %v2120, %v2120
        %v2254 = vpack.c.b16 %v2121, %v2121
        %v2255 = vpack.c.b16 %v2122, %v2122
        %v2256 = vpack.c.b16 %v2123, %v2123
        %v2257 = vpack.c.b16 %v2124, %v2124
        %v2258 = vpack.c.b16 %v2125, %v2125
        %v2259 = vpack.c.b16 %v2126, %v2126
        %v2260 = vpack.c.b16 %v2127, %v2127
        %v2261 = vpack.c.b16 %v2128, %v2128
        %v2262 = vpack.c.b16 %v2129, %v2129
        %v2263 = vpack.c.b16 %v2130, %v2130
        %v2264 = vpack.c.b16 %v2131, %v2131
        %v2265 = vpack.c.b16 %v2132, %v2132
        %v2266 = vpack.c.b16 %v2133, %v2133
        %v2267 = vpack.c.b16 %v2134, %v2134
        %v2268 = vpack.c.b16 %v2135, %v2135
        %v2269 = vpack.c.b16 %v2136, %v2136
        %v2270 = vpack.c.b16 %v2137, %v2137
        %v2271 = vpack.c.b16 %v2138, %v2138
        %v2272 = vpack.c.b16 %v2139, %v2139
        %v2273 = vpack.c.b16 %v2140, %v2140
        %v2274 = vpack.c.b16 %v2141, %v2141
        %v2275 = vpack.c.b16 %v2142, %v2142
        %v2276 = vpack.c.b16 %v2143, %v2143
        %v2277 = vpack.c.b16 %v2144, %v2144
        %v2278 = vpack.c.b16 %v2145, %v2145
        %v2279 = vpack.c.b16 %v2146, %v2146
        %v2280 = vpack.c.b16 %v2147, %v2147
        %v2281 = vpack.c.b16 %v2148, %v2148
        %v2282 = vpack.c.b16 %v2149, %v2149
        %v2283 = vpack.c.b16 %v2150, %v2150
        %v2284 = vpack.c.b16 %v2151, %v2151
        %v2285 = vpack.c.b16 %v2152, %v2152
        %v2286 = vpack.c.b16 %v2153, %v2153
        %v2287 = vpack.c.b16 %v2154, %v2154
        %v2288 = vpack.c.b16 %v2155, %v2155
        %v2289 = vpack.c.b16 %v2156, %v2156
        %v2290 = vpack.c.b16 %v2157, %v2157
        %v2291 = vpack.c.b16 %v2158, %v2158
        %v2292 = vpack.c.b16 %v2159, %v2159
        %v2293 = vpack.c.b16 %v2160, %v2160
        %v2294 = vpack.c.b16 %v2161, %v2161
        %v2295 = vpack.c.b16 %v2162, %v2162
        %v2296 = vpack.c.b16 %v2163, %v2163
        %v2297 = vpack.c.b16 %v2164, %v2164
        %v2298 = vpack.c.b16 %v2165, %v2165
        %v2299 = vpack.c.b16 %v2166, %v2166
        %v2300 = vpack.c.b16 %v2167, %v2167
        %v2301 = vpack.c.b16 %v2168, %v2168
        %v2302 = vpack.c.b16 %v2169, %v2169
        %v2303 = vpack.c.b16 %v2170, %v2170
        %v2304 = vpack.c.b16 %v2171, %v2171
        %v2305 = vpack.c.b16 %v2172, %v2172
        %v2306 = vpack.c.b16 %v2173, %v2173
        %v2307 = vpack.c.b16 %v2174, %v2174
        %v2308 = vpack.c.b16 %v2175, %v2175
        %v2309 = vpack.c.b16 %v2176, %v2176
        %v2310 = vpack.c.b16 %v2177, %v2177
        %v2311 = vpack.c.b16 %v2178, %v2178
        %v2312 = vpack.c.b16 %v2179, %v2179
        %v2313 = vpack.c.b16 %v2180, %v2180
        %v2314 = vpack.c.b16 %v2181, %v2181
        %v2315 = vpack.c.b16 %v2182, %v2182
        %vm2449 = vcmask 125952
        %2450 = vst.msk [vmem:[%s177] sm:$0xf] %vm2449, %v2183
        %2451 = vst.msk [vmem:[%s177 + $0x4] sm:$0xf] %vm2449, %v2184
        %2452 = vst.msk [vmem:[%s177 + $0x8] sm:$0xf] %vm2449, %v2185
        %2453 = vst.msk [vmem:[%s177 + $0xc] sm:$0xf] %vm2449, %v2186
        %2454 = vst.msk [vmem:[%s177 + $0x10] sm:$0xf] %vm2449, %v2187
        %2455 = vst.msk [vmem:[%s177 + $0x14] sm:$0xf] %vm2449, %v2188
        %2456 = vst.msk [vmem:[%s177 + $0x18] sm:$0xf] %vm2449, %v2189
        %2457 = vst.msk [vmem:[%s177 + $0x1c] sm:$0xf] %vm2449, %v2190
        %2458 = vst.msk [vmem:[%s177 + $0x20] sm:$0xf] %vm2449, %v2191
        %2459 = vst.msk [vmem:[%s177 + $0x24] sm:$0xf] %vm2449, %v2192
        %2460 = vst.msk [vmem:[%s177 + $0x28] sm:$0xf] %vm2449, %v2193
        %2461 = vst.msk [vmem:[%s177 + $0x2c] sm:$0xf] %vm2449, %v2194
        %2462 = vst.msk [vmem:[%s177 + $0x30] sm:$0xf] %vm2449, %v2195
        %2463 = vst.msk [vmem:[%s177 + $0x34] sm:$0xf] %vm2449, %v2196
        %2464 = vst.msk [vmem:[%s177 + $0x38] sm:$0xf] %vm2449, %v2197
        %2465 = vst.msk [vmem:[%s177 + $0x3c] sm:$0xf] %vm2449, %v2198
        %2466 = vst.msk [vmem:[%s177 + $0x40] sm:$0xf] %vm2449, %v2199
        %2467 = vst.msk [vmem:[%s177 + $0x44] sm:$0xf] %vm2449, %v2200
        %2468 = vst.msk [vmem:[%s177 + $0x48] sm:$0xf] %vm2449, %v2201
        %2469 = vst.msk [vmem:[%s177 + $0x4c] sm:$0xf] %vm2449, %v2202
        %2470 = vst.msk [vmem:[%s177 + $0x50] sm:$0xf] %vm2449, %v2203
        %2471 = vst.msk [vmem:[%s177 + $0x54] sm:$0xf] %vm2449, %v2204
        %2472 = vst.msk [vmem:[%s177 + $0x58] sm:$0xf] %vm2449, %v2205
        %2473 = vst.msk [vmem:[%s177 + $0x5c] sm:$0xf] %vm2449, %v2206
        %2474 = vst.msk [vmem:[%s177 + $0x60] sm:$0xf] %vm2449, %v2207
        %2475 = vst.msk [vmem:[%s177 + $0x64] sm:$0xf] %vm2449, %v2208
        %2476 = vst.msk [vmem:[%s177 + $0x68] sm:$0xf] %vm2449, %v2209
        %2477 = vst.msk [vmem:[%s177 + $0x6c] sm:$0xf] %vm2449, %v2210
        %2478 = vst.msk [vmem:[%s177 + $0x70] sm:$0xf] %vm2449, %v2211
        %2479 = vst.msk [vmem:[%s177 + $0x74] sm:$0xf] %vm2449, %v2212
        %2480 = vst.msk [vmem:[%s177 + $0x78] sm:$0xf] %vm2449, %v2213
        %2481 = vst.msk [vmem:[%s177 + $0x7c] sm:$0xf] %vm2449, %v2214
        %2482 = vst.msk [vmem:[%s177 + $0x80] sm:$0xf] %vm2449, %v2215
        %2483 = vst.msk [vmem:[%s177 + $0x84] sm:$0xf] %vm2449, %v2216
        %2484 = vst.msk [vmem:[%s177 + $0x88] sm:$0xf] %vm2449, %v2217
        %2485 = vst.msk [vmem:[%s177 + $0x8c] sm:$0xf] %vm2449, %v2218
        %2486 = vst.msk [vmem:[%s177 + $0x90] sm:$0xf] %vm2449, %v2219
        %2487 = vst.msk [vmem:[%s177 + $0x94] sm:$0xf] %vm2449, %v2220
        %2488 = vst.msk [vmem:[%s177 + $0x98] sm:$0xf] %vm2449, %v2221
        %2489 = vst.msk [vmem:[%s177 + $0x9c] sm:$0xf] %vm2449, %v2222
        %2490 = vst.msk [vmem:[%s177 + $0xa0] sm:$0xf] %vm2449, %v2223
        %2491 = vst.msk [vmem:[%s177 + $0xa4] sm:$0xf] %vm2449, %v2224
        %2492 = vst.msk [vmem:[%s177 + $0xa8] sm:$0xf] %vm2449, %v2225
        %2493 = vst.msk [vmem:[%s177 + $0xac] sm:$0xf] %vm2449, %v2226
        %2494 = vst.msk [vmem:[%s177 + $0xb0] sm:$0xf] %vm2449, %v2227
        %2495 = vst.msk [vmem:[%s177 + $0xb4] sm:$0xf] %vm2449, %v2228
        %2496 = vst.msk [vmem:[%s177 + $0xb8] sm:$0xf] %vm2449, %v2229
        %2497 = vst.msk [vmem:[%s177 + $0xbc] sm:$0xf] %vm2449, %v2230
        %2498 = vst.msk [vmem:[%s177 + $0xc0] sm:$0xf] %vm2449, %v2231
        %2499 = vst.msk [vmem:[%s177 + $0xc4] sm:$0xf] %vm2449, %v2232
        %2500 = vst.msk [vmem:[%s177 + $0xc8] sm:$0xf] %vm2449, %v2233
        %2501 = vst.msk [vmem:[%s177 + $0xcc] sm:$0xf] %vm2449, %v2234
        %2502 = vst.msk [vmem:[%s177 + $0xd0] sm:$0xf] %vm2449, %v2235
        %2503 = vst.msk [vmem:[%s177 + $0xd4] sm:$0xf] %vm2449, %v2236
        %2504 = vst.msk [vmem:[%s177 + $0xd8] sm:$0xf] %vm2449, %v2237
        %2505 = vst.msk [vmem:[%s177 + $0xdc] sm:$0xf] %vm2449, %v2238
        %2506 = vst.msk [vmem:[%s177 + $0xe0] sm:$0xf] %vm2449, %v2239
        %2507 = vst.msk [vmem:[%s177 + $0xe4] sm:$0xf] %vm2449, %v2240
        %2508 = vst.msk [vmem:[%s177 + $0xe8] sm:$0xf] %vm2449, %v2241
        %2509 = vst.msk [vmem:[%s177 + $0xec] sm:$0xf] %vm2449, %v2242
        %2510 = vst.msk [vmem:[%s177 + $0xf0] sm:$0xf] %vm2449, %v2243
        %2511 = vst.msk [vmem:[%s177 + $0xf4] sm:$0xf] %vm2449, %v2244
        %2512 = vst.msk [vmem:[%s177 + $0xf8] sm:$0xf] %vm2449, %v2245
        %2513 = vst.msk [vmem:[%s177 + $0xfc] sm:$0xf] %vm2449, %v2246
        %2514 = vst.msk [vmem:[%s177 + $0x100] sm:$0xf] %vm2449, %v2247
        %2515 = vst.msk [vmem:[%s177 + $0x104] sm:$0xf] %vm2449, %v2248
        %2516 = vst.msk [vmem:[%s177 + $0x108] sm:$0xf] %vm2449, %v2249
        %2517 = vst.msk [vmem:[%s177 + $0x10c] sm:$0xf] %vm2449, %v2250
        %2518 = vst.msk [vmem:[%s177 + $0x110] sm:$0xf] %vm2449, %v2251
        %2519 = vst.msk [vmem:[%s177 + $0x114] sm:$0xf] %vm2449, %v2252
        %2520 = vst.msk [vmem:[%s177 + $0x118] sm:$0xf] %vm2449, %v2253
        %2521 = vst.msk [vmem:[%s177 + $0x11c] sm:$0xf] %vm2449, %v2254
        %2522 = vst.msk [vmem:[%s177 + $0x120] sm:$0xf] %vm2449, %v2255
        %2523 = vst.msk [vmem:[%s177 + $0x124] sm:$0xf] %vm2449, %v2256
        %2524 = vst.msk [vmem:[%s177 + $0x128] sm:$0xf] %vm2449, %v2257
        %2525 = vst.msk [vmem:[%s177 + $0x12c] sm:$0xf] %vm2449, %v2258
        %2526 = vst.msk [vmem:[%s177 + $0x130] sm:$0xf] %vm2449, %v2259
        %2527 = vst.msk [vmem:[%s177 + $0x134] sm:$0xf] %vm2449, %v2260
        %2528 = vst.msk [vmem:[%s177 + $0x138] sm:$0xf] %vm2449, %v2261
        %2529 = vst.msk [vmem:[%s177 + $0x13c] sm:$0xf] %vm2449, %v2262
        %2530 = vst.msk [vmem:[%s177 + $0x140] sm:$0xf] %vm2449, %v2263
        %2531 = vst.msk [vmem:[%s177 + $0x144] sm:$0xf] %vm2449, %v2264
        %2532 = vst.msk [vmem:[%s177 + $0x148] sm:$0xf] %vm2449, %v2265
        %2533 = vst.msk [vmem:[%s177 + $0x14c] sm:$0xf] %vm2449, %v2266
        %2534 = vst.msk [vmem:[%s177 + $0x150] sm:$0xf] %vm2449, %v2267
        %2535 = vst.msk [vmem:[%s177 + $0x154] sm:$0xf] %vm2449, %v2268
        %2536 = vst.msk [vmem:[%s177 + $0x158] sm:$0xf] %vm2449, %v2269
        %2537 = vst.msk [vmem:[%s177 + $0x15c] sm:$0xf] %vm2449, %v2270
        %2538 = vst.msk [vmem:[%s177 + $0x160] sm:$0xf] %vm2449, %v2271
        %2539 = vst.msk [vmem:[%s177 + $0x164] sm:$0xf] %vm2449, %v2272
        %2540 = vst.msk [vmem:[%s177 + $0x168] sm:$0xf] %vm2449, %v2273
        %2541 = vst.msk [vmem:[%s177 + $0x16c] sm:$0xf] %vm2449, %v2274
        %2542 = vst.msk [vmem:[%s177 + $0x170] sm:$0xf] %vm2449, %v2275
        %2543 = vst.msk [vmem:[%s177 + $0x174] sm:$0xf] %vm2449, %v2276
        %2544 = vst.msk [vmem:[%s177 + $0x178] sm:$0xf] %vm2449, %v2277
        %2545 = vst.msk [vmem:[%s177 + $0x17c] sm:$0xf] %vm2449, %v2278
        %2546 = vst.msk [vmem:[%s177 + $0x180] sm:$0xf] %vm2449, %v2279
        %2547 = vst.msk [vmem:[%s177 + $0x184] sm:$0xf] %vm2449, %v2280
        %2548 = vst.msk [vmem:[%s177 + $0x188] sm:$0xf] %vm2449, %v2281
        %2549 = vst.msk [vmem:[%s177 + $0x18c] sm:$0xf] %vm2449, %v2282
        %2550 = vst.msk [vmem:[%s177 + $0x190] sm:$0xf] %vm2449, %v2283
        %2551 = vst.msk [vmem:[%s177 + $0x194] sm:$0xf] %vm2449, %v2284
        %2552 = vst.msk [vmem:[%s177 + $0x198] sm:$0xf] %vm2449, %v2285
        %2553 = vst.msk [vmem:[%s177 + $0x19c] sm:$0xf] %vm2449, %v2286
        %2554 = vst.msk [vmem:[%s177 + $0x1a0] sm:$0xf] %vm2449, %v2287
        %2555 = vst.msk [vmem:[%s177 + $0x1a4] sm:$0xf] %vm2449, %v2288
        %2556 = vst.msk [vmem:[%s177 + $0x1a8] sm:$0xf] %vm2449, %v2289
        %2557 = vst.msk [vmem:[%s177 + $0x1ac] sm:$0xf] %vm2449, %v2290
        %2558 = vst.msk [vmem:[%s177 + $0x1b0] sm:$0xf] %vm2449, %v2291
        %2559 = vst.msk [vmem:[%s177 + $0x1b4] sm:$0xf] %vm2449, %v2292
        %2560 = vst.msk [vmem:[%s177 + $0x1b8] sm:$0xf] %vm2449, %v2293
        %2561 = vst.msk [vmem:[%s177 + $0x1bc] sm:$0xf] %vm2449, %v2294
        %2562 = vst.msk [vmem:[%s177 + $0x1c0] sm:$0xf] %vm2449, %v2295
        %2563 = vst.msk [vmem:[%s177 + $0x1c4] sm:$0xf] %vm2449, %v2296
        %2564 = vst.msk [vmem:[%s177 + $0x1c8] sm:$0xf] %vm2449, %v2297
        %2565 = vst.msk [vmem:[%s177 + $0x1cc] sm:$0xf] %vm2449, %v2298
        %2566 = vst.msk [vmem:[%s177 + $0x1d0] sm:$0xf] %vm2449, %v2299
        %2567 = vst.msk [vmem:[%s177 + $0x1d4] sm:$0xf] %vm2449, %v2300
        %2568 = vst.msk [vmem:[%s177 + $0x1d8] sm:$0xf] %vm2449, %v2301
        %2569 = vst.msk [vmem:[%s177 + $0x1dc] sm:$0xf] %vm2449, %v2302
        %2570 = vst.msk [vmem:[%s177 + $0x1e0] sm:$0xf] %vm2449, %v2303
        %2571 = vst.msk [vmem:[%s177 + $0x1e4] sm:$0xf] %vm2449, %v2304
        %2572 = vst.msk [vmem:[%s177 + $0x1e8] sm:$0xf] %vm2449, %v2305
        %2573 = vst.msk [vmem:[%s177 + $0x1ec] sm:$0xf] %vm2449, %v2306
        %2574 = vst.msk [vmem:[%s177 + $0x1f0] sm:$0xf] %vm2449, %v2307
        %2575 = vst.msk [vmem:[%s177 + $0x1f4] sm:$0xf] %vm2449, %v2308
        %2576 = vst.msk [vmem:[%s177 + $0x1f8] sm:$0xf] %vm2449, %v2309
        %2577 = vst.msk [vmem:[%s177 + $0x1fc] sm:$0xf] %vm2449, %v2310
        %2578 = vst.msk [vmem:[%s177 + $0x200] sm:$0xf] %vm2449, %v2311
        %2579 = vst.msk [vmem:[%s177 + $0x204] sm:$0xf] %vm2449, %v2312
        %2580 = vst.msk [vmem:[%s177 + $0x208] sm:$0xf] %vm2449, %v2313
        %2581 = vst.msk [vmem:[%s177 + $0x20c] sm:$0xf] %vm2449, %v2314
        %2582 = vst.msk [vmem:[%s177 + $0x210] sm:$0xf] %vm2449, %v2315
        %s2583 = sand.u32 %s90, 1
        %s2584 = sand.u32 %s90, 1
        %s2585 = smul.addr %s2584, 532
        %s2586 = scalar_lea.vmem [#allocation2], %s2585
        // Predicated region
        $region33: #{cnno_forward.4} parent=31 // pred_check
          %p2587 = pneg %p100
        $region34: #{cnno_forward.4} parent=31 // pred_check_branch
          %2589 = sbr.rel (%p2587) target = $region36
        $region35: #{cnno_forward.4} parent=31 // pred_region
          %s2590 = smul.u32 133, %s14
          %s2591 = ssub.s32 529, %s2590
          %p2592 = scmp.lt.s32.totalorder %s2591, 133
          %s2593 = scalar_select %p2592, %s2591, 133
          %s2594 = smul.u32 64, %s2593
          %p2595 = scmp.ne.s32.totalorder 0, %s2594
          %s2596 = smul.addr %s2590, 4
          %s2597 = scalar_lea.vmem %s3, %s2596
          // Predicated region
          $region37: #{cnno_forward.4} parent=35 // pred_check
            %p2598 = pneg %p2595
          $region38: #{cnno_forward.4} parent=35 // pred_check_branch
            %2600 = sbr.rel (%p2598) target = $region40
          $region39: #{cnno_forward.4} parent=35 // pred_region
            // Predicated region
            $region41: #{cnno_forward.4} parent=39 // pred_check
              _
            $region42: #{cnno_forward.4} parent=39 // pred_check_branch
              %2602 = sbr.rel target = $region44
            $region43: #{cnno_forward.4} parent=39 // pred_region
              // Predicated region
              $region63: #{cnno_forward.4} parent=43 // pred_check
                _
              $region64: #{cnno_forward.4} parent=43 // pred_check_branch
                %2778 = sbr.rel (0) target = $region66
              $region65: #{cnno_forward.4} parent=43 // pred_region
                %s2780 = ssub.s32 16, 1
                %s2781 = sshrl.u32 %s2593, 6
                // While loop
                $region67: #{cnno_forward.4} parent=65 // loop_pre_header
                  _
                $region68: #{cnno_forward.4} parent=65 // loop_header
                  %s2783 = sphi 0, %s2785
                  %p2784 = scmp.ge.s32.totalorder %s2783, %s2781
                  %s2788 = sphi 0, %s2921
                  %s2789 = sphi %s2586, %s2924
                  %s2790 = sphi %s2597, %s2925
                $region69: #{cnno_forward.4} parent=65 // loop_header_branch
                  %2787 = sbr.rel (%p2784) target = $region73
                $region70: #{cnno_forward.4} parent=65 // loop_body
                  %v2791 = vld [vmem:[%s2789] sm:%s2780]
                  %2792 = vst [vmem:[%s2790] sm:%s2780] %v2791
                  %v2793 = vld [vmem:[%s2789 + $0x4] sm:%s2780]
                  %2794 = vst [vmem:[%s2790 + $0x4] sm:%s2780] %v2793
                  %v2795 = vld [vmem:[%s2789 + $0x8] sm:%s2780]
                  %2796 = vst [vmem:[%s2790 + $0x8] sm:%s2780] %v2795
                  %v2797 = vld [vmem:[%s2789 + $0xc] sm:%s2780]
                  %2798 = vst [vmem:[%s2790 + $0xc] sm:%s2780] %v2797
                  %v2799 = vld [vmem:[%s2789 + $0x10] sm:%s2780]
                  %2800 = vst [vmem:[%s2790 + $0x10] sm:%s2780] %v2799
                  %v2801 = vld [vmem:[%s2789 + $0x14] sm:%s2780]
                  %2802 = vst [vmem:[%s2790 + $0x14] sm:%s2780] %v2801
                  %v2803 = vld [vmem:[%s2789 + $0x18] sm:%s2780]
                  %2804 = vst [vmem:[%s2790 + $0x18] sm:%s2780] %v2803
                  %v2805 = vld [vmem:[%s2789 + $0x1c] sm:%s2780]
                  %2806 = vst [vmem:[%s2790 + $0x1c] sm:%s2780] %v2805
                  %v2807 = vld [vmem:[%s2789 + $0x20] sm:%s2780]
                  %2808 = vst [vmem:[%s2790 + $0x20] sm:%s2780] %v2807
                  %v2809 = vld [vmem:[%s2789 + $0x24] sm:%s2780]
                  %2810 = vst [vmem:[%s2790 + $0x24] sm:%s2780] %v2809
                  %v2811 = vld [vmem:[%s2789 + $0x28] sm:%s2780]
                  %2812 = vst [vmem:[%s2790 + $0x28] sm:%s2780] %v2811
                  %v2813 = vld [vmem:[%s2789 + $0x2c] sm:%s2780]
                  %2814 = vst [vmem:[%s2790 + $0x2c] sm:%s2780] %v2813
                  %v2815 = vld [vmem:[%s2789 + $0x30] sm:%s2780]
                  %2816 = vst [vmem:[%s2790 + $0x30] sm:%s2780] %v2815
                  %v2817 = vld [vmem:[%s2789 + $0x34] sm:%s2780]
                  %2818 = vst [vmem:[%s2790 + $0x34] sm:%s2780] %v2817
                  %v2819 = vld [vmem:[%s2789 + $0x38] sm:%s2780]
                  %2820 = vst [vmem:[%s2790 + $0x38] sm:%s2780] %v2819
                  %v2821 = vld [vmem:[%s2789 + $0x3c] sm:%s2780]
                  %2822 = vst [vmem:[%s2790 + $0x3c] sm:%s2780] %v2821
                  %v2823 = vld [vmem:[%s2789 + $0x40] sm:%s2780]
                  %2824 = vst [vmem:[%s2790 + $0x40] sm:%s2780] %v2823
                  %v2825 = vld [vmem:[%s2789 + $0x44] sm:%s2780]
                  %2826 = vst [vmem:[%s2790 + $0x44] sm:%s2780] %v2825
                  %v2827 = vld [vmem:[%s2789 + $0x48] sm:%s2780]
                  %2828 = vst [vmem:[%s2790 + $0x48] sm:%s2780] %v2827
                  %v2829 = vld [vmem:[%s2789 + $0x4c] sm:%s2780]
                  %2830 = vst [vmem:[%s2790 + $0x4c] sm:%s2780] %v2829
                  %v2831 = vld [vmem:[%s2789 + $0x50] sm:%s2780]
                  %2832 = vst [vmem:[%s2790 + $0x50] sm:%s2780] %v2831
                  %v2833 = vld [vmem:[%s2789 + $0x54] sm:%s2780]
                  %2834 = vst [vmem:[%s2790 + $0x54] sm:%s2780] %v2833
                  %v2835 = vld [vmem:[%s2789 + $0x58] sm:%s2780]
                  %2836 = vst [vmem:[%s2790 + $0x58] sm:%s2780] %v2835
                  %v2837 = vld [vmem:[%s2789 + $0x5c] sm:%s2780]
                  %2838 = vst [vmem:[%s2790 + $0x5c] sm:%s2780] %v2837
                  %v2839 = vld [vmem:[%s2789 + $0x60] sm:%s2780]
                  %2840 = vst [vmem:[%s2790 + $0x60] sm:%s2780] %v2839
                  %v2841 = vld [vmem:[%s2789 + $0x64] sm:%s2780]
                  %2842 = vst [vmem:[%s2790 + $0x64] sm:%s2780] %v2841
                  %v2843 = vld [vmem:[%s2789 + $0x68] sm:%s2780]
                  %2844 = vst [vmem:[%s2790 + $0x68] sm:%s2780] %v2843
                  %v2845 = vld [vmem:[%s2789 + $0x6c] sm:%s2780]
                  %2846 = vst [vmem:[%s2790 + $0x6c] sm:%s2780] %v2845
                  %v2847 = vld [vmem:[%s2789 + $0x70] sm:%s2780]
                  %2848 = vst [vmem:[%s2790 + $0x70] sm:%s2780] %v2847
                  %v2849 = vld [vmem:[%s2789 + $0x74] sm:%s2780]
                  %2850 = vst [vmem:[%s2790 + $0x74] sm:%s2780] %v2849
                  %v2851 = vld [vmem:[%s2789 + $0x78] sm:%s2780]
                  %2852 = vst [vmem:[%s2790 + $0x78] sm:%s2780] %v2851
                  %v2853 = vld [vmem:[%s2789 + $0x7c] sm:%s2780]
                  %2854 = vst [vmem:[%s2790 + $0x7c] sm:%s2780] %v2853
                  %v2855 = vld [vmem:[%s2789 + $0x80] sm:%s2780]
                  %2856 = vst [vmem:[%s2790 + $0x80] sm:%s2780] %v2855
                  %v2857 = vld [vmem:[%s2789 + $0x84] sm:%s2780]
                  %2858 = vst [vmem:[%s2790 + $0x84] sm:%s2780] %v2857
                  %v2859 = vld [vmem:[%s2789 + $0x88] sm:%s2780]
                  %2860 = vst [vmem:[%s2790 + $0x88] sm:%s2780] %v2859
                  %v2861 = vld [vmem:[%s2789 + $0x8c] sm:%s2780]
                  %2862 = vst [vmem:[%s2790 + $0x8c] sm:%s2780] %v2861
                  %v2863 = vld [vmem:[%s2789 + $0x90] sm:%s2780]
                  %2864 = vst [vmem:[%s2790 + $0x90] sm:%s2780] %v2863
                  %v2865 = vld [vmem:[%s2789 + $0x94] sm:%s2780]
                  %2866 = vst [vmem:[%s2790 + $0x94] sm:%s2780] %v2865
                  %v2867 = vld [vmem:[%s2789 + $0x98] sm:%s2780]
                  %2868 = vst [vmem:[%s2790 + $0x98] sm:%s2780] %v2867
                  %v2869 = vld [vmem:[%s2789 + $0x9c] sm:%s2780]
                  %2870 = vst [vmem:[%s2790 + $0x9c] sm:%s2780] %v2869
                  %v2871 = vld [vmem:[%s2789 + $0xa0] sm:%s2780]
                  %2872 = vst [vmem:[%s2790 + $0xa0] sm:%s2780] %v2871
                  %v2873 = vld [vmem:[%s2789 + $0xa4] sm:%s2780]
                  %2874 = vst [vmem:[%s2790 + $0xa4] sm:%s2780] %v2873
                  %v2875 = vld [vmem:[%s2789 + $0xa8] sm:%s2780]
                  %2876 = vst [vmem:[%s2790 + $0xa8] sm:%s2780] %v2875
                  %v2877 = vld [vmem:[%s2789 + $0xac] sm:%s2780]
                  %2878 = vst [vmem:[%s2790 + $0xac] sm:%s2780] %v2877
                  %v2879 = vld [vmem:[%s2789 + $0xb0] sm:%s2780]
                  %2880 = vst [vmem:[%s2790 + $0xb0] sm:%s2780] %v2879
                  %v2881 = vld [vmem:[%s2789 + $0xb4] sm:%s2780]
                  %2882 = vst [vmem:[%s2790 + $0xb4] sm:%s2780] %v2881
                  %v2883 = vld [vmem:[%s2789 + $0xb8] sm:%s2780]
                  %2884 = vst [vmem:[%s2790 + $0xb8] sm:%s2780] %v2883
                  %v2885 = vld [vmem:[%s2789 + $0xbc] sm:%s2780]
                  %2886 = vst [vmem:[%s2790 + $0xbc] sm:%s2780] %v2885
                  %v2887 = vld [vmem:[%s2789 + $0xc0] sm:%s2780]
                  %2888 = vst [vmem:[%s2790 + $0xc0] sm:%s2780] %v2887
                  %v2889 = vld [vmem:[%s2789 + $0xc4] sm:%s2780]
                  %2890 = vst [vmem:[%s2790 + $0xc4] sm:%s2780] %v2889
                  %v2891 = vld [vmem:[%s2789 + $0xc8] sm:%s2780]
                  %2892 = vst [vmem:[%s2790 + $0xc8] sm:%s2780] %v2891
                  %v2893 = vld [vmem:[%s2789 + $0xcc] sm:%s2780]
                  %2894 = vst [vmem:[%s2790 + $0xcc] sm:%s2780] %v2893
                  %v2895 = vld [vmem:[%s2789 + $0xd0] sm:%s2780]
                  %2896 = vst [vmem:[%s2790 + $0xd0] sm:%s2780] %v2895
                  %v2897 = vld [vmem:[%s2789 + $0xd4] sm:%s2780]
                  %2898 = vst [vmem:[%s2790 + $0xd4] sm:%s2780] %v2897
                  %v2899 = vld [vmem:[%s2789 + $0xd8] sm:%s2780]
                  %2900 = vst [vmem:[%s2790 + $0xd8] sm:%s2780] %v2899
                  %v2901 = vld [vmem:[%s2789 + $0xdc] sm:%s2780]
                  %2902 = vst [vmem:[%s2790 + $0xdc] sm:%s2780] %v2901
                  %v2903 = vld [vmem:[%s2789 + $0xe0] sm:%s2780]
                  %2904 = vst [vmem:[%s2790 + $0xe0] sm:%s2780] %v2903
                  %v2905 = vld [vmem:[%s2789 + $0xe4] sm:%s2780]
                  %2906 = vst [vmem:[%s2790 + $0xe4] sm:%s2780] %v2905
                  %v2907 = vld [vmem:[%s2789 + $0xe8] sm:%s2780]
                  %2908 = vst [vmem:[%s2790 + $0xe8] sm:%s2780] %v2907
                  %v2909 = vld [vmem:[%s2789 + $0xec] sm:%s2780]
                  %2910 = vst [vmem:[%s2790 + $0xec] sm:%s2780] %v2909
                  %v2911 = vld [vmem:[%s2789 + $0xf0] sm:%s2780]
                  %2912 = vst [vmem:[%s2790 + $0xf0] sm:%s2780] %v2911
                  %v2913 = vld [vmem:[%s2789 + $0xf4] sm:%s2780]
                  %2914 = vst [vmem:[%s2790 + $0xf4] sm:%s2780] %v2913
                  %v2915 = vld [vmem:[%s2789 + $0xf8] sm:%s2780]
                  %2916 = vst [vmem:[%s2790 + $0xf8] sm:%s2780] %v2915
                  %v2917 = vld [vmem:[%s2789 + $0xfc] sm:%s2780]
                  %2918 = vst [vmem:[%s2790 + $0xfc] sm:%s2780] %v2917
                  %s2919 = sadd.s32 1, %s2788
                  %p2920 = scmp.ge.s32.totalorder %s2919, %s2781
                  %s2921 = scalar_select %p2920, 0, %s2919
                  %s2922 = smul.u32 %s2921, 256
                  %s2923 = smul.u32 %s2921, 256
                  %s2924 = scalar_lea.vmem %s2586, %s2922 [#allocation2]
                  %s2925 = scalar_lea.vmem %s2597, %s2923
                $region71: #{cnno_forward.4} parent=65 // loop_footer
                  %s2785 = sadd.s32 %s2783, 1
                $region72: #{cnno_forward.4} parent=65 // loop_footer_branch
                  %2782 = sbr.rel target = $region68
                $region73: #{cnno_forward.4} parent=65 // loop_exit
                  _
                %s2926 = sshrl.u32 %s2593, 6
                %s2927 = sand.u32 %s2593, 63
                %s2928 = smul.u32 %s2926, 64
                %s2929 = smul.u32 4, %s2928
                %s2930 = scalar_lea.vmem %s2586, %s2929 [#allocation2]
                %s2931 = smul.u32 4, %s2928
                %s2932 = scalar_lea.vmem %s2597, %s2931
                // While loop
                $region74: #{cnno_forward.4} parent=65 // loop_pre_header
                  _
                $region75: #{cnno_forward.4} parent=65 // loop_header
                  %s2934 = sphi 0, %s2936
                  %p2935 = scmp.ge.s32.totalorder %s2934, %s2927
                  %s2939 = sphi 0, %s2946
                  %s2940 = sphi %s2930, %s2949
                  %s2941 = sphi %s2932, %s2950
                $region76: #{cnno_forward.4} parent=65 // loop_header_branch
                  %2938 = sbr.rel (%p2935) target = $region80
                $region77: #{cnno_forward.4} parent=65 // loop_body
                  %v2942 = vld [vmem:[%s2940] sm:%s2780]
                  %2943 = vst [vmem:[%s2941] sm:%s2780] %v2942
                  %s2944 = sadd.s32 1, %s2939
                  %p2945 = scmp.ge.s32.totalorder %s2944, %s2927
                  %s2946 = scalar_select %p2945, 0, %s2944
                  %s2947 = smul.u32 %s2946, 4
                  %s2948 = smul.u32 %s2946, 4
                  %s2949 = scalar_lea.vmem %s2930, %s2947 [#allocation2]
                  %s2950 = scalar_lea.vmem %s2932, %s2948
                $region78: #{cnno_forward.4} parent=65 // loop_footer
                  %s2936 = sadd.s32 %s2934, 1
                $region79: #{cnno_forward.4} parent=65 // loop_footer_branch
                  %2933 = sbr.rel target = $region75
                $region80: #{cnno_forward.4} parent=65 // loop_exit
                  _
              $region66: #{cnno_forward.4} parent=43 // pred_fallthru
                _
            $region44: #{cnno_forward.4} parent=39 // pred_fallthru
              _
            // Predicated region
            $region45: #{cnno_forward.4} parent=39 // pred_check
              _
            $region46: #{cnno_forward.4} parent=39 // pred_check_branch
              %2604 = sbr.rel (0) target = $region48
            $region47: #{cnno_forward.4} parent=39 // pred_region
              %s2606 = ssub.s32 16, 1
              %s2607 = sshrl.u32 %s2593, 6
              // While loop
              $region49: #{cnno_forward.4} parent=47 // loop_pre_header
                _
              $region50: #{cnno_forward.4} parent=47 // loop_header
                %s2609 = sphi 0, %s2611
                %p2610 = scmp.ge.s32.totalorder %s2609, %s2607
                %s2614 = sphi 0, %s2747
                %s2615 = sphi %s2586, %s2750
                %s2616 = sphi %s2597, %s2751
              $region51: #{cnno_forward.4} parent=47 // loop_header_branch
                %2613 = sbr.rel (%p2610) target = $region55
              $region52: #{cnno_forward.4} parent=47 // loop_body
                %v2617 = vld [vmem:[%s2615] sm:%s2606]
                %2618 = vst [vmem:[%s2616] sm:%s2606] %v2617
                %v2619 = vld [vmem:[%s2615 + $0x4] sm:%s2606]
                %2620 = vst [vmem:[%s2616 + $0x4] sm:%s2606] %v2619
                %v2621 = vld [vmem:[%s2615 + $0x8] sm:%s2606]
                %2622 = vst [vmem:[%s2616 + $0x8] sm:%s2606] %v2621
                %v2623 = vld [vmem:[%s2615 + $0xc] sm:%s2606]
                %2624 = vst [vmem:[%s2616 + $0xc] sm:%s2606] %v2623
                %v2625 = vld [vmem:[%s2615 + $0x10] sm:%s2606]
                %2626 = vst [vmem:[%s2616 + $0x10] sm:%s2606] %v2625
                %v2627 = vld [vmem:[%s2615 + $0x14] sm:%s2606]
                %2628 = vst [vmem:[%s2616 + $0x14] sm:%s2606] %v2627
                %v2629 = vld [vmem:[%s2615 + $0x18] sm:%s2606]
                %2630 = vst [vmem:[%s2616 + $0x18] sm:%s2606] %v2629
                %v2631 = vld [vmem:[%s2615 + $0x1c] sm:%s2606]
                %2632 = vst [vmem:[%s2616 + $0x1c] sm:%s2606] %v2631
                %v2633 = vld [vmem:[%s2615 + $0x20] sm:%s2606]
                %2634 = vst [vmem:[%s2616 + $0x20] sm:%s2606] %v2633
                %v2635 = vld [vmem:[%s2615 + $0x24] sm:%s2606]
                %2636 = vst [vmem:[%s2616 + $0x24] sm:%s2606] %v2635
                %v2637 = vld [vmem:[%s2615 + $0x28] sm:%s2606]
                %2638 = vst [vmem:[%s2616 + $0x28] sm:%s2606] %v2637
                %v2639 = vld [vmem:[%s2615 + $0x2c] sm:%s2606]
                %2640 = vst [vmem:[%s2616 + $0x2c] sm:%s2606] %v2639
                %v2641 = vld [vmem:[%s2615 + $0x30] sm:%s2606]
                %2642 = vst [vmem:[%s2616 + $0x30] sm:%s2606] %v2641
                %v2643 = vld [vmem:[%s2615 + $0x34] sm:%s2606]
                %2644 = vst [vmem:[%s2616 + $0x34] sm:%s2606] %v2643
                %v2645 = vld [vmem:[%s2615 + $0x38] sm:%s2606]
                %2646 = vst [vmem:[%s2616 + $0x38] sm:%s2606] %v2645
                %v2647 = vld [vmem:[%s2615 + $0x3c] sm:%s2606]
                %2648 = vst [vmem:[%s2616 + $0x3c] sm:%s2606] %v2647
                %v2649 = vld [vmem:[%s2615 + $0x40] sm:%s2606]
                %2650 = vst [vmem:[%s2616 + $0x40] sm:%s2606] %v2649
                %v2651 = vld [vmem:[%s2615 + $0x44] sm:%s2606]
                %2652 = vst [vmem:[%s2616 + $0x44] sm:%s2606] %v2651
                %v2653 = vld [vmem:[%s2615 + $0x48] sm:%s2606]
                %2654 = vst [vmem:[%s2616 + $0x48] sm:%s2606] %v2653
                %v2655 = vld [vmem:[%s2615 + $0x4c] sm:%s2606]
                %2656 = vst [vmem:[%s2616 + $0x4c] sm:%s2606] %v2655
                %v2657 = vld [vmem:[%s2615 + $0x50] sm:%s2606]
                %2658 = vst [vmem:[%s2616 + $0x50] sm:%s2606] %v2657
                %v2659 = vld [vmem:[%s2615 + $0x54] sm:%s2606]
                %2660 = vst [vmem:[%s2616 + $0x54] sm:%s2606] %v2659
                %v2661 = vld [vmem:[%s2615 + $0x58] sm:%s2606]
                %2662 = vst [vmem:[%s2616 + $0x58] sm:%s2606] %v2661
                %v2663 = vld [vmem:[%s2615 + $0x5c] sm:%s2606]
                %2664 = vst [vmem:[%s2616 + $0x5c] sm:%s2606] %v2663
                %v2665 = vld [vmem:[%s2615 + $0x60] sm:%s2606]
                %2666 = vst [vmem:[%s2616 + $0x60] sm:%s2606] %v2665
                %v2667 = vld [vmem:[%s2615 + $0x64] sm:%s2606]
                %2668 = vst [vmem:[%s2616 + $0x64] sm:%s2606] %v2667
                %v2669 = vld [vmem:[%s2615 + $0x68] sm:%s2606]
                %2670 = vst [vmem:[%s2616 + $0x68] sm:%s2606] %v2669
                %v2671 = vld [vmem:[%s2615 + $0x6c] sm:%s2606]
                %2672 = vst [vmem:[%s2616 + $0x6c] sm:%s2606] %v2671
                %v2673 = vld [vmem:[%s2615 + $0x70] sm:%s2606]
                %2674 = vst [vmem:[%s2616 + $0x70] sm:%s2606] %v2673
                %v2675 = vld [vmem:[%s2615 + $0x74] sm:%s2606]
                %2676 = vst [vmem:[%s2616 + $0x74] sm:%s2606] %v2675
                %v2677 = vld [vmem:[%s2615 + $0x78] sm:%s2606]
                %2678 = vst [vmem:[%s2616 + $0x78] sm:%s2606] %v2677
                %v2679 = vld [vmem:[%s2615 + $0x7c] sm:%s2606]
                %2680 = vst [vmem:[%s2616 + $0x7c] sm:%s2606] %v2679
                %v2681 = vld [vmem:[%s2615 + $0x80] sm:%s2606]
                %2682 = vst [vmem:[%s2616 + $0x80] sm:%s2606] %v2681
                %v2683 = vld [vmem:[%s2615 + $0x84] sm:%s2606]
                %2684 = vst [vmem:[%s2616 + $0x84] sm:%s2606] %v2683
                %v2685 = vld [vmem:[%s2615 + $0x88] sm:%s2606]
                %2686 = vst [vmem:[%s2616 + $0x88] sm:%s2606] %v2685
                %v2687 = vld [vmem:[%s2615 + $0x8c] sm:%s2606]
                %2688 = vst [vmem:[%s2616 + $0x8c] sm:%s2606] %v2687
                %v2689 = vld [vmem:[%s2615 + $0x90] sm:%s2606]
                %2690 = vst [vmem:[%s2616 + $0x90] sm:%s2606] %v2689
                %v2691 = vld [vmem:[%s2615 + $0x94] sm:%s2606]
                %2692 = vst [vmem:[%s2616 + $0x94] sm:%s2606] %v2691
                %v2693 = vld [vmem:[%s2615 + $0x98] sm:%s2606]
                %2694 = vst [vmem:[%s2616 + $0x98] sm:%s2606] %v2693
                %v2695 = vld [vmem:[%s2615 + $0x9c] sm:%s2606]
                %2696 = vst [vmem:[%s2616 + $0x9c] sm:%s2606] %v2695
                %v2697 = vld [vmem:[%s2615 + $0xa0] sm:%s2606]
                %2698 = vst [vmem:[%s2616 + $0xa0] sm:%s2606] %v2697
                %v2699 = vld [vmem:[%s2615 + $0xa4] sm:%s2606]
                %2700 = vst [vmem:[%s2616 + $0xa4] sm:%s2606] %v2699
                %v2701 = vld [vmem:[%s2615 + $0xa8] sm:%s2606]
                %2702 = vst [vmem:[%s2616 + $0xa8] sm:%s2606] %v2701
                %v2703 = vld [vmem:[%s2615 + $0xac] sm:%s2606]
                %2704 = vst [vmem:[%s2616 + $0xac] sm:%s2606] %v2703
                %v2705 = vld [vmem:[%s2615 + $0xb0] sm:%s2606]
                %2706 = vst [vmem:[%s2616 + $0xb0] sm:%s2606] %v2705
                %v2707 = vld [vmem:[%s2615 + $0xb4] sm:%s2606]
                %2708 = vst [vmem:[%s2616 + $0xb4] sm:%s2606] %v2707
                %v2709 = vld [vmem:[%s2615 + $0xb8] sm:%s2606]
                %2710 = vst [vmem:[%s2616 + $0xb8] sm:%s2606] %v2709
                %v2711 = vld [vmem:[%s2615 + $0xbc] sm:%s2606]
                %2712 = vst [vmem:[%s2616 + $0xbc] sm:%s2606] %v2711
                %v2713 = vld [vmem:[%s2615 + $0xc0] sm:%s2606]
                %2714 = vst [vmem:[%s2616 + $0xc0] sm:%s2606] %v2713
                %v2715 = vld [vmem:[%s2615 + $0xc4] sm:%s2606]
                %2716 = vst [vmem:[%s2616 + $0xc4] sm:%s2606] %v2715
                %v2717 = vld [vmem:[%s2615 + $0xc8] sm:%s2606]
                %2718 = vst [vmem:[%s2616 + $0xc8] sm:%s2606] %v2717
                %v2719 = vld [vmem:[%s2615 + $0xcc] sm:%s2606]
                %2720 = vst [vmem:[%s2616 + $0xcc] sm:%s2606] %v2719
                %v2721 = vld [vmem:[%s2615 + $0xd0] sm:%s2606]
                %2722 = vst [vmem:[%s2616 + $0xd0] sm:%s2606] %v2721
                %v2723 = vld [vmem:[%s2615 + $0xd4] sm:%s2606]
                %2724 = vst [vmem:[%s2616 + $0xd4] sm:%s2606] %v2723
                %v2725 = vld [vmem:[%s2615 + $0xd8] sm:%s2606]
                %2726 = vst [vmem:[%s2616 + $0xd8] sm:%s2606] %v2725
                %v2727 = vld [vmem:[%s2615 + $0xdc] sm:%s2606]
                %2728 = vst [vmem:[%s2616 + $0xdc] sm:%s2606] %v2727
                %v2729 = vld [vmem:[%s2615 + $0xe0] sm:%s2606]
                %2730 = vst [vmem:[%s2616 + $0xe0] sm:%s2606] %v2729
                %v2731 = vld [vmem:[%s2615 + $0xe4] sm:%s2606]
                %2732 = vst [vmem:[%s2616 + $0xe4] sm:%s2606] %v2731
                %v2733 = vld [vmem:[%s2615 + $0xe8] sm:%s2606]
                %2734 = vst [vmem:[%s2616 + $0xe8] sm:%s2606] %v2733
                %v2735 = vld [vmem:[%s2615 + $0xec] sm:%s2606]
                %2736 = vst [vmem:[%s2616 + $0xec] sm:%s2606] %v2735
                %v2737 = vld [vmem:[%s2615 + $0xf0] sm:%s2606]
                %2738 = vst [vmem:[%s2616 + $0xf0] sm:%s2606] %v2737
                %v2739 = vld [vmem:[%s2615 + $0xf4] sm:%s2606]
                %2740 = vst [vmem:[%s2616 + $0xf4] sm:%s2606] %v2739
                %v2741 = vld [vmem:[%s2615 + $0xf8] sm:%s2606]
                %2742 = vst [vmem:[%s2616 + $0xf8] sm:%s2606] %v2741
                %v2743 = vld [vmem:[%s2615 + $0xfc] sm:%s2606]
                %2744 = vst [vmem:[%s2616 + $0xfc] sm:%s2606] %v2743
                %s2745 = sadd.s32 1, %s2614
                %p2746 = scmp.ge.s32.totalorder %s2745, %s2607
                %s2747 = scalar_select %p2746, 0, %s2745
                %s2748 = smul.u32 %s2747, 256
                %s2749 = smul.u32 %s2747, 256
                %s2750 = scalar_lea.vmem %s2586, %s2748 [#allocation2]
                %s2751 = scalar_lea.vmem %s2597, %s2749
              $region53: #{cnno_forward.4} parent=47 // loop_footer
                %s2611 = sadd.s32 %s2609, 1
              $region54: #{cnno_forward.4} parent=47 // loop_footer_branch
                %2608 = sbr.rel target = $region50
              $region55: #{cnno_forward.4} parent=47 // loop_exit
                _
              %s2752 = sshrl.u32 %s2593, 6
              %s2753 = sand.u32 %s2593, 63
              %s2754 = smul.u32 %s2752, 64
              %s2755 = smul.u32 4, %s2754
              %s2756 = scalar_lea.vmem %s2586, %s2755 [#allocation2]
              %s2757 = smul.u32 4, %s2754
              %s2758 = scalar_lea.vmem %s2597, %s2757
              // While loop
              $region56: #{cnno_forward.4} parent=47 // loop_pre_header
                _
              $region57: #{cnno_forward.4} parent=47 // loop_header
                %s2760 = sphi 0, %s2762
                %p2761 = scmp.ge.s32.totalorder %s2760, %s2753
                %s2765 = sphi 0, %s2772
                %s2766 = sphi %s2756, %s2775
                %s2767 = sphi %s2758, %s2776
              $region58: #{cnno_forward.4} parent=47 // loop_header_branch
                %2764 = sbr.rel (%p2761) target = $region62
              $region59: #{cnno_forward.4} parent=47 // loop_body
                %v2768 = vld [vmem:[%s2766] sm:%s2606]
                %2769 = vst [vmem:[%s2767] sm:%s2606] %v2768
                %s2770 = sadd.s32 1, %s2765
                %p2771 = scmp.ge.s32.totalorder %s2770, %s2753
                %s2772 = scalar_select %p2771, 0, %s2770
                %s2773 = smul.u32 %s2772, 4
                %s2774 = smul.u32 %s2772, 4
                %s2775 = scalar_lea.vmem %s2756, %s2773 [#allocation2]
                %s2776 = scalar_lea.vmem %s2758, %s2774
              $region60: #{cnno_forward.4} parent=47 // loop_footer
                %s2762 = sadd.s32 %s2760, 1
              $region61: #{cnno_forward.4} parent=47 // loop_footer_branch
                %2759 = sbr.rel target = $region57
              $region62: #{cnno_forward.4} parent=47 // loop_exit
                _
            $region48: #{cnno_forward.4} parent=39 // pred_fallthru
              _
          $region40: #{cnno_forward.4} parent=35 // pred_fallthru
            _
          %2951 = vnop
        $region36: #{cnno_forward.4} parent=31 // pred_fallthru
          _
      $region32: #{cnno_forward.4} parent=5 // pred_fallthru
        _
      %p2952 = scmp.le.s32.totalorder 2, %s9
      // Predicated region
      $region81: #{cnno_forward.4} parent=5 // pred_check
        %p2953 = pneg %p2952
      $region82: #{cnno_forward.4} parent=5 // pred_check_branch
        %2955 = sbr.rel (%p2953) target = $region84
      $region83: #{cnno_forward.4} parent=5 // pred_region
        %s2956 = ssub.s32 %s9, 2
        // Predicated region
        $region85: #{cnno_forward.4} parent=83 // pred_check
          %p2957 = pneg %p106
        $region86: #{cnno_forward.4} parent=83 // pred_check_branch
          %2959 = sbr.rel (%p2957) target = $region88
        $region87: #{cnno_forward.4} parent=83 // pred_region
          %s2960 = sand.u32 %s91, 1
          %s2961 = sand.u32 %s91, 1
          %s2962 = smul.addr %s2961, 532
          %s2963 = scalar_lea.vmem [#allocation2], %s2962
        $region88: #{cnno_forward.4} parent=83 // pred_fallthru
          _
      $region84: #{cnno_forward.4} parent=5 // pred_fallthru
        _
    $region6: #{cnno_forward.4} parent=1 // loop_footer
      %s13 = sadd.s32 1, %s9
    $region7: #{cnno_forward.4} parent=1 // loop_footer_branch
      %8 = sbr.rel target = $region3
    $region8: #{cnno_forward.4} parent=1 // loop_exit
      _

// kernel: cnno_forward.5
$region0: #{cnno_forward.5}
  #allocation0 [shape = 'u32[]', space=smem, size = 0x4, offset = 0x4, fixed_abs, tag = 'smem constant byte address 0x4 - core index']
  #allocation1 [shape = 'u32[144,128]{1,0:T(1,128)}', space=vmem, size = 0x12000, scoped, tag = 'internal scratch']
  %s0 = inlined_call_operand.vmem [shape: bf16[882,576], index: 0, kind: input, shape index: {}]
  %s1 = inlined_call_operand.vmem [shape: bf16[576,32], index: 1, kind: input, shape index: {}]
  %s2 = inlined_call_operand.vmem [shape: f32[1,32], index: 2, kind: input, shape index: {}]
  %s3 = inlined_call_operand.vmem [shape: bf16[882,32], index: 3, kind: output, shape index: {}]
  %s4 = sld [smem:[#allocation0]]
  $region22: #{cnno_forward.5} parent=0
    _
  %s6 = ssub.s32 1, %s4
  %s7 = scalar_select 0, %s6, %s4
  // Predicated region
  $region2: #{cnno_forward.5} parent=0 // pred_check
    _
  $region3: #{cnno_forward.5} parent=0 // pred_check_branch
    %9 = sbr.rel (0) target = $region5
  $region4: #{cnno_forward.5} parent=0 // pred_region
    _
  $region5: #{cnno_forward.5} parent=0 // pred_fallthru
    _
  // Predicated region
  $region6: #{cnno_forward.5} parent=0 // pred_check
    _
  $region7: #{cnno_forward.5} parent=0 // pred_check_branch
    %11 = sbr.rel (0) target = $region9
  $region8: #{cnno_forward.5} parent=0 // pred_region
    _
  $region9: #{cnno_forward.5} parent=0 // pred_fallthru
    _
  // Predicated region
  $region10: #{cnno_forward.5} parent=0 // pred_check
    _
  $region11: #{cnno_forward.5} parent=0 // pred_check_branch
    %13 = sbr.rel (0) target = $region13
  $region12: #{cnno_forward.5} parent=0 // pred_region
    _
  $region13: #{cnno_forward.5} parent=0 // pred_fallthru
    _
  %v15 = vld [vmem:[%s0] sm:$0xff]
  %v16 = vld [vmem:[%s0 + $0x8] sm:$0xff]
  %v17 = vld [vmem:[%s0 + $0x10] sm:$0xf]
  %v18 = vld [vmem:[%s0 + $0x14] sm:$0xff]
  %v19 = vld [vmem:[%s0 + $0x1c] sm:$0xff]
  %v20 = vld [vmem:[%s0 + $0x24] sm:$0xf]
  %v21 = vld [vmem:[%s0 + $0x28] sm:$0xff]
  %v22 = vld [vmem:[%s0 + $0x30] sm:$0xff]
  %v23 = vld [vmem:[%s0 + $0x38] sm:$0xf]
  %v24 = vld [vmem:[%s0 + $0x3c] sm:$0xff]
  %v25 = vld [vmem:[%s0 + $0x44] sm:$0xff]
  %v26 = vld [vmem:[%s0 + $0x4c] sm:$0xf]
  %v27 = vld [vmem:[%s0 + $0x50] sm:$0xff]
  %v28 = vld [vmem:[%s0 + $0x58] sm:$0xff]
  %v29 = vld [vmem:[%s0 + $0x60] sm:$0xf]
  %v30 = vld [vmem:[%s0 + $0x64] sm:$0xff]
  %v31 = vld [vmem:[%s0 + $0x6c] sm:$0xff]
  %v32 = vld [vmem:[%s0 + $0x74] sm:$0xf]
  %v33 = vld [vmem:[%s0 + $0x78] sm:$0xff]
  %v34 = vld [vmem:[%s0 + $0x80] sm:$0xff]
  %v35 = vld [vmem:[%s0 + $0x88] sm:$0xf]
  %v36 = vld [vmem:[%s0 + $0x8c] sm:$0xff]
  %v37 = vld [vmem:[%s0 + $0x94] sm:$0xff]
  %v38 = vld [vmem:[%s0 + $0x9c] sm:$0xf]
  %v39 = vld [vmem:[%s0 + $0xa0] sm:$0xff]
  %v40 = vld [vmem:[%s0 + $0xa8] sm:$0xff]
  %v41 = vld [vmem:[%s0 + $0xb0] sm:$0xf]
  %v42 = vld [vmem:[%s0 + $0xb4] sm:$0xff]
  %v43 = vld [vmem:[%s0 + $0xbc] sm:$0xff]
  %v44 = vld [vmem:[%s0 + $0xc4] sm:$0xf]
  %v45 = vld [vmem:[%s0 + $0xc8] sm:$0xff]
  %v46 = vld [vmem:[%s0 + $0xd0] sm:$0xff]
  %v47 = vld [vmem:[%s0 + $0xd8] sm:$0xf]
  %v48 = vld [vmem:[%s0 + $0xdc] sm:$0xff]
  %v49 = vld [vmem:[%s0 + $0xe4] sm:$0xff]
  %v50 = vld [vmem:[%s0 + $0xec] sm:$0xf]
  %v51 = vld [vmem:[%s0 + $0xf0] sm:$0xff]
  %v52 = vld [vmem:[%s0 + $0xf8] sm:$0xff]
  %v53 = vld [vmem:[%s0 + $0x100] sm:$0xf]
  %v54 = vld [vmem:[%s0 + $0x104] sm:$0xff]
  %v55 = vld [vmem:[%s0 + $0x10c] sm:$0xff]
  %v56 = vld [vmem:[%s0 + $0x114] sm:$0xf]
  %v57 = vld [vmem:[%s0 + $0x118] sm:$0xff]
  %v58 = vld [vmem:[%s0 + $0x120] sm:$0xff]
  %v59 = vld [vmem:[%s0 + $0x128] sm:$0xf]
  %v60 = vld [vmem:[%s0 + $0x12c] sm:$0xff]
  %v61 = vld [vmem:[%s0 + $0x134] sm:$0xff]
  %v62 = vld [vmem:[%s0 + $0x13c] sm:$0xf]
  %v63 = vld [vmem:[%s0 + $0x140] sm:$0xff]
  %v64 = vld [vmem:[%s0 + $0x148] sm:$0xff]
  %v65 = vld [vmem:[%s0 + $0x150] sm:$0xf]
  %v66 = vld [vmem:[%s0 + $0x154] sm:$0xff]
  %v67 = vld [vmem:[%s0 + $0x15c] sm:$0xff]
  %v68 = vld [vmem:[%s0 + $0x164] sm:$0xf]
  %v69 = vld [vmem:[%s0 + $0x168] sm:$0xff]
  %v70 = vld [vmem:[%s0 + $0x170] sm:$0xff]
  %v71 = vld [vmem:[%s0 + $0x178] sm:$0xf]
  %v72 = vld [vmem:[%s0 + $0x17c] sm:$0xff]
  %v73 = vld [vmem:[%s0 + $0x184] sm:$0xff]
  %v74 = vld [vmem:[%s0 + $0x18c] sm:$0xf]
  %v75 = vld [vmem:[%s0 + $0x190] sm:$0xff]
  %v76 = vld [vmem:[%s0 + $0x198] sm:$0xff]
  %v77 = vld [vmem:[%s0 + $0x1a0] sm:$0xf]
  %v78 = vld [vmem:[%s0 + $0x1a4] sm:$0xff]
  %v79 = vld [vmem:[%s0 + $0x1ac] sm:$0xff]
  %v80 = vld [vmem:[%s0 + $0x1b4] sm:$0xf]
  %v81 = vld [vmem:[%s0 + $0x1b8] sm:$0xff]
  %v82 = vld [vmem:[%s0 + $0x1c0] sm:$0xff]
  %v83 = vld [vmem:[%s0 + $0x1c8] sm:$0xf]
  %v84 = vld [vmem:[%s0 + $0x1cc] sm:$0xff]
  %v85 = vld [vmem:[%s0 + $0x1d4] sm:$0xff]
  %v86 = vld [vmem:[%s0 + $0x1dc] sm:$0xf]
  %v87 = vld [vmem:[%s0 + $0x1e0] sm:$0xff]
  %v88 = vld [vmem:[%s0 + $0x1e8] sm:$0xff]
  %v89 = vld [vmem:[%s0 + $0x1f0] sm:$0xf]
  %v90 = vld [vmem:[%s0 + $0x1f4] sm:$0xff]
  %v91 = vld [vmem:[%s0 + $0x1fc] sm:$0xff]
  %v92 = vld [vmem:[%s0 + $0x204] sm:$0xf]
  %v93 = vld [vmem:[%s0 + $0x208] sm:$0xff]
  %v94 = vld [vmem:[%s0 + $0x210] sm:$0xff]
  %v95 = vld [vmem:[%s0 + $0x218] sm:$0xf]
  %v96 = vld [vmem:[%s0 + $0x21c] sm:$0xff]
  %v97 = vld [vmem:[%s0 + $0x224] sm:$0xff]
  %v98 = vld [vmem:[%s0 + $0x22c] sm:$0xf]
  %v99 = vld [vmem:[%s0 + $0x230] sm:$0xff]
  %v100 = vld [vmem:[%s0 + $0x238] sm:$0xff]
  %v101 = vld [vmem:[%s0 + $0x240] sm:$0xf]
  %v102 = vld [vmem:[%s0 + $0x244] sm:$0xff]
  %v103 = vld [vmem:[%s0 + $0x24c] sm:$0xff]
  %v104 = vld [vmem:[%s0 + $0x254] sm:$0xf]
  %v105 = vld [vmem:[%s0 + $0x258] sm:$0xff]
  %v106 = vld [vmem:[%s0 + $0x260] sm:$0xff]
  %v107 = vld [vmem:[%s0 + $0x268] sm:$0xf]
  %v108 = vld [vmem:[%s0 + $0x26c] sm:$0xff]
  %v109 = vld [vmem:[%s0 + $0x274] sm:$0xff]
  %v110 = vld [vmem:[%s0 + $0x27c] sm:$0xf]
  %v111 = vld [vmem:[%s0 + $0x280] sm:$0xff]
  %v112 = vld [vmem:[%s0 + $0x288] sm:$0xff]
  %v113 = vld [vmem:[%s0 + $0x290] sm:$0xf]
  %v114 = vld [vmem:[%s0 + $0x294] sm:$0xff]
  %v115 = vld [vmem:[%s0 + $0x29c] sm:$0xff]
  %v116 = vld [vmem:[%s0 + $0x2a4] sm:$0xf]
  %v117 = vld [vmem:[%s0 + $0x2a8] sm:$0xff]
  %v118 = vld [vmem:[%s0 + $0x2b0] sm:$0xff]
  %v119 = vld [vmem:[%s0 + $0x2b8] sm:$0xf]
  %v120 = vld [vmem:[%s0 + $0x2bc] sm:$0xff]
  %v121 = vld [vmem:[%s0 + $0x2c4] sm:$0xff]
  %v122 = vld [vmem:[%s0 + $0x2cc] sm:$0xf]
  %v123 = vld [vmem:[%s0 + $0x2d0] sm:$0xff]
  %v124 = vld [vmem:[%s0 + $0x2d8] sm:$0xff]
  %v125 = vld [vmem:[%s0 + $0x2e0] sm:$0xf]
  %v126 = vld [vmem:[%s0 + $0x2e4] sm:$0xff]
  %v127 = vld [vmem:[%s0 + $0x2ec] sm:$0xff]
  %v128 = vld [vmem:[%s0 + $0x2f4] sm:$0xf]
  %v129 = vld [vmem:[%s0 + $0x2f8] sm:$0xff]
  %v130 = vld [vmem:[%s0 + $0x300] sm:$0xff]
  %v131 = vld [vmem:[%s0 + $0x308] sm:$0xf]
  %v132 = vld [vmem:[%s0 + $0x30c] sm:$0xff]
  %v133 = vld [vmem:[%s0 + $0x314] sm:$0xff]
  %v134 = vld [vmem:[%s0 + $0x31c] sm:$0xf]
  %v135 = vld [vmem:[%s0 + $0x320] sm:$0xff]
  %v136 = vld [vmem:[%s0 + $0x328] sm:$0xff]
  %v137 = vld [vmem:[%s0 + $0x330] sm:$0xf]
  %v138 = vld [vmem:[%s0 + $0x334] sm:$0xff]
  %v139 = vld [vmem:[%s0 + $0x33c] sm:$0xff]
  %v140 = vld [vmem:[%s0 + $0x344] sm:$0xf]
  %v141 = vld [vmem:[%s0 + $0x348] sm:$0xff]
  %v142 = vld [vmem:[%s0 + $0x350] sm:$0xff]
  %v143 = vld [vmem:[%s0 + $0x358] sm:$0xf]
  %v144 = vld [vmem:[%s0 + $0x35c] sm:$0xff]
  %v145 = vld [vmem:[%s0 + $0x364] sm:$0xff]
  %v146 = vld [vmem:[%s0 + $0x36c] sm:$0xf]
  %v147 = vld [vmem:[%s0 + $0x370] sm:$0xff]
  %v148 = vld [vmem:[%s0 + $0x378] sm:$0xff]
  %v149 = vld [vmem:[%s0 + $0x380] sm:$0xf]
  %v150 = vld [vmem:[%s0 + $0x384] sm:$0xff]
  %v151 = vld [vmem:[%s0 + $0x38c] sm:$0xff]
  %v152 = vld [vmem:[%s0 + $0x394] sm:$0xf]
  %v153 = vld [vmem:[%s0 + $0x398] sm:$0xff]
  %v154 = vld [vmem:[%s0 + $0x3a0] sm:$0xff]
  %v155 = vld [vmem:[%s0 + $0x3a8] sm:$0xf]
  %v156 = vld [vmem:[%s0 + $0x3ac] sm:$0xff]
  %v157 = vld [vmem:[%s0 + $0x3b4] sm:$0xff]
  %v158 = vld [vmem:[%s0 + $0x3bc] sm:$0xf]
  %v159 = vld [vmem:[%s0 + $0x3c0] sm:$0xff]
  %v160 = vld [vmem:[%s0 + $0x3c8] sm:$0xff]
  %v161 = vld [vmem:[%s0 + $0x3d0] sm:$0xf]
  %v162 = vld [vmem:[%s0 + $0x3d4] sm:$0xff]
  %v163 = vld [vmem:[%s0 + $0x3dc] sm:$0xff]
  %v164 = vld [vmem:[%s0 + $0x3e4] sm:$0xf]
  %v165 = vld [vmem:[%s0 + $0x3e8] sm:$0xff]
  %v166 = vld [vmem:[%s0 + $0x3f0] sm:$0xff]
  %v167 = vld [vmem:[%s0 + $0x3f8] sm:$0xf]
  %v168 = vld [vmem:[%s0 + $0x3fc] sm:$0xff]
  %v169 = vld [vmem:[%s0 + $0x404] sm:$0xff]
  %v170 = vld [vmem:[%s0 + $0x40c] sm:$0xf]
  %v171 = vld [vmem:[%s0 + $0x410] sm:$0xff]
  %v172 = vld [vmem:[%s0 + $0x418] sm:$0xff]
  %v173 = vld [vmem:[%s0 + $0x420] sm:$0xf]
  %v174 = vld [vmem:[%s0 + $0x424] sm:$0xff]
  %v175 = vld [vmem:[%s0 + $0x42c] sm:$0xff]
  %v176 = vld [vmem:[%s0 + $0x434] sm:$0xf]
  %v177 = vld [vmem:[%s0 + $0x438] sm:$0xff]
  %v178 = vld [vmem:[%s0 + $0x440] sm:$0xff]
  %v179 = vld [vmem:[%s0 + $0x448] sm:$0xf]
  %v180 = vld [vmem:[%s0 + $0x44c] sm:$0xff]
  %v181 = vld [vmem:[%s0 + $0x454] sm:$0xff]
  %v182 = vld [vmem:[%s0 + $0x45c] sm:$0xf]
  %v183 = vld [vmem:[%s0 + $0x460] sm:$0xff]
  %v184 = vld [vmem:[%s0 + $0x468] sm:$0xff]
  %v185 = vld [vmem:[%s0 + $0x470] sm:$0xf]
  %v186 = vld [vmem:[%s0 + $0x474] sm:$0xff]
  %v187 = vld [vmem:[%s0 + $0x47c] sm:$0xff]
  %v188 = vld [vmem:[%s0 + $0x484] sm:$0xf]
  %v189 = vld [vmem:[%s0 + $0x488] sm:$0xff]
  %v190 = vld [vmem:[%s0 + $0x490] sm:$0xff]
  %v191 = vld [vmem:[%s0 + $0x498] sm:$0xf]
  %v192 = vld [vmem:[%s0 + $0x49c] sm:$0xff]
  %v193 = vld [vmem:[%s0 + $0x4a4] sm:$0xff]
  %v194 = vld [vmem:[%s0 + $0x4ac] sm:$0xf]
  %v195 = vld [vmem:[%s0 + $0x4b0] sm:$0xff]
  %v196 = vld [vmem:[%s0 + $0x4b8] sm:$0xff]
  %v197 = vld [vmem:[%s0 + $0x4c0] sm:$0xf]
  %v198 = vld [vmem:[%s0 + $0x4c4] sm:$0xff]
  %v199 = vld [vmem:[%s0 + $0x4cc] sm:$0xff]
  %v200 = vld [vmem:[%s0 + $0x4d4] sm:$0xf]
  %v201 = vld [vmem:[%s0 + $0x4d8] sm:$0xff]
  %v202 = vld [vmem:[%s0 + $0x4e0] sm:$0xff]
  %v203 = vld [vmem:[%s0 + $0x4e8] sm:$0xf]
  %v204 = vld [vmem:[%s0 + $0x4ec] sm:$0xff]
  %v205 = vld [vmem:[%s0 + $0x4f4] sm:$0xff]
  %v206 = vld [vmem:[%s0 + $0x4fc] sm:$0xf]
  %v207 = vld [vmem:[%s0 + $0x500] sm:$0xff]
  %v208 = vld [vmem:[%s0 + $0x508] sm:$0xff]
  %v209 = vld [vmem:[%s0 + $0x510] sm:$0xf]
  %v210 = vld [vmem:[%s0 + $0x514] sm:$0xff]
  %v211 = vld [vmem:[%s0 + $0x51c] sm:$0xff]
  %v212 = vld [vmem:[%s0 + $0x524] sm:$0xf]
  %v213 = vld [vmem:[%s0 + $0x528] sm:$0xff]
  %v214 = vld [vmem:[%s0 + $0x530] sm:$0xff]
  %v215 = vld [vmem:[%s0 + $0x538] sm:$0xf]
  %v216 = vld [vmem:[%s0 + $0x53c] sm:$0xff]
  %v217 = vld [vmem:[%s0 + $0x544] sm:$0xff]
  %v218 = vld [vmem:[%s0 + $0x54c] sm:$0xf]
  %v219 = vld [vmem:[%s0 + $0x550] sm:$0xff]
  %v220 = vld [vmem:[%s0 + $0x558] sm:$0xff]
  %v221 = vld [vmem:[%s0 + $0x560] sm:$0xf]
  %v222 = vld [vmem:[%s0 + $0x564] sm:$0xff]
  %v223 = vld [vmem:[%s0 + $0x56c] sm:$0xff]
  %v224 = vld [vmem:[%s0 + $0x574] sm:$0xf]
  %v225 = vld [vmem:[%s0 + $0x578] sm:$0xff]
  %v226 = vld [vmem:[%s0 + $0x580] sm:$0xff]
  %v227 = vld [vmem:[%s0 + $0x588] sm:$0xf]
  %v228 = vld [vmem:[%s0 + $0x58c] sm:$0xff]
  %v229 = vld [vmem:[%s0 + $0x594] sm:$0xff]
  %v230 = vld [vmem:[%s0 + $0x59c] sm:$0xf]
  %v231 = vld [vmem:[%s0 + $0x5a0] sm:$0xff]
  %v232 = vld [vmem:[%s0 + $0x5a8] sm:$0xff]
  %v233 = vld [vmem:[%s0 + $0x5b0] sm:$0xf]
  %v234 = vld [vmem:[%s0 + $0x5b4] sm:$0xff]
  %v235 = vld [vmem:[%s0 + $0x5bc] sm:$0xff]
  %v236 = vld [vmem:[%s0 + $0x5c4] sm:$0xf]
  %v237 = vld [vmem:[%s0 + $0x5c8] sm:$0xff]
  %v238 = vld [vmem:[%s0 + $0x5d0] sm:$0xff]
  %v239 = vld [vmem:[%s0 + $0x5d8] sm:$0xf]
  %v240 = vld [vmem:[%s0 + $0x5dc] sm:$0xff]
  %v241 = vld [vmem:[%s0 + $0x5e4] sm:$0xff]
  %v242 = vld [vmem:[%s0 + $0x5ec] sm:$0xf]
  %v243 = vld [vmem:[%s0 + $0x5f0] sm:$0xff]
  %v244 = vld [vmem:[%s0 + $0x5f8] sm:$0xff]
  %v245 = vld [vmem:[%s0 + $0x600] sm:$0xf]
  %v246 = vld [vmem:[%s0 + $0x604] sm:$0xff]
  %v247 = vld [vmem:[%s0 + $0x60c] sm:$0xff]
  %v248 = vld [vmem:[%s0 + $0x614] sm:$0xf]
  %v249 = vld [vmem:[%s0 + $0x618] sm:$0xff]
  %v250 = vld [vmem:[%s0 + $0x620] sm:$0xff]
  %v251 = vld [vmem:[%s0 + $0x628] sm:$0xf]
  %v252 = vld [vmem:[%s0 + $0x62c] sm:$0xff]
  %v253 = vld [vmem:[%s0 + $0x634] sm:$0xff]
  %v254 = vld [vmem:[%s0 + $0x63c] sm:$0xf]
  %v255 = vld [vmem:[%s0 + $0x640] sm:$0xff]
  %v256 = vld [vmem:[%s0 + $0x648] sm:$0xff]
  %v257 = vld [vmem:[%s0 + $0x650] sm:$0xf]
  %v258 = vld [vmem:[%s0 + $0x654] sm:$0xff]
  %v259 = vld [vmem:[%s0 + $0x65c] sm:$0xff]
  %v260 = vld [vmem:[%s0 + $0x664] sm:$0xf]
  %v261 = vld [vmem:[%s0 + $0x668] sm:$0xff]
  %v262 = vld [vmem:[%s0 + $0x670] sm:$0xff]
  %v263 = vld [vmem:[%s0 + $0x678] sm:$0xf]
  %v264 = vld [vmem:[%s0 + $0x67c] sm:$0xff]
  %v265 = vld [vmem:[%s0 + $0x684] sm:$0xff]
  %v266 = vld [vmem:[%s0 + $0x68c] sm:$0xf]
  %v267 = vld [vmem:[%s0 + $0x690] sm:$0xff]
  %v268 = vld [vmem:[%s0 + $0x698] sm:$0xff]
  %v269 = vld [vmem:[%s0 + $0x6a0] sm:$0xf]
  %v270 = vld [vmem:[%s0 + $0x6a4] sm:$0xff]
  %v271 = vld [vmem:[%s0 + $0x6ac] sm:$0xff]
  %v272 = vld [vmem:[%s0 + $0x6b4] sm:$0xf]
  %v273 = vld [vmem:[%s0 + $0x6b8] sm:$0xff]
  %v274 = vld [vmem:[%s0 + $0x6c0] sm:$0xff]
  %v275 = vld [vmem:[%s0 + $0x6c8] sm:$0xf]
  %v276 = vld [vmem:[%s0 + $0x6cc] sm:$0xff]
  %v277 = vld [vmem:[%s0 + $0x6d4] sm:$0xff]
  %v278 = vld [vmem:[%s0 + $0x6dc] sm:$0xf]
  %v279 = vld [vmem:[%s0 + $0x6e0] sm:$0xff]
  %v280 = vld [vmem:[%s0 + $0x6e8] sm:$0xff]
  %v281 = vld [vmem:[%s0 + $0x6f0] sm:$0xf]
  %v282 = vld [vmem:[%s0 + $0x6f4] sm:$0xff]
  %v283 = vld [vmem:[%s0 + $0x6fc] sm:$0xff]
  %v284 = vld [vmem:[%s0 + $0x704] sm:$0xf]
  %v285 = vld [vmem:[%s0 + $0x708] sm:$0xff]
  %v286 = vld [vmem:[%s0 + $0x710] sm:$0xff]
  %v287 = vld [vmem:[%s0 + $0x718] sm:$0xf]
  %v288 = vld [vmem:[%s0 + $0x71c] sm:$0xff]
  %v289 = vld [vmem:[%s0 + $0x724] sm:$0xff]
  %v290 = vld [vmem:[%s0 + $0x72c] sm:$0xf]
  %v291 = vld [vmem:[%s0 + $0x730] sm:$0xff]
  %v292 = vld [vmem:[%s0 + $0x738] sm:$0xff]
  %v293 = vld [vmem:[%s0 + $0x740] sm:$0xf]
  %v294 = vld [vmem:[%s0 + $0x744] sm:$0xff]
  %v295 = vld [vmem:[%s0 + $0x74c] sm:$0xff]
  %v296 = vld [vmem:[%s0 + $0x754] sm:$0xf]
  %v297 = vld [vmem:[%s0 + $0x758] sm:$0xff]
  %v298 = vld [vmem:[%s0 + $0x760] sm:$0xff]
  %v299 = vld [vmem:[%s0 + $0x768] sm:$0xf]
  %v300 = vld [vmem:[%s0 + $0x76c] sm:$0xff]
  %v301 = vld [vmem:[%s0 + $0x774] sm:$0xff]
  %v302 = vld [vmem:[%s0 + $0x77c] sm:$0xf]
  %v303 = vld [vmem:[%s0 + $0x780] sm:$0xff]
  %v304 = vld [vmem:[%s0 + $0x788] sm:$0xff]
  %v305 = vld [vmem:[%s0 + $0x790] sm:$0xf]
  %v306 = vld [vmem:[%s0 + $0x794] sm:$0xff]
  %v307 = vld [vmem:[%s0 + $0x79c] sm:$0xff]
  %v308 = vld [vmem:[%s0 + $0x7a4] sm:$0xf]
  %v309 = vld [vmem:[%s0 + $0x7a8] sm:$0xff]
  %v310 = vld [vmem:[%s0 + $0x7b0] sm:$0xff]
  %v311 = vld [vmem:[%s0 + $0x7b8] sm:$0xf]
  %v312 = vld [vmem:[%s0 + $0x7bc] sm:$0xff]
  %v313 = vld [vmem:[%s0 + $0x7c4] sm:$0xff]
  %v314 = vld [vmem:[%s0 + $0x7cc] sm:$0xf]
  %v315 = vld [vmem:[%s0 + $0x7d0] sm:$0xff]
  %v316 = vld [vmem:[%s0 + $0x7d8] sm:$0xff]
  %v317 = vld [vmem:[%s0 + $0x7e0] sm:$0xf]
  %v318 = vld [vmem:[%s0 + $0x7e4] sm:$0xff]
  %v319 = vld [vmem:[%s0 + $0x7ec] sm:$0xff]
  %v320 = vld [vmem:[%s0 + $0x7f4] sm:$0xf]
  %v321 = vld [vmem:[%s0 + $0x7f8] sm:$0xff]
  %v322 = vld [vmem:[%s0 + $0x800] sm:$0xff]
  %v323 = vld [vmem:[%s0 + $0x808] sm:$0xf]
  %v324 = vld [vmem:[%s0 + $0x80c] sm:$0xff]
  %v325 = vld [vmem:[%s0 + $0x814] sm:$0xff]
  %v326 = vld [vmem:[%s0 + $0x81c] sm:$0xf]
  %v327 = vld [vmem:[%s0 + $0x820] sm:$0xff]
  %v328 = vld [vmem:[%s0 + $0x828] sm:$0xff]
  %v329 = vld [vmem:[%s0 + $0x830] sm:$0xf]
  %v330 = vld [vmem:[%s0 + $0x834] sm:$0xff]
  %v331 = vld [vmem:[%s0 + $0x83c] sm:$0xff]
  %v332 = vld [vmem:[%s0 + $0x844] sm:$0xf]
  %v333 = vld [vmem:[%s0 + $0x848] sm:$0xff]
  %v334 = vld [vmem:[%s0 + $0x850] sm:$0xff]
  %v335 = vld [vmem:[%s0 + $0x858] sm:$0xf]
  %v336 = vld [vmem:[%s0 + $0x85c] sm:$0xff]
  %v337 = vld [vmem:[%s0 + $0x864] sm:$0xff]
  %v338 = vld [vmem:[%s0 + $0x86c] sm:$0xf]
  %v339 = vld [vmem:[%s0 + $0x870] sm:$0xff]
  %v340 = vld [vmem:[%s0 + $0x878] sm:$0xff]
  %v341 = vld [vmem:[%s0 + $0x880] sm:$0xf]
  %v342 = vld [vmem:[%s0 + $0x884] sm:$0xff]
  %v343 = vld [vmem:[%s0 + $0x88c] sm:$0xff]
  %v344 = vld [vmem:[%s0 + $0x894] sm:$0xf]
  %v345 = vld [vmem:[%s0 + $0x898] sm:$0x11]
  %v346 = vld [vmem:[%s0 + $0x8a0] sm:$0x11]
  %v347 = vld [vmem:[%s0 + $0x8a8] sm:$0x1]
  %v348 = vld [vmem:[%s1] sm:$0xf]
  %v349 = vld [vmem:[%s1 + $0x4] sm:$0xf]
  %v350 = vld [vmem:[%s1 + $0x8] sm:$0xf]
  %v351 = vld [vmem:[%s1 + $0xc] sm:$0xf]
  %v352 = vld [vmem:[%s1 + $0x10] sm:$0xf]
  %v353 = vld [vmem:[%s1 + $0x14] sm:$0xf]
  %v354 = vld [vmem:[%s1 + $0x18] sm:$0xf]
  %v355 = vld [vmem:[%s1 + $0x1c] sm:$0xf]
  %v356 = vld [vmem:[%s1 + $0x20] sm:$0xf]
  %v357 = vld [vmem:[%s1 + $0x24] sm:$0xf]
  %v358 = vld [vmem:[%s1 + $0x28] sm:$0xf]
  %v359 = vld [vmem:[%s1 + $0x2c] sm:$0xf]
  %v360 = vld [vmem:[%s1 + $0x30] sm:$0xf]
  %v361 = vld [vmem:[%s1 + $0x34] sm:$0xf]
  %v362 = vld [vmem:[%s1 + $0x38] sm:$0xf]
  %v363 = vld [vmem:[%s1 + $0x3c] sm:$0xf]
  %v364 = vld [vmem:[%s1 + $0x40] sm:$0xf]
  %v365 = vld [vmem:[%s1 + $0x44] sm:$0xf]
  %v366 = vld [vmem:[%s1 + $0x48] sm:$0xf]
  %v367 = vld [vmem:[%s1 + $0x4c] sm:$0xf]
  %v368 = vld [vmem:[%s1 + $0x50] sm:$0xf]
  %v369 = vld [vmem:[%s1 + $0x54] sm:$0xf]
  %v370 = vld [vmem:[%s1 + $0x58] sm:$0xf]
  %v371 = vld [vmem:[%s1 + $0x5c] sm:$0xf]
  %v372 = vld [vmem:[%s1 + $0x60] sm:$0xf]
  %v373 = vld [vmem:[%s1 + $0x64] sm:$0xf]
  %v374 = vld [vmem:[%s1 + $0x68] sm:$0xf]
  %v375 = vld [vmem:[%s1 + $0x6c] sm:$0xf]
  %v376 = vld [vmem:[%s1 + $0x70] sm:$0xf]
  %v377 = vld [vmem:[%s1 + $0x74] sm:$0xf]
  %v378 = vld [vmem:[%s1 + $0x78] sm:$0xf]
  %v379 = vld [vmem:[%s1 + $0x7c] sm:$0xf]
  %v380 = vld [vmem:[%s1 + $0x80] sm:$0xf]
  %v381 = vld [vmem:[%s1 + $0x84] sm:$0xf]
  %v382 = vld [vmem:[%s1 + $0x88] sm:$0xf]
  %v383 = vld [vmem:[%s1 + $0x8c] sm:$0xf]
  %v384 = vld [vmem:[%s1 + $0x90] sm:$0xf]
  %v385 = vld [vmem:[%s1 + $0x94] sm:$0xf]
  %v386 = vld [vmem:[%s1 + $0x98] sm:$0xf]
  %v387 = vld [vmem:[%s1 + $0x9c] sm:$0xf]
  %v388 = vld [vmem:[%s1 + $0xa0] sm:$0xf]
  %v389 = vld [vmem:[%s1 + $0xa4] sm:$0xf]
  %v390 = vld [vmem:[%s1 + $0xa8] sm:$0xf]
  %v391 = vld [vmem:[%s1 + $0xac] sm:$0xf]
  %v392 = vld [vmem:[%s1 + $0xb0] sm:$0xf]
  %v393 = vld [vmem:[%s1 + $0xb4] sm:$0xf]
  %v394 = vld [vmem:[%s1 + $0xb8] sm:$0xf]
  %v395 = vld [vmem:[%s1 + $0xbc] sm:$0xf]
  %v396 = vld [vmem:[%s1 + $0xc0] sm:$0xf]
  %v397 = vld [vmem:[%s1 + $0xc4] sm:$0xf]
  %v398 = vld [vmem:[%s1 + $0xc8] sm:$0xf]
  %v399 = vld [vmem:[%s1 + $0xcc] sm:$0xf]
  %v400 = vld [vmem:[%s1 + $0xd0] sm:$0xf]
  %v401 = vld [vmem:[%s1 + $0xd4] sm:$0xf]
  %v402 = vld [vmem:[%s1 + $0xd8] sm:$0xf]
  %v403 = vld [vmem:[%s1 + $0xdc] sm:$0xf]
  %v404 = vld [vmem:[%s1 + $0xe0] sm:$0xf]
  %v405 = vld [vmem:[%s1 + $0xe4] sm:$0xf]
  %v406 = vld [vmem:[%s1 + $0xe8] sm:$0xf]
  %v407 = vld [vmem:[%s1 + $0xec] sm:$0xf]
  %v408 = vld [vmem:[%s1 + $0xf0] sm:$0xf]
  %v409 = vld [vmem:[%s1 + $0xf4] sm:$0xf]
  %v410 = vld [vmem:[%s1 + $0xf8] sm:$0xf]
  %v411 = vld [vmem:[%s1 + $0xfc] sm:$0xf]
  %v412 = vld [vmem:[%s1 + $0x100] sm:$0xf]
  %v413 = vld [vmem:[%s1 + $0x104] sm:$0xf]
  %v414 = vld [vmem:[%s1 + $0x108] sm:$0xf]
  %v415 = vld [vmem:[%s1 + $0x10c] sm:$0xf]
  %v416 = vld [vmem:[%s1 + $0x110] sm:$0xf]
  %v417 = vld [vmem:[%s1 + $0x114] sm:$0xf]
  %v418 = vld [vmem:[%s1 + $0x118] sm:$0xf]
  %v419 = vld [vmem:[%s1 + $0x11c] sm:$0xf]
  %v420 = vld [vmem:[%s2] sm:$0x1]
  %v422 = vlaneseq
  %v423 = vshrl.u32 %v422, 7
  %v424 = vsub.s32 0, %v423
  %v425 = vrot.slane %v420, %v424
  %v760 = vunpack.c.l.b16 %v15
  %v761 = vunpack.c.h.b16 %v15
  %v762 = vunpack.c.l.b16 %v16
  %v763 = vunpack.c.h.b16 %v16
  %v764 = vunpack.c.l.b16 %v17
  %v765 = vunpack.c.l.b16 %v18
  %v766 = vunpack.c.h.b16 %v18
  %v767 = vunpack.c.l.b16 %v19
  %v768 = vunpack.c.h.b16 %v19
  %v769 = vunpack.c.l.b16 %v20
  %v770 = vunpack.c.l.b16 %v21
  %v771 = vunpack.c.h.b16 %v21
  %v772 = vunpack.c.l.b16 %v22
  %v773 = vunpack.c.h.b16 %v22
  %v774 = vunpack.c.l.b16 %v23
  %v775 = vunpack.c.l.b16 %v24
  %v776 = vunpack.c.h.b16 %v24
  %v777 = vunpack.c.l.b16 %v25
  %v778 = vunpack.c.h.b16 %v25
  %v779 = vunpack.c.l.b16 %v26
  %v780 = vunpack.c.l.b16 %v27
  %v781 = vunpack.c.h.b16 %v27
  %v782 = vunpack.c.l.b16 %v28
  %v783 = vunpack.c.h.b16 %v28
  %v784 = vunpack.c.l.b16 %v29
  %v785 = vunpack.c.l.b16 %v30
  %v786 = vunpack.c.h.b16 %v30
  %v787 = vunpack.c.l.b16 %v31
  %v788 = vunpack.c.h.b16 %v31
  %v789 = vunpack.c.l.b16 %v32
  %v790 = vunpack.c.l.b16 %v33
  %v791 = vunpack.c.h.b16 %v33
  %v792 = vunpack.c.l.b16 %v34
  %v793 = vunpack.c.h.b16 %v34
  %v794 = vunpack.c.l.b16 %v35
  %v795 = vunpack.c.l.b16 %v36
  %v796 = vunpack.c.h.b16 %v36
  %v797 = vunpack.c.l.b16 %v37
  %v798 = vunpack.c.h.b16 %v37
  %v799 = vunpack.c.l.b16 %v38
  %v800 = vunpack.c.l.b16 %v39
  %v801 = vunpack.c.h.b16 %v39
  %v802 = vunpack.c.l.b16 %v40
  %v803 = vunpack.c.h.b16 %v40
  %v804 = vunpack.c.l.b16 %v41
  %v805 = vunpack.c.l.b16 %v42
  %v806 = vunpack.c.h.b16 %v42
  %v807 = vunpack.c.l.b16 %v43
  %v808 = vunpack.c.h.b16 %v43
  %v809 = vunpack.c.l.b16 %v44
  %v810 = vunpack.c.l.b16 %v45
  %v811 = vunpack.c.h.b16 %v45
  %v812 = vunpack.c.l.b16 %v46
  %v813 = vunpack.c.h.b16 %v46
  %v814 = vunpack.c.l.b16 %v47
  %v815 = vunpack.c.l.b16 %v48
  %v816 = vunpack.c.h.b16 %v48
  %v817 = vunpack.c.l.b16 %v49
  %v818 = vunpack.c.h.b16 %v49
  %v819 = vunpack.c.l.b16 %v50
  %v820 = vunpack.c.l.b16 %v51
  %v821 = vunpack.c.h.b16 %v51
  %v822 = vunpack.c.l.b16 %v52
  %v823 = vunpack.c.h.b16 %v52
  %v824 = vunpack.c.l.b16 %v53
  %v825 = vunpack.c.l.b16 %v54
  %v826 = vunpack.c.h.b16 %v54
  %v827 = vunpack.c.l.b16 %v55
  %v828 = vunpack.c.h.b16 %v55
  %v829 = vunpack.c.l.b16 %v56
  %v830 = vunpack.c.l.b16 %v57
  %v831 = vunpack.c.h.b16 %v57
  %v832 = vunpack.c.l.b16 %v58
  %v833 = vunpack.c.h.b16 %v58
  %v834 = vunpack.c.l.b16 %v59
  %v835 = vunpack.c.l.b16 %v60
  %v836 = vunpack.c.h.b16 %v60
  %v837 = vunpack.c.l.b16 %v61
  %v838 = vunpack.c.h.b16 %v61
  %v839 = vunpack.c.l.b16 %v62
  %v840 = vunpack.c.l.b16 %v63
  %v841 = vunpack.c.h.b16 %v63
  %v842 = vunpack.c.l.b16 %v64
  %v843 = vunpack.c.h.b16 %v64
  %v844 = vunpack.c.l.b16 %v65
  %v845 = vunpack.c.l.b16 %v66
  %v846 = vunpack.c.h.b16 %v66
  %v847 = vunpack.c.l.b16 %v67
  %v848 = vunpack.c.h.b16 %v67
  %v849 = vunpack.c.l.b16 %v68
  %v850 = vunpack.c.l.b16 %v69
  %v851 = vunpack.c.h.b16 %v69
  %v852 = vunpack.c.l.b16 %v70
  %v853 = vunpack.c.h.b16 %v70
  %v854 = vunpack.c.l.b16 %v71
  %v855 = vunpack.c.l.b16 %v72
  %v856 = vunpack.c.h.b16 %v72
  %v857 = vunpack.c.l.b16 %v73
  %v858 = vunpack.c.h.b16 %v73
  %v859 = vunpack.c.l.b16 %v74
  %v860 = vunpack.c.l.b16 %v75
  %v861 = vunpack.c.h.b16 %v75
  %v862 = vunpack.c.l.b16 %v76
  %v863 = vunpack.c.h.b16 %v76
  %v864 = vunpack.c.l.b16 %v77
  %v865 = vunpack.c.l.b16 %v78
  %v866 = vunpack.c.h.b16 %v78
  %v867 = vunpack.c.l.b16 %v79
  %v868 = vunpack.c.h.b16 %v79
  %v869 = vunpack.c.l.b16 %v80
  %v870 = vunpack.c.l.b16 %v81
  %v871 = vunpack.c.h.b16 %v81
  %v872 = vunpack.c.l.b16 %v82
  %v873 = vunpack.c.h.b16 %v82
  %v874 = vunpack.c.l.b16 %v83
  %v875 = vunpack.c.l.b16 %v84
  %v876 = vunpack.c.h.b16 %v84
  %v877 = vunpack.c.l.b16 %v85
  %v878 = vunpack.c.h.b16 %v85
  %v879 = vunpack.c.l.b16 %v86
  %v880 = vunpack.c.l.b16 %v87
  %v881 = vunpack.c.h.b16 %v87
  %v882 = vunpack.c.l.b16 %v88
  %v883 = vunpack.c.h.b16 %v88
  %v884 = vunpack.c.l.b16 %v89
  %v885 = vunpack.c.l.b16 %v90
  %v886 = vunpack.c.h.b16 %v90
  %v887 = vunpack.c.l.b16 %v91
  %v888 = vunpack.c.h.b16 %v91
  %v889 = vunpack.c.l.b16 %v92
  %v890 = vunpack.c.l.b16 %v93
  %v891 = vunpack.c.h.b16 %v93
  %v892 = vunpack.c.l.b16 %v94
  %v893 = vunpack.c.h.b16 %v94
  %v894 = vunpack.c.l.b16 %v95
  %v895 = vunpack.c.l.b16 %v96
  %v896 = vunpack.c.h.b16 %v96
  %v897 = vunpack.c.l.b16 %v97
  %v898 = vunpack.c.h.b16 %v97
  %v899 = vunpack.c.l.b16 %v98
  %v900 = vunpack.c.l.b16 %v99
  %v901 = vunpack.c.h.b16 %v99
  %v902 = vunpack.c.l.b16 %v100
  %v903 = vunpack.c.h.b16 %v100
  %v904 = vunpack.c.l.b16 %v101
  %v905 = vunpack.c.l.b16 %v102
  %v906 = vunpack.c.h.b16 %v102
  %v907 = vunpack.c.l.b16 %v103
  %v908 = vunpack.c.h.b16 %v103
  %v909 = vunpack.c.l.b16 %v104
  %v910 = vunpack.c.l.b16 %v105
  %v911 = vunpack.c.h.b16 %v105
  %v912 = vunpack.c.l.b16 %v106
  %v913 = vunpack.c.h.b16 %v106
  %v914 = vunpack.c.l.b16 %v107
  %v915 = vunpack.c.l.b16 %v108
  %v916 = vunpack.c.h.b16 %v108
  %v917 = vunpack.c.l.b16 %v109
  %v918 = vunpack.c.h.b16 %v109
  %v919 = vunpack.c.l.b16 %v110
  %v920 = vunpack.c.l.b16 %v111
  %v921 = vunpack.c.h.b16 %v111
  %v922 = vunpack.c.l.b16 %v112
  %v923 = vunpack.c.h.b16 %v112
  %v924 = vunpack.c.l.b16 %v113
  %v925 = vunpack.c.l.b16 %v114
  %v926 = vunpack.c.h.b16 %v114
  %v927 = vunpack.c.l.b16 %v115
  %v928 = vunpack.c.h.b16 %v115
  %v929 = vunpack.c.l.b16 %v116
  %v930 = vunpack.c.l.b16 %v117
  %v931 = vunpack.c.h.b16 %v117
  %v932 = vunpack.c.l.b16 %v118
  %v933 = vunpack.c.h.b16 %v118
  %v934 = vunpack.c.l.b16 %v119
  %v935 = vunpack.c.l.b16 %v120
  %v936 = vunpack.c.h.b16 %v120
  %v937 = vunpack.c.l.b16 %v121
  %v938 = vunpack.c.h.b16 %v121
  %v939 = vunpack.c.l.b16 %v122
  %v940 = vunpack.c.l.b16 %v123
  %v941 = vunpack.c.h.b16 %v123
  %v942 = vunpack.c.l.b16 %v124
  %v943 = vunpack.c.h.b16 %v124
  %v944 = vunpack.c.l.b16 %v125
  %v945 = vunpack.c.l.b16 %v126
  %v946 = vunpack.c.h.b16 %v126
  %v947 = vunpack.c.l.b16 %v127
  %v948 = vunpack.c.h.b16 %v127
  %v949 = vunpack.c.l.b16 %v128
  %v950 = vunpack.c.l.b16 %v129
  %v951 = vunpack.c.h.b16 %v129
  %v952 = vunpack.c.l.b16 %v130
  %v953 = vunpack.c.h.b16 %v130
  %v954 = vunpack.c.l.b16 %v131
  %v955 = vunpack.c.l.b16 %v132
  %v956 = vunpack.c.h.b16 %v132
  %v957 = vunpack.c.l.b16 %v133
  %v958 = vunpack.c.h.b16 %v133
  %v959 = vunpack.c.l.b16 %v134
  %v960 = vunpack.c.l.b16 %v135
  %v961 = vunpack.c.h.b16 %v135
  %v962 = vunpack.c.l.b16 %v136
  %v963 = vunpack.c.h.b16 %v136
  %v964 = vunpack.c.l.b16 %v137
  %v965 = vunpack.c.l.b16 %v138
  %v966 = vunpack.c.h.b16 %v138
  %v967 = vunpack.c.l.b16 %v139
  %v968 = vunpack.c.h.b16 %v139
  %v969 = vunpack.c.l.b16 %v140
  %v970 = vunpack.c.l.b16 %v141
  %v971 = vunpack.c.h.b16 %v141
  %v972 = vunpack.c.l.b16 %v142
  %v973 = vunpack.c.h.b16 %v142
  %v974 = vunpack.c.l.b16 %v143
  %v975 = vunpack.c.l.b16 %v144
  %v976 = vunpack.c.h.b16 %v144
  %v977 = vunpack.c.l.b16 %v145
  %v978 = vunpack.c.h.b16 %v145
  %v979 = vunpack.c.l.b16 %v146
  %v980 = vunpack.c.l.b16 %v147
  %v981 = vunpack.c.h.b16 %v147
  %v982 = vunpack.c.l.b16 %v148
  %v983 = vunpack.c.h.b16 %v148
  %v984 = vunpack.c.l.b16 %v149
  %v985 = vunpack.c.l.b16 %v150
  %v986 = vunpack.c.h.b16 %v150
  %v987 = vunpack.c.l.b16 %v151
  %v988 = vunpack.c.h.b16 %v151
  %v989 = vunpack.c.l.b16 %v152
  %v990 = vunpack.c.l.b16 %v153
  %v991 = vunpack.c.h.b16 %v153
  %v992 = vunpack.c.l.b16 %v154
  %v993 = vunpack.c.h.b16 %v154
  %v994 = vunpack.c.l.b16 %v155
  %v995 = vunpack.c.l.b16 %v156
  %v996 = vunpack.c.h.b16 %v156
  %v997 = vunpack.c.l.b16 %v157
  %v998 = vunpack.c.h.b16 %v157
  %v999 = vunpack.c.l.b16 %v158
  %v1000 = vunpack.c.l.b16 %v159
  %v1001 = vunpack.c.h.b16 %v159
  %v1002 = vunpack.c.l.b16 %v160
  %v1003 = vunpack.c.h.b16 %v160
  %v1004 = vunpack.c.l.b16 %v161
  %v1005 = vunpack.c.l.b16 %v162
  %v1006 = vunpack.c.h.b16 %v162
  %v1007 = vunpack.c.l.b16 %v163
  %v1008 = vunpack.c.h.b16 %v163
  %v1009 = vunpack.c.l.b16 %v164
  %v1010 = vunpack.c.l.b16 %v165
  %v1011 = vunpack.c.h.b16 %v165
  %v1012 = vunpack.c.l.b16 %v166
  %v1013 = vunpack.c.h.b16 %v166
  %v1014 = vunpack.c.l.b16 %v167
  %v1015 = vunpack.c.l.b16 %v168
  %v1016 = vunpack.c.h.b16 %v168
  %v1017 = vunpack.c.l.b16 %v169
  %v1018 = vunpack.c.h.b16 %v169
  %v1019 = vunpack.c.l.b16 %v170
  %v1020 = vunpack.c.l.b16 %v171
  %v1021 = vunpack.c.h.b16 %v171
  %v1022 = vunpack.c.l.b16 %v172
  %v1023 = vunpack.c.h.b16 %v172
  %v1024 = vunpack.c.l.b16 %v173
  %v1025 = vunpack.c.l.b16 %v174
  %v1026 = vunpack.c.h.b16 %v174
  %v1027 = vunpack.c.l.b16 %v175
  %v1028 = vunpack.c.h.b16 %v175
  %v1029 = vunpack.c.l.b16 %v176
  %v1030 = vunpack.c.l.b16 %v177
  %v1031 = vunpack.c.h.b16 %v177
  %v1032 = vunpack.c.l.b16 %v178
  %v1033 = vunpack.c.h.b16 %v178
  %v1034 = vunpack.c.l.b16 %v179
  %v1035 = vunpack.c.l.b16 %v180
  %v1036 = vunpack.c.h.b16 %v180
  %v1037 = vunpack.c.l.b16 %v181
  %v1038 = vunpack.c.h.b16 %v181
  %v1039 = vunpack.c.l.b16 %v182
  %v1040 = vunpack.c.l.b16 %v183
  %v1041 = vunpack.c.h.b16 %v183
  %v1042 = vunpack.c.l.b16 %v184
  %v1043 = vunpack.c.h.b16 %v184
  %v1044 = vunpack.c.l.b16 %v185
  %v1045 = vunpack.c.l.b16 %v186
  %v1046 = vunpack.c.h.b16 %v186
  %v1047 = vunpack.c.l.b16 %v187
  %v1048 = vunpack.c.h.b16 %v187
  %v1049 = vunpack.c.l.b16 %v188
  %v1050 = vunpack.c.l.b16 %v189
  %v1051 = vunpack.c.h.b16 %v189
  %v1052 = vunpack.c.l.b16 %v190
  %v1053 = vunpack.c.h.b16 %v190
  %v1054 = vunpack.c.l.b16 %v191
  %v1055 = vunpack.c.l.b16 %v192
  %v1056 = vunpack.c.h.b16 %v192
  %v1057 = vunpack.c.l.b16 %v193
  %v1058 = vunpack.c.h.b16 %v193
  %v1059 = vunpack.c.l.b16 %v194
  %v1060 = vunpack.c.l.b16 %v195
  %v1061 = vunpack.c.h.b16 %v195
  %v1062 = vunpack.c.l.b16 %v196
  %v1063 = vunpack.c.h.b16 %v196
  %v1064 = vunpack.c.l.b16 %v197
  %v1065 = vunpack.c.l.b16 %v198
  %v1066 = vunpack.c.h.b16 %v198
  %v1067 = vunpack.c.l.b16 %v199
  %v1068 = vunpack.c.h.b16 %v199
  %v1069 = vunpack.c.l.b16 %v200
  %v1070 = vunpack.c.l.b16 %v201
  %v1071 = vunpack.c.h.b16 %v201
  %v1072 = vunpack.c.l.b16 %v202
  %v1073 = vunpack.c.h.b16 %v202
  %v1074 = vunpack.c.l.b16 %v203
  %v1075 = vunpack.c.l.b16 %v204
  %v1076 = vunpack.c.h.b16 %v204
  %v1077 = vunpack.c.l.b16 %v205
  %v1078 = vunpack.c.h.b16 %v205
  %v1079 = vunpack.c.l.b16 %v206
  %v1080 = vunpack.c.l.b16 %v207
  %v1081 = vunpack.c.h.b16 %v207
  %v1082 = vunpack.c.l.b16 %v208
  %v1083 = vunpack.c.h.b16 %v208
  %v1084 = vunpack.c.l.b16 %v209
  %v1085 = vunpack.c.l.b16 %v210
  %v1086 = vunpack.c.h.b16 %v210
  %v1087 = vunpack.c.l.b16 %v211
  %v1088 = vunpack.c.h.b16 %v211
  %v1089 = vunpack.c.l.b16 %v212
  %v1090 = vunpack.c.l.b16 %v213
  %v1091 = vunpack.c.h.b16 %v213
  %v1092 = vunpack.c.l.b16 %v214
  %v1093 = vunpack.c.h.b16 %v214
  %v1094 = vunpack.c.l.b16 %v215
  %v1095 = vunpack.c.l.b16 %v216
  %v1096 = vunpack.c.h.b16 %v216
  %v1097 = vunpack.c.l.b16 %v217
  %v1098 = vunpack.c.h.b16 %v217
  %v1099 = vunpack.c.l.b16 %v218
  %v1100 = vunpack.c.l.b16 %v219
  %v1101 = vunpack.c.h.b16 %v219
  %v1102 = vunpack.c.l.b16 %v220
  %v1103 = vunpack.c.h.b16 %v220
  %v1104 = vunpack.c.l.b16 %v221
  %v1105 = vunpack.c.l.b16 %v222
  %v1106 = vunpack.c.h.b16 %v222
  %v1107 = vunpack.c.l.b16 %v223
  %v1108 = vunpack.c.h.b16 %v223
  %v1109 = vunpack.c.l.b16 %v224
  %v1110 = vunpack.c.l.b16 %v225
  %v1111 = vunpack.c.h.b16 %v225
  %v1112 = vunpack.c.l.b16 %v226
  %v1113 = vunpack.c.h.b16 %v226
  %v1114 = vunpack.c.l.b16 %v227
  %v1115 = vunpack.c.l.b16 %v228
  %v1116 = vunpack.c.h.b16 %v228
  %v1117 = vunpack.c.l.b16 %v229
  %v1118 = vunpack.c.h.b16 %v229
  %v1119 = vunpack.c.l.b16 %v230
  %v1120 = vunpack.c.l.b16 %v231
  %v1121 = vunpack.c.h.b16 %v231
  %v1122 = vunpack.c.l.b16 %v232
  %v1123 = vunpack.c.h.b16 %v232
  %v1124 = vunpack.c.l.b16 %v233
  %v1125 = vunpack.c.l.b16 %v234
  %v1126 = vunpack.c.h.b16 %v234
  %v1127 = vunpack.c.l.b16 %v235
  %v1128 = vunpack.c.h.b16 %v235
  %v1129 = vunpack.c.l.b16 %v236
  %v1130 = vunpack.c.l.b16 %v237
  %v1131 = vunpack.c.h.b16 %v237
  %v1132 = vunpack.c.l.b16 %v238
  %v1133 = vunpack.c.h.b16 %v238
  %v1134 = vunpack.c.l.b16 %v239
  %v1135 = vunpack.c.l.b16 %v240
  %v1136 = vunpack.c.h.b16 %v240
  %v1137 = vunpack.c.l.b16 %v241
  %v1138 = vunpack.c.h.b16 %v241
  %v1139 = vunpack.c.l.b16 %v242
  %v1140 = vunpack.c.l.b16 %v243
  %v1141 = vunpack.c.h.b16 %v243
  %v1142 = vunpack.c.l.b16 %v244
  %v1143 = vunpack.c.h.b16 %v244
  %v1144 = vunpack.c.l.b16 %v245
  %v1145 = vunpack.c.l.b16 %v246
  %v1146 = vunpack.c.h.b16 %v246
  %v1147 = vunpack.c.l.b16 %v247
  %v1148 = vunpack.c.h.b16 %v247
  %v1149 = vunpack.c.l.b16 %v248
  %v1150 = vunpack.c.l.b16 %v249
  %v1151 = vunpack.c.h.b16 %v249
  %v1152 = vunpack.c.l.b16 %v250
  %v1153 = vunpack.c.h.b16 %v250
  %v1154 = vunpack.c.l.b16 %v251
  %v1155 = vunpack.c.l.b16 %v252
  %v1156 = vunpack.c.h.b16 %v252
  %v1157 = vunpack.c.l.b16 %v253
  %v1158 = vunpack.c.h.b16 %v253
  %v1159 = vunpack.c.l.b16 %v254
  %v1160 = vunpack.c.l.b16 %v255
  %v1161 = vunpack.c.h.b16 %v255
  %v1162 = vunpack.c.l.b16 %v256
  %v1163 = vunpack.c.h.b16 %v256
  %v1164 = vunpack.c.l.b16 %v257
  %v1165 = vunpack.c.l.b16 %v258
  %v1166 = vunpack.c.h.b16 %v258
  %v1167 = vunpack.c.l.b16 %v259
  %v1168 = vunpack.c.h.b16 %v259
  %v1169 = vunpack.c.l.b16 %v260
  %v1170 = vunpack.c.l.b16 %v261
  %v1171 = vunpack.c.h.b16 %v261
  %v1172 = vunpack.c.l.b16 %v262
  %v1173 = vunpack.c.h.b16 %v262
  %v1174 = vunpack.c.l.b16 %v263
  %v1175 = vunpack.c.l.b16 %v264
  %v1176 = vunpack.c.h.b16 %v264
  %v1177 = vunpack.c.l.b16 %v265
  %v1178 = vunpack.c.h.b16 %v265
  %v1179 = vunpack.c.l.b16 %v266
  %v1180 = vunpack.c.l.b16 %v267
  %v1181 = vunpack.c.h.b16 %v267
  %v1182 = vunpack.c.l.b16 %v268
  %v1183 = vunpack.c.h.b16 %v268
  %v1184 = vunpack.c.l.b16 %v269
  %v1185 = vunpack.c.l.b16 %v270
  %v1186 = vunpack.c.h.b16 %v270
  %v1187 = vunpack.c.l.b16 %v271
  %v1188 = vunpack.c.h.b16 %v271
  %v1189 = vunpack.c.l.b16 %v272
  %v1190 = vunpack.c.l.b16 %v273
  %v1191 = vunpack.c.h.b16 %v273
  %v1192 = vunpack.c.l.b16 %v274
  %v1193 = vunpack.c.h.b16 %v274
  %v1194 = vunpack.c.l.b16 %v275
  %v1195 = vunpack.c.l.b16 %v276
  %v1196 = vunpack.c.h.b16 %v276
  %v1197 = vunpack.c.l.b16 %v277
  %v1198 = vunpack.c.h.b16 %v277
  %v1199 = vunpack.c.l.b16 %v278
  %v1200 = vunpack.c.l.b16 %v279
  %v1201 = vunpack.c.h.b16 %v279
  %v1202 = vunpack.c.l.b16 %v280
  %v1203 = vunpack.c.h.b16 %v280
  %v1204 = vunpack.c.l.b16 %v281
  %v1205 = vunpack.c.l.b16 %v282
  %v1206 = vunpack.c.h.b16 %v282
  %v1207 = vunpack.c.l.b16 %v283
  %v1208 = vunpack.c.h.b16 %v283
  %v1209 = vunpack.c.l.b16 %v284
  %v1210 = vunpack.c.l.b16 %v285
  %v1211 = vunpack.c.h.b16 %v285
  %v1212 = vunpack.c.l.b16 %v286
  %v1213 = vunpack.c.h.b16 %v286
  %v1214 = vunpack.c.l.b16 %v287
  %v1215 = vunpack.c.l.b16 %v288
  %v1216 = vunpack.c.h.b16 %v288
  %v1217 = vunpack.c.l.b16 %v289
  %v1218 = vunpack.c.h.b16 %v289
  %v1219 = vunpack.c.l.b16 %v290
  %v1220 = vunpack.c.l.b16 %v291
  %v1221 = vunpack.c.h.b16 %v291
  %v1222 = vunpack.c.l.b16 %v292
  %v1223 = vunpack.c.h.b16 %v292
  %v1224 = vunpack.c.l.b16 %v293
  %v1225 = vunpack.c.l.b16 %v294
  %v1226 = vunpack.c.h.b16 %v294
  %v1227 = vunpack.c.l.b16 %v295
  %v1228 = vunpack.c.h.b16 %v295
  %v1229 = vunpack.c.l.b16 %v296
  %v1230 = vunpack.c.l.b16 %v297
  %v1231 = vunpack.c.h.b16 %v297
  %v1232 = vunpack.c.l.b16 %v298
  %v1233 = vunpack.c.h.b16 %v298
  %v1234 = vunpack.c.l.b16 %v299
  %v1235 = vunpack.c.l.b16 %v300
  %v1236 = vunpack.c.h.b16 %v300
  %v1237 = vunpack.c.l.b16 %v301
  %v1238 = vunpack.c.h.b16 %v301
  %v1239 = vunpack.c.l.b16 %v302
  %v1240 = vunpack.c.l.b16 %v303
  %v1241 = vunpack.c.h.b16 %v303
  %v1242 = vunpack.c.l.b16 %v304
  %v1243 = vunpack.c.h.b16 %v304
  %v1244 = vunpack.c.l.b16 %v305
  %v1245 = vunpack.c.l.b16 %v306
  %v1246 = vunpack.c.h.b16 %v306
  %v1247 = vunpack.c.l.b16 %v307
  %v1248 = vunpack.c.h.b16 %v307
  %v1249 = vunpack.c.l.b16 %v308
  %v1250 = vunpack.c.l.b16 %v309
  %v1251 = vunpack.c.h.b16 %v309
  %v1252 = vunpack.c.l.b16 %v310
  %v1253 = vunpack.c.h.b16 %v310
  %v1254 = vunpack.c.l.b16 %v311
  %v1255 = vunpack.c.l.b16 %v312
  %v1256 = vunpack.c.h.b16 %v312
  %v1257 = vunpack.c.l.b16 %v313
  %v1258 = vunpack.c.h.b16 %v313
  %v1259 = vunpack.c.l.b16 %v314
  %v1260 = vunpack.c.l.b16 %v315
  %v1261 = vunpack.c.h.b16 %v315
  %v1262 = vunpack.c.l.b16 %v316
  %v1263 = vunpack.c.h.b16 %v316
  %v1264 = vunpack.c.l.b16 %v317
  %v1265 = vunpack.c.l.b16 %v318
  %v1266 = vunpack.c.h.b16 %v318
  %v1267 = vunpack.c.l.b16 %v319
  %v1268 = vunpack.c.h.b16 %v319
  %v1269 = vunpack.c.l.b16 %v320
  %v1270 = vunpack.c.l.b16 %v321
  %v1271 = vunpack.c.h.b16 %v321
  %v1272 = vunpack.c.l.b16 %v322
  %v1273 = vunpack.c.h.b16 %v322
  %v1274 = vunpack.c.l.b16 %v323
  %v1275 = vunpack.c.l.b16 %v324
  %v1276 = vunpack.c.h.b16 %v324
  %v1277 = vunpack.c.l.b16 %v325
  %v1278 = vunpack.c.h.b16 %v325
  %v1279 = vunpack.c.l.b16 %v326
  %v1280 = vunpack.c.l.b16 %v327
  %v1281 = vunpack.c.h.b16 %v327
  %v1282 = vunpack.c.l.b16 %v328
  %v1283 = vunpack.c.h.b16 %v328
  %v1284 = vunpack.c.l.b16 %v329
  %v1285 = vunpack.c.l.b16 %v330
  %v1286 = vunpack.c.h.b16 %v330
  %v1287 = vunpack.c.l.b16 %v331
  %v1288 = vunpack.c.h.b16 %v331
  %v1289 = vunpack.c.l.b16 %v332
  %v1290 = vunpack.c.l.b16 %v333
  %v1291 = vunpack.c.h.b16 %v333
  %v1292 = vunpack.c.l.b16 %v334
  %v1293 = vunpack.c.h.b16 %v334
  %v1294 = vunpack.c.l.b16 %v335
  %v1295 = vunpack.c.l.b16 %v336
  %v1296 = vunpack.c.h.b16 %v336
  %v1297 = vunpack.c.l.b16 %v337
  %v1298 = vunpack.c.h.b16 %v337
  %v1299 = vunpack.c.l.b16 %v338
  %v1300 = vunpack.c.l.b16 %v339
  %v1301 = vunpack.c.h.b16 %v339
  %v1302 = vunpack.c.l.b16 %v340
  %v1303 = vunpack.c.h.b16 %v340
  %v1304 = vunpack.c.l.b16 %v341
  %v1305 = vunpack.c.l.b16 %v342
  %v1306 = vunpack.c.h.b16 %v342
  %v1307 = vunpack.c.l.b16 %v343
  %v1308 = vunpack.c.h.b16 %v343
  %v1309 = vunpack.c.l.b16 %v344
  %v1310 = vunpack.c.l.b16 %v345
  %v1311 = vunpack.c.h.b16 %v345
  %v1312 = vunpack.c.l.b16 %v346
  %v1313 = vunpack.c.h.b16 %v346
  %v1314 = vunpack.c.l.b16 %v347
  %v1315 = vpack.c.b16 %v765, %v760
  %v1316 = vpack.c.b16 %v766, %v761
  %v1317 = vpack.c.b16 %v767, %v762
  %v1318 = vpack.c.b16 %v768, %v763
  %v1319 = vpack.c.b16 %v769, %v764
  %v1320 = vpack.c.b16 %v775, %v770
  %v1321 = vpack.c.b16 %v776, %v771
  %v1322 = vpack.c.b16 %v777, %v772
  %v1323 = vpack.c.b16 %v778, %v773
  %v1324 = vpack.c.b16 %v779, %v774
  %v1325 = vpack.c.b16 %v785, %v780
  %v1326 = vpack.c.b16 %v786, %v781
  %v1327 = vpack.c.b16 %v787, %v782
  %v1328 = vpack.c.b16 %v788, %v783
  %v1329 = vpack.c.b16 %v789, %v784
  %v1330 = vpack.c.b16 %v795, %v790
  %v1331 = vpack.c.b16 %v796, %v791
  %v1332 = vpack.c.b16 %v797, %v792
  %v1333 = vpack.c.b16 %v798, %v793
  %v1334 = vpack.c.b16 %v799, %v794
  %v1335 = vpack.c.b16 %v805, %v800
  %v1336 = vpack.c.b16 %v806, %v801
  %v1337 = vpack.c.b16 %v807, %v802
  %v1338 = vpack.c.b16 %v808, %v803
  %v1339 = vpack.c.b16 %v809, %v804
  %v1340 = vpack.c.b16 %v815, %v810
  %v1341 = vpack.c.b16 %v816, %v811
  %v1342 = vpack.c.b16 %v817, %v812
  %v1343 = vpack.c.b16 %v818, %v813
  %v1344 = vpack.c.b16 %v819, %v814
  %v1345 = vpack.c.b16 %v825, %v820
  %v1346 = vpack.c.b16 %v826, %v821
  %v1347 = vpack.c.b16 %v827, %v822
  %v1348 = vpack.c.b16 %v828, %v823
  %v1349 = vpack.c.b16 %v829, %v824
  %v1350 = vpack.c.b16 %v835, %v830
  %v1351 = vpack.c.b16 %v836, %v831
  %v1352 = vpack.c.b16 %v837, %v832
  %v1353 = vpack.c.b16 %v838, %v833
  %v1354 = vpack.c.b16 %v839, %v834
  %v1355 = vpack.c.b16 %v845, %v840
  %v1356 = vpack.c.b16 %v846, %v841
  %v1357 = vpack.c.b16 %v847, %v842
  %v1358 = vpack.c.b16 %v848, %v843
  %v1359 = vpack.c.b16 %v849, %v844
  %v1360 = vpack.c.b16 %v855, %v850
  %v1361 = vpack.c.b16 %v856, %v851
  %v1362 = vpack.c.b16 %v857, %v852
  %v1363 = vpack.c.b16 %v858, %v853
  %v1364 = vpack.c.b16 %v859, %v854
  %v1365 = vpack.c.b16 %v865, %v860
  %v1366 = vpack.c.b16 %v866, %v861
  %v1367 = vpack.c.b16 %v867, %v862
  %v1368 = vpack.c.b16 %v868, %v863
  %v1369 = vpack.c.b16 %v869, %v864
  %v1370 = vpack.c.b16 %v875, %v870
  %v1371 = vpack.c.b16 %v876, %v871
  %v1372 = vpack.c.b16 %v877, %v872
  %v1373 = vpack.c.b16 %v878, %v873
  %v1374 = vpack.c.b16 %v879, %v874
  %v1375 = vpack.c.b16 %v885, %v880
  %v1376 = vpack.c.b16 %v886, %v881
  %v1377 = vpack.c.b16 %v887, %v882
  %v1378 = vpack.c.b16 %v888, %v883
  %v1379 = vpack.c.b16 %v889, %v884
  %v1380 = vpack.c.b16 %v895, %v890
  %v1381 = vpack.c.b16 %v896, %v891
  %v1382 = vpack.c.b16 %v897, %v892
  %v1383 = vpack.c.b16 %v898, %v893
  %v1384 = vpack.c.b16 %v899, %v894
  %v1385 = vpack.c.b16 %v905, %v900
  %v1386 = vpack.c.b16 %v906, %v901
  %v1387 = vpack.c.b16 %v907, %v902
  %v1388 = vpack.c.b16 %v908, %v903
  %v1389 = vpack.c.b16 %v909, %v904
  %v1390 = vpack.c.b16 %v915, %v910
  %v1391 = vpack.c.b16 %v916, %v911
  %v1392 = vpack.c.b16 %v917, %v912
  %v1393 = vpack.c.b16 %v918, %v913
  %v1394 = vpack.c.b16 %v919, %v914
  %v1395 = vpack.c.b16 %v925, %v920
  %v1396 = vpack.c.b16 %v926, %v921
  %v1397 = vpack.c.b16 %v927, %v922
  %v1398 = vpack.c.b16 %v928, %v923
  %v1399 = vpack.c.b16 %v929, %v924
  %v1400 = vpack.c.b16 %v935, %v930
  %v1401 = vpack.c.b16 %v936, %v931
  %v1402 = vpack.c.b16 %v937, %v932
  %v1403 = vpack.c.b16 %v938, %v933
  %v1404 = vpack.c.b16 %v939, %v934
  %v1405 = vpack.c.b16 %v945, %v940
  %v1406 = vpack.c.b16 %v946, %v941
  %v1407 = vpack.c.b16 %v947, %v942
  %v1408 = vpack.c.b16 %v948, %v943
  %v1409 = vpack.c.b16 %v949, %v944
  %v1410 = vpack.c.b16 %v955, %v950
  %v1411 = vpack.c.b16 %v956, %v951
  %v1412 = vpack.c.b16 %v957, %v952
  %v1413 = vpack.c.b16 %v958, %v953
  %v1414 = vpack.c.b16 %v959, %v954
  %v1415 = vpack.c.b16 %v965, %v960
  %v1416 = vpack.c.b16 %v966, %v961
  %v1417 = vpack.c.b16 %v967, %v962
  %v1418 = vpack.c.b16 %v968, %v963
  %v1419 = vpack.c.b16 %v969, %v964
  %v1420 = vpack.c.b16 %v975, %v970
  %v1421 = vpack.c.b16 %v976, %v971
  %v1422 = vpack.c.b16 %v977, %v972
  %v1423 = vpack.c.b16 %v978, %v973
  %v1424 = vpack.c.b16 %v979, %v974
  %v1425 = vpack.c.b16 %v985, %v980
  %v1426 = vpack.c.b16 %v986, %v981
  %v1427 = vpack.c.b16 %v987, %v982
  %v1428 = vpack.c.b16 %v988, %v983
  %v1429 = vpack.c.b16 %v989, %v984
  %v1430 = vpack.c.b16 %v995, %v990
  %v1431 = vpack.c.b16 %v996, %v991
  %v1432 = vpack.c.b16 %v997, %v992
  %v1433 = vpack.c.b16 %v998, %v993
  %v1434 = vpack.c.b16 %v999, %v994
  %v1435 = vpack.c.b16 %v1005, %v1000
  %v1436 = vpack.c.b16 %v1006, %v1001
  %v1437 = vpack.c.b16 %v1007, %v1002
  %v1438 = vpack.c.b16 %v1008, %v1003
  %v1439 = vpack.c.b16 %v1009, %v1004
  %v1440 = vpack.c.b16 %v1015, %v1010
  %v1441 = vpack.c.b16 %v1016, %v1011
  %v1442 = vpack.c.b16 %v1017, %v1012
  %v1443 = vpack.c.b16 %v1018, %v1013
  %v1444 = vpack.c.b16 %v1019, %v1014
  %v1445 = vpack.c.b16 %v1025, %v1020
  %v1446 = vpack.c.b16 %v1026, %v1021
  %v1447 = vpack.c.b16 %v1027, %v1022
  %v1448 = vpack.c.b16 %v1028, %v1023
  %v1449 = vpack.c.b16 %v1029, %v1024
  %v1450 = vpack.c.b16 %v1035, %v1030
  %v1451 = vpack.c.b16 %v1036, %v1031
  %v1452 = vpack.c.b16 %v1037, %v1032
  %v1453 = vpack.c.b16 %v1038, %v1033
  %v1454 = vpack.c.b16 %v1039, %v1034
  %v1455 = vpack.c.b16 %v1045, %v1040
  %v1456 = vpack.c.b16 %v1046, %v1041
  %v1457 = vpack.c.b16 %v1047, %v1042
  %v1458 = vpack.c.b16 %v1048, %v1043
  %v1459 = vpack.c.b16 %v1049, %v1044
  %v1460 = vpack.c.b16 %v1055, %v1050
  %v1461 = vpack.c.b16 %v1056, %v1051
  %v1462 = vpack.c.b16 %v1057, %v1052
  %v1463 = vpack.c.b16 %v1058, %v1053
  %v1464 = vpack.c.b16 %v1059, %v1054
  %v1465 = vpack.c.b16 %v1065, %v1060
  %v1466 = vpack.c.b16 %v1066, %v1061
  %v1467 = vpack.c.b16 %v1067, %v1062
  %v1468 = vpack.c.b16 %v1068, %v1063
  %v1469 = vpack.c.b16 %v1069, %v1064
  %v1470 = vpack.c.b16 %v1075, %v1070
  %v1471 = vpack.c.b16 %v1076, %v1071
  %v1472 = vpack.c.b16 %v1077, %v1072
  %v1473 = vpack.c.b16 %v1078, %v1073
  %v1474 = vpack.c.b16 %v1079, %v1074
  %v1475 = vpack.c.b16 %v1085, %v1080
  %v1476 = vpack.c.b16 %v1086, %v1081
  %v1477 = vpack.c.b16 %v1087, %v1082
  %v1478 = vpack.c.b16 %v1088, %v1083
  %v1479 = vpack.c.b16 %v1089, %v1084
  %v1480 = vpack.c.b16 %v1095, %v1090
  %v1481 = vpack.c.b16 %v1096, %v1091
  %v1482 = vpack.c.b16 %v1097, %v1092
  %v1483 = vpack.c.b16 %v1098, %v1093
  %v1484 = vpack.c.b16 %v1099, %v1094
  %v1485 = vpack.c.b16 %v1105, %v1100
  %v1486 = vpack.c.b16 %v1106, %v1101
  %v1487 = vpack.c.b16 %v1107, %v1102
  %v1488 = vpack.c.b16 %v1108, %v1103
  %v1489 = vpack.c.b16 %v1109, %v1104
  %v1490 = vpack.c.b16 %v1115, %v1110
  %v1491 = vpack.c.b16 %v1116, %v1111
  %v1492 = vpack.c.b16 %v1117, %v1112
  %v1493 = vpack.c.b16 %v1118, %v1113
  %v1494 = vpack.c.b16 %v1119, %v1114
  %v1495 = vpack.c.b16 %v1125, %v1120
  %v1496 = vpack.c.b16 %v1126, %v1121
  %v1497 = vpack.c.b16 %v1127, %v1122
  %v1498 = vpack.c.b16 %v1128, %v1123
  %v1499 = vpack.c.b16 %v1129, %v1124
  %v1500 = vpack.c.b16 %v1135, %v1130
  %v1501 = vpack.c.b16 %v1136, %v1131
  %v1502 = vpack.c.b16 %v1137, %v1132
  %v1503 = vpack.c.b16 %v1138, %v1133
  %v1504 = vpack.c.b16 %v1139, %v1134
  %v1505 = vpack.c.b16 %v1145, %v1140
  %v1506 = vpack.c.b16 %v1146, %v1141
  %v1507 = vpack.c.b16 %v1147, %v1142
  %v1508 = vpack.c.b16 %v1148, %v1143
  %v1509 = vpack.c.b16 %v1149, %v1144
  %v1510 = vpack.c.b16 %v1155, %v1150
  %v1511 = vpack.c.b16 %v1156, %v1151
  %v1512 = vpack.c.b16 %v1157, %v1152
  %v1513 = vpack.c.b16 %v1158, %v1153
  %v1514 = vpack.c.b16 %v1159, %v1154
  %v1515 = vpack.c.b16 %v1165, %v1160
  %v1516 = vpack.c.b16 %v1166, %v1161
  %v1517 = vpack.c.b16 %v1167, %v1162
  %v1518 = vpack.c.b16 %v1168, %v1163
  %v1519 = vpack.c.b16 %v1169, %v1164
  %v1520 = vpack.c.b16 %v1175, %v1170
  %v1521 = vpack.c.b16 %v1176, %v1171
  %v1522 = vpack.c.b16 %v1177, %v1172
  %v1523 = vpack.c.b16 %v1178, %v1173
  %v1524 = vpack.c.b16 %v1179, %v1174
  %v1525 = vpack.c.b16 %v1185, %v1180
  %v1526 = vpack.c.b16 %v1186, %v1181
  %v1527 = vpack.c.b16 %v1187, %v1182
  %v1528 = vpack.c.b16 %v1188, %v1183
  %v1529 = vpack.c.b16 %v1189, %v1184
  %v1530 = vpack.c.b16 %v1195, %v1190
  %v1531 = vpack.c.b16 %v1196, %v1191
  %v1532 = vpack.c.b16 %v1197, %v1192
  %v1533 = vpack.c.b16 %v1198, %v1193
  %v1534 = vpack.c.b16 %v1199, %v1194
  %v1535 = vpack.c.b16 %v1205, %v1200
  %v1536 = vpack.c.b16 %v1206, %v1201
  %v1537 = vpack.c.b16 %v1207, %v1202
  %v1538 = vpack.c.b16 %v1208, %v1203
  %v1539 = vpack.c.b16 %v1209, %v1204
  %v1540 = vpack.c.b16 %v1215, %v1210
  %v1541 = vpack.c.b16 %v1216, %v1211
  %v1542 = vpack.c.b16 %v1217, %v1212
  %v1543 = vpack.c.b16 %v1218, %v1213
  %v1544 = vpack.c.b16 %v1219, %v1214
  %v1545 = vpack.c.b16 %v1225, %v1220
  %v1546 = vpack.c.b16 %v1226, %v1221
  %v1547 = vpack.c.b16 %v1227, %v1222
  %v1548 = vpack.c.b16 %v1228, %v1223
  %v1549 = vpack.c.b16 %v1229, %v1224
  %v1550 = vpack.c.b16 %v1235, %v1230
  %v1551 = vpack.c.b16 %v1236, %v1231
  %v1552 = vpack.c.b16 %v1237, %v1232
  %v1553 = vpack.c.b16 %v1238, %v1233
  %v1554 = vpack.c.b16 %v1239, %v1234
  %v1555 = vpack.c.b16 %v1245, %v1240
  %v1556 = vpack.c.b16 %v1246, %v1241
  %v1557 = vpack.c.b16 %v1247, %v1242
  %v1558 = vpack.c.b16 %v1248, %v1243
  %v1559 = vpack.c.b16 %v1249, %v1244
  %v1560 = vpack.c.b16 %v1255, %v1250
  %v1561 = vpack.c.b16 %v1256, %v1251
  %v1562 = vpack.c.b16 %v1257, %v1252
  %v1563 = vpack.c.b16 %v1258, %v1253
  %v1564 = vpack.c.b16 %v1259, %v1254
  %v1565 = vpack.c.b16 %v1265, %v1260
  %v1566 = vpack.c.b16 %v1266, %v1261
  %v1567 = vpack.c.b16 %v1267, %v1262
  %v1568 = vpack.c.b16 %v1268, %v1263
  %v1569 = vpack.c.b16 %v1269, %v1264
  %v1570 = vpack.c.b16 %v1275, %v1270
  %v1571 = vpack.c.b16 %v1276, %v1271
  %v1572 = vpack.c.b16 %v1277, %v1272
  %v1573 = vpack.c.b16 %v1278, %v1273
  %v1574 = vpack.c.b16 %v1279, %v1274
  %v1575 = vpack.c.b16 %v1285, %v1280
  %v1576 = vpack.c.b16 %v1286, %v1281
  %v1577 = vpack.c.b16 %v1287, %v1282
  %v1578 = vpack.c.b16 %v1288, %v1283
  %v1579 = vpack.c.b16 %v1289, %v1284
  %v1580 = vpack.c.b16 %v1295, %v1290
  %v1581 = vpack.c.b16 %v1296, %v1291
  %v1582 = vpack.c.b16 %v1297, %v1292
  %v1583 = vpack.c.b16 %v1298, %v1293
  %v1584 = vpack.c.b16 %v1299, %v1294
  %v1585 = vpack.c.b16 %v1305, %v1300
  %v1586 = vpack.c.b16 %v1306, %v1301
  %v1587 = vpack.c.b16 %v1307, %v1302
  %v1588 = vpack.c.b16 %v1308, %v1303
  %v1589 = vpack.c.b16 %v1309, %v1304
  %v1590 = vpack.c.b16 %v1310, %v1310
  %v1591 = vpack.c.b16 %v1311, %v1311
  %v1592 = vpack.c.b16 %v1312, %v1312
  %v1593 = vpack.c.b16 %v1313, %v1313
  %v1594 = vpack.c.b16 %v1314, %v1314
  %v1891 = vunpack.c.l.b16 %v348
  %v1892 = vunpack.c.l.b16 %v349
  %v1893 = vunpack.c.l.b16 %v350
  %v1894 = vunpack.c.l.b16 %v351
  %v1895 = vunpack.c.l.b16 %v352
  %v1896 = vunpack.c.l.b16 %v353
  %v1897 = vunpack.c.l.b16 %v354
  %v1898 = vunpack.c.l.b16 %v355
  %v1899 = vunpack.c.l.b16 %v356
  %v1900 = vunpack.c.l.b16 %v357
  %v1901 = vunpack.c.l.b16 %v358
  %v1902 = vunpack.c.l.b16 %v359
  %v1903 = vunpack.c.l.b16 %v360
  %v1904 = vunpack.c.l.b16 %v361
  %v1905 = vunpack.c.l.b16 %v362
  %v1906 = vunpack.c.l.b16 %v363
  %v1907 = vunpack.c.l.b16 %v364
  %v1908 = vunpack.c.l.b16 %v365
  %v1909 = vunpack.c.l.b16 %v366
  %v1910 = vunpack.c.l.b16 %v367
  %v1911 = vunpack.c.l.b16 %v368
  %v1912 = vunpack.c.l.b16 %v369
  %v1913 = vunpack.c.l.b16 %v370
  %v1914 = vunpack.c.l.b16 %v371
  %v1915 = vunpack.c.l.b16 %v372
  %v1916 = vunpack.c.l.b16 %v373
  %v1917 = vunpack.c.l.b16 %v374
  %v1918 = vunpack.c.l.b16 %v375
  %v1919 = vunpack.c.l.b16 %v376
  %v1920 = vunpack.c.l.b16 %v377
  %v1921 = vunpack.c.l.b16 %v378
  %v1922 = vunpack.c.l.b16 %v379
  %v1923 = vunpack.c.l.b16 %v380
  %v1924 = vunpack.c.l.b16 %v381
  %v1925 = vunpack.c.l.b16 %v382
  %v1926 = vunpack.c.l.b16 %v383
  %v1927 = vunpack.c.l.b16 %v384
  %v1928 = vunpack.c.l.b16 %v385
  %v1929 = vunpack.c.l.b16 %v386
  %v1930 = vunpack.c.l.b16 %v387
  %v1931 = vunpack.c.l.b16 %v388
  %v1932 = vunpack.c.l.b16 %v389
  %v1933 = vunpack.c.l.b16 %v390
  %v1934 = vunpack.c.l.b16 %v391
  %v1935 = vunpack.c.l.b16 %v392
  %v1936 = vunpack.c.l.b16 %v393
  %v1937 = vunpack.c.l.b16 %v394
  %v1938 = vunpack.c.l.b16 %v395
  %v1939 = vunpack.c.l.b16 %v396
  %v1940 = vunpack.c.l.b16 %v397
  %v1941 = vunpack.c.l.b16 %v398
  %v1942 = vunpack.c.l.b16 %v399
  %v1943 = vunpack.c.l.b16 %v400
  %v1944 = vunpack.c.l.b16 %v401
  %v1945 = vunpack.c.l.b16 %v402
  %v1946 = vunpack.c.l.b16 %v403
  %v1947 = vunpack.c.l.b16 %v404
  %v1948 = vunpack.c.l.b16 %v405
  %v1949 = vunpack.c.l.b16 %v406
  %v1950 = vunpack.c.l.b16 %v407
  %v1951 = vunpack.c.l.b16 %v408
  %v1952 = vunpack.c.l.b16 %v409
  %v1953 = vunpack.c.l.b16 %v410
  %v1954 = vunpack.c.l.b16 %v411
  %v1955 = vunpack.c.l.b16 %v412
  %v1956 = vunpack.c.l.b16 %v413
  %v1957 = vunpack.c.l.b16 %v414
  %v1958 = vunpack.c.l.b16 %v415
  %v1959 = vunpack.c.l.b16 %v416
  %v1960 = vunpack.c.l.b16 %v417
  %v1961 = vunpack.c.l.b16 %v418
  %v1962 = vunpack.c.l.b16 %v419
  %v1963 = vpack.c.b16 %v1892, %v1891
  %v1964 = vpack.c.b16 %v1894, %v1893
  %v1965 = vpack.c.b16 %v1896, %v1895
  %v1966 = vpack.c.b16 %v1898, %v1897
  %v1967 = vpack.c.b16 %v1900, %v1899
  %v1968 = vpack.c.b16 %v1902, %v1901
  %v1969 = vpack.c.b16 %v1904, %v1903
  %v1970 = vpack.c.b16 %v1906, %v1905
  %v1971 = vpack.c.b16 %v1908, %v1907
  %v1972 = vpack.c.b16 %v1910, %v1909
  %v1973 = vpack.c.b16 %v1912, %v1911
  %v1974 = vpack.c.b16 %v1914, %v1913
  %v1975 = vpack.c.b16 %v1916, %v1915
  %v1976 = vpack.c.b16 %v1918, %v1917
  %v1977 = vpack.c.b16 %v1920, %v1919
  %v1978 = vpack.c.b16 %v1922, %v1921
  %v1979 = vpack.c.b16 %v1924, %v1923
  %v1980 = vpack.c.b16 %v1926, %v1925
  %v1981 = vpack.c.b16 %v1928, %v1927
  %v1982 = vpack.c.b16 %v1930, %v1929
  %v1983 = vpack.c.b16 %v1932, %v1931
  %v1984 = vpack.c.b16 %v1934, %v1933
  %v1985 = vpack.c.b16 %v1936, %v1935
  %v1986 = vpack.c.b16 %v1938, %v1937
  %v1987 = vpack.c.b16 %v1940, %v1939
  %v1988 = vpack.c.b16 %v1942, %v1941
  %v1989 = vpack.c.b16 %v1944, %v1943
  %v1990 = vpack.c.b16 %v1946, %v1945
  %v1991 = vpack.c.b16 %v1948, %v1947
  %v1992 = vpack.c.b16 %v1950, %v1949
  %v1993 = vpack.c.b16 %v1952, %v1951
  %v1994 = vpack.c.b16 %v1954, %v1953
  %v1995 = vpack.c.b16 %v1956, %v1955
  %v1996 = vpack.c.b16 %v1958, %v1957
  %v1997 = vpack.c.b16 %v1960, %v1959
  %v1998 = vpack.c.b16 %v1962, %v1961
  %vm2035 = vcmask 523264
  %v2037 = vsel %vm2035, %v1319, 0
  %v2040 = vsel %vm2035, %v1324, 0
  %v2043 = vsel %vm2035, %v1329, 0
  %v2046 = vsel %vm2035, %v1334, 0
  %v2049 = vsel %vm2035, %v1339, 0
  %v2052 = vsel %vm2035, %v1344, 0
  %v2055 = vsel %vm2035, %v1349, 0
  %v2058 = vsel %vm2035, %v1354, 0
  %v2061 = vsel %vm2035, %v1359, 0
  %v2064 = vsel %vm2035, %v1364, 0
  %v2067 = vsel %vm2035, %v1369, 0
  %v2070 = vsel %vm2035, %v1374, 0
  %v2073 = vsel %vm2035, %v1379, 0
  %v2076 = vsel %vm2035, %v1384, 0
  %v2079 = vsel %vm2035, %v1389, 0
  %v2082 = vsel %vm2035, %v1394, 0
  %v2085 = vsel %vm2035, %v1399, 0
  %v2088 = vsel %vm2035, %v1404, 0
  %v2091 = vsel %vm2035, %v1409, 0
  %v2094 = vsel %vm2035, %v1414, 0
  %v2097 = vsel %vm2035, %v1419, 0
  %v2100 = vsel %vm2035, %v1424, 0
  %v2103 = vsel %vm2035, %v1429, 0
  %v2106 = vsel %vm2035, %v1434, 0
  %v2109 = vsel %vm2035, %v1439, 0
  %v2112 = vsel %vm2035, %v1444, 0
  %v2115 = vsel %vm2035, %v1449, 0
  %v2118 = vsel %vm2035, %v1454, 0
  %v2121 = vsel %vm2035, %v1459, 0
  %v2124 = vsel %vm2035, %v1464, 0
  %v2127 = vsel %vm2035, %v1469, 0
  %v2130 = vsel %vm2035, %v1474, 0
  %v2133 = vsel %vm2035, %v1479, 0
  %v2136 = vsel %vm2035, %v1484, 0
  %v2139 = vsel %vm2035, %v1489, 0
  %v2142 = vsel %vm2035, %v1494, 0
  %v2145 = vsel %vm2035, %v1499, 0
  %v2148 = vsel %vm2035, %v1504, 0
  %v2151 = vsel %vm2035, %v1509, 0
  %v2154 = vsel %vm2035, %v1514, 0
  %v2157 = vsel %vm2035, %v1519, 0
  %v2160 = vsel %vm2035, %v1524, 0
  %v2163 = vsel %vm2035, %v1529, 0
  %v2166 = vsel %vm2035, %v1534, 0
  %v2169 = vsel %vm2035, %v1539, 0
  %v2172 = vsel %vm2035, %v1544, 0
  %v2175 = vsel %vm2035, %v1549, 0
  %v2178 = vsel %vm2035, %v1554, 0
  %v2181 = vsel %vm2035, %v1559, 0
  %v2184 = vsel %vm2035, %v1564, 0
  %v2187 = vsel %vm2035, %v1569, 0
  %v2190 = vsel %vm2035, %v1574, 0
  %v2193 = vsel %vm2035, %v1579, 0
  %v2196 = vsel %vm2035, %v1584, 0
  %v2199 = vsel %vm2035, %v1589, 0
  %v2202 = vsel %vm2035, %v1594, 0
  %2204 = vmatprep.subr.bf16.mxu0 0
  %2205 = vmatpush1.bf16.msra.mxu0 %v1970
  %2206 = vmatprep.subr.bf16.mxu0 0
  %2207 = vmatpush1.bf16.msra.mxu0 %v1969
  %2208 = vmatprep.subr.bf16.mxu0 0
  %2209 = vmatpush1.bf16.msra.mxu0 %v1968
  %2210 = vmatprep.subr.bf16.mxu0 0
  %2211 = vmatpush1.bf16.msra.mxu0 %v1967
  %2212 = vmatprep.subr.bf16.mxu0 0
  %2213 = vmatpush1.bf16.msra.mxu0 %v1966
  %2214 = vmatprep.subr.bf16.mxu0 0
  %2215 = vmatpush1.bf16.msra.mxu0 %v1965
  %2216 = vmatprep.subr.bf16.mxu0 0
  %2217 = vmatpush1.bf16.msra.mxu0 %v1964
  %2218 = vmatprep.subr.bf16.mxu0 0
  %2219 = vmatpush1.bf16.msra.mxu0 %v1963
  %2220 = vmatprep.subr.bf16.mxu0 0
  %2221 = vmatpush2.bf16.msra.mxu0 %v1978
  %2222 = vmatprep.subr.bf16.mxu0 0
  %2223 = vmatpush2.bf16.msra.mxu0 %v1977
  %2224 = vmatprep.subr.bf16.mxu0 0
  %2225 = vmatpush2.bf16.msra.mxu0 %v1976
  %2226 = vmatprep.subr.bf16.mxu0 0
  %2227 = vmatpush2.bf16.msra.mxu0 %v1975
  %2228 = vmatprep.subr.bf16.mxu0 0
  %2229 = vmatpush2.bf16.msra.mxu0 %v1974
  %2230 = vmatprep.subr.bf16.mxu0 0
  %2231 = vmatpush2.bf16.msra.mxu0 %v1973
  %2232 = vmatprep.subr.bf16.mxu0 0
  %2233 = vmatpush2.bf16.msra.mxu0 %v1972
  %2234 = vmatprep.subr.bf16.mxu0 0
  %2235 = vmatpush2.bf16.msra.mxu0 %v1971
  %2236 = vmatprep.mubr.bf16.mxu0 %v1316
  %2237 = vmatmul.mubr.bf16.gmra.mxu0 %v1315
  %v2238 = vpop.f32.mrf.mxu0
  %v2239 = vadd.f32 %v425, %v2238
  %v2240 = vpop.f32.mrf.mxu0
  %v2241 = vpop.f32.mrf.mxu0
  %v2242 = vadd.f32 %v425, %v2241
  %v2243 = vpop.f32.mrf.mxu0
  %2244 = vmatprep.mubr.bf16.mxu0 %v1321
  %2245 = vmatmul.mubr.bf16.gmra.mxu0 %v1320
  %v2246 = vpop.f32.mrf.mxu0
  %v2247 = vadd.f32 %v425, %v2246
  %v2248 = vpop.f32.mrf.mxu0
  %v2249 = vpop.f32.mrf.mxu0
  %v2250 = vadd.f32 %v425, %v2249
  %v2251 = vpop.f32.mrf.mxu0
  %2252 = vmatprep.mubr.bf16.mxu0 %v1326
  %2253 = vmatmul.mubr.bf16.gmra.mxu0 %v1325
  %v2254 = vpop.f32.mrf.mxu0
  %v2255 = vadd.f32 %v425, %v2254
  %v2256 = vpop.f32.mrf.mxu0
  %v2257 = vpop.f32.mrf.mxu0
  %v2258 = vadd.f32 %v425, %v2257
  %v2259 = vpop.f32.mrf.mxu0
  %2260 = vmatprep.mubr.bf16.mxu0 %v1331
  %2261 = vmatmul.mubr.bf16.gmra.mxu0 %v1330
  %v2262 = vpop.f32.mrf.mxu0
  %v2263 = vadd.f32 %v425, %v2262
  %v2264 = vpop.f32.mrf.mxu0
  %v2265 = vpop.f32.mrf.mxu0
  %v2266 = vadd.f32 %v425, %v2265
  %v2267 = vpop.f32.mrf.mxu0
  %2268 = vmatprep.mubr.bf16.mxu0 %v1336
  %2269 = vmatmul.mubr.bf16.gmra.mxu0 %v1335
  %v2270 = vpop.f32.mrf.mxu0
  %v2271 = vadd.f32 %v425, %v2270
  %v2272 = vpop.f32.mrf.mxu0
  %v2273 = vpop.f32.mrf.mxu0
  %v2274 = vadd.f32 %v425, %v2273
  %v2275 = vpop.f32.mrf.mxu0
  %2276 = vmatprep.mubr.bf16.mxu0 %v1341
  %2277 = vmatmul.mubr.bf16.gmra.mxu0 %v1340
  %v2278 = vpop.f32.mrf.mxu0
  %v2279 = vadd.f32 %v425, %v2278
  %v2280 = vpop.f32.mrf.mxu0
  %v2281 = vpop.f32.mrf.mxu0
  %v2282 = vadd.f32 %v425, %v2281
  %v2283 = vpop.f32.mrf.mxu0
  %2284 = vmatprep.mubr.bf16.mxu0 %v1346
  %2285 = vmatmul.mubr.bf16.gmra.mxu0 %v1345
  %v2286 = vpop.f32.mrf.mxu0
  %v2287 = vadd.f32 %v425, %v2286
  %v2288 = vpop.f32.mrf.mxu0
  %v2289 = vpop.f32.mrf.mxu0
  %v2290 = vadd.f32 %v425, %v2289
  %v2291 = vpop.f32.mrf.mxu0
  %2292 = vmatprep.mubr.bf16.mxu0 %v1351
  %2293 = vmatmul.mubr.bf16.gmra.mxu0 %v1350
  %v2294 = vpop.f32.mrf.mxu0
  %v2295 = vadd.f32 %v425, %v2294
  %v2296 = vpop.f32.mrf.mxu0
  %v2297 = vpop.f32.mrf.mxu0
  %v2298 = vadd.f32 %v425, %v2297
  %v2299 = vpop.f32.mrf.mxu0
  %2300 = vmatprep.mubr.bf16.mxu0 %v1356
  %2301 = vmatmul.mubr.bf16.gmra.mxu0 %v1355
  %v2302 = vpop.f32.mrf.mxu0
  %v2303 = vadd.f32 %v425, %v2302
  %v2304 = vpop.f32.mrf.mxu0
  %v2305 = vpop.f32.mrf.mxu0
  %v2306 = vadd.f32 %v425, %v2305
  %v2307 = vpop.f32.mrf.mxu0
  %2308 = vmatprep.mubr.bf16.mxu0 %v1361
  %2309 = vmatmul.mubr.bf16.gmra.mxu0 %v1360
  %v2310 = vpop.f32.mrf.mxu0
  %v2311 = vadd.f32 %v425, %v2310
  %v2312 = vpop.f32.mrf.mxu0
  %v2313 = vpop.f32.mrf.mxu0
  %v2314 = vadd.f32 %v425, %v2313
  %v2315 = vpop.f32.mrf.mxu0
  %2316 = vmatprep.mubr.bf16.mxu0 %v1366
  %2317 = vmatmul.mubr.bf16.gmra.mxu0 %v1365
  %v2318 = vpop.f32.mrf.mxu0
  %v2319 = vadd.f32 %v425, %v2318
  %v2320 = vpop.f32.mrf.mxu0
  %v2321 = vpop.f32.mrf.mxu0
  %v2322 = vadd.f32 %v425, %v2321
  %v2323 = vpop.f32.mrf.mxu0
  %2324 = vmatprep.mubr.bf16.mxu0 %v1371
  %2325 = vmatmul.mubr.bf16.gmra.mxu0 %v1370
  %v2326 = vpop.f32.mrf.mxu0
  %v2327 = vadd.f32 %v425, %v2326
  %v2328 = vpop.f32.mrf.mxu0
  %v2329 = vpop.f32.mrf.mxu0
  %v2330 = vadd.f32 %v425, %v2329
  %v2331 = vpop.f32.mrf.mxu0
  %2332 = vmatprep.mubr.bf16.mxu0 %v1376
  %2333 = vmatmul.mubr.bf16.gmra.mxu0 %v1375
  %v2334 = vpop.f32.mrf.mxu0
  %v2335 = vadd.f32 %v425, %v2334
  %v2336 = vpop.f32.mrf.mxu0
  %v2337 = vpop.f32.mrf.mxu0
  %v2338 = vadd.f32 %v425, %v2337
  %v2339 = vpop.f32.mrf.mxu0
  %2340 = vmatprep.mubr.bf16.mxu0 %v1381
  %2341 = vmatmul.mubr.bf16.gmra.mxu0 %v1380
  %v2342 = vpop.f32.mrf.mxu0
  %v2343 = vadd.f32 %v425, %v2342
  %v2344 = vpop.f32.mrf.mxu0
  %v2345 = vpop.f32.mrf.mxu0
  %v2346 = vadd.f32 %v425, %v2345
  %v2347 = vpop.f32.mrf.mxu0
  %2348 = vmatprep.mubr.bf16.mxu0 %v1386
  %2349 = vmatmul.mubr.bf16.gmra.mxu0 %v1385
  %v2350 = vpop.f32.mrf.mxu0
  %v2351 = vadd.f32 %v425, %v2350
  %v2352 = vpop.f32.mrf.mxu0
  %v2353 = vpop.f32.mrf.mxu0
  %v2354 = vadd.f32 %v425, %v2353
  %v2355 = vpop.f32.mrf.mxu0
  %2356 = vmatprep.mubr.bf16.mxu0 %v1391
  %2357 = vmatmul.mubr.bf16.gmra.mxu0 %v1390
  %v2358 = vpop.f32.mrf.mxu0
  %v2359 = vadd.f32 %v425, %v2358
  %v2360 = vpop.f32.mrf.mxu0
  %v2361 = vpop.f32.mrf.mxu0
  %v2362 = vadd.f32 %v425, %v2361
  %v2363 = vpop.f32.mrf.mxu0
  %2364 = vmatprep.mubr.bf16.mxu0 %v1396
  %2365 = vmatmul.mubr.bf16.gmra.mxu0 %v1395
  %v2366 = vpop.f32.mrf.mxu0
  %v2367 = vadd.f32 %v425, %v2366
  %v2368 = vpop.f32.mrf.mxu0
  %v2369 = vpop.f32.mrf.mxu0
  %v2370 = vadd.f32 %v425, %v2369
  %v2371 = vpop.f32.mrf.mxu0
  %2372 = vmatprep.mubr.bf16.mxu0 %v1401
  %2373 = vmatmul.mubr.bf16.gmra.mxu0 %v1400
  %v2374 = vpop.f32.mrf.mxu0
  %v2375 = vadd.f32 %v425, %v2374
  %v2376 = vpop.f32.mrf.mxu0
  %v2377 = vpop.f32.mrf.mxu0
  %v2378 = vadd.f32 %v425, %v2377
  %v2379 = vpop.f32.mrf.mxu0
  %2380 = vmatprep.mubr.bf16.mxu0 %v1406
  %2381 = vmatmul.mubr.bf16.gmra.mxu0 %v1405
  %v2382 = vpop.f32.mrf.mxu0
  %v2383 = vadd.f32 %v425, %v2382
  %v2384 = vpop.f32.mrf.mxu0
  %v2385 = vpop.f32.mrf.mxu0
  %v2386 = vadd.f32 %v425, %v2385
  %v2387 = vpop.f32.mrf.mxu0
  %2388 = vmatprep.mubr.bf16.mxu0 %v1411
  %2389 = vmatmul.mubr.bf16.gmra.mxu0 %v1410
  %v2390 = vpop.f32.mrf.mxu0
  %v2391 = vadd.f32 %v425, %v2390
  %v2392 = vpop.f32.mrf.mxu0
  %v2393 = vpop.f32.mrf.mxu0
  %v2394 = vadd.f32 %v425, %v2393
  %v2395 = vpop.f32.mrf.mxu0
  %2396 = vmatprep.mubr.bf16.mxu0 %v1416
  %2397 = vmatmul.mubr.bf16.gmra.mxu0 %v1415
  %v2398 = vpop.f32.mrf.mxu0
  %v2399 = vadd.f32 %v425, %v2398
  %v2400 = vpop.f32.mrf.mxu0
  %v2401 = vpop.f32.mrf.mxu0
  %v2402 = vadd.f32 %v425, %v2401
  %v2403 = vpop.f32.mrf.mxu0
  %2404 = vmatprep.mubr.bf16.mxu0 %v1421
  %2405 = vmatmul.mubr.bf16.gmra.mxu0 %v1420
  %v2406 = vpop.f32.mrf.mxu0
  %v2407 = vadd.f32 %v425, %v2406
  %v2408 = vpop.f32.mrf.mxu0
  %v2409 = vpop.f32.mrf.mxu0
  %v2410 = vadd.f32 %v425, %v2409
  %v2411 = vpop.f32.mrf.mxu0
  %2412 = vmatprep.mubr.bf16.mxu0 %v1426
  %2413 = vmatmul.mubr.bf16.gmra.mxu0 %v1425
  %v2414 = vpop.f32.mrf.mxu0
  %v2415 = vadd.f32 %v425, %v2414
  %v2416 = vpop.f32.mrf.mxu0
  %v2417 = vpop.f32.mrf.mxu0
  %v2418 = vadd.f32 %v425, %v2417
  %v2419 = vpop.f32.mrf.mxu0
  %2420 = vmatprep.mubr.bf16.mxu0 %v1431
  %2421 = vmatmul.mubr.bf16.gmra.mxu0 %v1430
  %v2422 = vpop.f32.mrf.mxu0
  %v2423 = vadd.f32 %v425, %v2422
  %v2424 = vpop.f32.mrf.mxu0
  %v2425 = vpop.f32.mrf.mxu0
  %v2426 = vadd.f32 %v425, %v2425
  %v2427 = vpop.f32.mrf.mxu0
  %2428 = vmatprep.mubr.bf16.mxu0 %v1436
  %2429 = vmatmul.mubr.bf16.gmra.mxu0 %v1435
  %v2430 = vpop.f32.mrf.mxu0
  %v2431 = vadd.f32 %v425, %v2430
  %v2432 = vpop.f32.mrf.mxu0
  %v2433 = vpop.f32.mrf.mxu0
  %v2434 = vadd.f32 %v425, %v2433
  %v2435 = vpop.f32.mrf.mxu0
  %2436 = vmatprep.mubr.bf16.mxu0 %v1441
  %2437 = vmatmul.mubr.bf16.gmra.mxu0 %v1440
  %v2438 = vpop.f32.mrf.mxu0
  %v2439 = vadd.f32 %v425, %v2438
  %v2440 = vpop.f32.mrf.mxu0
  %v2441 = vpop.f32.mrf.mxu0
  %v2442 = vadd.f32 %v425, %v2441
  %v2443 = vpop.f32.mrf.mxu0
  %2444 = vmatprep.mubr.bf16.mxu0 %v1446
  %2445 = vmatmul.mubr.bf16.gmra.mxu0 %v1445
  %v2446 = vpop.f32.mrf.mxu0
  %v2447 = vadd.f32 %v425, %v2446
  %v2448 = vpop.f32.mrf.mxu0
  %v2449 = vpop.f32.mrf.mxu0
  %v2450 = vadd.f32 %v425, %v2449
  %v2451 = vpop.f32.mrf.mxu0
  %2452 = vmatprep.mubr.bf16.mxu0 %v1451
  %2453 = vmatmul.mubr.bf16.gmra.mxu0 %v1450
  %v2454 = vpop.f32.mrf.mxu0
  %v2455 = vadd.f32 %v425, %v2454
  %v2456 = vpop.f32.mrf.mxu0
  %v2457 = vpop.f32.mrf.mxu0
  %v2458 = vadd.f32 %v425, %v2457
  %v2459 = vpop.f32.mrf.mxu0
  %2460 = vmatprep.mubr.bf16.mxu0 %v1456
  %2461 = vmatmul.mubr.bf16.gmra.mxu0 %v1455
  %v2462 = vpop.f32.mrf.mxu0
  %v2463 = vadd.f32 %v425, %v2462
  %v2464 = vpop.f32.mrf.mxu0
  %v2465 = vpop.f32.mrf.mxu0
  %v2466 = vadd.f32 %v425, %v2465
  %v2467 = vpop.f32.mrf.mxu0
  %2468 = vmatprep.mubr.bf16.mxu0 %v1461
  %2469 = vmatmul.mubr.bf16.gmra.mxu0 %v1460
  %v2470 = vpop.f32.mrf.mxu0
  %v2471 = vadd.f32 %v425, %v2470
  %v2472 = vpop.f32.mrf.mxu0
  %v2473 = vpop.f32.mrf.mxu0
  %v2474 = vadd.f32 %v425, %v2473
  %v2475 = vpop.f32.mrf.mxu0
  %2476 = vmatprep.mubr.bf16.mxu0 %v1466
  %2477 = vmatmul.mubr.bf16.gmra.mxu0 %v1465
  %v2478 = vpop.f32.mrf.mxu0
  %v2479 = vadd.f32 %v425, %v2478
  %v2480 = vpop.f32.mrf.mxu0
  %v2481 = vpop.f32.mrf.mxu0
  %v2482 = vadd.f32 %v425, %v2481
  %v2483 = vpop.f32.mrf.mxu0
  %2484 = vmatprep.mubr.bf16.mxu0 %v1471
  %2485 = vmatmul.mubr.bf16.gmra.mxu0 %v1470
  %v2486 = vpop.f32.mrf.mxu0
  %v2487 = vadd.f32 %v425, %v2486
  %v2488 = vpop.f32.mrf.mxu0
  %v2489 = vpop.f32.mrf.mxu0
  %v2490 = vadd.f32 %v425, %v2489
  %v2491 = vpop.f32.mrf.mxu0
  %2492 = vmatprep.mubr.bf16.mxu0 %v1476
  %2493 = vmatmul.mubr.bf16.gmra.mxu0 %v1475
  %v2494 = vpop.f32.mrf.mxu0
  %v2495 = vadd.f32 %v425, %v2494
  %v2496 = vpop.f32.mrf.mxu0
  %v2497 = vpop.f32.mrf.mxu0
  %v2498 = vadd.f32 %v425, %v2497
  %v2499 = vpop.f32.mrf.mxu0
  %2500 = vmatprep.mubr.bf16.mxu0 %v1481
  %2501 = vmatmul.mubr.bf16.gmra.mxu0 %v1480
  %v2502 = vpop.f32.mrf.mxu0
  %v2503 = vadd.f32 %v425, %v2502
  %v2504 = vpop.f32.mrf.mxu0
  %v2505 = vpop.f32.mrf.mxu0
  %v2506 = vadd.f32 %v425, %v2505
  %v2507 = vpop.f32.mrf.mxu0
  %2508 = vmatprep.mubr.bf16.mxu0 %v1486
  %2509 = vmatmul.mubr.bf16.gmra.mxu0 %v1485
  %v2510 = vpop.f32.mrf.mxu0
  %v2511 = vadd.f32 %v425, %v2510
  %v2512 = vpop.f32.mrf.mxu0
  %v2513 = vpop.f32.mrf.mxu0
  %v2514 = vadd.f32 %v425, %v2513
  %v2515 = vpop.f32.mrf.mxu0
  %2516 = vmatprep.mubr.bf16.mxu0 %v1491
  %2517 = vmatmul.mubr.bf16.gmra.mxu0 %v1490
  %v2518 = vpop.f32.mrf.mxu0
  %v2519 = vadd.f32 %v425, %v2518
  %v2520 = vpop.f32.mrf.mxu0
  %v2521 = vpop.f32.mrf.mxu0
  %v2522 = vadd.f32 %v425, %v2521
  %v2523 = vpop.f32.mrf.mxu0
  %2524 = vmatprep.mubr.bf16.mxu0 %v1496
  %2525 = vmatmul.mubr.bf16.gmra.mxu0 %v1495
  %v2526 = vpop.f32.mrf.mxu0
  %v2527 = vadd.f32 %v425, %v2526
  %v2528 = vpop.f32.mrf.mxu0
  %v2529 = vpop.f32.mrf.mxu0
  %v2530 = vadd.f32 %v425, %v2529
  %v2531 = vpop.f32.mrf.mxu0
  %2532 = vmatprep.mubr.bf16.mxu0 %v1501
  %2533 = vmatmul.mubr.bf16.gmra.mxu0 %v1500
  %v2534 = vpop.f32.mrf.mxu0
  %v2535 = vadd.f32 %v425, %v2534
  %v2536 = vpop.f32.mrf.mxu0
  %v2537 = vpop.f32.mrf.mxu0
  %v2538 = vadd.f32 %v425, %v2537
  %v2539 = vpop.f32.mrf.mxu0
  %2540 = vmatprep.mubr.bf16.mxu0 %v1506
  %2541 = vmatmul.mubr.bf16.gmra.mxu0 %v1505
  %v2542 = vpop.f32.mrf.mxu0
  %v2543 = vadd.f32 %v425, %v2542
  %v2544 = vpop.f32.mrf.mxu0
  %v2545 = vpop.f32.mrf.mxu0
  %v2546 = vadd.f32 %v425, %v2545
  %v2547 = vpop.f32.mrf.mxu0
  %2548 = vmatprep.mubr.bf16.mxu0 %v1511
  %2549 = vmatmul.mubr.bf16.gmra.mxu0 %v1510
  %v2550 = vpop.f32.mrf.mxu0
  %v2551 = vadd.f32 %v425, %v2550
  %v2552 = vpop.f32.mrf.mxu0
  %v2553 = vpop.f32.mrf.mxu0
  %v2554 = vadd.f32 %v425, %v2553
  %v2555 = vpop.f32.mrf.mxu0
  %2556 = vmatprep.mubr.bf16.mxu0 %v1516
  %2557 = vmatmul.mubr.bf16.gmra.mxu0 %v1515
  %v2558 = vpop.f32.mrf.mxu0
  %v2559 = vadd.f32 %v425, %v2558
  %v2560 = vpop.f32.mrf.mxu0
  %v2561 = vpop.f32.mrf.mxu0
  %v2562 = vadd.f32 %v425, %v2561
  %v2563 = vpop.f32.mrf.mxu0
  %2564 = vmatprep.mubr.bf16.mxu0 %v1521
  %2565 = vmatmul.mubr.bf16.gmra.mxu0 %v1520
  %v2566 = vpop.f32.mrf.mxu0
  %v2567 = vadd.f32 %v425, %v2566
  %v2568 = vpop.f32.mrf.mxu0
  %v2569 = vpop.f32.mrf.mxu0
  %v2570 = vadd.f32 %v425, %v2569
  %v2571 = vpop.f32.mrf.mxu0
  %2572 = vmatprep.mubr.bf16.mxu0 %v1526
  %2573 = vmatmul.mubr.bf16.gmra.mxu0 %v1525
  %v2574 = vpop.f32.mrf.mxu0
  %v2575 = vadd.f32 %v425, %v2574
  %v2576 = vpop.f32.mrf.mxu0
  %v2577 = vpop.f32.mrf.mxu0
  %v2578 = vadd.f32 %v425, %v2577
  %v2579 = vpop.f32.mrf.mxu0
  %2580 = vmatprep.mubr.bf16.mxu0 %v1531
  %2581 = vmatmul.mubr.bf16.gmra.mxu0 %v1530
  %v2582 = vpop.f32.mrf.mxu0
  %v2583 = vadd.f32 %v425, %v2582
  %v2584 = vpop.f32.mrf.mxu0
  %v2585 = vpop.f32.mrf.mxu0
  %v2586 = vadd.f32 %v425, %v2585
  %v2587 = vpop.f32.mrf.mxu0
  %2588 = vmatprep.mubr.bf16.mxu0 %v1536
  %2589 = vmatmul.mubr.bf16.gmra.mxu0 %v1535
  %v2590 = vpop.f32.mrf.mxu0
  %v2591 = vadd.f32 %v425, %v2590
  %v2592 = vpop.f32.mrf.mxu0
  %v2593 = vpop.f32.mrf.mxu0
  %v2594 = vadd.f32 %v425, %v2593
  %v2595 = vpop.f32.mrf.mxu0
  %2596 = vmatprep.mubr.bf16.mxu0 %v1541
  %2597 = vmatmul.mubr.bf16.gmra.mxu0 %v1540
  %v2598 = vpop.f32.mrf.mxu0
  %v2599 = vadd.f32 %v425, %v2598
  %v2600 = vpop.f32.mrf.mxu0
  %v2601 = vpop.f32.mrf.mxu0
  %v2602 = vadd.f32 %v425, %v2601
  %v2603 = vpop.f32.mrf.mxu0
  %2604 = vmatprep.mubr.bf16.mxu0 %v1546
  %2605 = vmatmul.mubr.bf16.gmra.mxu0 %v1545
  %v2606 = vpop.f32.mrf.mxu0
  %v2607 = vadd.f32 %v425, %v2606
  %v2608 = vpop.f32.mrf.mxu0
  %v2609 = vpop.f32.mrf.mxu0
  %v2610 = vadd.f32 %v425, %v2609
  %v2611 = vpop.f32.mrf.mxu0
  %2612 = vmatprep.mubr.bf16.mxu0 %v1551
  %2613 = vmatmul.mubr.bf16.gmra.mxu0 %v1550
  %v2614 = vpop.f32.mrf.mxu0
  %v2615 = vadd.f32 %v425, %v2614
  %v2616 = vpop.f32.mrf.mxu0
  %v2617 = vpop.f32.mrf.mxu0
  %v2618 = vadd.f32 %v425, %v2617
  %v2619 = vpop.f32.mrf.mxu0
  %2620 = vmatprep.mubr.bf16.mxu0 %v1556
  %2621 = vmatmul.mubr.bf16.gmra.mxu0 %v1555
  %v2622 = vpop.f32.mrf.mxu0
  %v2623 = vadd.f32 %v425, %v2622
  %v2624 = vpop.f32.mrf.mxu0
  %v2625 = vpop.f32.mrf.mxu0
  %v2626 = vadd.f32 %v425, %v2625
  %v2627 = vpop.f32.mrf.mxu0
  %2628 = vmatprep.mubr.bf16.mxu0 %v1561
  %2629 = vmatmul.mubr.bf16.gmra.mxu0 %v1560
  %v2630 = vpop.f32.mrf.mxu0
  %v2631 = vadd.f32 %v425, %v2630
  %v2632 = vpop.f32.mrf.mxu0
  %v2633 = vpop.f32.mrf.mxu0
  %v2634 = vadd.f32 %v425, %v2633
  %v2635 = vpop.f32.mrf.mxu0
  %2636 = vmatprep.mubr.bf16.mxu0 %v1566
  %2637 = vmatmul.mubr.bf16.gmra.mxu0 %v1565
  %v2638 = vpop.f32.mrf.mxu0
  %v2639 = vadd.f32 %v425, %v2638
  %v2640 = vpop.f32.mrf.mxu0
  %v2641 = vpop.f32.mrf.mxu0
  %v2642 = vadd.f32 %v425, %v2641
  %v2643 = vpop.f32.mrf.mxu0
  %2644 = vmatprep.mubr.bf16.mxu0 %v1571
  %2645 = vmatmul.mubr.bf16.gmra.mxu0 %v1570
  %v2646 = vpop.f32.mrf.mxu0
  %v2647 = vadd.f32 %v425, %v2646
  %v2648 = vpop.f32.mrf.mxu0
  %v2649 = vpop.f32.mrf.mxu0
  %v2650 = vadd.f32 %v425, %v2649
  %v2651 = vpop.f32.mrf.mxu0
  %2652 = vmatprep.mubr.bf16.mxu0 %v1576
  %2653 = vmatmul.mubr.bf16.gmra.mxu0 %v1575
  %v2654 = vpop.f32.mrf.mxu0
  %v2655 = vadd.f32 %v425, %v2654
  %v2656 = vpop.f32.mrf.mxu0
  %v2657 = vpop.f32.mrf.mxu0
  %v2658 = vadd.f32 %v425, %v2657
  %v2659 = vpop.f32.mrf.mxu0
  %2660 = vmatprep.mubr.bf16.mxu0 %v1581
  %2661 = vmatmul.mubr.bf16.gmra.mxu0 %v1580
  %v2662 = vpop.f32.mrf.mxu0
  %v2663 = vadd.f32 %v425, %v2662
  %v2664 = vpop.f32.mrf.mxu0
  %v2665 = vpop.f32.mrf.mxu0
  %v2666 = vadd.f32 %v425, %v2665
  %v2667 = vpop.f32.mrf.mxu0
  %2668 = vmatprep.mubr.bf16.mxu0 %v1586
  %2669 = vmatmul.mubr.bf16.gmra.mxu0 %v1585
  %v2670 = vpop.f32.mrf.mxu0
  %v2671 = vadd.f32 %v425, %v2670
  %v2672 = vpop.f32.mrf.mxu0
  %v2673 = vpop.f32.mrf.mxu0
  %v2674 = vadd.f32 %v425, %v2673
  %v2675 = vpop.f32.mrf.mxu0
  %2676 = vmatprep.mubr.bf16.mxu0 %v1591
  %2677 = vmatmul.mubr.bf16.gmra.mxu0 %v1590
  %v2678 = vpop.f32.mrf.mxu0
  %v2679 = vadd.f32 %v425, %v2678
  %v2680 = vpop.f32.mrf.mxu0
  %v2681 = vpop.f32.mrf.mxu0
  %v2682 = vpop.f32.mrf.mxu0
  %2683 = vdwg.mxu0
  %2684 = vmatprep.subr.bf16.mxu0 0
  %2685 = vmatpush1.bf16.msra.mxu0 %v1986
  %2686 = vmatprep.subr.bf16.mxu0 0
  %2687 = vmatpush1.bf16.msra.mxu0 %v1985
  %2688 = vmatprep.subr.bf16.mxu0 0
  %2689 = vmatpush1.bf16.msra.mxu0 %v1984
  %2690 = vmatprep.subr.bf16.mxu0 0
  %2691 = vmatpush1.bf16.msra.mxu0 %v1983
  %2692 = vmatprep.subr.bf16.mxu0 0
  %2693 = vmatpush1.bf16.msra.mxu0 %v1982
  %2694 = vmatprep.subr.bf16.mxu0 0
  %2695 = vmatpush1.bf16.msra.mxu0 %v1981
  %2696 = vmatprep.subr.bf16.mxu0 0
  %2697 = vmatpush1.bf16.msra.mxu0 %v1980
  %2698 = vmatprep.subr.bf16.mxu0 0
  %2699 = vmatpush1.bf16.msra.mxu0 %v1979
  %2700 = vmatprep.subr.bf16.mxu0 0
  %2701 = vmatpush2.bf16.msra.mxu0 %v1994
  %2702 = vmatprep.subr.bf16.mxu0 0
  %2703 = vmatpush2.bf16.msra.mxu0 %v1993
  %2704 = vmatprep.subr.bf16.mxu0 0
  %2705 = vmatpush2.bf16.msra.mxu0 %v1992
  %2706 = vmatprep.subr.bf16.mxu0 0
  %2707 = vmatpush2.bf16.msra.mxu0 %v1991
  %2708 = vmatprep.subr.bf16.mxu0 0
  %2709 = vmatpush2.bf16.msra.mxu0 %v1990
  %2710 = vmatprep.subr.bf16.mxu0 0
  %2711 = vmatpush2.bf16.msra.mxu0 %v1989
  %2712 = vmatprep.subr.bf16.mxu0 0
  %2713 = vmatpush2.bf16.msra.mxu0 %v1988
  %2714 = vmatprep.subr.bf16.mxu0 0
  %2715 = vmatpush2.bf16.msra.mxu0 %v1987
  %2716 = vmatprep.mubr.bf16.mxu0 %v1318
  %2717 = vmatmul.mubr.bf16.gmra.mxu0 %v1317
  %v2718 = vpop.f32.mrf.mxu0
  %v2719 = vadd.f32 %v2239, %v2718
  %v2720 = vpop.f32.mrf.mxu0
  %v2721 = vpop.f32.mrf.mxu0
  %v2722 = vadd.f32 %v2242, %v2721
  %v2723 = vpop.f32.mrf.mxu0
  %2724 = vmatprep.mubr.bf16.mxu0 %v1323
  %2725 = vmatmul.mubr.bf16.gmra.mxu0 %v1322
  %v2726 = vpop.f32.mrf.mxu0
  %v2727 = vadd.f32 %v2247, %v2726
  %v2728 = vpop.f32.mrf.mxu0
  %v2729 = vpop.f32.mrf.mxu0
  %v2730 = vadd.f32 %v2250, %v2729
  %v2731 = vpop.f32.mrf.mxu0
  %2732 = vmatprep.mubr.bf16.mxu0 %v1328
  %2733 = vmatmul.mubr.bf16.gmra.mxu0 %v1327
  %v2734 = vpop.f32.mrf.mxu0
  %v2735 = vadd.f32 %v2255, %v2734
  %v2736 = vpop.f32.mrf.mxu0
  %v2737 = vpop.f32.mrf.mxu0
  %v2738 = vadd.f32 %v2258, %v2737
  %v2739 = vpop.f32.mrf.mxu0
  %2740 = vmatprep.mubr.bf16.mxu0 %v1333
  %2741 = vmatmul.mubr.bf16.gmra.mxu0 %v1332
  %v2742 = vpop.f32.mrf.mxu0
  %v2743 = vadd.f32 %v2263, %v2742
  %v2744 = vpop.f32.mrf.mxu0
  %v2745 = vpop.f32.mrf.mxu0
  %v2746 = vadd.f32 %v2266, %v2745
  %v2747 = vpop.f32.mrf.mxu0
  %2748 = vmatprep.mubr.bf16.mxu0 %v1338
  %2749 = vmatmul.mubr.bf16.gmra.mxu0 %v1337
  %v2750 = vpop.f32.mrf.mxu0
  %v2751 = vadd.f32 %v2271, %v2750
  %v2752 = vpop.f32.mrf.mxu0
  %v2753 = vpop.f32.mrf.mxu0
  %v2754 = vadd.f32 %v2274, %v2753
  %v2755 = vpop.f32.mrf.mxu0
  %2756 = vmatprep.mubr.bf16.mxu0 %v1343
  %2757 = vmatmul.mubr.bf16.gmra.mxu0 %v1342
  %v2758 = vpop.f32.mrf.mxu0
  %v2759 = vadd.f32 %v2279, %v2758
  %v2760 = vpop.f32.mrf.mxu0
  %v2761 = vpop.f32.mrf.mxu0
  %v2762 = vadd.f32 %v2282, %v2761
  %v2763 = vpop.f32.mrf.mxu0
  %2764 = vmatprep.mubr.bf16.mxu0 %v1348
  %2765 = vmatmul.mubr.bf16.gmra.mxu0 %v1347
  %v2766 = vpop.f32.mrf.mxu0
  %v2767 = vadd.f32 %v2287, %v2766
  %v2768 = vpop.f32.mrf.mxu0
  %v2769 = vpop.f32.mrf.mxu0
  %v2770 = vadd.f32 %v2290, %v2769
  %v2771 = vpop.f32.mrf.mxu0
  %2772 = vmatprep.mubr.bf16.mxu0 %v1353
  %2773 = vmatmul.mubr.bf16.gmra.mxu0 %v1352
  %v2774 = vpop.f32.mrf.mxu0
  %v2775 = vadd.f32 %v2295, %v2774
  %v2776 = vpop.f32.mrf.mxu0
  %v2777 = vpop.f32.mrf.mxu0
  %v2778 = vadd.f32 %v2298, %v2777
  %v2779 = vpop.f32.mrf.mxu0
  %2780 = vmatprep.mubr.bf16.mxu0 %v1358
  %2781 = vmatmul.mubr.bf16.gmra.mxu0 %v1357
  %v2782 = vpop.f32.mrf.mxu0
  %v2783 = vadd.f32 %v2303, %v2782
  %v2784 = vpop.f32.mrf.mxu0
  %v2785 = vpop.f32.mrf.mxu0
  %v2786 = vadd.f32 %v2306, %v2785
  %v2787 = vpop.f32.mrf.mxu0
  %2788 = vmatprep.mubr.bf16.mxu0 %v1363
  %2789 = vmatmul.mubr.bf16.gmra.mxu0 %v1362
  %v2790 = vpop.f32.mrf.mxu0
  %v2791 = vadd.f32 %v2311, %v2790
  %v2792 = vpop.f32.mrf.mxu0
  %v2793 = vpop.f32.mrf.mxu0
  %v2794 = vadd.f32 %v2314, %v2793
  %v2795 = vpop.f32.mrf.mxu0
  %2796 = vmatprep.mubr.bf16.mxu0 %v1368
  %2797 = vmatmul.mubr.bf16.gmra.mxu0 %v1367
  %v2798 = vpop.f32.mrf.mxu0
  %v2799 = vadd.f32 %v2319, %v2798
  %v2800 = vpop.f32.mrf.mxu0
  %v2801 = vpop.f32.mrf.mxu0
  %v2802 = vadd.f32 %v2322, %v2801
  %v2803 = vpop.f32.mrf.mxu0
  %2804 = vmatprep.mubr.bf16.mxu0 %v1373
  %2805 = vmatmul.mubr.bf16.gmra.mxu0 %v1372
  %v2806 = vpop.f32.mrf.mxu0
  %v2807 = vadd.f32 %v2327, %v2806
  %v2808 = vpop.f32.mrf.mxu0
  %v2809 = vpop.f32.mrf.mxu0
  %v2810 = vadd.f32 %v2330, %v2809
  %v2811 = vpop.f32.mrf.mxu0
  %2812 = vmatprep.mubr.bf16.mxu0 %v1378
  %2813 = vmatmul.mubr.bf16.gmra.mxu0 %v1377
  %v2814 = vpop.f32.mrf.mxu0
  %v2815 = vadd.f32 %v2335, %v2814
  %v2816 = vpop.f32.mrf.mxu0
  %v2817 = vpop.f32.mrf.mxu0
  %v2818 = vadd.f32 %v2338, %v2817
  %v2819 = vpop.f32.mrf.mxu0
  %2820 = vmatprep.mubr.bf16.mxu0 %v1383
  %2821 = vmatmul.mubr.bf16.gmra.mxu0 %v1382
  %v2822 = vpop.f32.mrf.mxu0
  %v2823 = vadd.f32 %v2343, %v2822
  %v2824 = vpop.f32.mrf.mxu0
  %v2825 = vpop.f32.mrf.mxu0
  %v2826 = vadd.f32 %v2346, %v2825
  %v2827 = vpop.f32.mrf.mxu0
  %2828 = vmatprep.mubr.bf16.mxu0 %v1388
  %2829 = vmatmul.mubr.bf16.gmra.mxu0 %v1387
  %v2830 = vpop.f32.mrf.mxu0
  %v2831 = vadd.f32 %v2351, %v2830
  %v2832 = vpop.f32.mrf.mxu0
  %v2833 = vpop.f32.mrf.mxu0
  %v2834 = vadd.f32 %v2354, %v2833
  %v2835 = vpop.f32.mrf.mxu0
  %2836 = vmatprep.mubr.bf16.mxu0 %v1393
  %2837 = vmatmul.mubr.bf16.gmra.mxu0 %v1392
  %v2838 = vpop.f32.mrf.mxu0
  %v2839 = vadd.f32 %v2359, %v2838
  %v2840 = vpop.f32.mrf.mxu0
  %v2841 = vpop.f32.mrf.mxu0
  %v2842 = vadd.f32 %v2362, %v2841
  %v2843 = vpop.f32.mrf.mxu0
  %2844 = vmatprep.mubr.bf16.mxu0 %v1398
  %2845 = vmatmul.mubr.bf16.gmra.mxu0 %v1397
  %v2846 = vpop.f32.mrf.mxu0
  %v2847 = vadd.f32 %v2367, %v2846
  %v2848 = vpop.f32.mrf.mxu0
  %v2849 = vpop.f32.mrf.mxu0
  %v2850 = vadd.f32 %v2370, %v2849
  %v2851 = vpop.f32.mrf.mxu0
  %2852 = vmatprep.mubr.bf16.mxu0 %v1403
  %2853 = vmatmul.mubr.bf16.gmra.mxu0 %v1402
  %v2854 = vpop.f32.mrf.mxu0
  %v2855 = vadd.f32 %v2375, %v2854
  %v2856 = vpop.f32.mrf.mxu0
  %v2857 = vpop.f32.mrf.mxu0
  %v2858 = vadd.f32 %v2378, %v2857
  %v2859 = vpop.f32.mrf.mxu0
  %2860 = vmatprep.mubr.bf16.mxu0 %v1408
  %2861 = vmatmul.mubr.bf16.gmra.mxu0 %v1407
  %v2862 = vpop.f32.mrf.mxu0
  %v2863 = vadd.f32 %v2383, %v2862
  %v2864 = vpop.f32.mrf.mxu0
  %v2865 = vpop.f32.mrf.mxu0
  %v2866 = vadd.f32 %v2386, %v2865
  %v2867 = vpop.f32.mrf.mxu0
  %2868 = vmatprep.mubr.bf16.mxu0 %v1413
  %2869 = vmatmul.mubr.bf16.gmra.mxu0 %v1412
  %v2870 = vpop.f32.mrf.mxu0
  %v2871 = vadd.f32 %v2391, %v2870
  %v2872 = vpop.f32.mrf.mxu0
  %v2873 = vpop.f32.mrf.mxu0
  %v2874 = vadd.f32 %v2394, %v2873
  %v2875 = vpop.f32.mrf.mxu0
  %2876 = vmatprep.mubr.bf16.mxu0 %v1418
  %2877 = vmatmul.mubr.bf16.gmra.mxu0 %v1417
  %v2878 = vpop.f32.mrf.mxu0
  %v2879 = vadd.f32 %v2399, %v2878
  %v2880 = vpop.f32.mrf.mxu0
  %v2881 = vpop.f32.mrf.mxu0
  %v2882 = vadd.f32 %v2402, %v2881
  %v2883 = vpop.f32.mrf.mxu0
  %2884 = vmatprep.mubr.bf16.mxu0 %v1423
  %2885 = vmatmul.mubr.bf16.gmra.mxu0 %v1422
  %v2886 = vpop.f32.mrf.mxu0
  %v2887 = vadd.f32 %v2407, %v2886
  %v2888 = vpop.f32.mrf.mxu0
  %v2889 = vpop.f32.mrf.mxu0
  %v2890 = vadd.f32 %v2410, %v2889
  %v2891 = vpop.f32.mrf.mxu0
  %2892 = vmatprep.mubr.bf16.mxu0 %v1428
  %2893 = vmatmul.mubr.bf16.gmra.mxu0 %v1427
  %v2894 = vpop.f32.mrf.mxu0
  %v2895 = vadd.f32 %v2415, %v2894
  %v2896 = vpop.f32.mrf.mxu0
  %v2897 = vpop.f32.mrf.mxu0
  %v2898 = vadd.f32 %v2418, %v2897
  %v2899 = vpop.f32.mrf.mxu0
  %2900 = vmatprep.mubr.bf16.mxu0 %v1433
  %2901 = vmatmul.mubr.bf16.gmra.mxu0 %v1432
  %v2902 = vpop.f32.mrf.mxu0
  %v2903 = vadd.f32 %v2423, %v2902
  %v2904 = vpop.f32.mrf.mxu0
  %v2905 = vpop.f32.mrf.mxu0
  %v2906 = vadd.f32 %v2426, %v2905
  %v2907 = vpop.f32.mrf.mxu0
  %2908 = vmatprep.mubr.bf16.mxu0 %v1438
  %2909 = vmatmul.mubr.bf16.gmra.mxu0 %v1437
  %v2910 = vpop.f32.mrf.mxu0
  %v2911 = vadd.f32 %v2431, %v2910
  %v2912 = vpop.f32.mrf.mxu0
  %v2913 = vpop.f32.mrf.mxu0
  %v2914 = vadd.f32 %v2434, %v2913
  %v2915 = vpop.f32.mrf.mxu0
  %2916 = vmatprep.mubr.bf16.mxu0 %v1443
  %2917 = vmatmul.mubr.bf16.gmra.mxu0 %v1442
  %v2918 = vpop.f32.mrf.mxu0
  %v2919 = vadd.f32 %v2439, %v2918
  %v2920 = vpop.f32.mrf.mxu0
  %v2921 = vpop.f32.mrf.mxu0
  %v2922 = vadd.f32 %v2442, %v2921
  %v2923 = vpop.f32.mrf.mxu0
  %2924 = vmatprep.mubr.bf16.mxu0 %v1448
  %2925 = vmatmul.mubr.bf16.gmra.mxu0 %v1447
  %v2926 = vpop.f32.mrf.mxu0
  %v2927 = vadd.f32 %v2447, %v2926
  %v2928 = vpop.f32.mrf.mxu0
  %v2929 = vpop.f32.mrf.mxu0
  %v2930 = vadd.f32 %v2450, %v2929
  %v2931 = vpop.f32.mrf.mxu0
  %2932 = vmatprep.mubr.bf16.mxu0 %v1453
  %2933 = vmatmul.mubr.bf16.gmra.mxu0 %v1452
  %v2934 = vpop.f32.mrf.mxu0
  %v2935 = vadd.f32 %v2455, %v2934
  %v2936 = vpop.f32.mrf.mxu0
  %v2937 = vpop.f32.mrf.mxu0
  %v2938 = vadd.f32 %v2458, %v2937
  %v2939 = vpop.f32.mrf.mxu0
  %2940 = vmatprep.mubr.bf16.mxu0 %v1458
  %2941 = vmatmul.mubr.bf16.gmra.mxu0 %v1457
  %v2942 = vpop.f32.mrf.mxu0
  %v2943 = vadd.f32 %v2463, %v2942
  %v2944 = vpop.f32.mrf.mxu0
  %v2945 = vpop.f32.mrf.mxu0
  %v2946 = vadd.f32 %v2466, %v2945
  %v2947 = vpop.f32.mrf.mxu0
  %2948 = vmatprep.mubr.bf16.mxu0 %v1463
  %2949 = vmatmul.mubr.bf16.gmra.mxu0 %v1462
  %v2950 = vpop.f32.mrf.mxu0
  %v2951 = vadd.f32 %v2471, %v2950
  %v2952 = vpop.f32.mrf.mxu0
  %v2953 = vpop.f32.mrf.mxu0
  %v2954 = vadd.f32 %v2474, %v2953
  %v2955 = vpop.f32.mrf.mxu0
  %2956 = vmatprep.mubr.bf16.mxu0 %v1468
  %2957 = vmatmul.mubr.bf16.gmra.mxu0 %v1467
  %v2958 = vpop.f32.mrf.mxu0
  %v2959 = vadd.f32 %v2479, %v2958
  %v2960 = vpop.f32.mrf.mxu0
  %v2961 = vpop.f32.mrf.mxu0
  %v2962 = vadd.f32 %v2482, %v2961
  %v2963 = vpop.f32.mrf.mxu0
  %2964 = vmatprep.mubr.bf16.mxu0 %v1473
  %2965 = vmatmul.mubr.bf16.gmra.mxu0 %v1472
  %v2966 = vpop.f32.mrf.mxu0
  %v2967 = vadd.f32 %v2487, %v2966
  %v2968 = vpop.f32.mrf.mxu0
  %v2969 = vpop.f32.mrf.mxu0
  %v2970 = vadd.f32 %v2490, %v2969
  %v2971 = vpop.f32.mrf.mxu0
  %2972 = vmatprep.mubr.bf16.mxu0 %v1478
  %2973 = vmatmul.mubr.bf16.gmra.mxu0 %v1477
  %v2974 = vpop.f32.mrf.mxu0
  %v2975 = vadd.f32 %v2495, %v2974
  %v2976 = vpop.f32.mrf.mxu0
  %v2977 = vpop.f32.mrf.mxu0
  %v2978 = vadd.f32 %v2498, %v2977
  %v2979 = vpop.f32.mrf.mxu0
  %2980 = vmatprep.mubr.bf16.mxu0 %v1483
  %2981 = vmatmul.mubr.bf16.gmra.mxu0 %v1482
  %v2982 = vpop.f32.mrf.mxu0
  %v2983 = vadd.f32 %v2503, %v2982
  %v2984 = vpop.f32.mrf.mxu0
  %v2985 = vpop.f32.mrf.mxu0
  %v2986 = vadd.f32 %v2506, %v2985
  %v2987 = vpop.f32.mrf.mxu0
  %2988 = vmatprep.mubr.bf16.mxu0 %v1488
  %2989 = vmatmul.mubr.bf16.gmra.mxu0 %v1487
  %v2990 = vpop.f32.mrf.mxu0
  %v2991 = vadd.f32 %v2511, %v2990
  %v2992 = vpop.f32.mrf.mxu0
  %v2993 = vpop.f32.mrf.mxu0
  %v2994 = vadd.f32 %v2514, %v2993
  %v2995 = vpop.f32.mrf.mxu0
  %2996 = vmatprep.mubr.bf16.mxu0 %v1493
  %2997 = vmatmul.mubr.bf16.gmra.mxu0 %v1492
  %v2998 = vpop.f32.mrf.mxu0
  %v2999 = vadd.f32 %v2519, %v2998
  %v3000 = vpop.f32.mrf.mxu0
  %v3001 = vpop.f32.mrf.mxu0
  %v3002 = vadd.f32 %v2522, %v3001
  %v3003 = vpop.f32.mrf.mxu0
  %3004 = vmatprep.mubr.bf16.mxu0 %v1498
  %3005 = vmatmul.mubr.bf16.gmra.mxu0 %v1497
  %v3006 = vpop.f32.mrf.mxu0
  %v3007 = vadd.f32 %v2527, %v3006
  %v3008 = vpop.f32.mrf.mxu0
  %v3009 = vpop.f32.mrf.mxu0
  %v3010 = vadd.f32 %v2530, %v3009
  %v3011 = vpop.f32.mrf.mxu0
  %3012 = vmatprep.mubr.bf16.mxu0 %v1503
  %3013 = vmatmul.mubr.bf16.gmra.mxu0 %v1502
  %v3014 = vpop.f32.mrf.mxu0
  %v3015 = vadd.f32 %v2535, %v3014
  %v3016 = vpop.f32.mrf.mxu0
  %v3017 = vpop.f32.mrf.mxu0
  %v3018 = vadd.f32 %v2538, %v3017
  %v3019 = vpop.f32.mrf.mxu0
  %3020 = vmatprep.mubr.bf16.mxu0 %v1508
  %3021 = vmatmul.mubr.bf16.gmra.mxu0 %v1507
  %v3022 = vpop.f32.mrf.mxu0
  %v3023 = vadd.f32 %v2543, %v3022
  %v3024 = vpop.f32.mrf.mxu0
  %v3025 = vpop.f32.mrf.mxu0
  %v3026 = vadd.f32 %v2546, %v3025
  %v3027 = vpop.f32.mrf.mxu0
  %3028 = vmatprep.mubr.bf16.mxu0 %v1513
  %3029 = vmatmul.mubr.bf16.gmra.mxu0 %v1512
  %v3030 = vpop.f32.mrf.mxu0
  %v3031 = vadd.f32 %v2551, %v3030
  %v3032 = vpop.f32.mrf.mxu0
  %v3033 = vpop.f32.mrf.mxu0
  %v3034 = vadd.f32 %v2554, %v3033
  %v3035 = vpop.f32.mrf.mxu0
  %3036 = vmatprep.mubr.bf16.mxu0 %v1518
  %3037 = vmatmul.mubr.bf16.gmra.mxu0 %v1517
  %v3038 = vpop.f32.mrf.mxu0
  %v3039 = vadd.f32 %v2559, %v3038
  %v3040 = vpop.f32.mrf.mxu0
  %v3041 = vpop.f32.mrf.mxu0
  %v3042 = vadd.f32 %v2562, %v3041
  %v3043 = vpop.f32.mrf.mxu0
  %3044 = vmatprep.mubr.bf16.mxu0 %v1523
  %3045 = vmatmul.mubr.bf16.gmra.mxu0 %v1522
  %v3046 = vpop.f32.mrf.mxu0
  %v3047 = vadd.f32 %v2567, %v3046
  %v3048 = vpop.f32.mrf.mxu0
  %v3049 = vpop.f32.mrf.mxu0
  %v3050 = vadd.f32 %v2570, %v3049
  %v3051 = vpop.f32.mrf.mxu0
  %3052 = vmatprep.mubr.bf16.mxu0 %v1528
  %3053 = vmatmul.mubr.bf16.gmra.mxu0 %v1527
  %v3054 = vpop.f32.mrf.mxu0
  %v3055 = vadd.f32 %v2575, %v3054
  %v3056 = vpop.f32.mrf.mxu0
  %v3057 = vpop.f32.mrf.mxu0
  %v3058 = vadd.f32 %v2578, %v3057
  %v3059 = vpop.f32.mrf.mxu0
  %3060 = vmatprep.mubr.bf16.mxu0 %v1533
  %3061 = vmatmul.mubr.bf16.gmra.mxu0 %v1532
  %v3062 = vpop.f32.mrf.mxu0
  %v3063 = vadd.f32 %v2583, %v3062
  %v3064 = vpop.f32.mrf.mxu0
  %v3065 = vpop.f32.mrf.mxu0
  %v3066 = vadd.f32 %v2586, %v3065
  %v3067 = vpop.f32.mrf.mxu0
  %3068 = vmatprep.mubr.bf16.mxu0 %v1538
  %3069 = vmatmul.mubr.bf16.gmra.mxu0 %v1537
  %v3070 = vpop.f32.mrf.mxu0
  %v3071 = vadd.f32 %v2591, %v3070
  %v3072 = vpop.f32.mrf.mxu0
  %v3073 = vpop.f32.mrf.mxu0
  %v3074 = vadd.f32 %v2594, %v3073
  %v3075 = vpop.f32.mrf.mxu0
  %3076 = vmatprep.mubr.bf16.mxu0 %v1543
  %3077 = vmatmul.mubr.bf16.gmra.mxu0 %v1542
  %v3078 = vpop.f32.mrf.mxu0
  %v3079 = vadd.f32 %v2599, %v3078
  %v3080 = vpop.f32.mrf.mxu0
  %v3081 = vpop.f32.mrf.mxu0
  %v3082 = vadd.f32 %v2602, %v3081
  %v3083 = vpop.f32.mrf.mxu0
  %3084 = vmatprep.mubr.bf16.mxu0 %v1548
  %3085 = vmatmul.mubr.bf16.gmra.mxu0 %v1547
  %v3086 = vpop.f32.mrf.mxu0
  %v3087 = vadd.f32 %v2607, %v3086
  %v3088 = vpop.f32.mrf.mxu0
  %v3089 = vpop.f32.mrf.mxu0
  %v3090 = vadd.f32 %v2610, %v3089
  %v3091 = vpop.f32.mrf.mxu0
  %3092 = vmatprep.mubr.bf16.mxu0 %v1553
  %3093 = vmatmul.mubr.bf16.gmra.mxu0 %v1552
  %v3094 = vpop.f32.mrf.mxu0
  %v3095 = vadd.f32 %v2615, %v3094
  %v3096 = vpop.f32.mrf.mxu0
  %v3097 = vpop.f32.mrf.mxu0
  %v3098 = vadd.f32 %v2618, %v3097
  %v3099 = vpop.f32.mrf.mxu0
  %3100 = vmatprep.mubr.bf16.mxu0 %v1558
  %3101 = vmatmul.mubr.bf16.gmra.mxu0 %v1557
  %v3102 = vpop.f32.mrf.mxu0
  %v3103 = vadd.f32 %v2623, %v3102
  %v3104 = vpop.f32.mrf.mxu0
  %v3105 = vpop.f32.mrf.mxu0
  %v3106 = vadd.f32 %v2626, %v3105
  %v3107 = vpop.f32.mrf.mxu0
  %3108 = vmatprep.mubr.bf16.mxu0 %v1563
  %3109 = vmatmul.mubr.bf16.gmra.mxu0 %v1562
  %v3110 = vpop.f32.mrf.mxu0
  %v3111 = vadd.f32 %v2631, %v3110
  %v3112 = vpop.f32.mrf.mxu0
  %v3113 = vpop.f32.mrf.mxu0
  %v3114 = vadd.f32 %v2634, %v3113
  %v3115 = vpop.f32.mrf.mxu0
  %3116 = vmatprep.mubr.bf16.mxu0 %v1568
  %3117 = vmatmul.mubr.bf16.gmra.mxu0 %v1567
  %v3118 = vpop.f32.mrf.mxu0
  %v3119 = vadd.f32 %v2639, %v3118
  %v3120 = vpop.f32.mrf.mxu0
  %v3121 = vpop.f32.mrf.mxu0
  %v3122 = vadd.f32 %v2642, %v3121
  %v3123 = vpop.f32.mrf.mxu0
  %3124 = vmatprep.mubr.bf16.mxu0 %v1573
  %3125 = vmatmul.mubr.bf16.gmra.mxu0 %v1572
  %v3126 = vpop.f32.mrf.mxu0
  %v3127 = vadd.f32 %v2647, %v3126
  %v3128 = vpop.f32.mrf.mxu0
  %v3129 = vpop.f32.mrf.mxu0
  %v3130 = vadd.f32 %v2650, %v3129
  %v3131 = vpop.f32.mrf.mxu0
  %3132 = vmatprep.mubr.bf16.mxu0 %v1578
  %3133 = vmatmul.mubr.bf16.gmra.mxu0 %v1577
  %v3134 = vpop.f32.mrf.mxu0
  %v3135 = vadd.f32 %v2655, %v3134
  %v3136 = vpop.f32.mrf.mxu0
  %v3137 = vpop.f32.mrf.mxu0
  %v3138 = vadd.f32 %v2658, %v3137
  %v3139 = vpop.f32.mrf.mxu0
  %3140 = vmatprep.mubr.bf16.mxu0 %v1583
  %3141 = vmatmul.mubr.bf16.gmra.mxu0 %v1582
  %v3142 = vpop.f32.mrf.mxu0
  %v3143 = vadd.f32 %v2663, %v3142
  %v3144 = vpop.f32.mrf.mxu0
  %v3145 = vpop.f32.mrf.mxu0
  %v3146 = vadd.f32 %v2666, %v3145
  %v3147 = vpop.f32.mrf.mxu0
  %3148 = vmatprep.mubr.bf16.mxu0 %v1588
  %3149 = vmatmul.mubr.bf16.gmra.mxu0 %v1587
  %v3150 = vpop.f32.mrf.mxu0
  %v3151 = vadd.f32 %v2671, %v3150
  %v3152 = vpop.f32.mrf.mxu0
  %v3153 = vpop.f32.mrf.mxu0
  %v3154 = vadd.f32 %v2674, %v3153
  %v3155 = vpop.f32.mrf.mxu0
  %3156 = vmatprep.mubr.bf16.mxu0 %v1593
  %3157 = vmatmul.mubr.bf16.gmra.mxu0 %v1592
  %v3158 = vpop.f32.mrf.mxu0
  %v3159 = vadd.f32 %v2679, %v3158
  %v3160 = vpop.f32.mrf.mxu0
  %v3161 = vpop.f32.mrf.mxu0
  %v3162 = vpop.f32.mrf.mxu0
  %3163 = vdwg.mxu0
  %3164 = vmatprep.subr.bf16.mxu0 0
  %3165 = vmatpush1.bf16.msra.mxu0 0
  %3166 = vmatprep.subr.bf16.mxu0 0
  %3167 = vmatpush1.bf16.msra.mxu0 0
  %3168 = vmatprep.subr.bf16.mxu0 0
  %3169 = vmatpush1.bf16.msra.mxu0 0
  %3170 = vmatprep.subr.bf16.mxu0 0
  %3171 = vmatpush1.bf16.msra.mxu0 0
  %3172 = vmatprep.subr.bf16.mxu0 0
  %3173 = vmatpush1.bf16.msra.mxu0 %v1998
  %3174 = vmatprep.subr.bf16.mxu0 0
  %3175 = vmatpush1.bf16.msra.mxu0 %v1997
  %3176 = vmatprep.subr.bf16.mxu0 0
  %3177 = vmatpush1.bf16.msra.mxu0 %v1996
  %3178 = vmatprep.subr.bf16.mxu0 0
  %3179 = vmatpush1.bf16.msra.mxu0 %v1995
  %3180 = vmatprep.subr.bf16.mxu0 0
  %3181 = vmatpush2.bf16.msra.mxu0 0
  %3182 = vmatprep.subr.bf16.mxu0 0
  %3183 = vmatpush2.bf16.msra.mxu0 0
  %3184 = vmatprep.subr.bf16.mxu0 0
  %3185 = vmatpush2.bf16.msra.mxu0 0
  %3186 = vmatprep.subr.bf16.mxu0 0
  %3187 = vmatpush2.bf16.msra.mxu0 0
  %3188 = vmatprep.subr.bf16.mxu0 0
  %3189 = vmatpush2.bf16.msra.mxu0 0
  %3190 = vmatprep.subr.bf16.mxu0 0
  %3191 = vmatpush2.bf16.msra.mxu0 0
  %3192 = vmatprep.subr.bf16.mxu0 0
  %3193 = vmatpush2.bf16.msra.mxu0 0
  %3194 = vmatprep.subr.bf16.mxu0 0
  %3195 = vmatpush2.bf16.msra.mxu0 0
  %3196 = vmatprep.mubr.bf16.mxu0 0
  %3197 = vmatmul.mubr.bf16.gmra.mxu0 %v2037
  %v3198 = vpop.f32.mrf.mxu0
  %v3199 = vadd.f32 %v2719, %v3198
  %v3200 = vpop.f32.mrf.mxu0
  %v3201 = vpop.f32.mrf.mxu0
  %v3202 = vadd.f32 %v2722, %v3201
  %v3203 = vpop.f32.mrf.mxu0
  %3204 = vmatprep.mubr.bf16.mxu0 0
  %3205 = vmatmul.mubr.bf16.gmra.mxu0 %v2040
  %v3206 = vpop.f32.mrf.mxu0
  %v3207 = vadd.f32 %v2727, %v3206
  %v3208 = vpop.f32.mrf.mxu0
  %v3209 = vpop.f32.mrf.mxu0
  %v3210 = vadd.f32 %v2730, %v3209
  %v3211 = vpop.f32.mrf.mxu0
  %3212 = vmatprep.mubr.bf16.mxu0 0
  %3213 = vmatmul.mubr.bf16.gmra.mxu0 %v2043
  %v3214 = vpop.f32.mrf.mxu0
  %v3215 = vadd.f32 %v2735, %v3214
  %v3216 = vpop.f32.mrf.mxu0
  %v3217 = vpop.f32.mrf.mxu0
  %v3218 = vadd.f32 %v2738, %v3217
  %v3219 = vpop.f32.mrf.mxu0
  %3220 = vmatprep.mubr.bf16.mxu0 0
  %3221 = vmatmul.mubr.bf16.gmra.mxu0 %v2046
  %v3222 = vpop.f32.mrf.mxu0
  %v3223 = vadd.f32 %v2743, %v3222
  %v3224 = vpop.f32.mrf.mxu0
  %v3225 = vpop.f32.mrf.mxu0
  %v3226 = vadd.f32 %v2746, %v3225
  %v3227 = vpop.f32.mrf.mxu0
  %3228 = vmatprep.mubr.bf16.mxu0 0
  %3229 = vmatmul.mubr.bf16.gmra.mxu0 %v2049
  %v3230 = vpop.f32.mrf.mxu0
  %v3231 = vadd.f32 %v2751, %v3230
  %v3232 = vpop.f32.mrf.mxu0
  %v3233 = vpop.f32.mrf.mxu0
  %v3234 = vadd.f32 %v2754, %v3233
  %v3235 = vpop.f32.mrf.mxu0
  %3236 = vmatprep.mubr.bf16.mxu0 0
  %3237 = vmatmul.mubr.bf16.gmra.mxu0 %v2052
  %v3238 = vpop.f32.mrf.mxu0
  %v3239 = vadd.f32 %v2759, %v3238
  %v3240 = vpop.f32.mrf.mxu0
  %v3241 = vpop.f32.mrf.mxu0
  %v3242 = vadd.f32 %v2762, %v3241
  %v3243 = vpop.f32.mrf.mxu0
  %3244 = vmatprep.mubr.bf16.mxu0 0
  %3245 = vmatmul.mubr.bf16.gmra.mxu0 %v2055
  %v3246 = vpop.f32.mrf.mxu0
  %v3247 = vadd.f32 %v2767, %v3246
  %v3248 = vpop.f32.mrf.mxu0
  %v3249 = vpop.f32.mrf.mxu0
  %v3250 = vadd.f32 %v2770, %v3249
  %v3251 = vpop.f32.mrf.mxu0
  %3252 = vmatprep.mubr.bf16.mxu0 0
  %3253 = vmatmul.mubr.bf16.gmra.mxu0 %v2058
  %v3254 = vpop.f32.mrf.mxu0
  %v3255 = vadd.f32 %v2775, %v3254
  %v3256 = vpop.f32.mrf.mxu0
  %v3257 = vpop.f32.mrf.mxu0
  %v3258 = vadd.f32 %v2778, %v3257
  %v3259 = vpop.f32.mrf.mxu0
  %3260 = vmatprep.mubr.bf16.mxu0 0
  %3261 = vmatmul.mubr.bf16.gmra.mxu0 %v2061
  %v3262 = vpop.f32.mrf.mxu0
  %v3263 = vadd.f32 %v2783, %v3262
  %v3264 = vpop.f32.mrf.mxu0
  %v3265 = vpop.f32.mrf.mxu0
  %v3266 = vadd.f32 %v2786, %v3265
  %v3267 = vpop.f32.mrf.mxu0
  %3268 = vmatprep.mubr.bf16.mxu0 0
  %3269 = vmatmul.mubr.bf16.gmra.mxu0 %v2064
  %v3270 = vpop.f32.mrf.mxu0
  %v3271 = vadd.f32 %v2791, %v3270
  %v3272 = vpop.f32.mrf.mxu0
  %v3273 = vpop.f32.mrf.mxu0
  %v3274 = vadd.f32 %v2794, %v3273
  %v3275 = vpop.f32.mrf.mxu0
  %3276 = vmatprep.mubr.bf16.mxu0 0
  %3277 = vmatmul.mubr.bf16.gmra.mxu0 %v2067
  %v3278 = vpop.f32.mrf.mxu0
  %v3279 = vadd.f32 %v2799, %v3278
  %v3280 = vpop.f32.mrf.mxu0
  %v3281 = vpop.f32.mrf.mxu0
  %v3282 = vadd.f32 %v2802, %v3281
  %v3283 = vpop.f32.mrf.mxu0
  %3284 = vmatprep.mubr.bf16.mxu0 0
  %3285 = vmatmul.mubr.bf16.gmra.mxu0 %v2070
  %v3286 = vpop.f32.mrf.mxu0
  %v3287 = vadd.f32 %v2807, %v3286
  %v3288 = vpop.f32.mrf.mxu0
  %v3289 = vpop.f32.mrf.mxu0
  %v3290 = vadd.f32 %v2810, %v3289
  %v3291 = vpop.f32.mrf.mxu0
  %3292 = vmatprep.mubr.bf16.mxu0 0
  %3293 = vmatmul.mubr.bf16.gmra.mxu0 %v2073
  %v3294 = vpop.f32.mrf.mxu0
  %v3295 = vadd.f32 %v2815, %v3294
  %v3296 = vpop.f32.mrf.mxu0
  %v3297 = vpop.f32.mrf.mxu0
  %v3298 = vadd.f32 %v2818, %v3297
  %v3299 = vpop.f32.mrf.mxu0
  %3300 = vmatprep.mubr.bf16.mxu0 0
  %3301 = vmatmul.mubr.bf16.gmra.mxu0 %v2076
  %v3302 = vpop.f32.mrf.mxu0
  %v3303 = vadd.f32 %v2823, %v3302
  %v3304 = vpop.f32.mrf.mxu0
  %v3305 = vpop.f32.mrf.mxu0
  %v3306 = vadd.f32 %v2826, %v3305
  %v3307 = vpop.f32.mrf.mxu0
  %3308 = vmatprep.mubr.bf16.mxu0 0
  %3309 = vmatmul.mubr.bf16.gmra.mxu0 %v2079
  %v3310 = vpop.f32.mrf.mxu0
  %v3311 = vadd.f32 %v2831, %v3310
  %v3312 = vpop.f32.mrf.mxu0
  %v3313 = vpop.f32.mrf.mxu0
  %v3314 = vadd.f32 %v2834, %v3313
  %v3315 = vpop.f32.mrf.mxu0
  %3316 = vmatprep.mubr.bf16.mxu0 0
  %3317 = vmatmul.mubr.bf16.gmra.mxu0 %v2082
  %v3318 = vpop.f32.mrf.mxu0
  %v3319 = vadd.f32 %v2839, %v3318
  %v3320 = vpop.f32.mrf.mxu0
  %v3321 = vpop.f32.mrf.mxu0
  %v3322 = vadd.f32 %v2842, %v3321
  %v3323 = vpop.f32.mrf.mxu0
  %3324 = vmatprep.mubr.bf16.mxu0 0
  %3325 = vmatmul.mubr.bf16.gmra.mxu0 %v2085
  %v3326 = vpop.f32.mrf.mxu0
  %v3327 = vadd.f32 %v2847, %v3326
  %v3328 = vpop.f32.mrf.mxu0
  %v3329 = vpop.f32.mrf.mxu0
  %v3330 = vadd.f32 %v2850, %v3329
  %v3331 = vpop.f32.mrf.mxu0
  %3332 = vmatprep.mubr.bf16.mxu0 0
  %3333 = vmatmul.mubr.bf16.gmra.mxu0 %v2088
  %v3334 = vpop.f32.mrf.mxu0
  %v3335 = vadd.f32 %v2855, %v3334
  %v3336 = vpop.f32.mrf.mxu0
  %v3337 = vpop.f32.mrf.mxu0
  %v3338 = vadd.f32 %v2858, %v3337
  %v3339 = vpop.f32.mrf.mxu0
  %3340 = vmatprep.mubr.bf16.mxu0 0
  %3341 = vmatmul.mubr.bf16.gmra.mxu0 %v2091
  %v3342 = vpop.f32.mrf.mxu0
  %v3343 = vadd.f32 %v2863, %v3342
  %v3344 = vpop.f32.mrf.mxu0
  %v3345 = vpop.f32.mrf.mxu0
  %v3346 = vadd.f32 %v2866, %v3345
  %v3347 = vpop.f32.mrf.mxu0
  %3348 = vmatprep.mubr.bf16.mxu0 0
  %3349 = vmatmul.mubr.bf16.gmra.mxu0 %v2094
  %v3350 = vpop.f32.mrf.mxu0
  %v3351 = vadd.f32 %v2871, %v3350
  %v3352 = vpop.f32.mrf.mxu0
  %v3353 = vpop.f32.mrf.mxu0
  %v3354 = vadd.f32 %v2874, %v3353
  %v3355 = vpop.f32.mrf.mxu0
  %3356 = vmatprep.mubr.bf16.mxu0 0
  %3357 = vmatmul.mubr.bf16.gmra.mxu0 %v2097
  %v3358 = vpop.f32.mrf.mxu0
  %v3359 = vadd.f32 %v2879, %v3358
  %v3360 = vpop.f32.mrf.mxu0
  %v3361 = vpop.f32.mrf.mxu0
  %v3362 = vadd.f32 %v2882, %v3361
  %v3363 = vpop.f32.mrf.mxu0
  %3364 = vmatprep.mubr.bf16.mxu0 0
  %3365 = vmatmul.mubr.bf16.gmra.mxu0 %v2100
  %v3366 = vpop.f32.mrf.mxu0
  %v3367 = vadd.f32 %v2887, %v3366
  %v3368 = vpop.f32.mrf.mxu0
  %v3369 = vpop.f32.mrf.mxu0
  %v3370 = vadd.f32 %v2890, %v3369
  %v3371 = vpop.f32.mrf.mxu0
  %3372 = vmatprep.mubr.bf16.mxu0 0
  %3373 = vmatmul.mubr.bf16.gmra.mxu0 %v2103
  %v3374 = vpop.f32.mrf.mxu0
  %v3375 = vadd.f32 %v2895, %v3374
  %v3376 = vpop.f32.mrf.mxu0
  %v3377 = vpop.f32.mrf.mxu0
  %v3378 = vadd.f32 %v2898, %v3377
  %v3379 = vpop.f32.mrf.mxu0
  %3380 = vmatprep.mubr.bf16.mxu0 0
  %3381 = vmatmul.mubr.bf16.gmra.mxu0 %v2106
  %v3382 = vpop.f32.mrf.mxu0
  %v3383 = vadd.f32 %v2903, %v3382
  %v3384 = vpop.f32.mrf.mxu0
  %v3385 = vpop.f32.mrf.mxu0
  %v3386 = vadd.f32 %v2906, %v3385
  %v3387 = vpop.f32.mrf.mxu0
  %3388 = vmatprep.mubr.bf16.mxu0 0
  %3389 = vmatmul.mubr.bf16.gmra.mxu0 %v2109
  %v3390 = vpop.f32.mrf.mxu0
  %v3391 = vadd.f32 %v2911, %v3390
  %v3392 = vpop.f32.mrf.mxu0
  %v3393 = vpop.f32.mrf.mxu0
  %v3394 = vadd.f32 %v2914, %v3393
  %v3395 = vpop.f32.mrf.mxu0
  %3396 = vmatprep.mubr.bf16.mxu0 0
  %3397 = vmatmul.mubr.bf16.gmra.mxu0 %v2112
  %v3398 = vpop.f32.mrf.mxu0
  %v3399 = vadd.f32 %v2919, %v3398
  %v3400 = vpop.f32.mrf.mxu0
  %v3401 = vpop.f32.mrf.mxu0
  %v3402 = vadd.f32 %v2922, %v3401
  %v3403 = vpop.f32.mrf.mxu0
  %3404 = vmatprep.mubr.bf16.mxu0 0
  %3405 = vmatmul.mubr.bf16.gmra.mxu0 %v2115
  %v3406 = vpop.f32.mrf.mxu0
  %v3407 = vadd.f32 %v2927, %v3406
  %v3408 = vpop.f32.mrf.mxu0
  %v3409 = vpop.f32.mrf.mxu0
  %v3410 = vadd.f32 %v2930, %v3409
  %v3411 = vpop.f32.mrf.mxu0
  %3412 = vmatprep.mubr.bf16.mxu0 0
  %3413 = vmatmul.mubr.bf16.gmra.mxu0 %v2118
  %v3414 = vpop.f32.mrf.mxu0
  %v3415 = vadd.f32 %v2935, %v3414
  %v3416 = vpop.f32.mrf.mxu0
  %v3417 = vpop.f32.mrf.mxu0
  %v3418 = vadd.f32 %v2938, %v3417
  %v3419 = vpop.f32.mrf.mxu0
  %3420 = vmatprep.mubr.bf16.mxu0 0
  %3421 = vmatmul.mubr.bf16.gmra.mxu0 %v2121
  %v3422 = vpop.f32.mrf.mxu0
  %v3423 = vadd.f32 %v2943, %v3422
  %v3424 = vpop.f32.mrf.mxu0
  %v3425 = vpop.f32.mrf.mxu0
  %v3426 = vadd.f32 %v2946, %v3425
  %v3427 = vpop.f32.mrf.mxu0
  %3428 = vmatprep.mubr.bf16.mxu0 0
  %3429 = vmatmul.mubr.bf16.gmra.mxu0 %v2124
  %v3430 = vpop.f32.mrf.mxu0
  %v3431 = vadd.f32 %v2951, %v3430
  %v3432 = vpop.f32.mrf.mxu0
  %v3433 = vpop.f32.mrf.mxu0
  %v3434 = vadd.f32 %v2954, %v3433
  %v3435 = vpop.f32.mrf.mxu0
  %3436 = vmatprep.mubr.bf16.mxu0 0
  %3437 = vmatmul.mubr.bf16.gmra.mxu0 %v2127
  %v3438 = vpop.f32.mrf.mxu0
  %v3439 = vadd.f32 %v2959, %v3438
  %v3440 = vpop.f32.mrf.mxu0
  %v3441 = vpop.f32.mrf.mxu0
  %v3442 = vadd.f32 %v2962, %v3441
  %v3443 = vpop.f32.mrf.mxu0
  %3444 = vmatprep.mubr.bf16.mxu0 0
  %3445 = vmatmul.mubr.bf16.gmra.mxu0 %v2130
  %v3446 = vpop.f32.mrf.mxu0
  %v3447 = vadd.f32 %v2967, %v3446
  %v3448 = vpop.f32.mrf.mxu0
  %v3449 = vpop.f32.mrf.mxu0
  %v3450 = vadd.f32 %v2970, %v3449
  %v3451 = vpop.f32.mrf.mxu0
  %3452 = vmatprep.mubr.bf16.mxu0 0
  %3453 = vmatmul.mubr.bf16.gmra.mxu0 %v2133
  %v3454 = vpop.f32.mrf.mxu0
  %v3455 = vadd.f32 %v2975, %v3454
  %v3456 = vpop.f32.mrf.mxu0
  %v3457 = vpop.f32.mrf.mxu0
  %v3458 = vadd.f32 %v2978, %v3457
  %v3459 = vpop.f32.mrf.mxu0
  %3460 = vmatprep.mubr.bf16.mxu0 0
  %3461 = vmatmul.mubr.bf16.gmra.mxu0 %v2136
  %v3462 = vpop.f32.mrf.mxu0
  %v3463 = vadd.f32 %v2983, %v3462
  %v3464 = vpop.f32.mrf.mxu0
  %v3465 = vpop.f32.mrf.mxu0
  %v3466 = vadd.f32 %v2986, %v3465
  %v3467 = vpop.f32.mrf.mxu0
  %3468 = vmatprep.mubr.bf16.mxu0 0
  %3469 = vmatmul.mubr.bf16.gmra.mxu0 %v2139
  %v3470 = vpop.f32.mrf.mxu0
  %v3471 = vadd.f32 %v2991, %v3470
  %v3472 = vpop.f32.mrf.mxu0
  %v3473 = vpop.f32.mrf.mxu0
  %v3474 = vadd.f32 %v2994, %v3473
  %v3475 = vpop.f32.mrf.mxu0
  %3476 = vmatprep.mubr.bf16.mxu0 0
  %3477 = vmatmul.mubr.bf16.gmra.mxu0 %v2142
  %v3478 = vpop.f32.mrf.mxu0
  %v3479 = vadd.f32 %v2999, %v3478
  %v3480 = vpop.f32.mrf.mxu0
  %v3481 = vpop.f32.mrf.mxu0
  %v3482 = vadd.f32 %v3002, %v3481
  %v3483 = vpop.f32.mrf.mxu0
  %3484 = vmatprep.mubr.bf16.mxu0 0
  %3485 = vmatmul.mubr.bf16.gmra.mxu0 %v2145
  %v3486 = vpop.f32.mrf.mxu0
  %v3487 = vadd.f32 %v3007, %v3486
  %v3488 = vpop.f32.mrf.mxu0
  %v3489 = vpop.f32.mrf.mxu0
  %v3490 = vadd.f32 %v3010, %v3489
  %v3491 = vpop.f32.mrf.mxu0
  %3492 = vmatprep.mubr.bf16.mxu0 0
  %3493 = vmatmul.mubr.bf16.gmra.mxu0 %v2148
  %v3494 = vpop.f32.mrf.mxu0
  %v3495 = vadd.f32 %v3015, %v3494
  %v3496 = vpop.f32.mrf.mxu0
  %v3497 = vpop.f32.mrf.mxu0
  %v3498 = vadd.f32 %v3018, %v3497
  %v3499 = vpop.f32.mrf.mxu0
  %3500 = vmatprep.mubr.bf16.mxu0 0
  %3501 = vmatmul.mubr.bf16.gmra.mxu0 %v2151
  %v3502 = vpop.f32.mrf.mxu0
  %v3503 = vadd.f32 %v3023, %v3502
  %v3504 = vpop.f32.mrf.mxu0
  %v3505 = vpop.f32.mrf.mxu0
  %v3506 = vadd.f32 %v3026, %v3505
  %v3507 = vpop.f32.mrf.mxu0
  %3508 = vmatprep.mubr.bf16.mxu0 0
  %3509 = vmatmul.mubr.bf16.gmra.mxu0 %v2154
  %v3510 = vpop.f32.mrf.mxu0
  %v3511 = vadd.f32 %v3031, %v3510
  %v3512 = vpop.f32.mrf.mxu0
  %v3513 = vpop.f32.mrf.mxu0
  %v3514 = vadd.f32 %v3034, %v3513
  %v3515 = vpop.f32.mrf.mxu0
  %3516 = vmatprep.mubr.bf16.mxu0 0
  %3517 = vmatmul.mubr.bf16.gmra.mxu0 %v2157
  %v3518 = vpop.f32.mrf.mxu0
  %v3519 = vadd.f32 %v3039, %v3518
  %v3520 = vpop.f32.mrf.mxu0
  %v3521 = vpop.f32.mrf.mxu0
  %v3522 = vadd.f32 %v3042, %v3521
  %v3523 = vpop.f32.mrf.mxu0
  %3524 = vmatprep.mubr.bf16.mxu0 0
  %3525 = vmatmul.mubr.bf16.gmra.mxu0 %v2160
  %v3526 = vpop.f32.mrf.mxu0
  %v3527 = vadd.f32 %v3047, %v3526
  %v3528 = vpop.f32.mrf.mxu0
  %v3529 = vpop.f32.mrf.mxu0
  %v3530 = vadd.f32 %v3050, %v3529
  %v3531 = vpop.f32.mrf.mxu0
  %3532 = vmatprep.mubr.bf16.mxu0 0
  %3533 = vmatmul.mubr.bf16.gmra.mxu0 %v2163
  %v3534 = vpop.f32.mrf.mxu0
  %v3535 = vadd.f32 %v3055, %v3534
  %v3536 = vpop.f32.mrf.mxu0
  %v3537 = vpop.f32.mrf.mxu0
  %v3538 = vadd.f32 %v3058, %v3537
  %v3539 = vpop.f32.mrf.mxu0
  %3540 = vmatprep.mubr.bf16.mxu0 0
  %3541 = vmatmul.mubr.bf16.gmra.mxu0 %v2166
  %v3542 = vpop.f32.mrf.mxu0
  %v3543 = vadd.f32 %v3063, %v3542
  %v3544 = vpop.f32.mrf.mxu0
  %v3545 = vpop.f32.mrf.mxu0
  %v3546 = vadd.f32 %v3066, %v3545
  %v3547 = vpop.f32.mrf.mxu0
  %3548 = vmatprep.mubr.bf16.mxu0 0
  %3549 = vmatmul.mubr.bf16.gmra.mxu0 %v2169
  %v3550 = vpop.f32.mrf.mxu0
  %v3551 = vadd.f32 %v3071, %v3550
  %v3552 = vpop.f32.mrf.mxu0
  %v3553 = vpop.f32.mrf.mxu0
  %v3554 = vadd.f32 %v3074, %v3553
  %v3555 = vpop.f32.mrf.mxu0
  %3556 = vmatprep.mubr.bf16.mxu0 0
  %3557 = vmatmul.mubr.bf16.gmra.mxu0 %v2172
  %v3558 = vpop.f32.mrf.mxu0
  %v3559 = vadd.f32 %v3079, %v3558
  %v3560 = vpop.f32.mrf.mxu0
  %v3561 = vpop.f32.mrf.mxu0
  %v3562 = vadd.f32 %v3082, %v3561
  %v3563 = vpop.f32.mrf.mxu0
  %3564 = vmatprep.mubr.bf16.mxu0 0
  %3565 = vmatmul.mubr.bf16.gmra.mxu0 %v2175
  %v3566 = vpop.f32.mrf.mxu0
  %v3567 = vadd.f32 %v3087, %v3566
  %v3568 = vpop.f32.mrf.mxu0
  %v3569 = vpop.f32.mrf.mxu0
  %v3570 = vadd.f32 %v3090, %v3569
  %v3571 = vpop.f32.mrf.mxu0
  %3572 = vmatprep.mubr.bf16.mxu0 0
  %3573 = vmatmul.mubr.bf16.gmra.mxu0 %v2178
  %v3574 = vpop.f32.mrf.mxu0
  %v3575 = vadd.f32 %v3095, %v3574
  %v3576 = vpop.f32.mrf.mxu0
  %v3577 = vpop.f32.mrf.mxu0
  %v3578 = vadd.f32 %v3098, %v3577
  %v3579 = vpop.f32.mrf.mxu0
  %3580 = vmatprep.mubr.bf16.mxu0 0
  %3581 = vmatmul.mubr.bf16.gmra.mxu0 %v2181
  %v3582 = vpop.f32.mrf.mxu0
  %v3583 = vadd.f32 %v3103, %v3582
  %v3584 = vpop.f32.mrf.mxu0
  %v3585 = vpop.f32.mrf.mxu0
  %v3586 = vadd.f32 %v3106, %v3585
  %v3587 = vpop.f32.mrf.mxu0
  %3588 = vmatprep.mubr.bf16.mxu0 0
  %3589 = vmatmul.mubr.bf16.gmra.mxu0 %v2184
  %v3590 = vpop.f32.mrf.mxu0
  %v3591 = vadd.f32 %v3111, %v3590
  %v3592 = vpop.f32.mrf.mxu0
  %v3593 = vpop.f32.mrf.mxu0
  %v3594 = vadd.f32 %v3114, %v3593
  %v3595 = vpop.f32.mrf.mxu0
  %3596 = vmatprep.mubr.bf16.mxu0 0
  %3597 = vmatmul.mubr.bf16.gmra.mxu0 %v2187
  %v3598 = vpop.f32.mrf.mxu0
  %v3599 = vadd.f32 %v3119, %v3598
  %v3600 = vpop.f32.mrf.mxu0
  %v3601 = vpop.f32.mrf.mxu0
  %v3602 = vadd.f32 %v3122, %v3601
  %v3603 = vpop.f32.mrf.mxu0
  %3604 = vmatprep.mubr.bf16.mxu0 0
  %3605 = vmatmul.mubr.bf16.gmra.mxu0 %v2190
  %v3606 = vpop.f32.mrf.mxu0
  %v3607 = vadd.f32 %v3127, %v3606
  %v3608 = vpop.f32.mrf.mxu0
  %v3609 = vpop.f32.mrf.mxu0
  %v3610 = vadd.f32 %v3130, %v3609
  %v3611 = vpop.f32.mrf.mxu0
  %3612 = vmatprep.mubr.bf16.mxu0 0
  %3613 = vmatmul.mubr.bf16.gmra.mxu0 %v2193
  %v3614 = vpop.f32.mrf.mxu0
  %v3615 = vadd.f32 %v3135, %v3614
  %v3616 = vpop.f32.mrf.mxu0
  %v3617 = vpop.f32.mrf.mxu0
  %v3618 = vadd.f32 %v3138, %v3617
  %v3619 = vpop.f32.mrf.mxu0
  %3620 = vmatprep.mubr.bf16.mxu0 0
  %3621 = vmatmul.mubr.bf16.gmra.mxu0 %v2196
  %v3622 = vpop.f32.mrf.mxu0
  %v3623 = vadd.f32 %v3143, %v3622
  %v3624 = vpop.f32.mrf.mxu0
  %v3625 = vpop.f32.mrf.mxu0
  %v3626 = vadd.f32 %v3146, %v3625
  %v3627 = vpop.f32.mrf.mxu0
  %3628 = vmatprep.mubr.bf16.mxu0 0
  %3629 = vmatmul.mubr.bf16.gmra.mxu0 %v2199
  %v3630 = vpop.f32.mrf.mxu0
  %v3631 = vadd.f32 %v3151, %v3630
  %v3632 = vpop.f32.mrf.mxu0
  %v3633 = vpop.f32.mrf.mxu0
  %v3634 = vadd.f32 %v3154, %v3633
  %v3635 = vpop.f32.mrf.mxu0
  %3636 = vmatprep.mubr.bf16.mxu0 0
  %3637 = vmatmul.mubr.bf16.gmra.mxu0 %v2202
  %v3638 = vpop.f32.mrf.mxu0
  %v3639 = vadd.f32 %v3159, %v3638
  %v3640 = vpop.f32.mrf.mxu0
  %v3641 = vpop.f32.mrf.mxu0
  %v3642 = vpop.f32.mrf.mxu0
  %3643 = vdwg.mxu0
  %v3644 = vmax.f32 %v3199, 0.0
  %v3645 = vmax.f32 %v3202, 0.0
  %v3646 = vmax.f32 %v3207, 0.0
  %v3647 = vmax.f32 %v3210, 0.0
  %v3648 = vmax.f32 %v3215, 0.0
  %v3649 = vmax.f32 %v3218, 0.0
  %v3650 = vmax.f32 %v3223, 0.0
  %v3651 = vmax.f32 %v3226, 0.0
  %v3652 = vmax.f32 %v3231, 0.0
  %v3653 = vmax.f32 %v3234, 0.0
  %v3654 = vmax.f32 %v3239, 0.0
  %v3655 = vmax.f32 %v3242, 0.0
  %v3656 = vmax.f32 %v3247, 0.0
  %v3657 = vmax.f32 %v3250, 0.0
  %v3658 = vmax.f32 %v3255, 0.0
  %v3659 = vmax.f32 %v3258, 0.0
  %v3660 = vmax.f32 %v3263, 0.0
  %v3661 = vmax.f32 %v3266, 0.0
  %v3662 = vmax.f32 %v3271, 0.0
  %v3663 = vmax.f32 %v3274, 0.0
  %v3664 = vmax.f32 %v3279, 0.0
  %v3665 = vmax.f32 %v3282, 0.0
  %v3666 = vmax.f32 %v3287, 0.0
  %v3667 = vmax.f32 %v3290, 0.0
  %v3668 = vmax.f32 %v3295, 0.0
  %v3669 = vmax.f32 %v3298, 0.0
  %v3670 = vmax.f32 %v3303, 0.0
  %v3671 = vmax.f32 %v3306, 0.0
  %v3672 = vmax.f32 %v3311, 0.0
  %v3673 = vmax.f32 %v3314, 0.0
  %v3674 = vmax.f32 %v3319, 0.0
  %v3675 = vmax.f32 %v3322, 0.0
  %v3676 = vmax.f32 %v3327, 0.0
  %v3677 = vmax.f32 %v3330, 0.0
  %v3678 = vmax.f32 %v3335, 0.0
  %v3679 = vmax.f32 %v3338, 0.0
  %v3680 = vmax.f32 %v3343, 0.0
  %v3681 = vmax.f32 %v3346, 0.0
  %v3682 = vmax.f32 %v3351, 0.0
  %v3683 = vmax.f32 %v3354, 0.0
  %v3684 = vmax.f32 %v3359, 0.0
  %v3685 = vmax.f32 %v3362, 0.0
  %v3686 = vmax.f32 %v3367, 0.0
  %v3687 = vmax.f32 %v3370, 0.0
  %v3688 = vmax.f32 %v3375, 0.0
  %v3689 = vmax.f32 %v3378, 0.0
  %v3690 = vmax.f32 %v3383, 0.0
  %v3691 = vmax.f32 %v3386, 0.0
  %v3692 = vmax.f32 %v3391, 0.0
  %v3693 = vmax.f32 %v3394, 0.0
  %v3694 = vmax.f32 %v3399, 0.0
  %v3695 = vmax.f32 %v3402, 0.0
  %v3696 = vmax.f32 %v3407, 0.0
  %v3697 = vmax.f32 %v3410, 0.0
  %v3698 = vmax.f32 %v3415, 0.0
  %v3699 = vmax.f32 %v3418, 0.0
  %v3700 = vmax.f32 %v3423, 0.0
  %v3701 = vmax.f32 %v3426, 0.0
  %v3702 = vmax.f32 %v3431, 0.0
  %v3703 = vmax.f32 %v3434, 0.0
  %v3704 = vmax.f32 %v3439, 0.0
  %v3705 = vmax.f32 %v3442, 0.0
  %v3706 = vmax.f32 %v3447, 0.0
  %v3707 = vmax.f32 %v3450, 0.0
  %v3708 = vmax.f32 %v3455, 0.0
  %v3709 = vmax.f32 %v3458, 0.0
  %v3710 = vmax.f32 %v3463, 0.0
  %v3711 = vmax.f32 %v3466, 0.0
  %v3712 = vmax.f32 %v3471, 0.0
  %v3713 = vmax.f32 %v3474, 0.0
  %v3714 = vmax.f32 %v3479, 0.0
  %v3715 = vmax.f32 %v3482, 0.0
  %v3716 = vmax.f32 %v3487, 0.0
  %v3717 = vmax.f32 %v3490, 0.0
  %v3718 = vmax.f32 %v3495, 0.0
  %v3719 = vmax.f32 %v3498, 0.0
  %v3720 = vmax.f32 %v3503, 0.0
  %v3721 = vmax.f32 %v3506, 0.0
  %v3722 = vmax.f32 %v3511, 0.0
  %v3723 = vmax.f32 %v3514, 0.0
  %v3724 = vmax.f32 %v3519, 0.0
  %v3725 = vmax.f32 %v3522, 0.0
  %v3726 = vmax.f32 %v3527, 0.0
  %v3727 = vmax.f32 %v3530, 0.0
  %v3728 = vmax.f32 %v3535, 0.0
  %v3729 = vmax.f32 %v3538, 0.0
  %v3730 = vmax.f32 %v3543, 0.0
  %v3731 = vmax.f32 %v3546, 0.0
  %v3732 = vmax.f32 %v3551, 0.0
  %v3733 = vmax.f32 %v3554, 0.0
  %v3734 = vmax.f32 %v3559, 0.0
  %v3735 = vmax.f32 %v3562, 0.0
  %v3736 = vmax.f32 %v3567, 0.0
  %v3737 = vmax.f32 %v3570, 0.0
  %v3738 = vmax.f32 %v3575, 0.0
  %v3739 = vmax.f32 %v3578, 0.0
  %v3740 = vmax.f32 %v3583, 0.0
  %v3741 = vmax.f32 %v3586, 0.0
  %v3742 = vmax.f32 %v3591, 0.0
  %v3743 = vmax.f32 %v3594, 0.0
  %v3744 = vmax.f32 %v3599, 0.0
  %v3745 = vmax.f32 %v3602, 0.0
  %v3746 = vmax.f32 %v3607, 0.0
  %v3747 = vmax.f32 %v3610, 0.0
  %v3748 = vmax.f32 %v3615, 0.0
  %v3749 = vmax.f32 %v3618, 0.0
  %v3750 = vmax.f32 %v3623, 0.0
  %v3751 = vmax.f32 %v3626, 0.0
  %v3752 = vmax.f32 %v3631, 0.0
  %v3753 = vmax.f32 %v3634, 0.0
  %v3754 = vmax.f32 %v3639, 0.0
  %v3755 = vpack.c.bf16 %v3645, %v3644
  %v3756 = vpack.c.bf16 %v3647, %v3646
  %v3757 = vpack.c.bf16 %v3649, %v3648
  %v3758 = vpack.c.bf16 %v3651, %v3650
  %v3759 = vpack.c.bf16 %v3653, %v3652
  %v3760 = vpack.c.bf16 %v3655, %v3654
  %v3761 = vpack.c.bf16 %v3657, %v3656
  %v3762 = vpack.c.bf16 %v3659, %v3658
  %v3763 = vpack.c.bf16 %v3661, %v3660
  %v3764 = vpack.c.bf16 %v3663, %v3662
  %v3765 = vpack.c.bf16 %v3665, %v3664
  %v3766 = vpack.c.bf16 %v3667, %v3666
  %v3767 = vpack.c.bf16 %v3669, %v3668
  %v3768 = vpack.c.bf16 %v3671, %v3670
  %v3769 = vpack.c.bf16 %v3673, %v3672
  %v3770 = vpack.c.bf16 %v3675, %v3674
  %v3771 = vpack.c.bf16 %v3677, %v3676
  %v3772 = vpack.c.bf16 %v3679, %v3678
  %v3773 = vpack.c.bf16 %v3681, %v3680
  %v3774 = vpack.c.bf16 %v3683, %v3682
  %v3775 = vpack.c.bf16 %v3685, %v3684
  %v3776 = vpack.c.bf16 %v3687, %v3686
  %v3777 = vpack.c.bf16 %v3689, %v3688
  %v3778 = vpack.c.bf16 %v3691, %v3690
  %v3779 = vpack.c.bf16 %v3693, %v3692
  %v3780 = vpack.c.bf16 %v3695, %v3694
  %v3781 = vpack.c.bf16 %v3697, %v3696
  %v3782 = vpack.c.bf16 %v3699, %v3698
  %v3783 = vpack.c.bf16 %v3701, %v3700
  %v3784 = vpack.c.bf16 %v3703, %v3702
  %v3785 = vpack.c.bf16 %v3705, %v3704
  %v3786 = vpack.c.bf16 %v3707, %v3706
  %v3787 = vpack.c.bf16 %v3709, %v3708
  %v3788 = vpack.c.bf16 %v3711, %v3710
  %v3789 = vpack.c.bf16 %v3713, %v3712
  %v3790 = vpack.c.bf16 %v3715, %v3714
  %v3791 = vpack.c.bf16 %v3717, %v3716
  %v3792 = vpack.c.bf16 %v3719, %v3718
  %v3793 = vpack.c.bf16 %v3721, %v3720
  %v3794 = vpack.c.bf16 %v3723, %v3722
  %v3795 = vpack.c.bf16 %v3725, %v3724
  %v3796 = vpack.c.bf16 %v3727, %v3726
  %v3797 = vpack.c.bf16 %v3729, %v3728
  %v3798 = vpack.c.bf16 %v3731, %v3730
  %v3799 = vpack.c.bf16 %v3733, %v3732
  %v3800 = vpack.c.bf16 %v3735, %v3734
  %v3801 = vpack.c.bf16 %v3737, %v3736
  %v3802 = vpack.c.bf16 %v3739, %v3738
  %v3803 = vpack.c.bf16 %v3741, %v3740
  %v3804 = vpack.c.bf16 %v3743, %v3742
  %v3805 = vpack.c.bf16 %v3745, %v3744
  %v3806 = vpack.c.bf16 %v3747, %v3746
  %v3807 = vpack.c.bf16 %v3749, %v3748
  %v3808 = vpack.c.bf16 %v3751, %v3750
  %v3809 = vpack.c.bf16 %v3753, %v3752
  %v3810 = vpack.c.bf16 %v3754, %v3754
  %v3867 = vunpack.c.l.b16 %v3755
  %v3868 = vunpack.c.h.b16 %v3755
  %v3869 = vunpack.c.l.b16 %v3756
  %v3870 = vunpack.c.h.b16 %v3756
  %v3871 = vunpack.c.l.b16 %v3757
  %v3872 = vunpack.c.h.b16 %v3757
  %v3873 = vunpack.c.l.b16 %v3758
  %v3874 = vunpack.c.h.b16 %v3758
  %v3875 = vunpack.c.l.b16 %v3759
  %v3876 = vunpack.c.h.b16 %v3759
  %v3877 = vunpack.c.l.b16 %v3760
  %v3878 = vunpack.c.h.b16 %v3760
  %v3879 = vunpack.c.l.b16 %v3761
  %v3880 = vunpack.c.h.b16 %v3761
  %v3881 = vunpack.c.l.b16 %v3762
  %v3882 = vunpack.c.h.b16 %v3762
  %v3883 = vunpack.c.l.b16 %v3763
  %v3884 = vunpack.c.h.b16 %v3763
  %v3885 = vunpack.c.l.b16 %v3764
  %v3886 = vunpack.c.h.b16 %v3764
  %v3887 = vunpack.c.l.b16 %v3765
  %v3888 = vunpack.c.h.b16 %v3765
  %v3889 = vunpack.c.l.b16 %v3766
  %v3890 = vunpack.c.h.b16 %v3766
  %v3891 = vunpack.c.l.b16 %v3767
  %v3892 = vunpack.c.h.b16 %v3767
  %v3893 = vunpack.c.l.b16 %v3768
  %v3894 = vunpack.c.h.b16 %v3768
  %v3895 = vunpack.c.l.b16 %v3769
  %v3896 = vunpack.c.h.b16 %v3769
  %v3897 = vunpack.c.l.b16 %v3770
  %v3898 = vunpack.c.h.b16 %v3770
  %v3899 = vunpack.c.l.b16 %v3771
  %v3900 = vunpack.c.h.b16 %v3771
  %v3901 = vunpack.c.l.b16 %v3772
  %v3902 = vunpack.c.h.b16 %v3772
  %v3903 = vunpack.c.l.b16 %v3773
  %v3904 = vunpack.c.h.b16 %v3773
  %v3905 = vunpack.c.l.b16 %v3774
  %v3906 = vunpack.c.h.b16 %v3774
  %v3907 = vunpack.c.l.b16 %v3775
  %v3908 = vunpack.c.h.b16 %v3775
  %v3909 = vunpack.c.l.b16 %v3776
  %v3910 = vunpack.c.h.b16 %v3776
  %v3911 = vunpack.c.l.b16 %v3777
  %v3912 = vunpack.c.h.b16 %v3777
  %v3913 = vunpack.c.l.b16 %v3778
  %v3914 = vunpack.c.h.b16 %v3778
  %v3915 = vunpack.c.l.b16 %v3779
  %v3916 = vunpack.c.h.b16 %v3779
  %v3917 = vunpack.c.l.b16 %v3780
  %v3918 = vunpack.c.h.b16 %v3780
  %v3919 = vunpack.c.l.b16 %v3781
  %v3920 = vunpack.c.h.b16 %v3781
  %v3921 = vunpack.c.l.b16 %v3782
  %v3922 = vunpack.c.h.b16 %v3782
  %v3923 = vunpack.c.l.b16 %v3783
  %v3924 = vunpack.c.h.b16 %v3783
  %v3925 = vunpack.c.l.b16 %v3784
  %v3926 = vunpack.c.h.b16 %v3784
  %v3927 = vunpack.c.l.b16 %v3785
  %v3928 = vunpack.c.h.b16 %v3785
  %v3929 = vunpack.c.l.b16 %v3786
  %v3930 = vunpack.c.h.b16 %v3786
  %v3931 = vunpack.c.l.b16 %v3787
  %v3932 = vunpack.c.h.b16 %v3787
  %v3933 = vunpack.c.l.b16 %v3788
  %v3934 = vunpack.c.h.b16 %v3788
  %v3935 = vunpack.c.l.b16 %v3789
  %v3936 = vunpack.c.h.b16 %v3789
  %v3937 = vunpack.c.l.b16 %v3790
  %v3938 = vunpack.c.h.b16 %v3790
  %v3939 = vunpack.c.l.b16 %v3791
  %v3940 = vunpack.c.h.b16 %v3791
  %v3941 = vunpack.c.l.b16 %v3792
  %v3942 = vunpack.c.h.b16 %v3792
  %v3943 = vunpack.c.l.b16 %v3793
  %v3944 = vunpack.c.h.b16 %v3793
  %v3945 = vunpack.c.l.b16 %v3794
  %v3946 = vunpack.c.h.b16 %v3794
  %v3947 = vunpack.c.l.b16 %v3795
  %v3948 = vunpack.c.h.b16 %v3795
  %v3949 = vunpack.c.l.b16 %v3796
  %v3950 = vunpack.c.h.b16 %v3796
  %v3951 = vunpack.c.l.b16 %v3797
  %v3952 = vunpack.c.h.b16 %v3797
  %v3953 = vunpack.c.l.b16 %v3798
  %v3954 = vunpack.c.h.b16 %v3798
  %v3955 = vunpack.c.l.b16 %v3799
  %v3956 = vunpack.c.h.b16 %v3799
  %v3957 = vunpack.c.l.b16 %v3800
  %v3958 = vunpack.c.h.b16 %v3800
  %v3959 = vunpack.c.l.b16 %v3801
  %v3960 = vunpack.c.h.b16 %v3801
  %v3961 = vunpack.c.l.b16 %v3802
  %v3962 = vunpack.c.h.b16 %v3802
  %v3963 = vunpack.c.l.b16 %v3803
  %v3964 = vunpack.c.h.b16 %v3803
  %v3965 = vunpack.c.l.b16 %v3804
  %v3966 = vunpack.c.h.b16 %v3804
  %v3967 = vunpack.c.l.b16 %v3805
  %v3968 = vunpack.c.h.b16 %v3805
  %v3969 = vunpack.c.l.b16 %v3806
  %v3970 = vunpack.c.h.b16 %v3806
  %v3971 = vunpack.c.l.b16 %v3807
  %v3972 = vunpack.c.h.b16 %v3807
  %v3973 = vunpack.c.l.b16 %v3808
  %v3974 = vunpack.c.h.b16 %v3808
  %v3975 = vunpack.c.l.b16 %v3809
  %v3976 = vunpack.c.h.b16 %v3809
  %v3977 = vunpack.c.l.b16 %v3810
  %v3978 = vpack.c.b16 %v3867, %v3867
  %v3979 = vpack.c.b16 %v3868, %v3868
  %v3980 = vpack.c.b16 %v3869, %v3869
  %v3981 = vpack.c.b16 %v3870, %v3870
  %v3982 = vpack.c.b16 %v3871, %v3871
  %v3983 = vpack.c.b16 %v3872, %v3872
  %v3984 = vpack.c.b16 %v3873, %v3873
  %v3985 = vpack.c.b16 %v3874, %v3874
  %v3986 = vpack.c.b16 %v3875, %v3875
  %v3987 = vpack.c.b16 %v3876, %v3876
  %v3988 = vpack.c.b16 %v3877, %v3877
  %v3989 = vpack.c.b16 %v3878, %v3878
  %v3990 = vpack.c.b16 %v3879, %v3879
  %v3991 = vpack.c.b16 %v3880, %v3880
  %v3992 = vpack.c.b16 %v3881, %v3881
  %v3993 = vpack.c.b16 %v3882, %v3882
  %v3994 = vpack.c.b16 %v3883, %v3883
  %v3995 = vpack.c.b16 %v3884, %v3884
  %v3996 = vpack.c.b16 %v3885, %v3885
  %v3997 = vpack.c.b16 %v3886, %v3886
  %v3998 = vpack.c.b16 %v3887, %v3887
  %v3999 = vpack.c.b16 %v3888, %v3888
  %v4000 = vpack.c.b16 %v3889, %v3889
  %v4001 = vpack.c.b16 %v3890, %v3890
  %v4002 = vpack.c.b16 %v3891, %v3891
  %v4003 = vpack.c.b16 %v3892, %v3892
  %v4004 = vpack.c.b16 %v3893, %v3893
  %v4005 = vpack.c.b16 %v3894, %v3894
  %v4006 = vpack.c.b16 %v3895, %v3895
  %v4007 = vpack.c.b16 %v3896, %v3896
  %v4008 = vpack.c.b16 %v3897, %v3897
  %v4009 = vpack.c.b16 %v3898, %v3898
  %v4010 = vpack.c.b16 %v3899, %v3899
  %v4011 = vpack.c.b16 %v3900, %v3900
  %v4012 = vpack.c.b16 %v3901, %v3901
  %v4013 = vpack.c.b16 %v3902, %v3902
  %v4014 = vpack.c.b16 %v3903, %v3903
  %v4015 = vpack.c.b16 %v3904, %v3904
  %v4016 = vpack.c.b16 %v3905, %v3905
  %v4017 = vpack.c.b16 %v3906, %v3906
  %v4018 = vpack.c.b16 %v3907, %v3907
  %v4019 = vpack.c.b16 %v3908, %v3908
  %v4020 = vpack.c.b16 %v3909, %v3909
  %v4021 = vpack.c.b16 %v3910, %v3910
  %v4022 = vpack.c.b16 %v3911, %v3911
  %v4023 = vpack.c.b16 %v3912, %v3912
  %v4024 = vpack.c.b16 %v3913, %v3913
  %v4025 = vpack.c.b16 %v3914, %v3914
  %v4026 = vpack.c.b16 %v3915, %v3915
  %v4027 = vpack.c.b16 %v3916, %v3916
  %v4028 = vpack.c.b16 %v3917, %v3917
  %v4029 = vpack.c.b16 %v3918, %v3918
  %v4030 = vpack.c.b16 %v3919, %v3919
  %v4031 = vpack.c.b16 %v3920, %v3920
  %v4032 = vpack.c.b16 %v3921, %v3921
  %v4033 = vpack.c.b16 %v3922, %v3922
  %v4034 = vpack.c.b16 %v3923, %v3923
  %v4035 = vpack.c.b16 %v3924, %v3924
  %v4036 = vpack.c.b16 %v3925, %v3925
  %v4037 = vpack.c.b16 %v3926, %v3926
  %v4038 = vpack.c.b16 %v3927, %v3927
  %v4039 = vpack.c.b16 %v3928, %v3928
  %v4040 = vpack.c.b16 %v3929, %v3929
  %v4041 = vpack.c.b16 %v3930, %v3930
  %v4042 = vpack.c.b16 %v3931, %v3931
  %v4043 = vpack.c.b16 %v3932, %v3932
  %v4044 = vpack.c.b16 %v3933, %v3933
  %v4045 = vpack.c.b16 %v3934, %v3934
  %v4046 = vpack.c.b16 %v3935, %v3935
  %v4047 = vpack.c.b16 %v3936, %v3936
  %v4048 = vpack.c.b16 %v3937, %v3937
  %v4049 = vpack.c.b16 %v3938, %v3938
  %v4050 = vpack.c.b16 %v3939, %v3939
  %v4051 = vpack.c.b16 %v3940, %v3940
  %v4052 = vpack.c.b16 %v3941, %v3941
  %v4053 = vpack.c.b16 %v3942, %v3942
  %v4054 = vpack.c.b16 %v3943, %v3943
  %v4055 = vpack.c.b16 %v3944, %v3944
  %v4056 = vpack.c.b16 %v3945, %v3945
  %v4057 = vpack.c.b16 %v3946, %v3946
  %v4058 = vpack.c.b16 %v3947, %v3947
  %v4059 = vpack.c.b16 %v3948, %v3948
  %v4060 = vpack.c.b16 %v3949, %v3949
  %v4061 = vpack.c.b16 %v3950, %v3950
  %v4062 = vpack.c.b16 %v3951, %v3951
  %v4063 = vpack.c.b16 %v3952, %v3952
  %v4064 = vpack.c.b16 %v3953, %v3953
  %v4065 = vpack.c.b16 %v3954, %v3954
  %v4066 = vpack.c.b16 %v3955, %v3955
  %v4067 = vpack.c.b16 %v3956, %v3956
  %v4068 = vpack.c.b16 %v3957, %v3957
  %v4069 = vpack.c.b16 %v3958, %v3958
  %v4070 = vpack.c.b16 %v3959, %v3959
  %v4071 = vpack.c.b16 %v3960, %v3960
  %v4072 = vpack.c.b16 %v3961, %v3961
  %v4073 = vpack.c.b16 %v3962, %v3962
  %v4074 = vpack.c.b16 %v3963, %v3963
  %v4075 = vpack.c.b16 %v3964, %v3964
  %v4076 = vpack.c.b16 %v3965, %v3965
  %v4077 = vpack.c.b16 %v3966, %v3966
  %v4078 = vpack.c.b16 %v3967, %v3967
  %v4079 = vpack.c.b16 %v3968, %v3968
  %v4080 = vpack.c.b16 %v3969, %v3969
  %v4081 = vpack.c.b16 %v3970, %v3970
  %v4082 = vpack.c.b16 %v3971, %v3971
  %v4083 = vpack.c.b16 %v3972, %v3972
  %v4084 = vpack.c.b16 %v3973, %v3973
  %v4085 = vpack.c.b16 %v3974, %v3974
  %v4086 = vpack.c.b16 %v3975, %v3975
  %v4087 = vpack.c.b16 %v3976, %v3976
  %v4088 = vpack.c.b16 %v3977, %v3977
  %vm4200 = vcmask 257024
  %4201 = vst.msk [vmem:[%s3] sm:$0xf] %vm4200, %v3978
  %4202 = vst.msk [vmem:[%s3 + $0x4] sm:$0xf] %vm4200, %v3979
  %4203 = vst.msk [vmem:[%s3 + $0x8] sm:$0xf] %vm4200, %v3980
  %4204 = vst.msk [vmem:[%s3 + $0xc] sm:$0xf] %vm4200, %v3981
  %4205 = vst.msk [vmem:[%s3 + $0x10] sm:$0xf] %vm4200, %v3982
  %4206 = vst.msk [vmem:[%s3 + $0x14] sm:$0xf] %vm4200, %v3983
  %4207 = vst.msk [vmem:[%s3 + $0x18] sm:$0xf] %vm4200, %v3984
  %4208 = vst.msk [vmem:[%s3 + $0x1c] sm:$0xf] %vm4200, %v3985
  %4209 = vst.msk [vmem:[%s3 + $0x20] sm:$0xf] %vm4200, %v3986
  %4210 = vst.msk [vmem:[%s3 + $0x24] sm:$0xf] %vm4200, %v3987
  %4211 = vst.msk [vmem:[%s3 + $0x28] sm:$0xf] %vm4200, %v3988
  %4212 = vst.msk [vmem:[%s3 + $0x2c] sm:$0xf] %vm4200, %v3989
  %4213 = vst.msk [vmem:[%s3 + $0x30] sm:$0xf] %vm4200, %v3990
  %4214 = vst.msk [vmem:[%s3 + $0x34] sm:$0xf] %vm4200, %v3991
  %4215 = vst.msk [vmem:[%s3 + $0x38] sm:$0xf] %vm4200, %v3992
  %4216 = vst.msk [vmem:[%s3 + $0x3c] sm:$0xf] %vm4200, %v3993
  %4217 = vst.msk [vmem:[%s3 + $0x40] sm:$0xf] %vm4200, %v3994
  %4218 = vst.msk [vmem:[%s3 + $0x44] sm:$0xf] %vm4200, %v3995
  %4219 = vst.msk [vmem:[%s3 + $0x48] sm:$0xf] %vm4200, %v3996
  %4220 = vst.msk [vmem:[%s3 + $0x4c] sm:$0xf] %vm4200, %v3997
  %4221 = vst.msk [vmem:[%s3 + $0x50] sm:$0xf] %vm4200, %v3998
  %4222 = vst.msk [vmem:[%s3 + $0x54] sm:$0xf] %vm4200, %v3999
  %4223 = vst.msk [vmem:[%s3 + $0x58] sm:$0xf] %vm4200, %v4000
  %4224 = vst.msk [vmem:[%s3 + $0x5c] sm:$0xf] %vm4200, %v4001
  %4225 = vst.msk [vmem:[%s3 + $0x60] sm:$0xf] %vm4200, %v4002
  %4226 = vst.msk [vmem:[%s3 + $0x64] sm:$0xf] %vm4200, %v4003
  %4227 = vst.msk [vmem:[%s3 + $0x68] sm:$0xf] %vm4200, %v4004
  %4228 = vst.msk [vmem:[%s3 + $0x6c] sm:$0xf] %vm4200, %v4005
  %4229 = vst.msk [vmem:[%s3 + $0x70] sm:$0xf] %vm4200, %v4006
  %4230 = vst.msk [vmem:[%s3 + $0x74] sm:$0xf] %vm4200, %v4007
  %4231 = vst.msk [vmem:[%s3 + $0x78] sm:$0xf] %vm4200, %v4008
  %4232 = vst.msk [vmem:[%s3 + $0x7c] sm:$0xf] %vm4200, %v4009
  %4233 = vst.msk [vmem:[%s3 + $0x80] sm:$0xf] %vm4200, %v4010
  %4234 = vst.msk [vmem:[%s3 + $0x84] sm:$0xf] %vm4200, %v4011
  %4235 = vst.msk [vmem:[%s3 + $0x88] sm:$0xf] %vm4200, %v4012
  %4236 = vst.msk [vmem:[%s3 + $0x8c] sm:$0xf] %vm4200, %v4013
  %4237 = vst.msk [vmem:[%s3 + $0x90] sm:$0xf] %vm4200, %v4014
  %4238 = vst.msk [vmem:[%s3 + $0x94] sm:$0xf] %vm4200, %v4015
  %4239 = vst.msk [vmem:[%s3 + $0x98] sm:$0xf] %vm4200, %v4016
  %4240 = vst.msk [vmem:[%s3 + $0x9c] sm:$0xf] %vm4200, %v4017
  %4241 = vst.msk [vmem:[%s3 + $0xa0] sm:$0xf] %vm4200, %v4018
  %4242 = vst.msk [vmem:[%s3 + $0xa4] sm:$0xf] %vm4200, %v4019
  %4243 = vst.msk [vmem:[%s3 + $0xa8] sm:$0xf] %vm4200, %v4020
  %4244 = vst.msk [vmem:[%s3 + $0xac] sm:$0xf] %vm4200, %v4021
  %4245 = vst.msk [vmem:[%s3 + $0xb0] sm:$0xf] %vm4200, %v4022
  %4246 = vst.msk [vmem:[%s3 + $0xb4] sm:$0xf] %vm4200, %v4023
  %4247 = vst.msk [vmem:[%s3 + $0xb8] sm:$0xf] %vm4200, %v4024
  %4248 = vst.msk [vmem:[%s3 + $0xbc] sm:$0xf] %vm4200, %v4025
  %4249 = vst.msk [vmem:[%s3 + $0xc0] sm:$0xf] %vm4200, %v4026
  %4250 = vst.msk [vmem:[%s3 + $0xc4] sm:$0xf] %vm4200, %v4027
  %4251 = vst.msk [vmem:[%s3 + $0xc8] sm:$0xf] %vm4200, %v4028
  %4252 = vst.msk [vmem:[%s3 + $0xcc] sm:$0xf] %vm4200, %v4029
  %4253 = vst.msk [vmem:[%s3 + $0xd0] sm:$0xf] %vm4200, %v4030
  %4254 = vst.msk [vmem:[%s3 + $0xd4] sm:$0xf] %vm4200, %v4031
  %4255 = vst.msk [vmem:[%s3 + $0xd8] sm:$0xf] %vm4200, %v4032
  %4256 = vst.msk [vmem:[%s3 + $0xdc] sm:$0xf] %vm4200, %v4033
  %4257 = vst.msk [vmem:[%s3 + $0xe0] sm:$0xf] %vm4200, %v4034
  %4258 = vst.msk [vmem:[%s3 + $0xe4] sm:$0xf] %vm4200, %v4035
  %4259 = vst.msk [vmem:[%s3 + $0xe8] sm:$0xf] %vm4200, %v4036
  %4260 = vst.msk [vmem:[%s3 + $0xec] sm:$0xf] %vm4200, %v4037
  %4261 = vst.msk [vmem:[%s3 + $0xf0] sm:$0xf] %vm4200, %v4038
  %4262 = vst.msk [vmem:[%s3 + $0xf4] sm:$0xf] %vm4200, %v4039
  %4263 = vst.msk [vmem:[%s3 + $0xf8] sm:$0xf] %vm4200, %v4040
  %4264 = vst.msk [vmem:[%s3 + $0xfc] sm:$0xf] %vm4200, %v4041
  %4265 = vst.msk [vmem:[%s3 + $0x100] sm:$0xf] %vm4200, %v4042
  %4266 = vst.msk [vmem:[%s3 + $0x104] sm:$0xf] %vm4200, %v4043
  %4267 = vst.msk [vmem:[%s3 + $0x108] sm:$0xf] %vm4200, %v4044
  %4268 = vst.msk [vmem:[%s3 + $0x10c] sm:$0xf] %vm4200, %v4045
  %4269 = vst.msk [vmem:[%s3 + $0x110] sm:$0xf] %vm4200, %v4046
  %4270 = vst.msk [vmem:[%s3 + $0x114] sm:$0xf] %vm4200, %v4047
  %4271 = vst.msk [vmem:[%s3 + $0x118] sm:$0xf] %vm4200, %v4048
  %4272 = vst.msk [vmem:[%s3 + $0x11c] sm:$0xf] %vm4200, %v4049
  %4273 = vst.msk [vmem:[%s3 + $0x120] sm:$0xf] %vm4200, %v4050
  %4274 = vst.msk [vmem:[%s3 + $0x124] sm:$0xf] %vm4200, %v4051
  %4275 = vst.msk [vmem:[%s3 + $0x128] sm:$0xf] %vm4200, %v4052
  %4276 = vst.msk [vmem:[%s3 + $0x12c] sm:$0xf] %vm4200, %v4053
  %4277 = vst.msk [vmem:[%s3 + $0x130] sm:$0xf] %vm4200, %v4054
  %4278 = vst.msk [vmem:[%s3 + $0x134] sm:$0xf] %vm4200, %v4055
  %4279 = vst.msk [vmem:[%s3 + $0x138] sm:$0xf] %vm4200, %v4056
  %4280 = vst.msk [vmem:[%s3 + $0x13c] sm:$0xf] %vm4200, %v4057
  %4281 = vst.msk [vmem:[%s3 + $0x140] sm:$0xf] %vm4200, %v4058
  %4282 = vst.msk [vmem:[%s3 + $0x144] sm:$0xf] %vm4200, %v4059
  %4283 = vst.msk [vmem:[%s3 + $0x148] sm:$0xf] %vm4200, %v4060
  %4284 = vst.msk [vmem:[%s3 + $0x14c] sm:$0xf] %vm4200, %v4061
  %4285 = vst.msk [vmem:[%s3 + $0x150] sm:$0xf] %vm4200, %v4062
  %4286 = vst.msk [vmem:[%s3 + $0x154] sm:$0xf] %vm4200, %v4063
  %4287 = vst.msk [vmem:[%s3 + $0x158] sm:$0xf] %vm4200, %v4064
  %4288 = vst.msk [vmem:[%s3 + $0x15c] sm:$0xf] %vm4200, %v4065
  %4289 = vst.msk [vmem:[%s3 + $0x160] sm:$0xf] %vm4200, %v4066
  %4290 = vst.msk [vmem:[%s3 + $0x164] sm:$0xf] %vm4200, %v4067
  %4291 = vst.msk [vmem:[%s3 + $0x168] sm:$0xf] %vm4200, %v4068
  %4292 = vst.msk [vmem:[%s3 + $0x16c] sm:$0xf] %vm4200, %v4069
  %4293 = vst.msk [vmem:[%s3 + $0x170] sm:$0xf] %vm4200, %v4070
  %4294 = vst.msk [vmem:[%s3 + $0x174] sm:$0xf] %vm4200, %v4071
  %4295 = vst.msk [vmem:[%s3 + $0x178] sm:$0xf] %vm4200, %v4072
  %4296 = vst.msk [vmem:[%s3 + $0x17c] sm:$0xf] %vm4200, %v4073
  %4297 = vst.msk [vmem:[%s3 + $0x180] sm:$0xf] %vm4200, %v4074
  %4298 = vst.msk [vmem:[%s3 + $0x184] sm:$0xf] %vm4200, %v4075
  %4299 = vst.msk [vmem:[%s3 + $0x188] sm:$0xf] %vm4200, %v4076
  %4300 = vst.msk [vmem:[%s3 + $0x18c] sm:$0xf] %vm4200, %v4077
  %4301 = vst.msk [vmem:[%s3 + $0x190] sm:$0xf] %vm4200, %v4078
  %4302 = vst.msk [vmem:[%s3 + $0x194] sm:$0xf] %vm4200, %v4079
  %4303 = vst.msk [vmem:[%s3 + $0x198] sm:$0xf] %vm4200, %v4080
  %4304 = vst.msk [vmem:[%s3 + $0x19c] sm:$0xf] %vm4200, %v4081
  %4305 = vst.msk [vmem:[%s3 + $0x1a0] sm:$0xf] %vm4200, %v4082
  %4306 = vst.msk [vmem:[%s3 + $0x1a4] sm:$0xf] %vm4200, %v4083
  %4307 = vst.msk [vmem:[%s3 + $0x1a8] sm:$0xf] %vm4200, %v4084
  %4308 = vst.msk [vmem:[%s3 + $0x1ac] sm:$0xf] %vm4200, %v4085
  %4309 = vst.msk [vmem:[%s3 + $0x1b0] sm:$0xf] %vm4200, %v4086
  %4310 = vst.msk [vmem:[%s3 + $0x1b4] sm:$0xf] %vm4200, %v4087
  %vm4311 = vcmask 253952
  %4312 = vst.msk [vmem:[%s3 + $0x1b8] sm:$0x1] %vm4311, %v4088
  // Predicated region
  $region14: #{cnno_forward.5} parent=0 // pred_check
    _
  $region15: #{cnno_forward.5} parent=0 // pred_check_branch
    %4314 = sbr.rel (0) target = $region17
  $region16: #{cnno_forward.5} parent=0 // pred_region
    _
  $region17: #{cnno_forward.5} parent=0 // pred_fallthru
    _
  // Predicated region
  $region18: #{cnno_forward.5} parent=0 // pred_check
    _
  $region19: #{cnno_forward.5} parent=0 // pred_check_branch
    %4316 = sbr.rel (0) target = $region21
  $region20: #{cnno_forward.5} parent=0 // pred_region
    _
  $region21: #{cnno_forward.5} parent=0 // pred_fallthru
    _

// kernel: cnno_forward.6
$region0: #{cnno_forward.6}
  #allocation0 [shape = 'u32[]', space=smem, size = 0x4, offset = 0x4, fixed_abs, tag = 'smem constant byte address 0x4 - core index']
  #allocation1 [shape = 'u32[144,128]{1,0:T(1,128)}', space=vmem, size = 0x12000, scoped, tag = 'internal scratch']
  %s0 = inlined_call_operand.vmem [shape: bf16[200,288], index: 0, kind: input, shape index: {}]
  %s1 = inlined_call_operand.vmem [shape: bf16[288,32], index: 1, kind: input, shape index: {}]
  %s2 = inlined_call_operand.vmem [shape: f32[1,32], index: 2, kind: input, shape index: {}]
  %s3 = inlined_call_operand.vmem [shape: bf16[200,32], index: 3, kind: output, shape index: {}]
  %s4 = sld [smem:[#allocation0]]
  $region22: #{cnno_forward.6} parent=0
    _
  %s6 = ssub.s32 1, %s4
  %s7 = scalar_select 0, %s6, %s4
  // Predicated region
  $region2: #{cnno_forward.6} parent=0 // pred_check
    _
  $region3: #{cnno_forward.6} parent=0 // pred_check_branch
    %9 = sbr.rel (0) target = $region5
  $region4: #{cnno_forward.6} parent=0 // pred_region
    _
  $region5: #{cnno_forward.6} parent=0 // pred_fallthru
    _
  // Predicated region
  $region6: #{cnno_forward.6} parent=0 // pred_check
    _
  $region7: #{cnno_forward.6} parent=0 // pred_check_branch
    %11 = sbr.rel (0) target = $region9
  $region8: #{cnno_forward.6} parent=0 // pred_region
    _
  $region9: #{cnno_forward.6} parent=0 // pred_fallthru
    _
  // Predicated region
  $region10: #{cnno_forward.6} parent=0 // pred_check
    _
  $region11: #{cnno_forward.6} parent=0 // pred_check_branch
    %13 = sbr.rel (0) target = $region13
  $region12: #{cnno_forward.6} parent=0 // pred_region
    _
  $region13: #{cnno_forward.6} parent=0 // pred_fallthru
    _
  %v15 = vld [vmem:[%s0] sm:$0xff]
  %v16 = vld [vmem:[%s0 + $0x8] sm:$0xf]
  %v17 = vld [vmem:[%s0 + $0xc] sm:$0xff]
  %v18 = vld [vmem:[%s0 + $0x14] sm:$0xf]
  %v19 = vld [vmem:[%s0 + $0x18] sm:$0xff]
  %v20 = vld [vmem:[%s0 + $0x20] sm:$0xf]
  %v21 = vld [vmem:[%s0 + $0x24] sm:$0xff]
  %v22 = vld [vmem:[%s0 + $0x2c] sm:$0xf]
  %v23 = vld [vmem:[%s0 + $0x30] sm:$0xff]
  %v24 = vld [vmem:[%s0 + $0x38] sm:$0xf]
  %v25 = vld [vmem:[%s0 + $0x3c] sm:$0xff]
  %v26 = vld [vmem:[%s0 + $0x44] sm:$0xf]
  %v27 = vld [vmem:[%s0 + $0x48] sm:$0xff]
  %v28 = vld [vmem:[%s0 + $0x50] sm:$0xf]
  %v29 = vld [vmem:[%s0 + $0x54] sm:$0xff]
  %v30 = vld [vmem:[%s0 + $0x5c] sm:$0xf]
  %v31 = vld [vmem:[%s0 + $0x60] sm:$0xff]
  %v32 = vld [vmem:[%s0 + $0x68] sm:$0xf]
  %v33 = vld [vmem:[%s0 + $0x6c] sm:$0xff]
  %v34 = vld [vmem:[%s0 + $0x74] sm:$0xf]
  %v35 = vld [vmem:[%s0 + $0x78] sm:$0xff]
  %v36 = vld [vmem:[%s0 + $0x80] sm:$0xf]
  %v37 = vld [vmem:[%s0 + $0x84] sm:$0xff]
  %v38 = vld [vmem:[%s0 + $0x8c] sm:$0xf]
  %v39 = vld [vmem:[%s0 + $0x90] sm:$0xff]
  %v40 = vld [vmem:[%s0 + $0x98] sm:$0xf]
  %v41 = vld [vmem:[%s0 + $0x9c] sm:$0xff]
  %v42 = vld [vmem:[%s0 + $0xa4] sm:$0xf]
  %v43 = vld [vmem:[%s0 + $0xa8] sm:$0xff]
  %v44 = vld [vmem:[%s0 + $0xb0] sm:$0xf]
  %v45 = vld [vmem:[%s0 + $0xb4] sm:$0xff]
  %v46 = vld [vmem:[%s0 + $0xbc] sm:$0xf]
  %v47 = vld [vmem:[%s0 + $0xc0] sm:$0xff]
  %v48 = vld [vmem:[%s0 + $0xc8] sm:$0xf]
  %v49 = vld [vmem:[%s0 + $0xcc] sm:$0xff]
  %v50 = vld [vmem:[%s0 + $0xd4] sm:$0xf]
  %v51 = vld [vmem:[%s0 + $0xd8] sm:$0xff]
  %v52 = vld [vmem:[%s0 + $0xe0] sm:$0xf]
  %v53 = vld [vmem:[%s0 + $0xe4] sm:$0xff]
  %v54 = vld [vmem:[%s0 + $0xec] sm:$0xf]
  %v55 = vld [vmem:[%s0 + $0xf0] sm:$0xff]
  %v56 = vld [vmem:[%s0 + $0xf8] sm:$0xf]
  %v57 = vld [vmem:[%s0 + $0xfc] sm:$0xff]
  %v58 = vld [vmem:[%s0 + $0x104] sm:$0xf]
  %v59 = vld [vmem:[%s0 + $0x108] sm:$0xff]
  %v60 = vld [vmem:[%s0 + $0x110] sm:$0xf]
  %v61 = vld [vmem:[%s0 + $0x114] sm:$0xff]
  %v62 = vld [vmem:[%s0 + $0x11c] sm:$0xf]
  %v63 = vld [vmem:[%s0 + $0x120] sm:$0xff]
  %v64 = vld [vmem:[%s0 + $0x128] sm:$0xf]
  %v65 = vld [vmem:[%s1] sm:$0xf]
  %v66 = vld [vmem:[%s1 + $0x4] sm:$0xf]
  %v67 = vld [vmem:[%s1 + $0x8] sm:$0xf]
  %v68 = vld [vmem:[%s1 + $0xc] sm:$0xf]
  %v69 = vld [vmem:[%s1 + $0x10] sm:$0xf]
  %v70 = vld [vmem:[%s1 + $0x14] sm:$0xf]
  %v71 = vld [vmem:[%s1 + $0x18] sm:$0xf]
  %v72 = vld [vmem:[%s1 + $0x1c] sm:$0xf]
  %v73 = vld [vmem:[%s1 + $0x20] sm:$0xf]
  %v74 = vld [vmem:[%s1 + $0x24] sm:$0xf]
  %v75 = vld [vmem:[%s1 + $0x28] sm:$0xf]
  %v76 = vld [vmem:[%s1 + $0x2c] sm:$0xf]
  %v77 = vld [vmem:[%s1 + $0x30] sm:$0xf]
  %v78 = vld [vmem:[%s1 + $0x34] sm:$0xf]
  %v79 = vld [vmem:[%s1 + $0x38] sm:$0xf]
  %v80 = vld [vmem:[%s1 + $0x3c] sm:$0xf]
  %v81 = vld [vmem:[%s1 + $0x40] sm:$0xf]
  %v82 = vld [vmem:[%s1 + $0x44] sm:$0xf]
  %v83 = vld [vmem:[%s1 + $0x48] sm:$0xf]
  %v84 = vld [vmem:[%s1 + $0x4c] sm:$0xf]
  %v85 = vld [vmem:[%s1 + $0x50] sm:$0xf]
  %v86 = vld [vmem:[%s1 + $0x54] sm:$0xf]
  %v87 = vld [vmem:[%s1 + $0x58] sm:$0xf]
  %v88 = vld [vmem:[%s1 + $0x5c] sm:$0xf]
  %v89 = vld [vmem:[%s1 + $0x60] sm:$0xf]
  %v90 = vld [vmem:[%s1 + $0x64] sm:$0xf]
  %v91 = vld [vmem:[%s1 + $0x68] sm:$0xf]
  %v92 = vld [vmem:[%s1 + $0x6c] sm:$0xf]
  %v93 = vld [vmem:[%s1 + $0x70] sm:$0xf]
  %v94 = vld [vmem:[%s1 + $0x74] sm:$0xf]
  %v95 = vld [vmem:[%s1 + $0x78] sm:$0xf]
  %v96 = vld [vmem:[%s1 + $0x7c] sm:$0xf]
  %v97 = vld [vmem:[%s1 + $0x80] sm:$0xf]
  %v98 = vld [vmem:[%s1 + $0x84] sm:$0xf]
  %v99 = vld [vmem:[%s1 + $0x88] sm:$0xf]
  %v100 = vld [vmem:[%s1 + $0x8c] sm:$0xf]
  %v101 = vld [vmem:[%s2] sm:$0x1]
  %v103 = vlaneseq
  %v104 = vshrl.u32 %v103, 7
  %v105 = vsub.s32 0, %v104
  %v106 = vrot.slane %v101, %v105
  %v158 = vunpack.c.l.b16 %v15
  %v159 = vunpack.c.h.b16 %v15
  %v160 = vunpack.c.l.b16 %v16
  %v161 = vunpack.c.l.b16 %v17
  %v162 = vunpack.c.h.b16 %v17
  %v163 = vunpack.c.l.b16 %v18
  %v164 = vunpack.c.l.b16 %v19
  %v165 = vunpack.c.h.b16 %v19
  %v166 = vunpack.c.l.b16 %v20
  %v167 = vunpack.c.l.b16 %v21
  %v168 = vunpack.c.h.b16 %v21
  %v169 = vunpack.c.l.b16 %v22
  %v170 = vunpack.c.l.b16 %v23
  %v171 = vunpack.c.h.b16 %v23
  %v172 = vunpack.c.l.b16 %v24
  %v173 = vunpack.c.l.b16 %v25
  %v174 = vunpack.c.h.b16 %v25
  %v175 = vunpack.c.l.b16 %v26
  %v176 = vunpack.c.l.b16 %v27
  %v177 = vunpack.c.h.b16 %v27
  %v178 = vunpack.c.l.b16 %v28
  %v179 = vunpack.c.l.b16 %v29
  %v180 = vunpack.c.h.b16 %v29
  %v181 = vunpack.c.l.b16 %v30
  %v182 = vunpack.c.l.b16 %v31
  %v183 = vunpack.c.h.b16 %v31
  %v184 = vunpack.c.l.b16 %v32
  %v185 = vunpack.c.l.b16 %v33
  %v186 = vunpack.c.h.b16 %v33
  %v187 = vunpack.c.l.b16 %v34
  %v188 = vunpack.c.l.b16 %v35
  %v189 = vunpack.c.h.b16 %v35
  %v190 = vunpack.c.l.b16 %v36
  %v191 = vunpack.c.l.b16 %v37
  %v192 = vunpack.c.h.b16 %v37
  %v193 = vunpack.c.l.b16 %v38
  %v194 = vunpack.c.l.b16 %v39
  %v195 = vunpack.c.h.b16 %v39
  %v196 = vunpack.c.l.b16 %v40
  %v197 = vunpack.c.l.b16 %v41
  %v198 = vunpack.c.h.b16 %v41
  %v199 = vunpack.c.l.b16 %v42
  %v200 = vunpack.c.l.b16 %v43
  %v201 = vunpack.c.h.b16 %v43
  %v202 = vunpack.c.l.b16 %v44
  %v203 = vunpack.c.l.b16 %v45
  %v204 = vunpack.c.h.b16 %v45
  %v205 = vunpack.c.l.b16 %v46
  %v206 = vunpack.c.l.b16 %v47
  %v207 = vunpack.c.h.b16 %v47
  %v208 = vunpack.c.l.b16 %v48
  %v209 = vunpack.c.l.b16 %v49
  %v210 = vunpack.c.h.b16 %v49
  %v211 = vunpack.c.l.b16 %v50
  %v212 = vunpack.c.l.b16 %v51
  %v213 = vunpack.c.h.b16 %v51
  %v214 = vunpack.c.l.b16 %v52
  %v215 = vunpack.c.l.b16 %v53
  %v216 = vunpack.c.h.b16 %v53
  %v217 = vunpack.c.l.b16 %v54
  %v218 = vunpack.c.l.b16 %v55
  %v219 = vunpack.c.h.b16 %v55
  %v220 = vunpack.c.l.b16 %v56
  %v221 = vunpack.c.l.b16 %v57
  %v222 = vunpack.c.h.b16 %v57
  %v223 = vunpack.c.l.b16 %v58
  %v224 = vunpack.c.l.b16 %v59
  %v225 = vunpack.c.h.b16 %v59
  %v226 = vunpack.c.l.b16 %v60
  %v227 = vunpack.c.l.b16 %v61
  %v228 = vunpack.c.h.b16 %v61
  %v229 = vunpack.c.l.b16 %v62
  %v230 = vunpack.c.l.b16 %v63
  %v231 = vunpack.c.h.b16 %v63
  %v232 = vunpack.c.l.b16 %v64
  %v233 = vpack.c.b16 %v161, %v158
  %v234 = vpack.c.b16 %v162, %v159
  %v235 = vpack.c.b16 %v163, %v160
  %v236 = vpack.c.b16 %v167, %v164
  %v237 = vpack.c.b16 %v168, %v165
  %v238 = vpack.c.b16 %v169, %v166
  %v239 = vpack.c.b16 %v173, %v170
  %v240 = vpack.c.b16 %v174, %v171
  %v241 = vpack.c.b16 %v175, %v172
  %v242 = vpack.c.b16 %v179, %v176
  %v243 = vpack.c.b16 %v180, %v177
  %v244 = vpack.c.b16 %v181, %v178
  %v245 = vpack.c.b16 %v185, %v182
  %v246 = vpack.c.b16 %v186, %v183
  %v247 = vpack.c.b16 %v187, %v184
  %v248 = vpack.c.b16 %v191, %v188
  %v249 = vpack.c.b16 %v192, %v189
  %v250 = vpack.c.b16 %v193, %v190
  %v251 = vpack.c.b16 %v197, %v194
  %v252 = vpack.c.b16 %v198, %v195
  %v253 = vpack.c.b16 %v199, %v196
  %v254 = vpack.c.b16 %v203, %v200
  %v255 = vpack.c.b16 %v204, %v201
  %v256 = vpack.c.b16 %v205, %v202
  %v257 = vpack.c.b16 %v209, %v206
  %v258 = vpack.c.b16 %v210, %v207
  %v259 = vpack.c.b16 %v211, %v208
  %v260 = vpack.c.b16 %v215, %v212
  %v261 = vpack.c.b16 %v216, %v213
  %v262 = vpack.c.b16 %v217, %v214
  %v263 = vpack.c.b16 %v221, %v218
  %v264 = vpack.c.b16 %v222, %v219
  %v265 = vpack.c.b16 %v223, %v220
  %v266 = vpack.c.b16 %v227, %v224
  %v267 = vpack.c.b16 %v228, %v225
  %v268 = vpack.c.b16 %v229, %v226
  %v269 = vpack.c.b16 %v230, %v230
  %v270 = vpack.c.b16 %v231, %v231
  %v271 = vpack.c.b16 %v232, %v232
  %v334 = vunpack.c.l.b16 %v65
  %v335 = vunpack.c.l.b16 %v66
  %v336 = vunpack.c.l.b16 %v67
  %v337 = vunpack.c.l.b16 %v68
  %v338 = vunpack.c.l.b16 %v69
  %v339 = vunpack.c.l.b16 %v70
  %v340 = vunpack.c.l.b16 %v71
  %v341 = vunpack.c.l.b16 %v72
  %v342 = vunpack.c.l.b16 %v73
  %v343 = vunpack.c.l.b16 %v74
  %v344 = vunpack.c.l.b16 %v75
  %v345 = vunpack.c.l.b16 %v76
  %v346 = vunpack.c.l.b16 %v77
  %v347 = vunpack.c.l.b16 %v78
  %v348 = vunpack.c.l.b16 %v79
  %v349 = vunpack.c.l.b16 %v80
  %v350 = vunpack.c.l.b16 %v81
  %v351 = vunpack.c.l.b16 %v82
  %v352 = vunpack.c.l.b16 %v83
  %v353 = vunpack.c.l.b16 %v84
  %v354 = vunpack.c.l.b16 %v85
  %v355 = vunpack.c.l.b16 %v86
  %v356 = vunpack.c.l.b16 %v87
  %v357 = vunpack.c.l.b16 %v88
  %v358 = vunpack.c.l.b16 %v89
  %v359 = vunpack.c.l.b16 %v90
  %v360 = vunpack.c.l.b16 %v91
  %v361 = vunpack.c.l.b16 %v92
  %v362 = vunpack.c.l.b16 %v93
  %v363 = vunpack.c.l.b16 %v94
  %v364 = vunpack.c.l.b16 %v95
  %v365 = vunpack.c.l.b16 %v96
  %v366 = vunpack.c.l.b16 %v97
  %v367 = vunpack.c.l.b16 %v98
  %v368 = vunpack.c.l.b16 %v99
  %v369 = vunpack.c.l.b16 %v100
  %v370 = vpack.c.b16 %v335, %v334
  %v371 = vpack.c.b16 %v337, %v336
  %v372 = vpack.c.b16 %v339, %v338
  %v373 = vpack.c.b16 %v341, %v340
  %v374 = vpack.c.b16 %v343, %v342
  %v375 = vpack.c.b16 %v345, %v344
  %v376 = vpack.c.b16 %v347, %v346
  %v377 = vpack.c.b16 %v349, %v348
  %v378 = vpack.c.b16 %v351, %v350
  %v379 = vpack.c.b16 %v353, %v352
  %v380 = vpack.c.b16 %v355, %v354
  %v381 = vpack.c.b16 %v357, %v356
  %v382 = vpack.c.b16 %v359, %v358
  %v383 = vpack.c.b16 %v361, %v360
  %v384 = vpack.c.b16 %v363, %v362
  %v385 = vpack.c.b16 %v365, %v364
  %v386 = vpack.c.b16 %v367, %v366
  %v387 = vpack.c.b16 %v369, %v368
  %vm406 = vcmask 261120
  %v408 = vsel %vm406, %v235, 0
  %v411 = vsel %vm406, %v238, 0
  %v414 = vsel %vm406, %v241, 0
  %v417 = vsel %vm406, %v244, 0
  %v420 = vsel %vm406, %v247, 0
  %v423 = vsel %vm406, %v250, 0
  %v426 = vsel %vm406, %v253, 0
  %v429 = vsel %vm406, %v256, 0
  %v432 = vsel %vm406, %v259, 0
  %v435 = vsel %vm406, %v262, 0
  %v438 = vsel %vm406, %v265, 0
  %v441 = vsel %vm406, %v268, 0
  %v444 = vsel %vm406, %v271, 0
  %446 = vmatprep.subr.bf16.mxu0 0
  %447 = vmatpush1.bf16.msra.mxu0 %v377
  %448 = vmatprep.subr.bf16.mxu0 0
  %449 = vmatpush1.bf16.msra.mxu0 %v376
  %450 = vmatprep.subr.bf16.mxu0 0
  %451 = vmatpush1.bf16.msra.mxu0 %v375
  %452 = vmatprep.subr.bf16.mxu0 0
  %453 = vmatpush1.bf16.msra.mxu0 %v374
  %454 = vmatprep.subr.bf16.mxu0 0
  %455 = vmatpush1.bf16.msra.mxu0 %v373
  %456 = vmatprep.subr.bf16.mxu0 0
  %457 = vmatpush1.bf16.msra.mxu0 %v372
  %458 = vmatprep.subr.bf16.mxu0 0
  %459 = vmatpush1.bf16.msra.mxu0 %v371
  %460 = vmatprep.subr.bf16.mxu0 0
  %461 = vmatpush1.bf16.msra.mxu0 %v370
  %462 = vmatprep.subr.bf16.mxu0 0
  %463 = vmatpush2.bf16.msra.mxu0 %v385
  %464 = vmatprep.subr.bf16.mxu0 0
  %465 = vmatpush2.bf16.msra.mxu0 %v384
  %466 = vmatprep.subr.bf16.mxu0 0
  %467 = vmatpush2.bf16.msra.mxu0 %v383
  %468 = vmatprep.subr.bf16.mxu0 0
  %469 = vmatpush2.bf16.msra.mxu0 %v382
  %470 = vmatprep.subr.bf16.mxu0 0
  %471 = vmatpush2.bf16.msra.mxu0 %v381
  %472 = vmatprep.subr.bf16.mxu0 0
  %473 = vmatpush2.bf16.msra.mxu0 %v380
  %474 = vmatprep.subr.bf16.mxu0 0
  %475 = vmatpush2.bf16.msra.mxu0 %v379
  %476 = vmatprep.subr.bf16.mxu0 0
  %477 = vmatpush2.bf16.msra.mxu0 %v378
  %478 = vmatprep.mubr.bf16.mxu0 %v234
  %479 = vmatmul.mubr.bf16.gmra.mxu0 %v233
  %v480 = vpop.f32.mrf.mxu0
  %v481 = vadd.f32 %v106, %v480
  %v482 = vpop.f32.mrf.mxu0
  %v483 = vpop.f32.mrf.mxu0
  %v484 = vadd.f32 %v106, %v483
  %v485 = vpop.f32.mrf.mxu0
  %486 = vmatprep.mubr.bf16.mxu0 %v237
  %487 = vmatmul.mubr.bf16.gmra.mxu0 %v236
  %v488 = vpop.f32.mrf.mxu0
  %v489 = vadd.f32 %v106, %v488
  %v490 = vpop.f32.mrf.mxu0
  %v491 = vpop.f32.mrf.mxu0
  %v492 = vadd.f32 %v106, %v491
  %v493 = vpop.f32.mrf.mxu0
  %494 = vmatprep.mubr.bf16.mxu0 %v240
  %495 = vmatmul.mubr.bf16.gmra.mxu0 %v239
  %v496 = vpop.f32.mrf.mxu0
  %v497 = vadd.f32 %v106, %v496
  %v498 = vpop.f32.mrf.mxu0
  %v499 = vpop.f32.mrf.mxu0
  %v500 = vadd.f32 %v106, %v499
  %v501 = vpop.f32.mrf.mxu0
  %502 = vmatprep.mubr.bf16.mxu0 %v243
  %503 = vmatmul.mubr.bf16.gmra.mxu0 %v242
  %v504 = vpop.f32.mrf.mxu0
  %v505 = vadd.f32 %v106, %v504
  %v506 = vpop.f32.mrf.mxu0
  %v507 = vpop.f32.mrf.mxu0
  %v508 = vadd.f32 %v106, %v507
  %v509 = vpop.f32.mrf.mxu0
  %510 = vmatprep.mubr.bf16.mxu0 %v246
  %511 = vmatmul.mubr.bf16.gmra.mxu0 %v245
  %v512 = vpop.f32.mrf.mxu0
  %v513 = vadd.f32 %v106, %v512
  %v514 = vpop.f32.mrf.mxu0
  %v515 = vpop.f32.mrf.mxu0
  %v516 = vadd.f32 %v106, %v515
  %v517 = vpop.f32.mrf.mxu0
  %518 = vmatprep.mubr.bf16.mxu0 %v249
  %519 = vmatmul.mubr.bf16.gmra.mxu0 %v248
  %v520 = vpop.f32.mrf.mxu0
  %v521 = vadd.f32 %v106, %v520
  %v522 = vpop.f32.mrf.mxu0
  %v523 = vpop.f32.mrf.mxu0
  %v524 = vadd.f32 %v106, %v523
  %v525 = vpop.f32.mrf.mxu0
  %526 = vmatprep.mubr.bf16.mxu0 %v252
  %527 = vmatmul.mubr.bf16.gmra.mxu0 %v251
  %v528 = vpop.f32.mrf.mxu0
  %v529 = vadd.f32 %v106, %v528
  %v530 = vpop.f32.mrf.mxu0
  %v531 = vpop.f32.mrf.mxu0
  %v532 = vadd.f32 %v106, %v531
  %v533 = vpop.f32.mrf.mxu0
  %534 = vmatprep.mubr.bf16.mxu0 %v255
  %535 = vmatmul.mubr.bf16.gmra.mxu0 %v254
  %v536 = vpop.f32.mrf.mxu0
  %v537 = vadd.f32 %v106, %v536
  %v538 = vpop.f32.mrf.mxu0
  %v539 = vpop.f32.mrf.mxu0
  %v540 = vadd.f32 %v106, %v539
  %v541 = vpop.f32.mrf.mxu0
  %542 = vmatprep.mubr.bf16.mxu0 %v258
  %543 = vmatmul.mubr.bf16.gmra.mxu0 %v257
  %v544 = vpop.f32.mrf.mxu0
  %v545 = vadd.f32 %v106, %v544
  %v546 = vpop.f32.mrf.mxu0
  %v547 = vpop.f32.mrf.mxu0
  %v548 = vadd.f32 %v106, %v547
  %v549 = vpop.f32.mrf.mxu0
  %550 = vmatprep.mubr.bf16.mxu0 %v261
  %551 = vmatmul.mubr.bf16.gmra.mxu0 %v260
  %v552 = vpop.f32.mrf.mxu0
  %v553 = vadd.f32 %v106, %v552
  %v554 = vpop.f32.mrf.mxu0
  %v555 = vpop.f32.mrf.mxu0
  %v556 = vadd.f32 %v106, %v555
  %v557 = vpop.f32.mrf.mxu0
  %558 = vmatprep.mubr.bf16.mxu0 %v264
  %559 = vmatmul.mubr.bf16.gmra.mxu0 %v263
  %v560 = vpop.f32.mrf.mxu0
  %v561 = vadd.f32 %v106, %v560
  %v562 = vpop.f32.mrf.mxu0
  %v563 = vpop.f32.mrf.mxu0
  %v564 = vadd.f32 %v106, %v563
  %v565 = vpop.f32.mrf.mxu0
  %566 = vmatprep.mubr.bf16.mxu0 %v267
  %567 = vmatmul.mubr.bf16.gmra.mxu0 %v266
  %v568 = vpop.f32.mrf.mxu0
  %v569 = vadd.f32 %v106, %v568
  %v570 = vpop.f32.mrf.mxu0
  %v571 = vpop.f32.mrf.mxu0
  %v572 = vadd.f32 %v106, %v571
  %v573 = vpop.f32.mrf.mxu0
  %574 = vmatprep.mubr.bf16.mxu0 %v270
  %575 = vmatmul.mubr.bf16.gmra.mxu0 %v269
  %v576 = vpop.f32.mrf.mxu0
  %v577 = vadd.f32 %v106, %v576
  %v578 = vpop.f32.mrf.mxu0
  %v579 = vpop.f32.mrf.mxu0
  %v580 = vpop.f32.mrf.mxu0
  %581 = vdwg.mxu0
  %582 = vmatprep.subr.bf16.mxu0 0
  %583 = vmatpush1.bf16.msra.mxu0 0
  %584 = vmatprep.subr.bf16.mxu0 0
  %585 = vmatpush1.bf16.msra.mxu0 0
  %586 = vmatprep.subr.bf16.mxu0 0
  %587 = vmatpush1.bf16.msra.mxu0 0
  %588 = vmatprep.subr.bf16.mxu0 0
  %589 = vmatpush1.bf16.msra.mxu0 0
  %590 = vmatprep.subr.bf16.mxu0 0
  %591 = vmatpush1.bf16.msra.mxu0 0
  %592 = vmatprep.subr.bf16.mxu0 0
  %593 = vmatpush1.bf16.msra.mxu0 0
  %594 = vmatprep.subr.bf16.mxu0 0
  %595 = vmatpush1.bf16.msra.mxu0 %v387
  %596 = vmatprep.subr.bf16.mxu0 0
  %597 = vmatpush1.bf16.msra.mxu0 %v386
  %598 = vmatprep.subr.bf16.mxu0 0
  %599 = vmatpush2.bf16.msra.mxu0 0
  %600 = vmatprep.subr.bf16.mxu0 0
  %601 = vmatpush2.bf16.msra.mxu0 0
  %602 = vmatprep.subr.bf16.mxu0 0
  %603 = vmatpush2.bf16.msra.mxu0 0
  %604 = vmatprep.subr.bf16.mxu0 0
  %605 = vmatpush2.bf16.msra.mxu0 0
  %606 = vmatprep.subr.bf16.mxu0 0
  %607 = vmatpush2.bf16.msra.mxu0 0
  %608 = vmatprep.subr.bf16.mxu0 0
  %609 = vmatpush2.bf16.msra.mxu0 0
  %610 = vmatprep.subr.bf16.mxu0 0
  %611 = vmatpush2.bf16.msra.mxu0 0
  %612 = vmatprep.subr.bf16.mxu0 0
  %613 = vmatpush2.bf16.msra.mxu0 0
  %614 = vmatprep.mubr.bf16.mxu0 0
  %615 = vmatmul.mubr.bf16.gmra.mxu0 %v408
  %v616 = vpop.f32.mrf.mxu0
  %v617 = vadd.f32 %v481, %v616
  %v618 = vpop.f32.mrf.mxu0
  %v619 = vpop.f32.mrf.mxu0
  %v620 = vadd.f32 %v484, %v619
  %v621 = vpop.f32.mrf.mxu0
  %622 = vmatprep.mubr.bf16.mxu0 0
  %623 = vmatmul.mubr.bf16.gmra.mxu0 %v411
  %v624 = vpop.f32.mrf.mxu0
  %v625 = vadd.f32 %v489, %v624
  %v626 = vpop.f32.mrf.mxu0
  %v627 = vpop.f32.mrf.mxu0
  %v628 = vadd.f32 %v492, %v627
  %v629 = vpop.f32.mrf.mxu0
  %630 = vmatprep.mubr.bf16.mxu0 0
  %631 = vmatmul.mubr.bf16.gmra.mxu0 %v414
  %v632 = vpop.f32.mrf.mxu0
  %v633 = vadd.f32 %v497, %v632
  %v634 = vpop.f32.mrf.mxu0
  %v635 = vpop.f32.mrf.mxu0
  %v636 = vadd.f32 %v500, %v635
  %v637 = vpop.f32.mrf.mxu0
  %638 = vmatprep.mubr.bf16.mxu0 0
  %639 = vmatmul.mubr.bf16.gmra.mxu0 %v417
  %v640 = vpop.f32.mrf.mxu0
  %v641 = vadd.f32 %v505, %v640
  %v642 = vpop.f32.mrf.mxu0
  %v643 = vpop.f32.mrf.mxu0
  %v644 = vadd.f32 %v508, %v643
  %v645 = vpop.f32.mrf.mxu0
  %646 = vmatprep.mubr.bf16.mxu0 0
  %647 = vmatmul.mubr.bf16.gmra.mxu0 %v420
  %v648 = vpop.f32.mrf.mxu0
  %v649 = vadd.f32 %v513, %v648
  %v650 = vpop.f32.mrf.mxu0
  %v651 = vpop.f32.mrf.mxu0
  %v652 = vadd.f32 %v516, %v651
  %v653 = vpop.f32.mrf.mxu0
  %654 = vmatprep.mubr.bf16.mxu0 0
  %655 = vmatmul.mubr.bf16.gmra.mxu0 %v423
  %v656 = vpop.f32.mrf.mxu0
  %v657 = vadd.f32 %v521, %v656
  %v658 = vpop.f32.mrf.mxu0
  %v659 = vpop.f32.mrf.mxu0
  %v660 = vadd.f32 %v524, %v659
  %v661 = vpop.f32.mrf.mxu0
  %662 = vmatprep.mubr.bf16.mxu0 0
  %663 = vmatmul.mubr.bf16.gmra.mxu0 %v426
  %v664 = vpop.f32.mrf.mxu0
  %v665 = vadd.f32 %v529, %v664
  %v666 = vpop.f32.mrf.mxu0
  %v667 = vpop.f32.mrf.mxu0
  %v668 = vadd.f32 %v532, %v667
  %v669 = vpop.f32.mrf.mxu0
  %670 = vmatprep.mubr.bf16.mxu0 0
  %671 = vmatmul.mubr.bf16.gmra.mxu0 %v429
  %v672 = vpop.f32.mrf.mxu0
  %v673 = vadd.f32 %v537, %v672
  %v674 = vpop.f32.mrf.mxu0
  %v675 = vpop.f32.mrf.mxu0
  %v676 = vadd.f32 %v540, %v675
  %v677 = vpop.f32.mrf.mxu0
  %678 = vmatprep.mubr.bf16.mxu0 0
  %679 = vmatmul.mubr.bf16.gmra.mxu0 %v432
  %v680 = vpop.f32.mrf.mxu0
  %v681 = vadd.f32 %v545, %v680
  %v682 = vpop.f32.mrf.mxu0
  %v683 = vpop.f32.mrf.mxu0
  %v684 = vadd.f32 %v548, %v683
  %v685 = vpop.f32.mrf.mxu0
  %686 = vmatprep.mubr.bf16.mxu0 0
  %687 = vmatmul.mubr.bf16.gmra.mxu0 %v435
  %v688 = vpop.f32.mrf.mxu0
  %v689 = vadd.f32 %v553, %v688
  %v690 = vpop.f32.mrf.mxu0
  %v691 = vpop.f32.mrf.mxu0
  %v692 = vadd.f32 %v556, %v691
  %v693 = vpop.f32.mrf.mxu0
  %694 = vmatprep.mubr.bf16.mxu0 0
  %695 = vmatmul.mubr.bf16.gmra.mxu0 %v438
  %v696 = vpop.f32.mrf.mxu0
  %v697 = vadd.f32 %v561, %v696
  %v698 = vpop.f32.mrf.mxu0
  %v699 = vpop.f32.mrf.mxu0
  %v700 = vadd.f32 %v564, %v699
  %v701 = vpop.f32.mrf.mxu0
  %702 = vmatprep.mubr.bf16.mxu0 0
  %703 = vmatmul.mubr.bf16.gmra.mxu0 %v441
  %v704 = vpop.f32.mrf.mxu0
  %v705 = vadd.f32 %v569, %v704
  %v706 = vpop.f32.mrf.mxu0
  %v707 = vpop.f32.mrf.mxu0
  %v708 = vadd.f32 %v572, %v707
  %v709 = vpop.f32.mrf.mxu0
  %710 = vmatprep.mubr.bf16.mxu0 0
  %711 = vmatmul.mubr.bf16.gmra.mxu0 %v444
  %v712 = vpop.f32.mrf.mxu0
  %v713 = vadd.f32 %v577, %v712
  %v714 = vpop.f32.mrf.mxu0
  %v715 = vpop.f32.mrf.mxu0
  %v716 = vpop.f32.mrf.mxu0
  %717 = vdwg.mxu0
  %v718 = vmax.f32 %v617, 0.0
  %v719 = vmax.f32 %v620, 0.0
  %v720 = vmax.f32 %v625, 0.0
  %v721 = vmax.f32 %v628, 0.0
  %v722 = vmax.f32 %v633, 0.0
  %v723 = vmax.f32 %v636, 0.0
  %v724 = vmax.f32 %v641, 0.0
  %v725 = vmax.f32 %v644, 0.0
  %v726 = vmax.f32 %v649, 0.0
  %v727 = vmax.f32 %v652, 0.0
  %v728 = vmax.f32 %v657, 0.0
  %v729 = vmax.f32 %v660, 0.0
  %v730 = vmax.f32 %v665, 0.0
  %v731 = vmax.f32 %v668, 0.0
  %v732 = vmax.f32 %v673, 0.0
  %v733 = vmax.f32 %v676, 0.0
  %v734 = vmax.f32 %v681, 0.0
  %v735 = vmax.f32 %v684, 0.0
  %v736 = vmax.f32 %v689, 0.0
  %v737 = vmax.f32 %v692, 0.0
  %v738 = vmax.f32 %v697, 0.0
  %v739 = vmax.f32 %v700, 0.0
  %v740 = vmax.f32 %v705, 0.0
  %v741 = vmax.f32 %v708, 0.0
  %v742 = vmax.f32 %v713, 0.0
  %v743 = vpack.c.bf16 %v719, %v718
  %v744 = vpack.c.bf16 %v721, %v720
  %v745 = vpack.c.bf16 %v723, %v722
  %v746 = vpack.c.bf16 %v725, %v724
  %v747 = vpack.c.bf16 %v727, %v726
  %v748 = vpack.c.bf16 %v729, %v728
  %v749 = vpack.c.bf16 %v731, %v730
  %v750 = vpack.c.bf16 %v733, %v732
  %v751 = vpack.c.bf16 %v735, %v734
  %v752 = vpack.c.bf16 %v737, %v736
  %v753 = vpack.c.bf16 %v739, %v738
  %v754 = vpack.c.bf16 %v741, %v740
  %v755 = vpack.c.bf16 %v742, %v742
  %v769 = vunpack.c.l.b16 %v743
  %v770 = vunpack.c.h.b16 %v743
  %v771 = vunpack.c.l.b16 %v744
  %v772 = vunpack.c.h.b16 %v744
  %v773 = vunpack.c.l.b16 %v745
  %v774 = vunpack.c.h.b16 %v745
  %v775 = vunpack.c.l.b16 %v746
  %v776 = vunpack.c.h.b16 %v746
  %v777 = vunpack.c.l.b16 %v747
  %v778 = vunpack.c.h.b16 %v747
  %v779 = vunpack.c.l.b16 %v748
  %v780 = vunpack.c.h.b16 %v748
  %v781 = vunpack.c.l.b16 %v749
  %v782 = vunpack.c.h.b16 %v749
  %v783 = vunpack.c.l.b16 %v750
  %v784 = vunpack.c.h.b16 %v750
  %v785 = vunpack.c.l.b16 %v751
  %v786 = vunpack.c.h.b16 %v751
  %v787 = vunpack.c.l.b16 %v752
  %v788 = vunpack.c.h.b16 %v752
  %v789 = vunpack.c.l.b16 %v753
  %v790 = vunpack.c.h.b16 %v753
  %v791 = vunpack.c.l.b16 %v754
  %v792 = vunpack.c.h.b16 %v754
  %v793 = vunpack.c.l.b16 %v755
  %v794 = vpack.c.b16 %v769, %v769
  %v795 = vpack.c.b16 %v770, %v770
  %v796 = vpack.c.b16 %v771, %v771
  %v797 = vpack.c.b16 %v772, %v772
  %v798 = vpack.c.b16 %v773, %v773
  %v799 = vpack.c.b16 %v774, %v774
  %v800 = vpack.c.b16 %v775, %v775
  %v801 = vpack.c.b16 %v776, %v776
  %v802 = vpack.c.b16 %v777, %v777
  %v803 = vpack.c.b16 %v778, %v778
  %v804 = vpack.c.b16 %v779, %v779
  %v805 = vpack.c.b16 %v780, %v780
  %v806 = vpack.c.b16 %v781, %v781
  %v807 = vpack.c.b16 %v782, %v782
  %v808 = vpack.c.b16 %v783, %v783
  %v809 = vpack.c.b16 %v784, %v784
  %v810 = vpack.c.b16 %v785, %v785
  %v811 = vpack.c.b16 %v786, %v786
  %v812 = vpack.c.b16 %v787, %v787
  %v813 = vpack.c.b16 %v788, %v788
  %v814 = vpack.c.b16 %v789, %v789
  %v815 = vpack.c.b16 %v790, %v790
  %v816 = vpack.c.b16 %v791, %v791
  %v817 = vpack.c.b16 %v792, %v792
  %v818 = vpack.c.b16 %v793, %v793
  %vm844 = vcmask 257024
  %845 = vst.msk [vmem:[%s3] sm:$0xf] %vm844, %v794
  %846 = vst.msk [vmem:[%s3 + $0x4] sm:$0xf] %vm844, %v795
  %847 = vst.msk [vmem:[%s3 + $0x8] sm:$0xf] %vm844, %v796
  %848 = vst.msk [vmem:[%s3 + $0xc] sm:$0xf] %vm844, %v797
  %849 = vst.msk [vmem:[%s3 + $0x10] sm:$0xf] %vm844, %v798
  %850 = vst.msk [vmem:[%s3 + $0x14] sm:$0xf] %vm844, %v799
  %851 = vst.msk [vmem:[%s3 + $0x18] sm:$0xf] %vm844, %v800
  %852 = vst.msk [vmem:[%s3 + $0x1c] sm:$0xf] %vm844, %v801
  %853 = vst.msk [vmem:[%s3 + $0x20] sm:$0xf] %vm844, %v802
  %854 = vst.msk [vmem:[%s3 + $0x24] sm:$0xf] %vm844, %v803
  %855 = vst.msk [vmem:[%s3 + $0x28] sm:$0xf] %vm844, %v804
  %856 = vst.msk [vmem:[%s3 + $0x2c] sm:$0xf] %vm844, %v805
  %857 = vst.msk [vmem:[%s3 + $0x30] sm:$0xf] %vm844, %v806
  %858 = vst.msk [vmem:[%s3 + $0x34] sm:$0xf] %vm844, %v807
  %859 = vst.msk [vmem:[%s3 + $0x38] sm:$0xf] %vm844, %v808
  %860 = vst.msk [vmem:[%s3 + $0x3c] sm:$0xf] %vm844, %v809
  %861 = vst.msk [vmem:[%s3 + $0x40] sm:$0xf] %vm844, %v810
  %862 = vst.msk [vmem:[%s3 + $0x44] sm:$0xf] %vm844, %v811
  %863 = vst.msk [vmem:[%s3 + $0x48] sm:$0xf] %vm844, %v812
  %864 = vst.msk [vmem:[%s3 + $0x4c] sm:$0xf] %vm844, %v813
  %865 = vst.msk [vmem:[%s3 + $0x50] sm:$0xf] %vm844, %v814
  %866 = vst.msk [vmem:[%s3 + $0x54] sm:$0xf] %vm844, %v815
  %867 = vst.msk [vmem:[%s3 + $0x58] sm:$0xf] %vm844, %v816
  %868 = vst.msk [vmem:[%s3 + $0x5c] sm:$0xf] %vm844, %v817
  %869 = vst.msk [vmem:[%s3 + $0x60] sm:$0xf] %vm844, %v818
  // Predicated region
  $region14: #{cnno_forward.6} parent=0 // pred_check
    _
  $region15: #{cnno_forward.6} parent=0 // pred_check_branch
    %871 = sbr.rel (0) target = $region17
  $region16: #{cnno_forward.6} parent=0 // pred_region
    _
  $region17: #{cnno_forward.6} parent=0 // pred_fallthru
    _
  // Predicated region
  $region18: #{cnno_forward.6} parent=0 // pred_check
    _
  $region19: #{cnno_forward.6} parent=0 // pred_check_branch
    %873 = sbr.rel (0) target = $region21
  $region20: #{cnno_forward.6} parent=0 // pred_region
    _
  $region21: #{cnno_forward.6} parent=0 // pred_fallthru
    _

// kernel: cnno_forward.7
$region0: #{cnno_forward.7}
  #allocation0 [shape = 'u32[]', space=smem, size = 0x4, offset = 0x4, fixed_abs, tag = 'smem constant byte address 0x4 - core index']
  #allocation1 [shape = 'u32[144,128]{1,0:T(1,128)}', space=vmem, size = 0x12000, scoped, tag = 'internal scratch']
  %s0 = inlined_call_operand.vmem [shape: bf16[2,3200], index: 0, kind: input, shape index: {}]
  %s1 = inlined_call_operand.vmem [shape: bf16[3200,256], index: 1, kind: input, shape index: {}]
  %s2 = inlined_call_operand.vmem [shape: f32[1,256], index: 2, kind: input, shape index: {}]
  %s3 = inlined_call_operand.vmem [shape: bf16[256,16], index: 3, kind: input, shape index: {}]
  %s4 = inlined_call_operand.vmem [shape: f32[1,16], index: 4, kind: input, shape index: {}]
  %s5 = inlined_call_operand.vmem [shape: bf16[16,5], index: 5, kind: input, shape index: {}]
  %s6 = inlined_call_operand.vmem [shape: f32[1,5], index: 6, kind: input, shape index: {}]
  %s7 = inlined_call_operand.hbm [shape: f32[2,5], index: 7, kind: output, shape index: {}]
  %s8 = sld [smem:[#allocation0]]
  $region38: #{cnno_forward.7} parent=0
    _
  %s10 = ssub.s32 1, %s8
  %s11 = scalar_select 0, %s10, %s8
  $region1: #{cnno_forward.7} parent=0
    #allocation2 [shape = 'u8[1024]{0}', space=vmem, size = 0x400, scoped, tag = 'output window, operand 0, single buffered']
    #allocation3 [shape = 's32[1]{0}', space=sflag, size = 0x4, scoped, tag = 'scoped memory for cnno_forward.7']
    %12 = vsyncpa [#allocation3], 0
    // Predicated region
    $region2: #{cnno_forward.7} parent=1 // pred_check
      _
    $region3: #{cnno_forward.7} parent=1 // pred_check_branch
      %14 = sbr.rel (0) target = $region5
    $region4: #{cnno_forward.7} parent=1 // pred_region
      _
    $region5: #{cnno_forward.7} parent=1 // pred_fallthru
      _
    // Predicated region
    $region6: #{cnno_forward.7} parent=1 // pred_check
      _
    $region7: #{cnno_forward.7} parent=1 // pred_check_branch
      %16 = sbr.rel (0) target = $region9
    $region8: #{cnno_forward.7} parent=1 // pred_region
      _
    $region9: #{cnno_forward.7} parent=1 // pred_fallthru
      _
    // Predicated region
    $region10: #{cnno_forward.7} parent=1 // pred_check
      _
    $region11: #{cnno_forward.7} parent=1 // pred_check_branch
      %18 = sbr.rel (0) target = $region13
    $region12: #{cnno_forward.7} parent=1 // pred_region
      _
    $region13: #{cnno_forward.7} parent=1 // pred_fallthru
      _
    // Predicated region
    $region14: #{cnno_forward.7} parent=1 // pred_check
      _
    $region15: #{cnno_forward.7} parent=1 // pred_check_branch
      %20 = sbr.rel (0) target = $region17
    $region16: #{cnno_forward.7} parent=1 // pred_region
      _
    $region17: #{cnno_forward.7} parent=1 // pred_fallthru
      _
    // Predicated region
    $region18: #{cnno_forward.7} parent=1 // pred_check
      _
    $region19: #{cnno_forward.7} parent=1 // pred_check_branch
      %22 = sbr.rel (0) target = $region21
    $region20: #{cnno_forward.7} parent=1 // pred_region
      _
    $region21: #{cnno_forward.7} parent=1 // pred_fallthru
      _
    // Predicated region
    $region22: #{cnno_forward.7} parent=1 // pred_check
      _
    $region23: #{cnno_forward.7} parent=1 // pred_check_branch
      %24 = sbr.rel (0) target = $region25
    $region24: #{cnno_forward.7} parent=1 // pred_region
      _
    $region25: #{cnno_forward.7} parent=1 // pred_fallthru
      _
    // Predicated region
    $region26: #{cnno_forward.7} parent=1 // pred_check
      _
    $region27: #{cnno_forward.7} parent=1 // pred_check_branch
      %26 = sbr.rel (0) target = $region29
    $region28: #{cnno_forward.7} parent=1 // pred_region
      _
    $region29: #{cnno_forward.7} parent=1 // pred_fallthru
      _
    %v28 = vld [vmem:[%s0] sm:$0xff]
    %v29 = vld [vmem:[%s0 + $0x8] sm:$0xff]
    %v30 = vld [vmem:[%s0 + $0x10] sm:$0xff]
    %v31 = vld [vmem:[%s0 + $0x18] sm:$0x1]
    %v32 = vld [vmem:[%s1] sm:$0xff]
    %v33 = vld [vmem:[%s1 + $0x8] sm:$0xff]
    %v34 = vld [vmem:[%s1 + $0x10] sm:$0xff]
    %v35 = vld [vmem:[%s1 + $0x18] sm:$0xff]
    %v36 = vld [vmem:[%s1 + $0x20] sm:$0xff]
    %v37 = vld [vmem:[%s1 + $0x28] sm:$0xff]
    %v38 = vld [vmem:[%s1 + $0x30] sm:$0xff]
    %v39 = vld [vmem:[%s1 + $0x38] sm:$0xff]
    %v40 = vld [vmem:[%s1 + $0x40] sm:$0xff]
    %v41 = vld [vmem:[%s1 + $0x48] sm:$0xff]
    %v42 = vld [vmem:[%s1 + $0x50] sm:$0xff]
    %v43 = vld [vmem:[%s1 + $0x58] sm:$0xff]
    %v44 = vld [vmem:[%s1 + $0x60] sm:$0xff]
    %v45 = vld [vmem:[%s1 + $0x68] sm:$0xff]
    %v46 = vld [vmem:[%s1 + $0x70] sm:$0xff]
    %v47 = vld [vmem:[%s1 + $0x78] sm:$0xff]
    %v48 = vld [vmem:[%s1 + $0x80] sm:$0xff]
    %v49 = vld [vmem:[%s1 + $0x88] sm:$0xff]
    %v50 = vld [vmem:[%s1 + $0x90] sm:$0xff]
    %v51 = vld [vmem:[%s1 + $0x98] sm:$0xff]
    %v52 = vld [vmem:[%s1 + $0xa0] sm:$0xff]
    %v53 = vld [vmem:[%s1 + $0xa8] sm:$0xff]
    %v54 = vld [vmem:[%s1 + $0xb0] sm:$0xff]
    %v55 = vld [vmem:[%s1 + $0xb8] sm:$0xff]
    %v56 = vld [vmem:[%s1 + $0xc0] sm:$0xff]
    %v57 = vld [vmem:[%s1 + $0xc8] sm:$0xff]
    %v58 = vld [vmem:[%s1 + $0xd0] sm:$0xff]
    %v59 = vld [vmem:[%s1 + $0xd8] sm:$0xff]
    %v60 = vld [vmem:[%s1 + $0xe0] sm:$0xff]
    %v61 = vld [vmem:[%s1 + $0xe8] sm:$0xff]
    %v62 = vld [vmem:[%s1 + $0xf0] sm:$0xff]
    %v63 = vld [vmem:[%s1 + $0xf8] sm:$0xff]
    %v64 = vld [vmem:[%s1 + $0x100] sm:$0xff]
    %v65 = vld [vmem:[%s1 + $0x108] sm:$0xff]
    %v66 = vld [vmem:[%s1 + $0x110] sm:$0xff]
    %v67 = vld [vmem:[%s1 + $0x118] sm:$0xff]
    %v68 = vld [vmem:[%s1 + $0x120] sm:$0xff]
    %v69 = vld [vmem:[%s1 + $0x128] sm:$0xff]
    %v70 = vld [vmem:[%s1 + $0x130] sm:$0xff]
    %v71 = vld [vmem:[%s1 + $0x138] sm:$0xff]
    %v72 = vld [vmem:[%s1 + $0x140] sm:$0xff]
    %v73 = vld [vmem:[%s1 + $0x148] sm:$0xff]
    %v74 = vld [vmem:[%s1 + $0x150] sm:$0xff]
    %v75 = vld [vmem:[%s1 + $0x158] sm:$0xff]
    %v76 = vld [vmem:[%s1 + $0x160] sm:$0xff]
    %v77 = vld [vmem:[%s1 + $0x168] sm:$0xff]
    %v78 = vld [vmem:[%s1 + $0x170] sm:$0xff]
    %v79 = vld [vmem:[%s1 + $0x178] sm:$0xff]
    %v80 = vld [vmem:[%s1 + $0x180] sm:$0xff]
    %v81 = vld [vmem:[%s1 + $0x188] sm:$0xff]
    %v82 = vld [vmem:[%s1 + $0x190] sm:$0xff]
    %v83 = vld [vmem:[%s1 + $0x198] sm:$0xff]
    %v84 = vld [vmem:[%s1 + $0x1a0] sm:$0xff]
    %v85 = vld [vmem:[%s1 + $0x1a8] sm:$0xff]
    %v86 = vld [vmem:[%s1 + $0x1b0] sm:$0xff]
    %v87 = vld [vmem:[%s1 + $0x1b8] sm:$0xff]
    %v88 = vld [vmem:[%s1 + $0x1c0] sm:$0xff]
    %v89 = vld [vmem:[%s1 + $0x1c8] sm:$0xff]
    %v90 = vld [vmem:[%s1 + $0x1d0] sm:$0xff]
    %v91 = vld [vmem:[%s1 + $0x1d8] sm:$0xff]
    %v92 = vld [vmem:[%s1 + $0x1e0] sm:$0xff]
    %v93 = vld [vmem:[%s1 + $0x1e8] sm:$0xff]
    %v94 = vld [vmem:[%s1 + $0x1f0] sm:$0xff]
    %v95 = vld [vmem:[%s1 + $0x1f8] sm:$0xff]
    %v96 = vld [vmem:[%s1 + $0x200] sm:$0xff]
    %v97 = vld [vmem:[%s1 + $0x208] sm:$0xff]
    %v98 = vld [vmem:[%s1 + $0x210] sm:$0xff]
    %v99 = vld [vmem:[%s1 + $0x218] sm:$0xff]
    %v100 = vld [vmem:[%s1 + $0x220] sm:$0xff]
    %v101 = vld [vmem:[%s1 + $0x228] sm:$0xff]
    %v102 = vld [vmem:[%s1 + $0x230] sm:$0xff]
    %v103 = vld [vmem:[%s1 + $0x238] sm:$0xff]
    %v104 = vld [vmem:[%s1 + $0x240] sm:$0xff]
    %v105 = vld [vmem:[%s1 + $0x248] sm:$0xff]
    %v106 = vld [vmem:[%s1 + $0x250] sm:$0xff]
    %v107 = vld [vmem:[%s1 + $0x258] sm:$0xff]
    %v108 = vld [vmem:[%s1 + $0x260] sm:$0xff]
    %v109 = vld [vmem:[%s1 + $0x268] sm:$0xff]
    %v110 = vld [vmem:[%s1 + $0x270] sm:$0xff]
    %v111 = vld [vmem:[%s1 + $0x278] sm:$0xff]
    %v112 = vld [vmem:[%s1 + $0x280] sm:$0xff]
    %v113 = vld [vmem:[%s1 + $0x288] sm:$0xff]
    %v114 = vld [vmem:[%s1 + $0x290] sm:$0xff]
    %v115 = vld [vmem:[%s1 + $0x298] sm:$0xff]
    %v116 = vld [vmem:[%s1 + $0x2a0] sm:$0xff]
    %v117 = vld [vmem:[%s1 + $0x2a8] sm:$0xff]
    %v118 = vld [vmem:[%s1 + $0x2b0] sm:$0xff]
    %v119 = vld [vmem:[%s1 + $0x2b8] sm:$0xff]
    %v120 = vld [vmem:[%s1 + $0x2c0] sm:$0xff]
    %v121 = vld [vmem:[%s1 + $0x2c8] sm:$0xff]
    %v122 = vld [vmem:[%s1 + $0x2d0] sm:$0xff]
    %v123 = vld [vmem:[%s1 + $0x2d8] sm:$0xff]
    %v124 = vld [vmem:[%s1 + $0x2e0] sm:$0xff]
    %v125 = vld [vmem:[%s1 + $0x2e8] sm:$0xff]
    %v126 = vld [vmem:[%s1 + $0x2f0] sm:$0xff]
    %v127 = vld [vmem:[%s1 + $0x2f8] sm:$0xff]
    %v128 = vld [vmem:[%s1 + $0x300] sm:$0xff]
    %v129 = vld [vmem:[%s1 + $0x308] sm:$0xff]
    %v130 = vld [vmem:[%s1 + $0x310] sm:$0xff]
    %v131 = vld [vmem:[%s1 + $0x318] sm:$0xff]
    %v132 = vld [vmem:[%s1 + $0x320] sm:$0xff]
    %v133 = vld [vmem:[%s1 + $0x328] sm:$0xff]
    %v134 = vld [vmem:[%s1 + $0x330] sm:$0xff]
    %v135 = vld [vmem:[%s1 + $0x338] sm:$0xff]
    %v136 = vld [vmem:[%s1 + $0x340] sm:$0xff]
    %v137 = vld [vmem:[%s1 + $0x348] sm:$0xff]
    %v138 = vld [vmem:[%s1 + $0x350] sm:$0xff]
    %v139 = vld [vmem:[%s1 + $0x358] sm:$0xff]
    %v140 = vld [vmem:[%s1 + $0x360] sm:$0xff]
    %v141 = vld [vmem:[%s1 + $0x368] sm:$0xff]
    %v142 = vld [vmem:[%s1 + $0x370] sm:$0xff]
    %v143 = vld [vmem:[%s1 + $0x378] sm:$0xff]
    %v144 = vld [vmem:[%s1 + $0x380] sm:$0xff]
    %v145 = vld [vmem:[%s1 + $0x388] sm:$0xff]
    %v146 = vld [vmem:[%s1 + $0x390] sm:$0xff]
    %v147 = vld [vmem:[%s1 + $0x398] sm:$0xff]
    %v148 = vld [vmem:[%s1 + $0x3a0] sm:$0xff]
    %v149 = vld [vmem:[%s1 + $0x3a8] sm:$0xff]
    %v150 = vld [vmem:[%s1 + $0x3b0] sm:$0xff]
    %v151 = vld [vmem:[%s1 + $0x3b8] sm:$0xff]
    %v152 = vld [vmem:[%s1 + $0x3c0] sm:$0xff]
    %v153 = vld [vmem:[%s1 + $0x3c8] sm:$0xff]
    %v154 = vld [vmem:[%s1 + $0x3d0] sm:$0xff]
    %v155 = vld [vmem:[%s1 + $0x3d8] sm:$0xff]
    %v156 = vld [vmem:[%s1 + $0x3e0] sm:$0xff]
    %v157 = vld [vmem:[%s1 + $0x3e8] sm:$0xff]
    %v158 = vld [vmem:[%s1 + $0x3f0] sm:$0xff]
    %v159 = vld [vmem:[%s1 + $0x3f8] sm:$0xff]
    %v160 = vld [vmem:[%s1 + $0x400] sm:$0xff]
    %v161 = vld [vmem:[%s1 + $0x408] sm:$0xff]
    %v162 = vld [vmem:[%s1 + $0x410] sm:$0xff]
    %v163 = vld [vmem:[%s1 + $0x418] sm:$0xff]
    %v164 = vld [vmem:[%s1 + $0x420] sm:$0xff]
    %v165 = vld [vmem:[%s1 + $0x428] sm:$0xff]
    %v166 = vld [vmem:[%s1 + $0x430] sm:$0xff]
    %v167 = vld [vmem:[%s1 + $0x438] sm:$0xff]
    %v168 = vld [vmem:[%s1 + $0x440] sm:$0xff]
    %v169 = vld [vmem:[%s1 + $0x448] sm:$0xff]
    %v170 = vld [vmem:[%s1 + $0x450] sm:$0xff]
    %v171 = vld [vmem:[%s1 + $0x458] sm:$0xff]
    %v172 = vld [vmem:[%s1 + $0x460] sm:$0xff]
    %v173 = vld [vmem:[%s1 + $0x468] sm:$0xff]
    %v174 = vld [vmem:[%s1 + $0x470] sm:$0xff]
    %v175 = vld [vmem:[%s1 + $0x478] sm:$0xff]
    %v176 = vld [vmem:[%s1 + $0x480] sm:$0xff]
    %v177 = vld [vmem:[%s1 + $0x488] sm:$0xff]
    %v178 = vld [vmem:[%s1 + $0x490] sm:$0xff]
    %v179 = vld [vmem:[%s1 + $0x498] sm:$0xff]
    %v180 = vld [vmem:[%s1 + $0x4a0] sm:$0xff]
    %v181 = vld [vmem:[%s1 + $0x4a8] sm:$0xff]
    %v182 = vld [vmem:[%s1 + $0x4b0] sm:$0xff]
    %v183 = vld [vmem:[%s1 + $0x4b8] sm:$0xff]
    %v184 = vld [vmem:[%s1 + $0x4c0] sm:$0xff]
    %v185 = vld [vmem:[%s1 + $0x4c8] sm:$0xff]
    %v186 = vld [vmem:[%s1 + $0x4d0] sm:$0xff]
    %v187 = vld [vmem:[%s1 + $0x4d8] sm:$0xff]
    %v188 = vld [vmem:[%s1 + $0x4e0] sm:$0xff]
    %v189 = vld [vmem:[%s1 + $0x4e8] sm:$0xff]
    %v190 = vld [vmem:[%s1 + $0x4f0] sm:$0xff]
    %v191 = vld [vmem:[%s1 + $0x4f8] sm:$0xff]
    %v192 = vld [vmem:[%s1 + $0x500] sm:$0xff]
    %v193 = vld [vmem:[%s1 + $0x508] sm:$0xff]
    %v194 = vld [vmem:[%s1 + $0x510] sm:$0xff]
    %v195 = vld [vmem:[%s1 + $0x518] sm:$0xff]
    %v196 = vld [vmem:[%s1 + $0x520] sm:$0xff]
    %v197 = vld [vmem:[%s1 + $0x528] sm:$0xff]
    %v198 = vld [vmem:[%s1 + $0x530] sm:$0xff]
    %v199 = vld [vmem:[%s1 + $0x538] sm:$0xff]
    %v200 = vld [vmem:[%s1 + $0x540] sm:$0xff]
    %v201 = vld [vmem:[%s1 + $0x548] sm:$0xff]
    %v202 = vld [vmem:[%s1 + $0x550] sm:$0xff]
    %v203 = vld [vmem:[%s1 + $0x558] sm:$0xff]
    %v204 = vld [vmem:[%s1 + $0x560] sm:$0xff]
    %v205 = vld [vmem:[%s1 + $0x568] sm:$0xff]
    %v206 = vld [vmem:[%s1 + $0x570] sm:$0xff]
    %v207 = vld [vmem:[%s1 + $0x578] sm:$0xff]
    %v208 = vld [vmem:[%s1 + $0x580] sm:$0xff]
    %v209 = vld [vmem:[%s1 + $0x588] sm:$0xff]
    %v210 = vld [vmem:[%s1 + $0x590] sm:$0xff]
    %v211 = vld [vmem:[%s1 + $0x598] sm:$0xff]
    %v212 = vld [vmem:[%s1 + $0x5a0] sm:$0xff]
    %v213 = vld [vmem:[%s1 + $0x5a8] sm:$0xff]
    %v214 = vld [vmem:[%s1 + $0x5b0] sm:$0xff]
    %v215 = vld [vmem:[%s1 + $0x5b8] sm:$0xff]
    %v216 = vld [vmem:[%s1 + $0x5c0] sm:$0xff]
    %v217 = vld [vmem:[%s1 + $0x5c8] sm:$0xff]
    %v218 = vld [vmem:[%s1 + $0x5d0] sm:$0xff]
    %v219 = vld [vmem:[%s1 + $0x5d8] sm:$0xff]
    %v220 = vld [vmem:[%s1 + $0x5e0] sm:$0xff]
    %v221 = vld [vmem:[%s1 + $0x5e8] sm:$0xff]
    %v222 = vld [vmem:[%s1 + $0x5f0] sm:$0xff]
    %v223 = vld [vmem:[%s1 + $0x5f8] sm:$0xff]
    %v224 = vld [vmem:[%s1 + $0x600] sm:$0xff]
    %v225 = vld [vmem:[%s1 + $0x608] sm:$0xff]
    %v226 = vld [vmem:[%s1 + $0x610] sm:$0xff]
    %v227 = vld [vmem:[%s1 + $0x618] sm:$0xff]
    %v228 = vld [vmem:[%s1 + $0x620] sm:$0xff]
    %v229 = vld [vmem:[%s1 + $0x628] sm:$0xff]
    %v230 = vld [vmem:[%s1 + $0x630] sm:$0xff]
    %v231 = vld [vmem:[%s1 + $0x638] sm:$0xff]
    %v232 = vld [vmem:[%s1 + $0x640] sm:$0xff]
    %v233 = vld [vmem:[%s1 + $0x648] sm:$0xff]
    %v234 = vld [vmem:[%s1 + $0x650] sm:$0xff]
    %v235 = vld [vmem:[%s1 + $0x658] sm:$0xff]
    %v236 = vld [vmem:[%s1 + $0x660] sm:$0xff]
    %v237 = vld [vmem:[%s1 + $0x668] sm:$0xff]
    %v238 = vld [vmem:[%s1 + $0x670] sm:$0xff]
    %v239 = vld [vmem:[%s1 + $0x678] sm:$0xff]
    %v240 = vld [vmem:[%s1 + $0x680] sm:$0xff]
    %v241 = vld [vmem:[%s1 + $0x688] sm:$0xff]
    %v242 = vld [vmem:[%s1 + $0x690] sm:$0xff]
    %v243 = vld [vmem:[%s1 + $0x698] sm:$0xff]
    %v244 = vld [vmem:[%s1 + $0x6a0] sm:$0xff]
    %v245 = vld [vmem:[%s1 + $0x6a8] sm:$0xff]
    %v246 = vld [vmem:[%s1 + $0x6b0] sm:$0xff]
    %v247 = vld [vmem:[%s1 + $0x6b8] sm:$0xff]
    %v248 = vld [vmem:[%s1 + $0x6c0] sm:$0xff]
    %v249 = vld [vmem:[%s1 + $0x6c8] sm:$0xff]
    %v250 = vld [vmem:[%s1 + $0x6d0] sm:$0xff]
    %v251 = vld [vmem:[%s1 + $0x6d8] sm:$0xff]
    %v252 = vld [vmem:[%s1 + $0x6e0] sm:$0xff]
    %v253 = vld [vmem:[%s1 + $0x6e8] sm:$0xff]
    %v254 = vld [vmem:[%s1 + $0x6f0] sm:$0xff]
    %v255 = vld [vmem:[%s1 + $0x6f8] sm:$0xff]
    %v256 = vld [vmem:[%s1 + $0x700] sm:$0xff]
    %v257 = vld [vmem:[%s1 + $0x708] sm:$0xff]
    %v258 = vld [vmem:[%s1 + $0x710] sm:$0xff]
    %v259 = vld [vmem:[%s1 + $0x718] sm:$0xff]
    %v260 = vld [vmem:[%s1 + $0x720] sm:$0xff]
    %v261 = vld [vmem:[%s1 + $0x728] sm:$0xff]
    %v262 = vld [vmem:[%s1 + $0x730] sm:$0xff]
    %v263 = vld [vmem:[%s1 + $0x738] sm:$0xff]
    %v264 = vld [vmem:[%s1 + $0x740] sm:$0xff]
    %v265 = vld [vmem:[%s1 + $0x748] sm:$0xff]
    %v266 = vld [vmem:[%s1 + $0x750] sm:$0xff]
    %v267 = vld [vmem:[%s1 + $0x758] sm:$0xff]
    %v268 = vld [vmem:[%s1 + $0x760] sm:$0xff]
    %v269 = vld [vmem:[%s1 + $0x768] sm:$0xff]
    %v270 = vld [vmem:[%s1 + $0x770] sm:$0xff]
    %v271 = vld [vmem:[%s1 + $0x778] sm:$0xff]
    %v272 = vld [vmem:[%s1 + $0x780] sm:$0xff]
    %v273 = vld [vmem:[%s1 + $0x788] sm:$0xff]
    %v274 = vld [vmem:[%s1 + $0x790] sm:$0xff]
    %v275 = vld [vmem:[%s1 + $0x798] sm:$0xff]
    %v276 = vld [vmem:[%s1 + $0x7a0] sm:$0xff]
    %v277 = vld [vmem:[%s1 + $0x7a8] sm:$0xff]
    %v278 = vld [vmem:[%s1 + $0x7b0] sm:$0xff]
    %v279 = vld [vmem:[%s1 + $0x7b8] sm:$0xff]
    %v280 = vld [vmem:[%s1 + $0x7c0] sm:$0xff]
    %v281 = vld [vmem:[%s1 + $0x7c8] sm:$0xff]
    %v282 = vld [vmem:[%s1 + $0x7d0] sm:$0xff]
    %v283 = vld [vmem:[%s1 + $0x7d8] sm:$0xff]
    %v284 = vld [vmem:[%s1 + $0x7e0] sm:$0xff]
    %v285 = vld [vmem:[%s1 + $0x7e8] sm:$0xff]
    %v286 = vld [vmem:[%s1 + $0x7f0] sm:$0xff]
    %v287 = vld [vmem:[%s1 + $0x7f8] sm:$0xff]
    %v288 = vld [vmem:[%s1 + $0x800] sm:$0xff]
    %v289 = vld [vmem:[%s1 + $0x808] sm:$0xff]
    %v290 = vld [vmem:[%s1 + $0x810] sm:$0xff]
    %v291 = vld [vmem:[%s1 + $0x818] sm:$0xff]
    %v292 = vld [vmem:[%s1 + $0x820] sm:$0xff]
    %v293 = vld [vmem:[%s1 + $0x828] sm:$0xff]
    %v294 = vld [vmem:[%s1 + $0x830] sm:$0xff]
    %v295 = vld [vmem:[%s1 + $0x838] sm:$0xff]
    %v296 = vld [vmem:[%s1 + $0x840] sm:$0xff]
    %v297 = vld [vmem:[%s1 + $0x848] sm:$0xff]
    %v298 = vld [vmem:[%s1 + $0x850] sm:$0xff]
    %v299 = vld [vmem:[%s1 + $0x858] sm:$0xff]
    %v300 = vld [vmem:[%s1 + $0x860] sm:$0xff]
    %v301 = vld [vmem:[%s1 + $0x868] sm:$0xff]
    %v302 = vld [vmem:[%s1 + $0x870] sm:$0xff]
    %v303 = vld [vmem:[%s1 + $0x878] sm:$0xff]
    %v304 = vld [vmem:[%s1 + $0x880] sm:$0xff]
    %v305 = vld [vmem:[%s1 + $0x888] sm:$0xff]
    %v306 = vld [vmem:[%s1 + $0x890] sm:$0xff]
    %v307 = vld [vmem:[%s1 + $0x898] sm:$0xff]
    %v308 = vld [vmem:[%s1 + $0x8a0] sm:$0xff]
    %v309 = vld [vmem:[%s1 + $0x8a8] sm:$0xff]
    %v310 = vld [vmem:[%s1 + $0x8b0] sm:$0xff]
    %v311 = vld [vmem:[%s1 + $0x8b8] sm:$0xff]
    %v312 = vld [vmem:[%s1 + $0x8c0] sm:$0xff]
    %v313 = vld [vmem:[%s1 + $0x8c8] sm:$0xff]
    %v314 = vld [vmem:[%s1 + $0x8d0] sm:$0xff]
    %v315 = vld [vmem:[%s1 + $0x8d8] sm:$0xff]
    %v316 = vld [vmem:[%s1 + $0x8e0] sm:$0xff]
    %v317 = vld [vmem:[%s1 + $0x8e8] sm:$0xff]
    %v318 = vld [vmem:[%s1 + $0x8f0] sm:$0xff]
    %v319 = vld [vmem:[%s1 + $0x8f8] sm:$0xff]
    %v320 = vld [vmem:[%s1 + $0x900] sm:$0xff]
    %v321 = vld [vmem:[%s1 + $0x908] sm:$0xff]
    %v322 = vld [vmem:[%s1 + $0x910] sm:$0xff]
    %v323 = vld [vmem:[%s1 + $0x918] sm:$0xff]
    %v324 = vld [vmem:[%s1 + $0x920] sm:$0xff]
    %v325 = vld [vmem:[%s1 + $0x928] sm:$0xff]
    %v326 = vld [vmem:[%s1 + $0x930] sm:$0xff]
    %v327 = vld [vmem:[%s1 + $0x938] sm:$0xff]
    %v328 = vld [vmem:[%s1 + $0x940] sm:$0xff]
    %v329 = vld [vmem:[%s1 + $0x948] sm:$0xff]
    %v330 = vld [vmem:[%s1 + $0x950] sm:$0xff]
    %v331 = vld [vmem:[%s1 + $0x958] sm:$0xff]
    %v332 = vld [vmem:[%s1 + $0x960] sm:$0xff]
    %v333 = vld [vmem:[%s1 + $0x968] sm:$0xff]
    %v334 = vld [vmem:[%s1 + $0x970] sm:$0xff]
    %v335 = vld [vmem:[%s1 + $0x978] sm:$0xff]
    %v336 = vld [vmem:[%s1 + $0x980] sm:$0xff]
    %v337 = vld [vmem:[%s1 + $0x988] sm:$0xff]
    %v338 = vld [vmem:[%s1 + $0x990] sm:$0xff]
    %v339 = vld [vmem:[%s1 + $0x998] sm:$0xff]
    %v340 = vld [vmem:[%s1 + $0x9a0] sm:$0xff]
    %v341 = vld [vmem:[%s1 + $0x9a8] sm:$0xff]
    %v342 = vld [vmem:[%s1 + $0x9b0] sm:$0xff]
    %v343 = vld [vmem:[%s1 + $0x9b8] sm:$0xff]
    %v344 = vld [vmem:[%s1 + $0x9c0] sm:$0xff]
    %v345 = vld [vmem:[%s1 + $0x9c8] sm:$0xff]
    %v346 = vld [vmem:[%s1 + $0x9d0] sm:$0xff]
    %v347 = vld [vmem:[%s1 + $0x9d8] sm:$0xff]
    %v348 = vld [vmem:[%s1 + $0x9e0] sm:$0xff]
    %v349 = vld [vmem:[%s1 + $0x9e8] sm:$0xff]
    %v350 = vld [vmem:[%s1 + $0x9f0] sm:$0xff]
    %v351 = vld [vmem:[%s1 + $0x9f8] sm:$0xff]
    %v352 = vld [vmem:[%s1 + $0xa00] sm:$0xff]
    %v353 = vld [vmem:[%s1 + $0xa08] sm:$0xff]
    %v354 = vld [vmem:[%s1 + $0xa10] sm:$0xff]
    %v355 = vld [vmem:[%s1 + $0xa18] sm:$0xff]
    %v356 = vld [vmem:[%s1 + $0xa20] sm:$0xff]
    %v357 = vld [vmem:[%s1 + $0xa28] sm:$0xff]
    %v358 = vld [vmem:[%s1 + $0xa30] sm:$0xff]
    %v359 = vld [vmem:[%s1 + $0xa38] sm:$0xff]
    %v360 = vld [vmem:[%s1 + $0xa40] sm:$0xff]
    %v361 = vld [vmem:[%s1 + $0xa48] sm:$0xff]
    %v362 = vld [vmem:[%s1 + $0xa50] sm:$0xff]
    %v363 = vld [vmem:[%s1 + $0xa58] sm:$0xff]
    %v364 = vld [vmem:[%s1 + $0xa60] sm:$0xff]
    %v365 = vld [vmem:[%s1 + $0xa68] sm:$0xff]
    %v366 = vld [vmem:[%s1 + $0xa70] sm:$0xff]
    %v367 = vld [vmem:[%s1 + $0xa78] sm:$0xff]
    %v368 = vld [vmem:[%s1 + $0xa80] sm:$0xff]
    %v369 = vld [vmem:[%s1 + $0xa88] sm:$0xff]
    %v370 = vld [vmem:[%s1 + $0xa90] sm:$0xff]
    %v371 = vld [vmem:[%s1 + $0xa98] sm:$0xff]
    %v372 = vld [vmem:[%s1 + $0xaa0] sm:$0xff]
    %v373 = vld [vmem:[%s1 + $0xaa8] sm:$0xff]
    %v374 = vld [vmem:[%s1 + $0xab0] sm:$0xff]
    %v375 = vld [vmem:[%s1 + $0xab8] sm:$0xff]
    %v376 = vld [vmem:[%s1 + $0xac0] sm:$0xff]
    %v377 = vld [vmem:[%s1 + $0xac8] sm:$0xff]
    %v378 = vld [vmem:[%s1 + $0xad0] sm:$0xff]
    %v379 = vld [vmem:[%s1 + $0xad8] sm:$0xff]
    %v380 = vld [vmem:[%s1 + $0xae0] sm:$0xff]
    %v381 = vld [vmem:[%s1 + $0xae8] sm:$0xff]
    %v382 = vld [vmem:[%s1 + $0xaf0] sm:$0xff]
    %v383 = vld [vmem:[%s1 + $0xaf8] sm:$0xff]
    %v384 = vld [vmem:[%s1 + $0xb00] sm:$0xff]
    %v385 = vld [vmem:[%s1 + $0xb08] sm:$0xff]
    %v386 = vld [vmem:[%s1 + $0xb10] sm:$0xff]
    %v387 = vld [vmem:[%s1 + $0xb18] sm:$0xff]
    %v388 = vld [vmem:[%s1 + $0xb20] sm:$0xff]
    %v389 = vld [vmem:[%s1 + $0xb28] sm:$0xff]
    %v390 = vld [vmem:[%s1 + $0xb30] sm:$0xff]
    %v391 = vld [vmem:[%s1 + $0xb38] sm:$0xff]
    %v392 = vld [vmem:[%s1 + $0xb40] sm:$0xff]
    %v393 = vld [vmem:[%s1 + $0xb48] sm:$0xff]
    %v394 = vld [vmem:[%s1 + $0xb50] sm:$0xff]
    %v395 = vld [vmem:[%s1 + $0xb58] sm:$0xff]
    %v396 = vld [vmem:[%s1 + $0xb60] sm:$0xff]
    %v397 = vld [vmem:[%s1 + $0xb68] sm:$0xff]
    %v398 = vld [vmem:[%s1 + $0xb70] sm:$0xff]
    %v399 = vld [vmem:[%s1 + $0xb78] sm:$0xff]
    %v400 = vld [vmem:[%s1 + $0xb80] sm:$0xff]
    %v401 = vld [vmem:[%s1 + $0xb88] sm:$0xff]
    %v402 = vld [vmem:[%s1 + $0xb90] sm:$0xff]
    %v403 = vld [vmem:[%s1 + $0xb98] sm:$0xff]
    %v404 = vld [vmem:[%s1 + $0xba0] sm:$0xff]
    %v405 = vld [vmem:[%s1 + $0xba8] sm:$0xff]
    %v406 = vld [vmem:[%s1 + $0xbb0] sm:$0xff]
    %v407 = vld [vmem:[%s1 + $0xbb8] sm:$0xff]
    %v408 = vld [vmem:[%s1 + $0xbc0] sm:$0xff]
    %v409 = vld [vmem:[%s1 + $0xbc8] sm:$0xff]
    %v410 = vld [vmem:[%s1 + $0xbd0] sm:$0xff]
    %v411 = vld [vmem:[%s1 + $0xbd8] sm:$0xff]
    %v412 = vld [vmem:[%s1 + $0xbe0] sm:$0xff]
    %v413 = vld [vmem:[%s1 + $0xbe8] sm:$0xff]
    %v414 = vld [vmem:[%s1 + $0xbf0] sm:$0xff]
    %v415 = vld [vmem:[%s1 + $0xbf8] sm:$0xff]
    %v416 = vld [vmem:[%s1 + $0xc00] sm:$0xff]
    %v417 = vld [vmem:[%s1 + $0xc08] sm:$0xff]
    %v418 = vld [vmem:[%s1 + $0xc10] sm:$0xff]
    %v419 = vld [vmem:[%s1 + $0xc18] sm:$0xff]
    %v420 = vld [vmem:[%s1 + $0xc20] sm:$0xff]
    %v421 = vld [vmem:[%s1 + $0xc28] sm:$0xff]
    %v422 = vld [vmem:[%s1 + $0xc30] sm:$0xff]
    %v423 = vld [vmem:[%s1 + $0xc38] sm:$0xff]
    %v424 = vld [vmem:[%s1 + $0xc40] sm:$0xff]
    %v425 = vld [vmem:[%s1 + $0xc48] sm:$0xff]
    %v426 = vld [vmem:[%s1 + $0xc50] sm:$0xff]
    %v427 = vld [vmem:[%s1 + $0xc58] sm:$0xff]
    %v428 = vld [vmem:[%s1 + $0xc60] sm:$0xff]
    %v429 = vld [vmem:[%s1 + $0xc68] sm:$0xff]
    %v430 = vld [vmem:[%s1 + $0xc70] sm:$0xff]
    %v431 = vld [vmem:[%s1 + $0xc78] sm:$0xff]
    %v432 = vld [vmem:[%s2] sm:$0x3]
    %v434 = vlaneseq
    %v435 = vshrl.u32 %v434, 7
    %v436 = vsub.s32 0, %v435
    %v437 = vrot.slane %v432, %v436
    %v438 = vlaneseq
    %v439 = vshrl.u32 %v438, 7
    %v440 = vsub.s32 1, %v439
    %v441 = vrot.slane %v432, %v440
    %v448 = vcombine.high %v28, %v28
    %v450 = vunpack.c.l.s4 1966171168
    %v451 = vunpack.c.0.s8 %v450
    %v452 = vlaneseq
    %v453 = vshrl.u32 %v452, 7
    %v454 = vsub.s32 %v451, %v453
    %v455 = vrot.slane %v28, %v454
    %v457 = vunpack.c.l.s4 1966171168
    %v458 = vunpack.c.0.s8 %v457
    %v459 = vlaneseq
    %v460 = vshrl.u32 %v459, 7
    %v461 = vsub.s32 %v458, %v460
    %v462 = vrot.slane %v448, %v461
    %v463 = vcombine.high %v455, %v455
    %v464 = vcombine.high %v462, %v462
    %v466 = vunpack.c.l.s4 1966171168
    %v467 = vunpack.c.0.s8 %v466
    %v468 = vlaneseq
    %v469 = vshrl.u32 %v468, 7
    %v470 = vsub.s32 %v467, %v469
    %v471 = vrot.slane %v455, %v470
    %v473 = vunpack.c.l.s4 1966171168
    %v474 = vunpack.c.0.s8 %v473
    %v475 = vlaneseq
    %v476 = vshrl.u32 %v475, 7
    %v477 = vsub.s32 %v474, %v476
    %v478 = vrot.slane %v462, %v477
    %v480 = vunpack.c.l.s4 1966171168
    %v481 = vunpack.c.0.s8 %v480
    %v482 = vlaneseq
    %v483 = vshrl.u32 %v482, 7
    %v484 = vsub.s32 %v481, %v483
    %v485 = vrot.slane %v463, %v484
    %v487 = vunpack.c.l.s4 1966171168
    %v488 = vunpack.c.0.s8 %v487
    %v489 = vlaneseq
    %v490 = vshrl.u32 %v489, 7
    %v491 = vsub.s32 %v488, %v490
    %v492 = vrot.slane %v464, %v491
    %v493 = vcombine.high %v471, %v471
    %v494 = vcombine.high %v478, %v478
    %v495 = vcombine.high %v485, %v485
    %v496 = vcombine.high %v492, %v492
    %v497 = vcombine.high %v29, %v29
    %v499 = vunpack.c.l.s4 1966171168
    %v500 = vunpack.c.0.s8 %v499
    %v501 = vlaneseq
    %v502 = vshrl.u32 %v501, 7
    %v503 = vsub.s32 %v500, %v502
    %v504 = vrot.slane %v29, %v503
    %v506 = vunpack.c.l.s4 1966171168
    %v507 = vunpack.c.0.s8 %v506
    %v508 = vlaneseq
    %v509 = vshrl.u32 %v508, 7
    %v510 = vsub.s32 %v507, %v509
    %v511 = vrot.slane %v497, %v510
    %v512 = vcombine.high %v504, %v504
    %v513 = vcombine.high %v511, %v511
    %v515 = vunpack.c.l.s4 1966171168
    %v516 = vunpack.c.0.s8 %v515
    %v517 = vlaneseq
    %v518 = vshrl.u32 %v517, 7
    %v519 = vsub.s32 %v516, %v518
    %v520 = vrot.slane %v504, %v519
    %v522 = vunpack.c.l.s4 1966171168
    %v523 = vunpack.c.0.s8 %v522
    %v524 = vlaneseq
    %v525 = vshrl.u32 %v524, 7
    %v526 = vsub.s32 %v523, %v525
    %v527 = vrot.slane %v511, %v526
    %v529 = vunpack.c.l.s4 1966171168
    %v530 = vunpack.c.0.s8 %v529
    %v531 = vlaneseq
    %v532 = vshrl.u32 %v531, 7
    %v533 = vsub.s32 %v530, %v532
    %v534 = vrot.slane %v512, %v533
    %v536 = vunpack.c.l.s4 1966171168
    %v537 = vunpack.c.0.s8 %v536
    %v538 = vlaneseq
    %v539 = vshrl.u32 %v538, 7
    %v540 = vsub.s32 %v537, %v539
    %v541 = vrot.slane %v513, %v540
    %v542 = vcombine.high %v520, %v520
    %v543 = vcombine.high %v527, %v527
    %v544 = vcombine.high %v534, %v534
    %v545 = vcombine.high %v541, %v541
    %v546 = vcombine.high %v30, %v30
    %v548 = vunpack.c.l.s4 1966171168
    %v549 = vunpack.c.0.s8 %v548
    %v550 = vlaneseq
    %v551 = vshrl.u32 %v550, 7
    %v552 = vsub.s32 %v549, %v551
    %v553 = vrot.slane %v30, %v552
    %v555 = vunpack.c.l.s4 1966171168
    %v556 = vunpack.c.0.s8 %v555
    %v557 = vlaneseq
    %v558 = vshrl.u32 %v557, 7
    %v559 = vsub.s32 %v556, %v558
    %v560 = vrot.slane %v546, %v559
    %v561 = vcombine.high %v553, %v553
    %v562 = vcombine.high %v560, %v560
    %v564 = vunpack.c.l.s4 1966171168
    %v565 = vunpack.c.0.s8 %v564
    %v566 = vlaneseq
    %v567 = vshrl.u32 %v566, 7
    %v568 = vsub.s32 %v565, %v567
    %v569 = vrot.slane %v553, %v568
    %v571 = vunpack.c.l.s4 1966171168
    %v572 = vunpack.c.0.s8 %v571
    %v573 = vlaneseq
    %v574 = vshrl.u32 %v573, 7
    %v575 = vsub.s32 %v572, %v574
    %v576 = vrot.slane %v560, %v575
    %v578 = vunpack.c.l.s4 1966171168
    %v579 = vunpack.c.0.s8 %v578
    %v580 = vlaneseq
    %v581 = vshrl.u32 %v580, 7
    %v582 = vsub.s32 %v579, %v581
    %v583 = vrot.slane %v561, %v582
    %v585 = vunpack.c.l.s4 1966171168
    %v586 = vunpack.c.0.s8 %v585
    %v587 = vlaneseq
    %v588 = vshrl.u32 %v587, 7
    %v589 = vsub.s32 %v586, %v588
    %v590 = vrot.slane %v562, %v589
    %v591 = vcombine.high %v569, %v569
    %v592 = vcombine.high %v576, %v576
    %v593 = vcombine.high %v583, %v583
    %v594 = vcombine.high %v590, %v590
    %v596 = vunpack.c.l.s4 1966171168
    %v597 = vunpack.c.0.s8 %v596
    %v598 = vlaneseq
    %v599 = vshrl.u32 %v598, 7
    %v600 = vsub.s32 %v597, %v599
    %v601 = vrot.slane %v31, %v600
    %v603 = vunpack.c.l.s4 1966171168
    %v604 = vunpack.c.0.s8 %v603
    %v605 = vlaneseq
    %v606 = vshrl.u32 %v605, 7
    %v607 = vsub.s32 %v604, %v606
    %v608 = vrot.slane %v601, %v607
    %v1034 = vunpack.c.l.b16 %v32
    %v1035 = vunpack.c.h.b16 %v32
    %v1036 = vunpack.c.l.b16 %v33
    %v1037 = vunpack.c.h.b16 %v33
    %v1038 = vunpack.c.l.b16 %v34
    %v1039 = vunpack.c.h.b16 %v34
    %v1040 = vunpack.c.l.b16 %v35
    %v1041 = vunpack.c.h.b16 %v35
    %v1042 = vunpack.c.l.b16 %v36
    %v1043 = vunpack.c.h.b16 %v36
    %v1044 = vunpack.c.l.b16 %v37
    %v1045 = vunpack.c.h.b16 %v37
    %v1046 = vunpack.c.l.b16 %v38
    %v1047 = vunpack.c.h.b16 %v38
    %v1048 = vunpack.c.l.b16 %v39
    %v1049 = vunpack.c.h.b16 %v39
    %v1050 = vunpack.c.l.b16 %v40
    %v1051 = vunpack.c.h.b16 %v40
    %v1052 = vunpack.c.l.b16 %v41
    %v1053 = vunpack.c.h.b16 %v41
    %v1054 = vunpack.c.l.b16 %v42
    %v1055 = vunpack.c.h.b16 %v42
    %v1056 = vunpack.c.l.b16 %v43
    %v1057 = vunpack.c.h.b16 %v43
    %v1058 = vunpack.c.l.b16 %v44
    %v1059 = vunpack.c.h.b16 %v44
    %v1060 = vunpack.c.l.b16 %v45
    %v1061 = vunpack.c.h.b16 %v45
    %v1062 = vunpack.c.l.b16 %v46
    %v1063 = vunpack.c.h.b16 %v46
    %v1064 = vunpack.c.l.b16 %v47
    %v1065 = vunpack.c.h.b16 %v47
    %v1066 = vunpack.c.l.b16 %v48
    %v1067 = vunpack.c.h.b16 %v48
    %v1068 = vunpack.c.l.b16 %v49
    %v1069 = vunpack.c.h.b16 %v49
    %v1070 = vunpack.c.l.b16 %v50
    %v1071 = vunpack.c.h.b16 %v50
    %v1072 = vunpack.c.l.b16 %v51
    %v1073 = vunpack.c.h.b16 %v51
    %v1074 = vunpack.c.l.b16 %v52
    %v1075 = vunpack.c.h.b16 %v52
    %v1076 = vunpack.c.l.b16 %v53
    %v1077 = vunpack.c.h.b16 %v53
    %v1078 = vunpack.c.l.b16 %v54
    %v1079 = vunpack.c.h.b16 %v54
    %v1080 = vunpack.c.l.b16 %v55
    %v1081 = vunpack.c.h.b16 %v55
    %v1082 = vunpack.c.l.b16 %v56
    %v1083 = vunpack.c.h.b16 %v56
    %v1084 = vunpack.c.l.b16 %v57
    %v1085 = vunpack.c.h.b16 %v57
    %v1086 = vunpack.c.l.b16 %v58
    %v1087 = vunpack.c.h.b16 %v58
    %v1088 = vunpack.c.l.b16 %v59
    %v1089 = vunpack.c.h.b16 %v59
    %v1090 = vunpack.c.l.b16 %v60
    %v1091 = vunpack.c.h.b16 %v60
    %v1092 = vunpack.c.l.b16 %v61
    %v1093 = vunpack.c.h.b16 %v61
    %v1094 = vunpack.c.l.b16 %v62
    %v1095 = vunpack.c.h.b16 %v62
    %v1096 = vunpack.c.l.b16 %v63
    %v1097 = vunpack.c.h.b16 %v63
    %v1098 = vunpack.c.l.b16 %v64
    %v1099 = vunpack.c.h.b16 %v64
    %v1100 = vunpack.c.l.b16 %v65
    %v1101 = vunpack.c.h.b16 %v65
    %v1102 = vunpack.c.l.b16 %v66
    %v1103 = vunpack.c.h.b16 %v66
    %v1104 = vunpack.c.l.b16 %v67
    %v1105 = vunpack.c.h.b16 %v67
    %v1106 = vunpack.c.l.b16 %v68
    %v1107 = vunpack.c.h.b16 %v68
    %v1108 = vunpack.c.l.b16 %v69
    %v1109 = vunpack.c.h.b16 %v69
    %v1110 = vunpack.c.l.b16 %v70
    %v1111 = vunpack.c.h.b16 %v70
    %v1112 = vunpack.c.l.b16 %v71
    %v1113 = vunpack.c.h.b16 %v71
    %v1114 = vunpack.c.l.b16 %v72
    %v1115 = vunpack.c.h.b16 %v72
    %v1116 = vunpack.c.l.b16 %v73
    %v1117 = vunpack.c.h.b16 %v73
    %v1118 = vunpack.c.l.b16 %v74
    %v1119 = vunpack.c.h.b16 %v74
    %v1120 = vunpack.c.l.b16 %v75
    %v1121 = vunpack.c.h.b16 %v75
    %v1122 = vunpack.c.l.b16 %v76
    %v1123 = vunpack.c.h.b16 %v76
    %v1124 = vunpack.c.l.b16 %v77
    %v1125 = vunpack.c.h.b16 %v77
    %v1126 = vunpack.c.l.b16 %v78
    %v1127 = vunpack.c.h.b16 %v78
    %v1128 = vunpack.c.l.b16 %v79
    %v1129 = vunpack.c.h.b16 %v79
    %v1130 = vunpack.c.l.b16 %v80
    %v1131 = vunpack.c.h.b16 %v80
    %v1132 = vunpack.c.l.b16 %v81
    %v1133 = vunpack.c.h.b16 %v81
    %v1134 = vunpack.c.l.b16 %v82
    %v1135 = vunpack.c.h.b16 %v82
    %v1136 = vunpack.c.l.b16 %v83
    %v1137 = vunpack.c.h.b16 %v83
    %v1138 = vunpack.c.l.b16 %v84
    %v1139 = vunpack.c.h.b16 %v84
    %v1140 = vunpack.c.l.b16 %v85
    %v1141 = vunpack.c.h.b16 %v85
    %v1142 = vunpack.c.l.b16 %v86
    %v1143 = vunpack.c.h.b16 %v86
    %v1144 = vunpack.c.l.b16 %v87
    %v1145 = vunpack.c.h.b16 %v87
    %v1146 = vunpack.c.l.b16 %v88
    %v1147 = vunpack.c.h.b16 %v88
    %v1148 = vunpack.c.l.b16 %v89
    %v1149 = vunpack.c.h.b16 %v89
    %v1150 = vunpack.c.l.b16 %v90
    %v1151 = vunpack.c.h.b16 %v90
    %v1152 = vunpack.c.l.b16 %v91
    %v1153 = vunpack.c.h.b16 %v91
    %v1154 = vunpack.c.l.b16 %v92
    %v1155 = vunpack.c.h.b16 %v92
    %v1156 = vunpack.c.l.b16 %v93
    %v1157 = vunpack.c.h.b16 %v93
    %v1158 = vunpack.c.l.b16 %v94
    %v1159 = vunpack.c.h.b16 %v94
    %v1160 = vunpack.c.l.b16 %v95
    %v1161 = vunpack.c.h.b16 %v95
    %v1162 = vunpack.c.l.b16 %v96
    %v1163 = vunpack.c.h.b16 %v96
    %v1164 = vunpack.c.l.b16 %v97
    %v1165 = vunpack.c.h.b16 %v97
    %v1166 = vunpack.c.l.b16 %v98
    %v1167 = vunpack.c.h.b16 %v98
    %v1168 = vunpack.c.l.b16 %v99
    %v1169 = vunpack.c.h.b16 %v99
    %v1170 = vunpack.c.l.b16 %v100
    %v1171 = vunpack.c.h.b16 %v100
    %v1172 = vunpack.c.l.b16 %v101
    %v1173 = vunpack.c.h.b16 %v101
    %v1174 = vunpack.c.l.b16 %v102
    %v1175 = vunpack.c.h.b16 %v102
    %v1176 = vunpack.c.l.b16 %v103
    %v1177 = vunpack.c.h.b16 %v103
    %v1178 = vunpack.c.l.b16 %v104
    %v1179 = vunpack.c.h.b16 %v104
    %v1180 = vunpack.c.l.b16 %v105
    %v1181 = vunpack.c.h.b16 %v105
    %v1182 = vunpack.c.l.b16 %v106
    %v1183 = vunpack.c.h.b16 %v106
    %v1184 = vunpack.c.l.b16 %v107
    %v1185 = vunpack.c.h.b16 %v107
    %v1186 = vunpack.c.l.b16 %v108
    %v1187 = vunpack.c.h.b16 %v108
    %v1188 = vunpack.c.l.b16 %v109
    %v1189 = vunpack.c.h.b16 %v109
    %v1190 = vunpack.c.l.b16 %v110
    %v1191 = vunpack.c.h.b16 %v110
    %v1192 = vunpack.c.l.b16 %v111
    %v1193 = vunpack.c.h.b16 %v111
    %v1194 = vunpack.c.l.b16 %v112
    %v1195 = vunpack.c.h.b16 %v112
    %v1196 = vunpack.c.l.b16 %v113
    %v1197 = vunpack.c.h.b16 %v113
    %v1198 = vunpack.c.l.b16 %v114
    %v1199 = vunpack.c.h.b16 %v114
    %v1200 = vunpack.c.l.b16 %v115
    %v1201 = vunpack.c.h.b16 %v115
    %v1202 = vunpack.c.l.b16 %v116
    %v1203 = vunpack.c.h.b16 %v116
    %v1204 = vunpack.c.l.b16 %v117
    %v1205 = vunpack.c.h.b16 %v117
    %v1206 = vunpack.c.l.b16 %v118
    %v1207 = vunpack.c.h.b16 %v118
    %v1208 = vunpack.c.l.b16 %v119
    %v1209 = vunpack.c.h.b16 %v119
    %v1210 = vunpack.c.l.b16 %v120
    %v1211 = vunpack.c.h.b16 %v120
    %v1212 = vunpack.c.l.b16 %v121
    %v1213 = vunpack.c.h.b16 %v121
    %v1214 = vunpack.c.l.b16 %v122
    %v1215 = vunpack.c.h.b16 %v122
    %v1216 = vunpack.c.l.b16 %v123
    %v1217 = vunpack.c.h.b16 %v123
    %v1218 = vunpack.c.l.b16 %v124
    %v1219 = vunpack.c.h.b16 %v124
    %v1220 = vunpack.c.l.b16 %v125
    %v1221 = vunpack.c.h.b16 %v125
    %v1222 = vunpack.c.l.b16 %v126
    %v1223 = vunpack.c.h.b16 %v126
    %v1224 = vunpack.c.l.b16 %v127
    %v1225 = vunpack.c.h.b16 %v127
    %v1226 = vunpack.c.l.b16 %v128
    %v1227 = vunpack.c.h.b16 %v128
    %v1228 = vunpack.c.l.b16 %v129
    %v1229 = vunpack.c.h.b16 %v129
    %v1230 = vunpack.c.l.b16 %v130
    %v1231 = vunpack.c.h.b16 %v130
    %v1232 = vunpack.c.l.b16 %v131
    %v1233 = vunpack.c.h.b16 %v131
    %v1234 = vunpack.c.l.b16 %v132
    %v1235 = vunpack.c.h.b16 %v132
    %v1236 = vunpack.c.l.b16 %v133
    %v1237 = vunpack.c.h.b16 %v133
    %v1238 = vunpack.c.l.b16 %v134
    %v1239 = vunpack.c.h.b16 %v134
    %v1240 = vunpack.c.l.b16 %v135
    %v1241 = vunpack.c.h.b16 %v135
    %v1242 = vunpack.c.l.b16 %v136
    %v1243 = vunpack.c.h.b16 %v136
    %v1244 = vunpack.c.l.b16 %v137
    %v1245 = vunpack.c.h.b16 %v137
    %v1246 = vunpack.c.l.b16 %v138
    %v1247 = vunpack.c.h.b16 %v138
    %v1248 = vunpack.c.l.b16 %v139
    %v1249 = vunpack.c.h.b16 %v139
    %v1250 = vunpack.c.l.b16 %v140
    %v1251 = vunpack.c.h.b16 %v140
    %v1252 = vunpack.c.l.b16 %v141
    %v1253 = vunpack.c.h.b16 %v141
    %v1254 = vunpack.c.l.b16 %v142
    %v1255 = vunpack.c.h.b16 %v142
    %v1256 = vunpack.c.l.b16 %v143
    %v1257 = vunpack.c.h.b16 %v143
    %v1258 = vunpack.c.l.b16 %v144
    %v1259 = vunpack.c.h.b16 %v144
    %v1260 = vunpack.c.l.b16 %v145
    %v1261 = vunpack.c.h.b16 %v145
    %v1262 = vunpack.c.l.b16 %v146
    %v1263 = vunpack.c.h.b16 %v146
    %v1264 = vunpack.c.l.b16 %v147
    %v1265 = vunpack.c.h.b16 %v147
    %v1266 = vunpack.c.l.b16 %v148
    %v1267 = vunpack.c.h.b16 %v148
    %v1268 = vunpack.c.l.b16 %v149
    %v1269 = vunpack.c.h.b16 %v149
    %v1270 = vunpack.c.l.b16 %v150
    %v1271 = vunpack.c.h.b16 %v150
    %v1272 = vunpack.c.l.b16 %v151
    %v1273 = vunpack.c.h.b16 %v151
    %v1274 = vunpack.c.l.b16 %v152
    %v1275 = vunpack.c.h.b16 %v152
    %v1276 = vunpack.c.l.b16 %v153
    %v1277 = vunpack.c.h.b16 %v153
    %v1278 = vunpack.c.l.b16 %v154
    %v1279 = vunpack.c.h.b16 %v154
    %v1280 = vunpack.c.l.b16 %v155
    %v1281 = vunpack.c.h.b16 %v155
    %v1282 = vunpack.c.l.b16 %v156
    %v1283 = vunpack.c.h.b16 %v156
    %v1284 = vunpack.c.l.b16 %v157
    %v1285 = vunpack.c.h.b16 %v157
    %v1286 = vunpack.c.l.b16 %v158
    %v1287 = vunpack.c.h.b16 %v158
    %v1288 = vunpack.c.l.b16 %v159
    %v1289 = vunpack.c.h.b16 %v159
    %v1290 = vunpack.c.l.b16 %v160
    %v1291 = vunpack.c.h.b16 %v160
    %v1292 = vunpack.c.l.b16 %v161
    %v1293 = vunpack.c.h.b16 %v161
    %v1294 = vunpack.c.l.b16 %v162
    %v1295 = vunpack.c.h.b16 %v162
    %v1296 = vunpack.c.l.b16 %v163
    %v1297 = vunpack.c.h.b16 %v163
    %v1298 = vunpack.c.l.b16 %v164
    %v1299 = vunpack.c.h.b16 %v164
    %v1300 = vunpack.c.l.b16 %v165
    %v1301 = vunpack.c.h.b16 %v165
    %v1302 = vunpack.c.l.b16 %v166
    %v1303 = vunpack.c.h.b16 %v166
    %v1304 = vunpack.c.l.b16 %v167
    %v1305 = vunpack.c.h.b16 %v167
    %v1306 = vunpack.c.l.b16 %v168
    %v1307 = vunpack.c.h.b16 %v168
    %v1308 = vunpack.c.l.b16 %v169
    %v1309 = vunpack.c.h.b16 %v169
    %v1310 = vunpack.c.l.b16 %v170
    %v1311 = vunpack.c.h.b16 %v170
    %v1312 = vunpack.c.l.b16 %v171
    %v1313 = vunpack.c.h.b16 %v171
    %v1314 = vunpack.c.l.b16 %v172
    %v1315 = vunpack.c.h.b16 %v172
    %v1316 = vunpack.c.l.b16 %v173
    %v1317 = vunpack.c.h.b16 %v173
    %v1318 = vunpack.c.l.b16 %v174
    %v1319 = vunpack.c.h.b16 %v174
    %v1320 = vunpack.c.l.b16 %v175
    %v1321 = vunpack.c.h.b16 %v175
    %v1322 = vunpack.c.l.b16 %v176
    %v1323 = vunpack.c.h.b16 %v176
    %v1324 = vunpack.c.l.b16 %v177
    %v1325 = vunpack.c.h.b16 %v177
    %v1326 = vunpack.c.l.b16 %v178
    %v1327 = vunpack.c.h.b16 %v178
    %v1328 = vunpack.c.l.b16 %v179
    %v1329 = vunpack.c.h.b16 %v179
    %v1330 = vunpack.c.l.b16 %v180
    %v1331 = vunpack.c.h.b16 %v180
    %v1332 = vunpack.c.l.b16 %v181
    %v1333 = vunpack.c.h.b16 %v181
    %v1334 = vunpack.c.l.b16 %v182
    %v1335 = vunpack.c.h.b16 %v182
    %v1336 = vunpack.c.l.b16 %v183
    %v1337 = vunpack.c.h.b16 %v183
    %v1338 = vunpack.c.l.b16 %v184
    %v1339 = vunpack.c.h.b16 %v184
    %v1340 = vunpack.c.l.b16 %v185
    %v1341 = vunpack.c.h.b16 %v185
    %v1342 = vunpack.c.l.b16 %v186
    %v1343 = vunpack.c.h.b16 %v186
    %v1344 = vunpack.c.l.b16 %v187
    %v1345 = vunpack.c.h.b16 %v187
    %v1346 = vunpack.c.l.b16 %v188
    %v1347 = vunpack.c.h.b16 %v188
    %v1348 = vunpack.c.l.b16 %v189
    %v1349 = vunpack.c.h.b16 %v189
    %v1350 = vunpack.c.l.b16 %v190
    %v1351 = vunpack.c.h.b16 %v190
    %v1352 = vunpack.c.l.b16 %v191
    %v1353 = vunpack.c.h.b16 %v191
    %v1354 = vunpack.c.l.b16 %v192
    %v1355 = vunpack.c.h.b16 %v192
    %v1356 = vunpack.c.l.b16 %v193
    %v1357 = vunpack.c.h.b16 %v193
    %v1358 = vunpack.c.l.b16 %v194
    %v1359 = vunpack.c.h.b16 %v194
    %v1360 = vunpack.c.l.b16 %v195
    %v1361 = vunpack.c.h.b16 %v195
    %v1362 = vunpack.c.l.b16 %v196
    %v1363 = vunpack.c.h.b16 %v196
    %v1364 = vunpack.c.l.b16 %v197
    %v1365 = vunpack.c.h.b16 %v197
    %v1366 = vunpack.c.l.b16 %v198
    %v1367 = vunpack.c.h.b16 %v198
    %v1368 = vunpack.c.l.b16 %v199
    %v1369 = vunpack.c.h.b16 %v199
    %v1370 = vunpack.c.l.b16 %v200
    %v1371 = vunpack.c.h.b16 %v200
    %v1372 = vunpack.c.l.b16 %v201
    %v1373 = vunpack.c.h.b16 %v201
    %v1374 = vunpack.c.l.b16 %v202
    %v1375 = vunpack.c.h.b16 %v202
    %v1376 = vunpack.c.l.b16 %v203
    %v1377 = vunpack.c.h.b16 %v203
    %v1378 = vunpack.c.l.b16 %v204
    %v1379 = vunpack.c.h.b16 %v204
    %v1380 = vunpack.c.l.b16 %v205
    %v1381 = vunpack.c.h.b16 %v205
    %v1382 = vunpack.c.l.b16 %v206
    %v1383 = vunpack.c.h.b16 %v206
    %v1384 = vunpack.c.l.b16 %v207
    %v1385 = vunpack.c.h.b16 %v207
    %v1386 = vunpack.c.l.b16 %v208
    %v1387 = vunpack.c.h.b16 %v208
    %v1388 = vunpack.c.l.b16 %v209
    %v1389 = vunpack.c.h.b16 %v209
    %v1390 = vunpack.c.l.b16 %v210
    %v1391 = vunpack.c.h.b16 %v210
    %v1392 = vunpack.c.l.b16 %v211
    %v1393 = vunpack.c.h.b16 %v211
    %v1394 = vunpack.c.l.b16 %v212
    %v1395 = vunpack.c.h.b16 %v212
    %v1396 = vunpack.c.l.b16 %v213
    %v1397 = vunpack.c.h.b16 %v213
    %v1398 = vunpack.c.l.b16 %v214
    %v1399 = vunpack.c.h.b16 %v214
    %v1400 = vunpack.c.l.b16 %v215
    %v1401 = vunpack.c.h.b16 %v215
    %v1402 = vunpack.c.l.b16 %v216
    %v1403 = vunpack.c.h.b16 %v216
    %v1404 = vunpack.c.l.b16 %v217
    %v1405 = vunpack.c.h.b16 %v217
    %v1406 = vunpack.c.l.b16 %v218
    %v1407 = vunpack.c.h.b16 %v218
    %v1408 = vunpack.c.l.b16 %v219
    %v1409 = vunpack.c.h.b16 %v219
    %v1410 = vunpack.c.l.b16 %v220
    %v1411 = vunpack.c.h.b16 %v220
    %v1412 = vunpack.c.l.b16 %v221
    %v1413 = vunpack.c.h.b16 %v221
    %v1414 = vunpack.c.l.b16 %v222
    %v1415 = vunpack.c.h.b16 %v222
    %v1416 = vunpack.c.l.b16 %v223
    %v1417 = vunpack.c.h.b16 %v223
    %v1418 = vunpack.c.l.b16 %v224
    %v1419 = vunpack.c.h.b16 %v224
    %v1420 = vunpack.c.l.b16 %v225
    %v1421 = vunpack.c.h.b16 %v225
    %v1422 = vunpack.c.l.b16 %v226
    %v1423 = vunpack.c.h.b16 %v226
    %v1424 = vunpack.c.l.b16 %v227
    %v1425 = vunpack.c.h.b16 %v227
    %v1426 = vunpack.c.l.b16 %v228
    %v1427 = vunpack.c.h.b16 %v228
    %v1428 = vunpack.c.l.b16 %v229
    %v1429 = vunpack.c.h.b16 %v229
    %v1430 = vunpack.c.l.b16 %v230
    %v1431 = vunpack.c.h.b16 %v230
    %v1432 = vunpack.c.l.b16 %v231
    %v1433 = vunpack.c.h.b16 %v231
    %v1434 = vunpack.c.l.b16 %v232
    %v1435 = vunpack.c.h.b16 %v232
    %v1436 = vunpack.c.l.b16 %v233
    %v1437 = vunpack.c.h.b16 %v233
    %v1438 = vunpack.c.l.b16 %v234
    %v1439 = vunpack.c.h.b16 %v234
    %v1440 = vunpack.c.l.b16 %v235
    %v1441 = vunpack.c.h.b16 %v235
    %v1442 = vunpack.c.l.b16 %v236
    %v1443 = vunpack.c.h.b16 %v236
    %v1444 = vunpack.c.l.b16 %v237
    %v1445 = vunpack.c.h.b16 %v237
    %v1446 = vunpack.c.l.b16 %v238
    %v1447 = vunpack.c.h.b16 %v238
    %v1448 = vunpack.c.l.b16 %v239
    %v1449 = vunpack.c.h.b16 %v239
    %v1450 = vunpack.c.l.b16 %v240
    %v1451 = vunpack.c.h.b16 %v240
    %v1452 = vunpack.c.l.b16 %v241
    %v1453 = vunpack.c.h.b16 %v241
    %v1454 = vunpack.c.l.b16 %v242
    %v1455 = vunpack.c.h.b16 %v242
    %v1456 = vunpack.c.l.b16 %v243
    %v1457 = vunpack.c.h.b16 %v243
    %v1458 = vunpack.c.l.b16 %v244
    %v1459 = vunpack.c.h.b16 %v244
    %v1460 = vunpack.c.l.b16 %v245
    %v1461 = vunpack.c.h.b16 %v245
    %v1462 = vunpack.c.l.b16 %v246
    %v1463 = vunpack.c.h.b16 %v246
    %v1464 = vunpack.c.l.b16 %v247
    %v1465 = vunpack.c.h.b16 %v247
    %v1466 = vunpack.c.l.b16 %v248
    %v1467 = vunpack.c.h.b16 %v248
    %v1468 = vunpack.c.l.b16 %v249
    %v1469 = vunpack.c.h.b16 %v249
    %v1470 = vunpack.c.l.b16 %v250
    %v1471 = vunpack.c.h.b16 %v250
    %v1472 = vunpack.c.l.b16 %v251
    %v1473 = vunpack.c.h.b16 %v251
    %v1474 = vunpack.c.l.b16 %v252
    %v1475 = vunpack.c.h.b16 %v252
    %v1476 = vunpack.c.l.b16 %v253
    %v1477 = vunpack.c.h.b16 %v253
    %v1478 = vunpack.c.l.b16 %v254
    %v1479 = vunpack.c.h.b16 %v254
    %v1480 = vunpack.c.l.b16 %v255
    %v1481 = vunpack.c.h.b16 %v255
    %v1482 = vunpack.c.l.b16 %v256
    %v1483 = vunpack.c.h.b16 %v256
    %v1484 = vunpack.c.l.b16 %v257
    %v1485 = vunpack.c.h.b16 %v257
    %v1486 = vunpack.c.l.b16 %v258
    %v1487 = vunpack.c.h.b16 %v258
    %v1488 = vunpack.c.l.b16 %v259
    %v1489 = vunpack.c.h.b16 %v259
    %v1490 = vunpack.c.l.b16 %v260
    %v1491 = vunpack.c.h.b16 %v260
    %v1492 = vunpack.c.l.b16 %v261
    %v1493 = vunpack.c.h.b16 %v261
    %v1494 = vunpack.c.l.b16 %v262
    %v1495 = vunpack.c.h.b16 %v262
    %v1496 = vunpack.c.l.b16 %v263
    %v1497 = vunpack.c.h.b16 %v263
    %v1498 = vunpack.c.l.b16 %v264
    %v1499 = vunpack.c.h.b16 %v264
    %v1500 = vunpack.c.l.b16 %v265
    %v1501 = vunpack.c.h.b16 %v265
    %v1502 = vunpack.c.l.b16 %v266
    %v1503 = vunpack.c.h.b16 %v266
    %v1504 = vunpack.c.l.b16 %v267
    %v1505 = vunpack.c.h.b16 %v267
    %v1506 = vunpack.c.l.b16 %v268
    %v1507 = vunpack.c.h.b16 %v268
    %v1508 = vunpack.c.l.b16 %v269
    %v1509 = vunpack.c.h.b16 %v269
    %v1510 = vunpack.c.l.b16 %v270
    %v1511 = vunpack.c.h.b16 %v270
    %v1512 = vunpack.c.l.b16 %v271
    %v1513 = vunpack.c.h.b16 %v271
    %v1514 = vunpack.c.l.b16 %v272
    %v1515 = vunpack.c.h.b16 %v272
    %v1516 = vunpack.c.l.b16 %v273
    %v1517 = vunpack.c.h.b16 %v273
    %v1518 = vunpack.c.l.b16 %v274
    %v1519 = vunpack.c.h.b16 %v274
    %v1520 = vunpack.c.l.b16 %v275
    %v1521 = vunpack.c.h.b16 %v275
    %v1522 = vunpack.c.l.b16 %v276
    %v1523 = vunpack.c.h.b16 %v276
    %v1524 = vunpack.c.l.b16 %v277
    %v1525 = vunpack.c.h.b16 %v277
    %v1526 = vunpack.c.l.b16 %v278
    %v1527 = vunpack.c.h.b16 %v278
    %v1528 = vunpack.c.l.b16 %v279
    %v1529 = vunpack.c.h.b16 %v279
    %v1530 = vunpack.c.l.b16 %v280
    %v1531 = vunpack.c.h.b16 %v280
    %v1532 = vunpack.c.l.b16 %v281
    %v1533 = vunpack.c.h.b16 %v281
    %v1534 = vunpack.c.l.b16 %v282
    %v1535 = vunpack.c.h.b16 %v282
    %v1536 = vunpack.c.l.b16 %v283
    %v1537 = vunpack.c.h.b16 %v283
    %v1538 = vunpack.c.l.b16 %v284
    %v1539 = vunpack.c.h.b16 %v284
    %v1540 = vunpack.c.l.b16 %v285
    %v1541 = vunpack.c.h.b16 %v285
    %v1542 = vunpack.c.l.b16 %v286
    %v1543 = vunpack.c.h.b16 %v286
    %v1544 = vunpack.c.l.b16 %v287
    %v1545 = vunpack.c.h.b16 %v287
    %v1546 = vunpack.c.l.b16 %v288
    %v1547 = vunpack.c.h.b16 %v288
    %v1548 = vunpack.c.l.b16 %v289
    %v1549 = vunpack.c.h.b16 %v289
    %v1550 = vunpack.c.l.b16 %v290
    %v1551 = vunpack.c.h.b16 %v290
    %v1552 = vunpack.c.l.b16 %v291
    %v1553 = vunpack.c.h.b16 %v291
    %v1554 = vunpack.c.l.b16 %v292
    %v1555 = vunpack.c.h.b16 %v292
    %v1556 = vunpack.c.l.b16 %v293
    %v1557 = vunpack.c.h.b16 %v293
    %v1558 = vunpack.c.l.b16 %v294
    %v1559 = vunpack.c.h.b16 %v294
    %v1560 = vunpack.c.l.b16 %v295
    %v1561 = vunpack.c.h.b16 %v295
    %v1562 = vunpack.c.l.b16 %v296
    %v1563 = vunpack.c.h.b16 %v296
    %v1564 = vunpack.c.l.b16 %v297
    %v1565 = vunpack.c.h.b16 %v297
    %v1566 = vunpack.c.l.b16 %v298
    %v1567 = vunpack.c.h.b16 %v298
    %v1568 = vunpack.c.l.b16 %v299
    %v1569 = vunpack.c.h.b16 %v299
    %v1570 = vunpack.c.l.b16 %v300
    %v1571 = vunpack.c.h.b16 %v300
    %v1572 = vunpack.c.l.b16 %v301
    %v1573 = vunpack.c.h.b16 %v301
    %v1574 = vunpack.c.l.b16 %v302
    %v1575 = vunpack.c.h.b16 %v302
    %v1576 = vunpack.c.l.b16 %v303
    %v1577 = vunpack.c.h.b16 %v303
    %v1578 = vunpack.c.l.b16 %v304
    %v1579 = vunpack.c.h.b16 %v304
    %v1580 = vunpack.c.l.b16 %v305
    %v1581 = vunpack.c.h.b16 %v305
    %v1582 = vunpack.c.l.b16 %v306
    %v1583 = vunpack.c.h.b16 %v306
    %v1584 = vunpack.c.l.b16 %v307
    %v1585 = vunpack.c.h.b16 %v307
    %v1586 = vunpack.c.l.b16 %v308
    %v1587 = vunpack.c.h.b16 %v308
    %v1588 = vunpack.c.l.b16 %v309
    %v1589 = vunpack.c.h.b16 %v309
    %v1590 = vunpack.c.l.b16 %v310
    %v1591 = vunpack.c.h.b16 %v310
    %v1592 = vunpack.c.l.b16 %v311
    %v1593 = vunpack.c.h.b16 %v311
    %v1594 = vunpack.c.l.b16 %v312
    %v1595 = vunpack.c.h.b16 %v312
    %v1596 = vunpack.c.l.b16 %v313
    %v1597 = vunpack.c.h.b16 %v313
    %v1598 = vunpack.c.l.b16 %v314
    %v1599 = vunpack.c.h.b16 %v314
    %v1600 = vunpack.c.l.b16 %v315
    %v1601 = vunpack.c.h.b16 %v315
    %v1602 = vunpack.c.l.b16 %v316
    %v1603 = vunpack.c.h.b16 %v316
    %v1604 = vunpack.c.l.b16 %v317
    %v1605 = vunpack.c.h.b16 %v317
    %v1606 = vunpack.c.l.b16 %v318
    %v1607 = vunpack.c.h.b16 %v318
    %v1608 = vunpack.c.l.b16 %v319
    %v1609 = vunpack.c.h.b16 %v319
    %v1610 = vunpack.c.l.b16 %v320
    %v1611 = vunpack.c.h.b16 %v320
    %v1612 = vunpack.c.l.b16 %v321
    %v1613 = vunpack.c.h.b16 %v321
    %v1614 = vunpack.c.l.b16 %v322
    %v1615 = vunpack.c.h.b16 %v322
    %v1616 = vunpack.c.l.b16 %v323
    %v1617 = vunpack.c.h.b16 %v323
    %v1618 = vunpack.c.l.b16 %v324
    %v1619 = vunpack.c.h.b16 %v324
    %v1620 = vunpack.c.l.b16 %v325
    %v1621 = vunpack.c.h.b16 %v325
    %v1622 = vunpack.c.l.b16 %v326
    %v1623 = vunpack.c.h.b16 %v326
    %v1624 = vunpack.c.l.b16 %v327
    %v1625 = vunpack.c.h.b16 %v327
    %v1626 = vunpack.c.l.b16 %v328
    %v1627 = vunpack.c.h.b16 %v328
    %v1628 = vunpack.c.l.b16 %v329
    %v1629 = vunpack.c.h.b16 %v329
    %v1630 = vunpack.c.l.b16 %v330
    %v1631 = vunpack.c.h.b16 %v330
    %v1632 = vunpack.c.l.b16 %v331
    %v1633 = vunpack.c.h.b16 %v331
    %v1634 = vunpack.c.l.b16 %v332
    %v1635 = vunpack.c.h.b16 %v332
    %v1636 = vunpack.c.l.b16 %v333
    %v1637 = vunpack.c.h.b16 %v333
    %v1638 = vunpack.c.l.b16 %v334
    %v1639 = vunpack.c.h.b16 %v334
    %v1640 = vunpack.c.l.b16 %v335
    %v1641 = vunpack.c.h.b16 %v335
    %v1642 = vunpack.c.l.b16 %v336
    %v1643 = vunpack.c.h.b16 %v336
    %v1644 = vunpack.c.l.b16 %v337
    %v1645 = vunpack.c.h.b16 %v337
    %v1646 = vunpack.c.l.b16 %v338
    %v1647 = vunpack.c.h.b16 %v338
    %v1648 = vunpack.c.l.b16 %v339
    %v1649 = vunpack.c.h.b16 %v339
    %v1650 = vunpack.c.l.b16 %v340
    %v1651 = vunpack.c.h.b16 %v340
    %v1652 = vunpack.c.l.b16 %v341
    %v1653 = vunpack.c.h.b16 %v341
    %v1654 = vunpack.c.l.b16 %v342
    %v1655 = vunpack.c.h.b16 %v342
    %v1656 = vunpack.c.l.b16 %v343
    %v1657 = vunpack.c.h.b16 %v343
    %v1658 = vunpack.c.l.b16 %v344
    %v1659 = vunpack.c.h.b16 %v344
    %v1660 = vunpack.c.l.b16 %v345
    %v1661 = vunpack.c.h.b16 %v345
    %v1662 = vunpack.c.l.b16 %v346
    %v1663 = vunpack.c.h.b16 %v346
    %v1664 = vunpack.c.l.b16 %v347
    %v1665 = vunpack.c.h.b16 %v347
    %v1666 = vunpack.c.l.b16 %v348
    %v1667 = vunpack.c.h.b16 %v348
    %v1668 = vunpack.c.l.b16 %v349
    %v1669 = vunpack.c.h.b16 %v349
    %v1670 = vunpack.c.l.b16 %v350
    %v1671 = vunpack.c.h.b16 %v350
    %v1672 = vunpack.c.l.b16 %v351
    %v1673 = vunpack.c.h.b16 %v351
    %v1674 = vunpack.c.l.b16 %v352
    %v1675 = vunpack.c.h.b16 %v352
    %v1676 = vunpack.c.l.b16 %v353
    %v1677 = vunpack.c.h.b16 %v353
    %v1678 = vunpack.c.l.b16 %v354
    %v1679 = vunpack.c.h.b16 %v354
    %v1680 = vunpack.c.l.b16 %v355
    %v1681 = vunpack.c.h.b16 %v355
    %v1682 = vunpack.c.l.b16 %v356
    %v1683 = vunpack.c.h.b16 %v356
    %v1684 = vunpack.c.l.b16 %v357
    %v1685 = vunpack.c.h.b16 %v357
    %v1686 = vunpack.c.l.b16 %v358
    %v1687 = vunpack.c.h.b16 %v358
    %v1688 = vunpack.c.l.b16 %v359
    %v1689 = vunpack.c.h.b16 %v359
    %v1690 = vunpack.c.l.b16 %v360
    %v1691 = vunpack.c.h.b16 %v360
    %v1692 = vunpack.c.l.b16 %v361
    %v1693 = vunpack.c.h.b16 %v361
    %v1694 = vunpack.c.l.b16 %v362
    %v1695 = vunpack.c.h.b16 %v362
    %v1696 = vunpack.c.l.b16 %v363
    %v1697 = vunpack.c.h.b16 %v363
    %v1698 = vunpack.c.l.b16 %v364
    %v1699 = vunpack.c.h.b16 %v364
    %v1700 = vunpack.c.l.b16 %v365
    %v1701 = vunpack.c.h.b16 %v365
    %v1702 = vunpack.c.l.b16 %v366
    %v1703 = vunpack.c.h.b16 %v366
    %v1704 = vunpack.c.l.b16 %v367
    %v1705 = vunpack.c.h.b16 %v367
    %v1706 = vunpack.c.l.b16 %v368
    %v1707 = vunpack.c.h.b16 %v368
    %v1708 = vunpack.c.l.b16 %v369
    %v1709 = vunpack.c.h.b16 %v369
    %v1710 = vunpack.c.l.b16 %v370
    %v1711 = vunpack.c.h.b16 %v370
    %v1712 = vunpack.c.l.b16 %v371
    %v1713 = vunpack.c.h.b16 %v371
    %v1714 = vunpack.c.l.b16 %v372
    %v1715 = vunpack.c.h.b16 %v372
    %v1716 = vunpack.c.l.b16 %v373
    %v1717 = vunpack.c.h.b16 %v373
    %v1718 = vunpack.c.l.b16 %v374
    %v1719 = vunpack.c.h.b16 %v374
    %v1720 = vunpack.c.l.b16 %v375
    %v1721 = vunpack.c.h.b16 %v375
    %v1722 = vunpack.c.l.b16 %v376
    %v1723 = vunpack.c.h.b16 %v376
    %v1724 = vunpack.c.l.b16 %v377
    %v1725 = vunpack.c.h.b16 %v377
    %v1726 = vunpack.c.l.b16 %v378
    %v1727 = vunpack.c.h.b16 %v378
    %v1728 = vunpack.c.l.b16 %v379
    %v1729 = vunpack.c.h.b16 %v379
    %v1730 = vunpack.c.l.b16 %v380
    %v1731 = vunpack.c.h.b16 %v380
    %v1732 = vunpack.c.l.b16 %v381
    %v1733 = vunpack.c.h.b16 %v381
    %v1734 = vunpack.c.l.b16 %v382
    %v1735 = vunpack.c.h.b16 %v382
    %v1736 = vunpack.c.l.b16 %v383
    %v1737 = vunpack.c.h.b16 %v383
    %v1738 = vunpack.c.l.b16 %v384
    %v1739 = vunpack.c.h.b16 %v384
    %v1740 = vunpack.c.l.b16 %v385
    %v1741 = vunpack.c.h.b16 %v385
    %v1742 = vunpack.c.l.b16 %v386
    %v1743 = vunpack.c.h.b16 %v386
    %v1744 = vunpack.c.l.b16 %v387
    %v1745 = vunpack.c.h.b16 %v387
    %v1746 = vunpack.c.l.b16 %v388
    %v1747 = vunpack.c.h.b16 %v388
    %v1748 = vunpack.c.l.b16 %v389
    %v1749 = vunpack.c.h.b16 %v389
    %v1750 = vunpack.c.l.b16 %v390
    %v1751 = vunpack.c.h.b16 %v390
    %v1752 = vunpack.c.l.b16 %v391
    %v1753 = vunpack.c.h.b16 %v391
    %v1754 = vunpack.c.l.b16 %v392
    %v1755 = vunpack.c.h.b16 %v392
    %v1756 = vunpack.c.l.b16 %v393
    %v1757 = vunpack.c.h.b16 %v393
    %v1758 = vunpack.c.l.b16 %v394
    %v1759 = vunpack.c.h.b16 %v394
    %v1760 = vunpack.c.l.b16 %v395
    %v1761 = vunpack.c.h.b16 %v395
    %v1762 = vunpack.c.l.b16 %v396
    %v1763 = vunpack.c.h.b16 %v396
    %v1764 = vunpack.c.l.b16 %v397
    %v1765 = vunpack.c.h.b16 %v397
    %v1766 = vunpack.c.l.b16 %v398
    %v1767 = vunpack.c.h.b16 %v398
    %v1768 = vunpack.c.l.b16 %v399
    %v1769 = vunpack.c.h.b16 %v399
    %v1770 = vunpack.c.l.b16 %v400
    %v1771 = vunpack.c.h.b16 %v400
    %v1772 = vunpack.c.l.b16 %v401
    %v1773 = vunpack.c.h.b16 %v401
    %v1774 = vunpack.c.l.b16 %v402
    %v1775 = vunpack.c.h.b16 %v402
    %v1776 = vunpack.c.l.b16 %v403
    %v1777 = vunpack.c.h.b16 %v403
    %v1778 = vunpack.c.l.b16 %v404
    %v1779 = vunpack.c.h.b16 %v404
    %v1780 = vunpack.c.l.b16 %v405
    %v1781 = vunpack.c.h.b16 %v405
    %v1782 = vunpack.c.l.b16 %v406
    %v1783 = vunpack.c.h.b16 %v406
    %v1784 = vunpack.c.l.b16 %v407
    %v1785 = vunpack.c.h.b16 %v407
    %v1786 = vunpack.c.l.b16 %v408
    %v1787 = vunpack.c.h.b16 %v408
    %v1788 = vunpack.c.l.b16 %v409
    %v1789 = vunpack.c.h.b16 %v409
    %v1790 = vunpack.c.l.b16 %v410
    %v1791 = vunpack.c.h.b16 %v410
    %v1792 = vunpack.c.l.b16 %v411
    %v1793 = vunpack.c.h.b16 %v411
    %v1794 = vunpack.c.l.b16 %v412
    %v1795 = vunpack.c.h.b16 %v412
    %v1796 = vunpack.c.l.b16 %v413
    %v1797 = vunpack.c.h.b16 %v413
    %v1798 = vunpack.c.l.b16 %v414
    %v1799 = vunpack.c.h.b16 %v414
    %v1800 = vunpack.c.l.b16 %v415
    %v1801 = vunpack.c.h.b16 %v415
    %v1802 = vunpack.c.l.b16 %v416
    %v1803 = vunpack.c.h.b16 %v416
    %v1804 = vunpack.c.l.b16 %v417
    %v1805 = vunpack.c.h.b16 %v417
    %v1806 = vunpack.c.l.b16 %v418
    %v1807 = vunpack.c.h.b16 %v418
    %v1808 = vunpack.c.l.b16 %v419
    %v1809 = vunpack.c.h.b16 %v419
    %v1810 = vunpack.c.l.b16 %v420
    %v1811 = vunpack.c.h.b16 %v420
    %v1812 = vunpack.c.l.b16 %v421
    %v1813 = vunpack.c.h.b16 %v421
    %v1814 = vunpack.c.l.b16 %v422
    %v1815 = vunpack.c.h.b16 %v422
    %v1816 = vunpack.c.l.b16 %v423
    %v1817 = vunpack.c.h.b16 %v423
    %v1818 = vunpack.c.l.b16 %v424
    %v1819 = vunpack.c.h.b16 %v424
    %v1820 = vunpack.c.l.b16 %v425
    %v1821 = vunpack.c.h.b16 %v425
    %v1822 = vunpack.c.l.b16 %v426
    %v1823 = vunpack.c.h.b16 %v426
    %v1824 = vunpack.c.l.b16 %v427
    %v1825 = vunpack.c.h.b16 %v427
    %v1826 = vunpack.c.l.b16 %v428
    %v1827 = vunpack.c.h.b16 %v428
    %v1828 = vunpack.c.l.b16 %v429
    %v1829 = vunpack.c.h.b16 %v429
    %v1830 = vunpack.c.l.b16 %v430
    %v1831 = vunpack.c.h.b16 %v430
    %v1832 = vunpack.c.l.b16 %v431
    %v1833 = vunpack.c.h.b16 %v431
    %v1834 = vpack.c.b16 %v1036, %v1034
    %v1835 = vpack.c.b16 %v1037, %v1035
    %v1836 = vpack.c.b16 %v1040, %v1038
    %v1837 = vpack.c.b16 %v1041, %v1039
    %v1838 = vpack.c.b16 %v1044, %v1042
    %v1839 = vpack.c.b16 %v1045, %v1043
    %v1840 = vpack.c.b16 %v1048, %v1046
    %v1841 = vpack.c.b16 %v1049, %v1047
    %v1842 = vpack.c.b16 %v1052, %v1050
    %v1843 = vpack.c.b16 %v1053, %v1051
    %v1844 = vpack.c.b16 %v1056, %v1054
    %v1845 = vpack.c.b16 %v1057, %v1055
    %v1846 = vpack.c.b16 %v1060, %v1058
    %v1847 = vpack.c.b16 %v1061, %v1059
    %v1848 = vpack.c.b16 %v1064, %v1062
    %v1849 = vpack.c.b16 %v1065, %v1063
    %v1850 = vpack.c.b16 %v1068, %v1066
    %v1851 = vpack.c.b16 %v1069, %v1067
    %v1852 = vpack.c.b16 %v1072, %v1070
    %v1853 = vpack.c.b16 %v1073, %v1071
    %v1854 = vpack.c.b16 %v1076, %v1074
    %v1855 = vpack.c.b16 %v1077, %v1075
    %v1856 = vpack.c.b16 %v1080, %v1078
    %v1857 = vpack.c.b16 %v1081, %v1079
    %v1858 = vpack.c.b16 %v1084, %v1082
    %v1859 = vpack.c.b16 %v1085, %v1083
    %v1860 = vpack.c.b16 %v1088, %v1086
    %v1861 = vpack.c.b16 %v1089, %v1087
    %v1862 = vpack.c.b16 %v1092, %v1090
    %v1863 = vpack.c.b16 %v1093, %v1091
    %v1864 = vpack.c.b16 %v1096, %v1094
    %v1865 = vpack.c.b16 %v1097, %v1095
    %v1866 = vpack.c.b16 %v1100, %v1098
    %v1867 = vpack.c.b16 %v1101, %v1099
    %v1868 = vpack.c.b16 %v1104, %v1102
    %v1869 = vpack.c.b16 %v1105, %v1103
    %v1870 = vpack.c.b16 %v1108, %v1106
    %v1871 = vpack.c.b16 %v1109, %v1107
    %v1872 = vpack.c.b16 %v1112, %v1110
    %v1873 = vpack.c.b16 %v1113, %v1111
    %v1874 = vpack.c.b16 %v1116, %v1114
    %v1875 = vpack.c.b16 %v1117, %v1115
    %v1876 = vpack.c.b16 %v1120, %v1118
    %v1877 = vpack.c.b16 %v1121, %v1119
    %v1878 = vpack.c.b16 %v1124, %v1122
    %v1879 = vpack.c.b16 %v1125, %v1123
    %v1880 = vpack.c.b16 %v1128, %v1126
    %v1881 = vpack.c.b16 %v1129, %v1127
    %v1882 = vpack.c.b16 %v1132, %v1130
    %v1883 = vpack.c.b16 %v1133, %v1131
    %v1884 = vpack.c.b16 %v1136, %v1134
    %v1885 = vpack.c.b16 %v1137, %v1135
    %v1886 = vpack.c.b16 %v1140, %v1138
    %v1887 = vpack.c.b16 %v1141, %v1139
    %v1888 = vpack.c.b16 %v1144, %v1142
    %v1889 = vpack.c.b16 %v1145, %v1143
    %v1890 = vpack.c.b16 %v1148, %v1146
    %v1891 = vpack.c.b16 %v1149, %v1147
    %v1892 = vpack.c.b16 %v1152, %v1150
    %v1893 = vpack.c.b16 %v1153, %v1151
    %v1894 = vpack.c.b16 %v1156, %v1154
    %v1895 = vpack.c.b16 %v1157, %v1155
    %v1896 = vpack.c.b16 %v1160, %v1158
    %v1897 = vpack.c.b16 %v1161, %v1159
    %v1898 = vpack.c.b16 %v1164, %v1162
    %v1899 = vpack.c.b16 %v1165, %v1163
    %v1900 = vpack.c.b16 %v1168, %v1166
    %v1901 = vpack.c.b16 %v1169, %v1167
    %v1902 = vpack.c.b16 %v1172, %v1170
    %v1903 = vpack.c.b16 %v1173, %v1171
    %v1904 = vpack.c.b16 %v1176, %v1174
    %v1905 = vpack.c.b16 %v1177, %v1175
    %v1906 = vpack.c.b16 %v1180, %v1178
    %v1907 = vpack.c.b16 %v1181, %v1179
    %v1908 = vpack.c.b16 %v1184, %v1182
    %v1909 = vpack.c.b16 %v1185, %v1183
    %v1910 = vpack.c.b16 %v1188, %v1186
    %v1911 = vpack.c.b16 %v1189, %v1187
    %v1912 = vpack.c.b16 %v1192, %v1190
    %v1913 = vpack.c.b16 %v1193, %v1191
    %v1914 = vpack.c.b16 %v1196, %v1194
    %v1915 = vpack.c.b16 %v1197, %v1195
    %v1916 = vpack.c.b16 %v1200, %v1198
    %v1917 = vpack.c.b16 %v1201, %v1199
    %v1918 = vpack.c.b16 %v1204, %v1202
    %v1919 = vpack.c.b16 %v1205, %v1203
    %v1920 = vpack.c.b16 %v1208, %v1206
    %v1921 = vpack.c.b16 %v1209, %v1207
    %v1922 = vpack.c.b16 %v1212, %v1210
    %v1923 = vpack.c.b16 %v1213, %v1211
    %v1924 = vpack.c.b16 %v1216, %v1214
    %v1925 = vpack.c.b16 %v1217, %v1215
    %v1926 = vpack.c.b16 %v1220, %v1218
    %v1927 = vpack.c.b16 %v1221, %v1219
    %v1928 = vpack.c.b16 %v1224, %v1222
    %v1929 = vpack.c.b16 %v1225, %v1223
    %v1930 = vpack.c.b16 %v1228, %v1226
    %v1931 = vpack.c.b16 %v1229, %v1227
    %v1932 = vpack.c.b16 %v1232, %v1230
    %v1933 = vpack.c.b16 %v1233, %v1231
    %v1934 = vpack.c.b16 %v1236, %v1234
    %v1935 = vpack.c.b16 %v1237, %v1235
    %v1936 = vpack.c.b16 %v1240, %v1238
    %v1937 = vpack.c.b16 %v1241, %v1239
    %v1938 = vpack.c.b16 %v1244, %v1242
    %v1939 = vpack.c.b16 %v1245, %v1243
    %v1940 = vpack.c.b16 %v1248, %v1246
    %v1941 = vpack.c.b16 %v1249, %v1247
    %v1942 = vpack.c.b16 %v1252, %v1250
    %v1943 = vpack.c.b16 %v1253, %v1251
    %v1944 = vpack.c.b16 %v1256, %v1254
    %v1945 = vpack.c.b16 %v1257, %v1255
    %v1946 = vpack.c.b16 %v1260, %v1258
    %v1947 = vpack.c.b16 %v1261, %v1259
    %v1948 = vpack.c.b16 %v1264, %v1262
    %v1949 = vpack.c.b16 %v1265, %v1263
    %v1950 = vpack.c.b16 %v1268, %v1266
    %v1951 = vpack.c.b16 %v1269, %v1267
    %v1952 = vpack.c.b16 %v1272, %v1270
    %v1953 = vpack.c.b16 %v1273, %v1271
    %v1954 = vpack.c.b16 %v1276, %v1274
    %v1955 = vpack.c.b16 %v1277, %v1275
    %v1956 = vpack.c.b16 %v1280, %v1278
    %v1957 = vpack.c.b16 %v1281, %v1279
    %v1958 = vpack.c.b16 %v1284, %v1282
    %v1959 = vpack.c.b16 %v1285, %v1283
    %v1960 = vpack.c.b16 %v1288, %v1286
    %v1961 = vpack.c.b16 %v1289, %v1287
    %v1962 = vpack.c.b16 %v1292, %v1290
    %v1963 = vpack.c.b16 %v1293, %v1291
    %v1964 = vpack.c.b16 %v1296, %v1294
    %v1965 = vpack.c.b16 %v1297, %v1295
    %v1966 = vpack.c.b16 %v1300, %v1298
    %v1967 = vpack.c.b16 %v1301, %v1299
    %v1968 = vpack.c.b16 %v1304, %v1302
    %v1969 = vpack.c.b16 %v1305, %v1303
    %v1970 = vpack.c.b16 %v1308, %v1306
    %v1971 = vpack.c.b16 %v1309, %v1307
    %v1972 = vpack.c.b16 %v1312, %v1310
    %v1973 = vpack.c.b16 %v1313, %v1311
    %v1974 = vpack.c.b16 %v1316, %v1314
    %v1975 = vpack.c.b16 %v1317, %v1315
    %v1976 = vpack.c.b16 %v1320, %v1318
    %v1977 = vpack.c.b16 %v1321, %v1319
    %v1978 = vpack.c.b16 %v1324, %v1322
    %v1979 = vpack.c.b16 %v1325, %v1323
    %v1980 = vpack.c.b16 %v1328, %v1326
    %v1981 = vpack.c.b16 %v1329, %v1327
    %v1982 = vpack.c.b16 %v1332, %v1330
    %v1983 = vpack.c.b16 %v1333, %v1331
    %v1984 = vpack.c.b16 %v1336, %v1334
    %v1985 = vpack.c.b16 %v1337, %v1335
    %v1986 = vpack.c.b16 %v1340, %v1338
    %v1987 = vpack.c.b16 %v1341, %v1339
    %v1988 = vpack.c.b16 %v1344, %v1342
    %v1989 = vpack.c.b16 %v1345, %v1343
    %v1990 = vpack.c.b16 %v1348, %v1346
    %v1991 = vpack.c.b16 %v1349, %v1347
    %v1992 = vpack.c.b16 %v1352, %v1350
    %v1993 = vpack.c.b16 %v1353, %v1351
    %v1994 = vpack.c.b16 %v1356, %v1354
    %v1995 = vpack.c.b16 %v1357, %v1355
    %v1996 = vpack.c.b16 %v1360, %v1358
    %v1997 = vpack.c.b16 %v1361, %v1359
    %v1998 = vpack.c.b16 %v1364, %v1362
    %v1999 = vpack.c.b16 %v1365, %v1363
    %v2000 = vpack.c.b16 %v1368, %v1366
    %v2001 = vpack.c.b16 %v1369, %v1367
    %v2002 = vpack.c.b16 %v1372, %v1370
    %v2003 = vpack.c.b16 %v1373, %v1371
    %v2004 = vpack.c.b16 %v1376, %v1374
    %v2005 = vpack.c.b16 %v1377, %v1375
    %v2006 = vpack.c.b16 %v1380, %v1378
    %v2007 = vpack.c.b16 %v1381, %v1379
    %v2008 = vpack.c.b16 %v1384, %v1382
    %v2009 = vpack.c.b16 %v1385, %v1383
    %v2010 = vpack.c.b16 %v1388, %v1386
    %v2011 = vpack.c.b16 %v1389, %v1387
    %v2012 = vpack.c.b16 %v1392, %v1390
    %v2013 = vpack.c.b16 %v1393, %v1391
    %v2014 = vpack.c.b16 %v1396, %v1394
    %v2015 = vpack.c.b16 %v1397, %v1395
    %v2016 = vpack.c.b16 %v1400, %v1398
    %v2017 = vpack.c.b16 %v1401, %v1399
    %v2018 = vpack.c.b16 %v1404, %v1402
    %v2019 = vpack.c.b16 %v1405, %v1403
    %v2020 = vpack.c.b16 %v1408, %v1406
    %v2021 = vpack.c.b16 %v1409, %v1407
    %v2022 = vpack.c.b16 %v1412, %v1410
    %v2023 = vpack.c.b16 %v1413, %v1411
    %v2024 = vpack.c.b16 %v1416, %v1414
    %v2025 = vpack.c.b16 %v1417, %v1415
    %v2026 = vpack.c.b16 %v1420, %v1418
    %v2027 = vpack.c.b16 %v1421, %v1419
    %v2028 = vpack.c.b16 %v1424, %v1422
    %v2029 = vpack.c.b16 %v1425, %v1423
    %v2030 = vpack.c.b16 %v1428, %v1426
    %v2031 = vpack.c.b16 %v1429, %v1427
    %v2032 = vpack.c.b16 %v1432, %v1430
    %v2033 = vpack.c.b16 %v1433, %v1431
    %v2034 = vpack.c.b16 %v1436, %v1434
    %v2035 = vpack.c.b16 %v1437, %v1435
    %v2036 = vpack.c.b16 %v1440, %v1438
    %v2037 = vpack.c.b16 %v1441, %v1439
    %v2038 = vpack.c.b16 %v1444, %v1442
    %v2039 = vpack.c.b16 %v1445, %v1443
    %v2040 = vpack.c.b16 %v1448, %v1446
    %v2041 = vpack.c.b16 %v1449, %v1447
    %v2042 = vpack.c.b16 %v1452, %v1450
    %v2043 = vpack.c.b16 %v1453, %v1451
    %v2044 = vpack.c.b16 %v1456, %v1454
    %v2045 = vpack.c.b16 %v1457, %v1455
    %v2046 = vpack.c.b16 %v1460, %v1458
    %v2047 = vpack.c.b16 %v1461, %v1459
    %v2048 = vpack.c.b16 %v1464, %v1462
    %v2049 = vpack.c.b16 %v1465, %v1463
    %v2050 = vpack.c.b16 %v1468, %v1466
    %v2051 = vpack.c.b16 %v1469, %v1467
    %v2052 = vpack.c.b16 %v1472, %v1470
    %v2053 = vpack.c.b16 %v1473, %v1471
    %v2054 = vpack.c.b16 %v1476, %v1474
    %v2055 = vpack.c.b16 %v1477, %v1475
    %v2056 = vpack.c.b16 %v1480, %v1478
    %v2057 = vpack.c.b16 %v1481, %v1479
    %v2058 = vpack.c.b16 %v1484, %v1482
    %v2059 = vpack.c.b16 %v1485, %v1483
    %v2060 = vpack.c.b16 %v1488, %v1486
    %v2061 = vpack.c.b16 %v1489, %v1487
    %v2062 = vpack.c.b16 %v1492, %v1490
    %v2063 = vpack.c.b16 %v1493, %v1491
    %v2064 = vpack.c.b16 %v1496, %v1494
    %v2065 = vpack.c.b16 %v1497, %v1495
    %v2066 = vpack.c.b16 %v1500, %v1498
    %v2067 = vpack.c.b16 %v1501, %v1499
    %v2068 = vpack.c.b16 %v1504, %v1502
    %v2069 = vpack.c.b16 %v1505, %v1503
    %v2070 = vpack.c.b16 %v1508, %v1506
    %v2071 = vpack.c.b16 %v1509, %v1507
    %v2072 = vpack.c.b16 %v1512, %v1510
    %v2073 = vpack.c.b16 %v1513, %v1511
    %v2074 = vpack.c.b16 %v1516, %v1514
    %v2075 = vpack.c.b16 %v1517, %v1515
    %v2076 = vpack.c.b16 %v1520, %v1518
    %v2077 = vpack.c.b16 %v1521, %v1519
    %v2078 = vpack.c.b16 %v1524, %v1522
    %v2079 = vpack.c.b16 %v1525, %v1523
    %v2080 = vpack.c.b16 %v1528, %v1526
    %v2081 = vpack.c.b16 %v1529, %v1527
    %v2082 = vpack.c.b16 %v1532, %v1530
    %v2083 = vpack.c.b16 %v1533, %v1531
    %v2084 = vpack.c.b16 %v1536, %v1534
    %v2085 = vpack.c.b16 %v1537, %v1535
    %v2086 = vpack.c.b16 %v1540, %v1538
    %v2087 = vpack.c.b16 %v1541, %v1539
    %v2088 = vpack.c.b16 %v1544, %v1542
    %v2089 = vpack.c.b16 %v1545, %v1543
    %v2090 = vpack.c.b16 %v1548, %v1546
    %v2091 = vpack.c.b16 %v1549, %v1547
    %v2092 = vpack.c.b16 %v1552, %v1550
    %v2093 = vpack.c.b16 %v1553, %v1551
    %v2094 = vpack.c.b16 %v1556, %v1554
    %v2095 = vpack.c.b16 %v1557, %v1555
    %v2096 = vpack.c.b16 %v1560, %v1558
    %v2097 = vpack.c.b16 %v1561, %v1559
    %v2098 = vpack.c.b16 %v1564, %v1562
    %v2099 = vpack.c.b16 %v1565, %v1563
    %v2100 = vpack.c.b16 %v1568, %v1566
    %v2101 = vpack.c.b16 %v1569, %v1567
    %v2102 = vpack.c.b16 %v1572, %v1570
    %v2103 = vpack.c.b16 %v1573, %v1571
    %v2104 = vpack.c.b16 %v1576, %v1574
    %v2105 = vpack.c.b16 %v1577, %v1575
    %v2106 = vpack.c.b16 %v1580, %v1578
    %v2107 = vpack.c.b16 %v1581, %v1579
    %v2108 = vpack.c.b16 %v1584, %v1582
    %v2109 = vpack.c.b16 %v1585, %v1583
    %v2110 = vpack.c.b16 %v1588, %v1586
    %v2111 = vpack.c.b16 %v1589, %v1587
    %v2112 = vpack.c.b16 %v1592, %v1590
    %v2113 = vpack.c.b16 %v1593, %v1591
    %v2114 = vpack.c.b16 %v1596, %v1594
    %v2115 = vpack.c.b16 %v1597, %v1595
    %v2116 = vpack.c.b16 %v1600, %v1598
    %v2117 = vpack.c.b16 %v1601, %v1599
    %v2118 = vpack.c.b16 %v1604, %v1602
    %v2119 = vpack.c.b16 %v1605, %v1603
    %v2120 = vpack.c.b16 %v1608, %v1606
    %v2121 = vpack.c.b16 %v1609, %v1607
    %v2122 = vpack.c.b16 %v1612, %v1610
    %v2123 = vpack.c.b16 %v1613, %v1611
    %v2124 = vpack.c.b16 %v1616, %v1614
    %v2125 = vpack.c.b16 %v1617, %v1615
    %v2126 = vpack.c.b16 %v1620, %v1618
    %v2127 = vpack.c.b16 %v1621, %v1619
    %v2128 = vpack.c.b16 %v1624, %v1622
    %v2129 = vpack.c.b16 %v1625, %v1623
    %v2130 = vpack.c.b16 %v1628, %v1626
    %v2131 = vpack.c.b16 %v1629, %v1627
    %v2132 = vpack.c.b16 %v1632, %v1630
    %v2133 = vpack.c.b16 %v1633, %v1631
    %v2134 = vpack.c.b16 %v1636, %v1634
    %v2135 = vpack.c.b16 %v1637, %v1635
    %v2136 = vpack.c.b16 %v1640, %v1638
    %v2137 = vpack.c.b16 %v1641, %v1639
    %v2138 = vpack.c.b16 %v1644, %v1642
    %v2139 = vpack.c.b16 %v1645, %v1643
    %v2140 = vpack.c.b16 %v1648, %v1646
    %v2141 = vpack.c.b16 %v1649, %v1647
    %v2142 = vpack.c.b16 %v1652, %v1650
    %v2143 = vpack.c.b16 %v1653, %v1651
    %v2144 = vpack.c.b16 %v1656, %v1654
    %v2145 = vpack.c.b16 %v1657, %v1655
    %v2146 = vpack.c.b16 %v1660, %v1658
    %v2147 = vpack.c.b16 %v1661, %v1659
    %v2148 = vpack.c.b16 %v1664, %v1662
    %v2149 = vpack.c.b16 %v1665, %v1663
    %v2150 = vpack.c.b16 %v1668, %v1666
    %v2151 = vpack.c.b16 %v1669, %v1667
    %v2152 = vpack.c.b16 %v1672, %v1670
    %v2153 = vpack.c.b16 %v1673, %v1671
    %v2154 = vpack.c.b16 %v1676, %v1674
    %v2155 = vpack.c.b16 %v1677, %v1675
    %v2156 = vpack.c.b16 %v1680, %v1678
    %v2157 = vpack.c.b16 %v1681, %v1679
    %v2158 = vpack.c.b16 %v1684, %v1682
    %v2159 = vpack.c.b16 %v1685, %v1683
    %v2160 = vpack.c.b16 %v1688, %v1686
    %v2161 = vpack.c.b16 %v1689, %v1687
    %v2162 = vpack.c.b16 %v1692, %v1690
    %v2163 = vpack.c.b16 %v1693, %v1691
    %v2164 = vpack.c.b16 %v1696, %v1694
    %v2165 = vpack.c.b16 %v1697, %v1695
    %v2166 = vpack.c.b16 %v1700, %v1698
    %v2167 = vpack.c.b16 %v1701, %v1699
    %v2168 = vpack.c.b16 %v1704, %v1702
    %v2169 = vpack.c.b16 %v1705, %v1703
    %v2170 = vpack.c.b16 %v1708, %v1706
    %v2171 = vpack.c.b16 %v1709, %v1707
    %v2172 = vpack.c.b16 %v1712, %v1710
    %v2173 = vpack.c.b16 %v1713, %v1711
    %v2174 = vpack.c.b16 %v1716, %v1714
    %v2175 = vpack.c.b16 %v1717, %v1715
    %v2176 = vpack.c.b16 %v1720, %v1718
    %v2177 = vpack.c.b16 %v1721, %v1719
    %v2178 = vpack.c.b16 %v1724, %v1722
    %v2179 = vpack.c.b16 %v1725, %v1723
    %v2180 = vpack.c.b16 %v1728, %v1726
    %v2181 = vpack.c.b16 %v1729, %v1727
    %v2182 = vpack.c.b16 %v1732, %v1730
    %v2183 = vpack.c.b16 %v1733, %v1731
    %v2184 = vpack.c.b16 %v1736, %v1734
    %v2185 = vpack.c.b16 %v1737, %v1735
    %v2186 = vpack.c.b16 %v1740, %v1738
    %v2187 = vpack.c.b16 %v1741, %v1739
    %v2188 = vpack.c.b16 %v1744, %v1742
    %v2189 = vpack.c.b16 %v1745, %v1743
    %v2190 = vpack.c.b16 %v1748, %v1746
    %v2191 = vpack.c.b16 %v1749, %v1747
    %v2192 = vpack.c.b16 %v1752, %v1750
    %v2193 = vpack.c.b16 %v1753, %v1751
    %v2194 = vpack.c.b16 %v1756, %v1754
    %v2195 = vpack.c.b16 %v1757, %v1755
    %v2196 = vpack.c.b16 %v1760, %v1758
    %v2197 = vpack.c.b16 %v1761, %v1759
    %v2198 = vpack.c.b16 %v1764, %v1762
    %v2199 = vpack.c.b16 %v1765, %v1763
    %v2200 = vpack.c.b16 %v1768, %v1766
    %v2201 = vpack.c.b16 %v1769, %v1767
    %v2202 = vpack.c.b16 %v1772, %v1770
    %v2203 = vpack.c.b16 %v1773, %v1771
    %v2204 = vpack.c.b16 %v1776, %v1774
    %v2205 = vpack.c.b16 %v1777, %v1775
    %v2206 = vpack.c.b16 %v1780, %v1778
    %v2207 = vpack.c.b16 %v1781, %v1779
    %v2208 = vpack.c.b16 %v1784, %v1782
    %v2209 = vpack.c.b16 %v1785, %v1783
    %v2210 = vpack.c.b16 %v1788, %v1786
    %v2211 = vpack.c.b16 %v1789, %v1787
    %v2212 = vpack.c.b16 %v1792, %v1790
    %v2213 = vpack.c.b16 %v1793, %v1791
    %v2214 = vpack.c.b16 %v1796, %v1794
    %v2215 = vpack.c.b16 %v1797, %v1795
    %v2216 = vpack.c.b16 %v1800, %v1798
    %v2217 = vpack.c.b16 %v1801, %v1799
    %v2218 = vpack.c.b16 %v1804, %v1802
    %v2219 = vpack.c.b16 %v1805, %v1803
    %v2220 = vpack.c.b16 %v1808, %v1806
    %v2221 = vpack.c.b16 %v1809, %v1807
    %v2222 = vpack.c.b16 %v1812, %v1810
    %v2223 = vpack.c.b16 %v1813, %v1811
    %v2224 = vpack.c.b16 %v1816, %v1814
    %v2225 = vpack.c.b16 %v1817, %v1815
    %v2226 = vpack.c.b16 %v1820, %v1818
    %v2227 = vpack.c.b16 %v1821, %v1819
    %v2228 = vpack.c.b16 %v1824, %v1822
    %v2229 = vpack.c.b16 %v1825, %v1823
    %v2230 = vpack.c.b16 %v1828, %v1826
    %v2231 = vpack.c.b16 %v1829, %v1827
    %v2232 = vpack.c.b16 %v1832, %v1830
    %v2233 = vpack.c.b16 %v1833, %v1831
    %2634 = vmatprep.subr.bf16.mxu0 %v1849
    %2635 = vmatpush1.bf16.msra.mxu0 %v1848
    %2636 = vmatprep.subr.bf16.mxu0 %v1847
    %2637 = vmatpush1.bf16.msra.mxu0 %v1846
    %2638 = vmatprep.subr.bf16.mxu0 %v1845
    %2639 = vmatpush1.bf16.msra.mxu0 %v1844
    %2640 = vmatprep.subr.bf16.mxu0 %v1843
    %2641 = vmatpush1.bf16.msra.mxu0 %v1842
    %2642 = vmatprep.subr.bf16.mxu0 %v1841
    %2643 = vmatpush1.bf16.msra.mxu0 %v1840
    %2644 = vmatprep.subr.bf16.mxu0 %v1839
    %2645 = vmatpush1.bf16.msra.mxu0 %v1838
    %2646 = vmatprep.subr.bf16.mxu0 %v1837
    %2647 = vmatpush1.bf16.msra.mxu0 %v1836
    %2648 = vmatprep.subr.bf16.mxu0 %v1835
    %2649 = vmatpush1.bf16.msra.mxu0 %v1834
    %2650 = vmatprep.subr.bf16.mxu0 %v1865
    %2651 = vmatpush2.bf16.msra.mxu0 %v1864
    %2652 = vmatprep.subr.bf16.mxu0 %v1863
    %2653 = vmatpush2.bf16.msra.mxu0 %v1862
    %2654 = vmatprep.subr.bf16.mxu0 %v1861
    %2655 = vmatpush2.bf16.msra.mxu0 %v1860
    %2656 = vmatprep.subr.bf16.mxu0 %v1859
    %2657 = vmatpush2.bf16.msra.mxu0 %v1858
    %2658 = vmatprep.subr.bf16.mxu0 %v1857
    %2659 = vmatpush2.bf16.msra.mxu0 %v1856
    %2660 = vmatprep.subr.bf16.mxu0 %v1855
    %2661 = vmatpush2.bf16.msra.mxu0 %v1854
    %2662 = vmatprep.subr.bf16.mxu0 %v1853
    %2663 = vmatpush2.bf16.msra.mxu0 %v1852
    %2664 = vmatprep.subr.bf16.mxu0 %v1851
    %2665 = vmatpush2.bf16.msra.mxu0 %v1850
    %2666 = vmatprep.mubr.bf16.mxu0 %v485
    %2667 = vmatmul.mubr.bf16.gmra.mxu0 %v471
    %v2668 = vpop.f32.mrf.mxu0
    %v2669 = vadd.f32 %v437, %v2668
    %v2670 = vpop.f32.mrf.mxu0
    %v2671 = vadd.f32 %v441, %v2670
    %v2672 = vpop.f32.mrf.mxu0
    %v2673 = vpop.f32.mrf.mxu0
    %2674 = vdwg.mxu0
    %2675 = vmatprep.subr.bf16.mxu0 %v1881
    %2676 = vmatpush1.bf16.msra.mxu0 %v1880
    %2677 = vmatprep.subr.bf16.mxu0 %v1879
    %2678 = vmatpush1.bf16.msra.mxu0 %v1878
    %2679 = vmatprep.subr.bf16.mxu0 %v1877
    %2680 = vmatpush1.bf16.msra.mxu0 %v1876
    %2681 = vmatprep.subr.bf16.mxu0 %v1875
    %2682 = vmatpush1.bf16.msra.mxu0 %v1874
    %2683 = vmatprep.subr.bf16.mxu0 %v1873
    %2684 = vmatpush1.bf16.msra.mxu0 %v1872
    %2685 = vmatprep.subr.bf16.mxu0 %v1871
    %2686 = vmatpush1.bf16.msra.mxu0 %v1870
    %2687 = vmatprep.subr.bf16.mxu0 %v1869
    %2688 = vmatpush1.bf16.msra.mxu0 %v1868
    %2689 = vmatprep.subr.bf16.mxu0 %v1867
    %2690 = vmatpush1.bf16.msra.mxu0 %v1866
    %2691 = vmatprep.subr.bf16.mxu0 %v1897
    %2692 = vmatpush2.bf16.msra.mxu0 %v1896
    %2693 = vmatprep.subr.bf16.mxu0 %v1895
    %2694 = vmatpush2.bf16.msra.mxu0 %v1894
    %2695 = vmatprep.subr.bf16.mxu0 %v1893
    %2696 = vmatpush2.bf16.msra.mxu0 %v1892
    %2697 = vmatprep.subr.bf16.mxu0 %v1891
    %2698 = vmatpush2.bf16.msra.mxu0 %v1890
    %2699 = vmatprep.subr.bf16.mxu0 %v1889
    %2700 = vmatpush2.bf16.msra.mxu0 %v1888
    %2701 = vmatprep.subr.bf16.mxu0 %v1887
    %2702 = vmatpush2.bf16.msra.mxu0 %v1886
    %2703 = vmatprep.subr.bf16.mxu0 %v1885
    %2704 = vmatpush2.bf16.msra.mxu0 %v1884
    %2705 = vmatprep.subr.bf16.mxu0 %v1883
    %2706 = vmatpush2.bf16.msra.mxu0 %v1882
    %2707 = vmatprep.mubr.bf16.mxu0 %v495
    %2708 = vmatmul.mubr.bf16.gmra.mxu0 %v493
    %v2709 = vpop.f32.mrf.mxu0
    %v2710 = vadd.f32 %v2669, %v2709
    %v2711 = vpop.f32.mrf.mxu0
    %v2712 = vadd.f32 %v2671, %v2711
    %v2713 = vpop.f32.mrf.mxu0
    %v2714 = vpop.f32.mrf.mxu0
    %2715 = vdwg.mxu0
    %2716 = vmatprep.subr.bf16.mxu0 %v1913
    %2717 = vmatpush1.bf16.msra.mxu0 %v1912
    %2718 = vmatprep.subr.bf16.mxu0 %v1911
    %2719 = vmatpush1.bf16.msra.mxu0 %v1910
    %2720 = vmatprep.subr.bf16.mxu0 %v1909
    %2721 = vmatpush1.bf16.msra.mxu0 %v1908
    %2722 = vmatprep.subr.bf16.mxu0 %v1907
    %2723 = vmatpush1.bf16.msra.mxu0 %v1906
    %2724 = vmatprep.subr.bf16.mxu0 %v1905
    %2725 = vmatpush1.bf16.msra.mxu0 %v1904
    %2726 = vmatprep.subr.bf16.mxu0 %v1903
    %2727 = vmatpush1.bf16.msra.mxu0 %v1902
    %2728 = vmatprep.subr.bf16.mxu0 %v1901
    %2729 = vmatpush1.bf16.msra.mxu0 %v1900
    %2730 = vmatprep.subr.bf16.mxu0 %v1899
    %2731 = vmatpush1.bf16.msra.mxu0 %v1898
    %2732 = vmatprep.subr.bf16.mxu0 %v1929
    %2733 = vmatpush2.bf16.msra.mxu0 %v1928
    %2734 = vmatprep.subr.bf16.mxu0 %v1927
    %2735 = vmatpush2.bf16.msra.mxu0 %v1926
    %2736 = vmatprep.subr.bf16.mxu0 %v1925
    %2737 = vmatpush2.bf16.msra.mxu0 %v1924
    %2738 = vmatprep.subr.bf16.mxu0 %v1923
    %2739 = vmatpush2.bf16.msra.mxu0 %v1922
    %2740 = vmatprep.subr.bf16.mxu0 %v1921
    %2741 = vmatpush2.bf16.msra.mxu0 %v1920
    %2742 = vmatprep.subr.bf16.mxu0 %v1919
    %2743 = vmatpush2.bf16.msra.mxu0 %v1918
    %2744 = vmatprep.subr.bf16.mxu0 %v1917
    %2745 = vmatpush2.bf16.msra.mxu0 %v1916
    %2746 = vmatprep.subr.bf16.mxu0 %v1915
    %2747 = vmatpush2.bf16.msra.mxu0 %v1914
    %2748 = vmatprep.mubr.bf16.mxu0 %v492
    %2749 = vmatmul.mubr.bf16.gmra.mxu0 %v478
    %v2750 = vpop.f32.mrf.mxu0
    %v2751 = vadd.f32 %v2710, %v2750
    %v2752 = vpop.f32.mrf.mxu0
    %v2753 = vadd.f32 %v2712, %v2752
    %v2754 = vpop.f32.mrf.mxu0
    %v2755 = vpop.f32.mrf.mxu0
    %2756 = vdwg.mxu0
    %2757 = vmatprep.subr.bf16.mxu0 %v1945
    %2758 = vmatpush1.bf16.msra.mxu0 %v1944
    %2759 = vmatprep.subr.bf16.mxu0 %v1943
    %2760 = vmatpush1.bf16.msra.mxu0 %v1942
    %2761 = vmatprep.subr.bf16.mxu0 %v1941
    %2762 = vmatpush1.bf16.msra.mxu0 %v1940
    %2763 = vmatprep.subr.bf16.mxu0 %v1939
    %2764 = vmatpush1.bf16.msra.mxu0 %v1938
    %2765 = vmatprep.subr.bf16.mxu0 %v1937
    %2766 = vmatpush1.bf16.msra.mxu0 %v1936
    %2767 = vmatprep.subr.bf16.mxu0 %v1935
    %2768 = vmatpush1.bf16.msra.mxu0 %v1934
    %2769 = vmatprep.subr.bf16.mxu0 %v1933
    %2770 = vmatpush1.bf16.msra.mxu0 %v1932
    %2771 = vmatprep.subr.bf16.mxu0 %v1931
    %2772 = vmatpush1.bf16.msra.mxu0 %v1930
    %2773 = vmatprep.subr.bf16.mxu0 %v1961
    %2774 = vmatpush2.bf16.msra.mxu0 %v1960
    %2775 = vmatprep.subr.bf16.mxu0 %v1959
    %2776 = vmatpush2.bf16.msra.mxu0 %v1958
    %2777 = vmatprep.subr.bf16.mxu0 %v1957
    %2778 = vmatpush2.bf16.msra.mxu0 %v1956
    %2779 = vmatprep.subr.bf16.mxu0 %v1955
    %2780 = vmatpush2.bf16.msra.mxu0 %v1954
    %2781 = vmatprep.subr.bf16.mxu0 %v1953
    %2782 = vmatpush2.bf16.msra.mxu0 %v1952
    %2783 = vmatprep.subr.bf16.mxu0 %v1951
    %2784 = vmatpush2.bf16.msra.mxu0 %v1950
    %2785 = vmatprep.subr.bf16.mxu0 %v1949
    %2786 = vmatpush2.bf16.msra.mxu0 %v1948
    %2787 = vmatprep.subr.bf16.mxu0 %v1947
    %2788 = vmatpush2.bf16.msra.mxu0 %v1946
    %2789 = vmatprep.mubr.bf16.mxu0 %v496
    %2790 = vmatmul.mubr.bf16.gmra.mxu0 %v494
    %v2791 = vpop.f32.mrf.mxu0
    %v2792 = vadd.f32 %v2751, %v2791
    %v2793 = vpop.f32.mrf.mxu0
    %v2794 = vadd.f32 %v2753, %v2793
    %v2795 = vpop.f32.mrf.mxu0
    %v2796 = vpop.f32.mrf.mxu0
    %2797 = vdwg.mxu0
    %2798 = vmatprep.subr.bf16.mxu0 %v1977
    %2799 = vmatpush1.bf16.msra.mxu0 %v1976
    %2800 = vmatprep.subr.bf16.mxu0 %v1975
    %2801 = vmatpush1.bf16.msra.mxu0 %v1974
    %2802 = vmatprep.subr.bf16.mxu0 %v1973
    %2803 = vmatpush1.bf16.msra.mxu0 %v1972
    %2804 = vmatprep.subr.bf16.mxu0 %v1971
    %2805 = vmatpush1.bf16.msra.mxu0 %v1970
    %2806 = vmatprep.subr.bf16.mxu0 %v1969
    %2807 = vmatpush1.bf16.msra.mxu0 %v1968
    %2808 = vmatprep.subr.bf16.mxu0 %v1967
    %2809 = vmatpush1.bf16.msra.mxu0 %v1966
    %2810 = vmatprep.subr.bf16.mxu0 %v1965
    %2811 = vmatpush1.bf16.msra.mxu0 %v1964
    %2812 = vmatprep.subr.bf16.mxu0 %v1963
    %2813 = vmatpush1.bf16.msra.mxu0 %v1962
    %2814 = vmatprep.subr.bf16.mxu0 %v1993
    %2815 = vmatpush2.bf16.msra.mxu0 %v1992
    %2816 = vmatprep.subr.bf16.mxu0 %v1991
    %2817 = vmatpush2.bf16.msra.mxu0 %v1990
    %2818 = vmatprep.subr.bf16.mxu0 %v1989
    %2819 = vmatpush2.bf16.msra.mxu0 %v1988
    %2820 = vmatprep.subr.bf16.mxu0 %v1987
    %2821 = vmatpush2.bf16.msra.mxu0 %v1986
    %2822 = vmatprep.subr.bf16.mxu0 %v1985
    %2823 = vmatpush2.bf16.msra.mxu0 %v1984
    %2824 = vmatprep.subr.bf16.mxu0 %v1983
    %2825 = vmatpush2.bf16.msra.mxu0 %v1982
    %2826 = vmatprep.subr.bf16.mxu0 %v1981
    %2827 = vmatpush2.bf16.msra.mxu0 %v1980
    %2828 = vmatprep.subr.bf16.mxu0 %v1979
    %2829 = vmatpush2.bf16.msra.mxu0 %v1978
    %2830 = vmatprep.mubr.bf16.mxu0 %v534
    %2831 = vmatmul.mubr.bf16.gmra.mxu0 %v520
    %v2832 = vpop.f32.mrf.mxu0
    %v2833 = vadd.f32 %v2792, %v2832
    %v2834 = vpop.f32.mrf.mxu0
    %v2835 = vadd.f32 %v2794, %v2834
    %v2836 = vpop.f32.mrf.mxu0
    %v2837 = vpop.f32.mrf.mxu0
    %2838 = vdwg.mxu0
    %2839 = vmatprep.subr.bf16.mxu0 %v2009
    %2840 = vmatpush1.bf16.msra.mxu0 %v2008
    %2841 = vmatprep.subr.bf16.mxu0 %v2007
    %2842 = vmatpush1.bf16.msra.mxu0 %v2006
    %2843 = vmatprep.subr.bf16.mxu0 %v2005
    %2844 = vmatpush1.bf16.msra.mxu0 %v2004
    %2845 = vmatprep.subr.bf16.mxu0 %v2003
    %2846 = vmatpush1.bf16.msra.mxu0 %v2002
    %2847 = vmatprep.subr.bf16.mxu0 %v2001
    %2848 = vmatpush1.bf16.msra.mxu0 %v2000
    %2849 = vmatprep.subr.bf16.mxu0 %v1999
    %2850 = vmatpush1.bf16.msra.mxu0 %v1998
    %2851 = vmatprep.subr.bf16.mxu0 %v1997
    %2852 = vmatpush1.bf16.msra.mxu0 %v1996
    %2853 = vmatprep.subr.bf16.mxu0 %v1995
    %2854 = vmatpush1.bf16.msra.mxu0 %v1994
    %2855 = vmatprep.subr.bf16.mxu0 %v2025
    %2856 = vmatpush2.bf16.msra.mxu0 %v2024
    %2857 = vmatprep.subr.bf16.mxu0 %v2023
    %2858 = vmatpush2.bf16.msra.mxu0 %v2022
    %2859 = vmatprep.subr.bf16.mxu0 %v2021
    %2860 = vmatpush2.bf16.msra.mxu0 %v2020
    %2861 = vmatprep.subr.bf16.mxu0 %v2019
    %2862 = vmatpush2.bf16.msra.mxu0 %v2018
    %2863 = vmatprep.subr.bf16.mxu0 %v2017
    %2864 = vmatpush2.bf16.msra.mxu0 %v2016
    %2865 = vmatprep.subr.bf16.mxu0 %v2015
    %2866 = vmatpush2.bf16.msra.mxu0 %v2014
    %2867 = vmatprep.subr.bf16.mxu0 %v2013
    %2868 = vmatpush2.bf16.msra.mxu0 %v2012
    %2869 = vmatprep.subr.bf16.mxu0 %v2011
    %2870 = vmatpush2.bf16.msra.mxu0 %v2010
    %2871 = vmatprep.mubr.bf16.mxu0 %v544
    %2872 = vmatmul.mubr.bf16.gmra.mxu0 %v542
    %v2873 = vpop.f32.mrf.mxu0
    %v2874 = vadd.f32 %v2833, %v2873
    %v2875 = vpop.f32.mrf.mxu0
    %v2876 = vadd.f32 %v2835, %v2875
    %v2877 = vpop.f32.mrf.mxu0
    %v2878 = vpop.f32.mrf.mxu0
    %2879 = vdwg.mxu0
    %2880 = vmatprep.subr.bf16.mxu0 %v2041
    %2881 = vmatpush1.bf16.msra.mxu0 %v2040
    %2882 = vmatprep.subr.bf16.mxu0 %v2039
    %2883 = vmatpush1.bf16.msra.mxu0 %v2038
    %2884 = vmatprep.subr.bf16.mxu0 %v2037
    %2885 = vmatpush1.bf16.msra.mxu0 %v2036
    %2886 = vmatprep.subr.bf16.mxu0 %v2035
    %2887 = vmatpush1.bf16.msra.mxu0 %v2034
    %2888 = vmatprep.subr.bf16.mxu0 %v2033
    %2889 = vmatpush1.bf16.msra.mxu0 %v2032
    %2890 = vmatprep.subr.bf16.mxu0 %v2031
    %2891 = vmatpush1.bf16.msra.mxu0 %v2030
    %2892 = vmatprep.subr.bf16.mxu0 %v2029
    %2893 = vmatpush1.bf16.msra.mxu0 %v2028
    %2894 = vmatprep.subr.bf16.mxu0 %v2027
    %2895 = vmatpush1.bf16.msra.mxu0 %v2026
    %2896 = vmatprep.subr.bf16.mxu0 %v2057
    %2897 = vmatpush2.bf16.msra.mxu0 %v2056
    %2898 = vmatprep.subr.bf16.mxu0 %v2055
    %2899 = vmatpush2.bf16.msra.mxu0 %v2054
    %2900 = vmatprep.subr.bf16.mxu0 %v2053
    %2901 = vmatpush2.bf16.msra.mxu0 %v2052
    %2902 = vmatprep.subr.bf16.mxu0 %v2051
    %2903 = vmatpush2.bf16.msra.mxu0 %v2050
    %2904 = vmatprep.subr.bf16.mxu0 %v2049
    %2905 = vmatpush2.bf16.msra.mxu0 %v2048
    %2906 = vmatprep.subr.bf16.mxu0 %v2047
    %2907 = vmatpush2.bf16.msra.mxu0 %v2046
    %2908 = vmatprep.subr.bf16.mxu0 %v2045
    %2909 = vmatpush2.bf16.msra.mxu0 %v2044
    %2910 = vmatprep.subr.bf16.mxu0 %v2043
    %2911 = vmatpush2.bf16.msra.mxu0 %v2042
    %2912 = vmatprep.mubr.bf16.mxu0 %v541
    %2913 = vmatmul.mubr.bf16.gmra.mxu0 %v527
    %v2914 = vpop.f32.mrf.mxu0
    %v2915 = vadd.f32 %v2874, %v2914
    %v2916 = vpop.f32.mrf.mxu0
    %v2917 = vadd.f32 %v2876, %v2916
    %v2918 = vpop.f32.mrf.mxu0
    %v2919 = vpop.f32.mrf.mxu0
    %2920 = vdwg.mxu0
    %2921 = vmatprep.subr.bf16.mxu0 %v2073
    %2922 = vmatpush1.bf16.msra.mxu0 %v2072
    %2923 = vmatprep.subr.bf16.mxu0 %v2071
    %2924 = vmatpush1.bf16.msra.mxu0 %v2070
    %2925 = vmatprep.subr.bf16.mxu0 %v2069
    %2926 = vmatpush1.bf16.msra.mxu0 %v2068
    %2927 = vmatprep.subr.bf16.mxu0 %v2067
    %2928 = vmatpush1.bf16.msra.mxu0 %v2066
    %2929 = vmatprep.subr.bf16.mxu0 %v2065
    %2930 = vmatpush1.bf16.msra.mxu0 %v2064
    %2931 = vmatprep.subr.bf16.mxu0 %v2063
    %2932 = vmatpush1.bf16.msra.mxu0 %v2062
    %2933 = vmatprep.subr.bf16.mxu0 %v2061
    %2934 = vmatpush1.bf16.msra.mxu0 %v2060
    %2935 = vmatprep.subr.bf16.mxu0 %v2059
    %2936 = vmatpush1.bf16.msra.mxu0 %v2058
    %2937 = vmatprep.subr.bf16.mxu0 %v2089
    %2938 = vmatpush2.bf16.msra.mxu0 %v2088
    %2939 = vmatprep.subr.bf16.mxu0 %v2087
    %2940 = vmatpush2.bf16.msra.mxu0 %v2086
    %2941 = vmatprep.subr.bf16.mxu0 %v2085
    %2942 = vmatpush2.bf16.msra.mxu0 %v2084
    %2943 = vmatprep.subr.bf16.mxu0 %v2083
    %2944 = vmatpush2.bf16.msra.mxu0 %v2082
    %2945 = vmatprep.subr.bf16.mxu0 %v2081
    %2946 = vmatpush2.bf16.msra.mxu0 %v2080
    %2947 = vmatprep.subr.bf16.mxu0 %v2079
    %2948 = vmatpush2.bf16.msra.mxu0 %v2078
    %2949 = vmatprep.subr.bf16.mxu0 %v2077
    %2950 = vmatpush2.bf16.msra.mxu0 %v2076
    %2951 = vmatprep.subr.bf16.mxu0 %v2075
    %2952 = vmatpush2.bf16.msra.mxu0 %v2074
    %2953 = vmatprep.mubr.bf16.mxu0 %v545
    %2954 = vmatmul.mubr.bf16.gmra.mxu0 %v543
    %v2955 = vpop.f32.mrf.mxu0
    %v2956 = vadd.f32 %v2915, %v2955
    %v2957 = vpop.f32.mrf.mxu0
    %v2958 = vadd.f32 %v2917, %v2957
    %v2959 = vpop.f32.mrf.mxu0
    %v2960 = vpop.f32.mrf.mxu0
    %2961 = vdwg.mxu0
    %2962 = vmatprep.subr.bf16.mxu0 %v2105
    %2963 = vmatpush1.bf16.msra.mxu0 %v2104
    %2964 = vmatprep.subr.bf16.mxu0 %v2103
    %2965 = vmatpush1.bf16.msra.mxu0 %v2102
    %2966 = vmatprep.subr.bf16.mxu0 %v2101
    %2967 = vmatpush1.bf16.msra.mxu0 %v2100
    %2968 = vmatprep.subr.bf16.mxu0 %v2099
    %2969 = vmatpush1.bf16.msra.mxu0 %v2098
    %2970 = vmatprep.subr.bf16.mxu0 %v2097
    %2971 = vmatpush1.bf16.msra.mxu0 %v2096
    %2972 = vmatprep.subr.bf16.mxu0 %v2095
    %2973 = vmatpush1.bf16.msra.mxu0 %v2094
    %2974 = vmatprep.subr.bf16.mxu0 %v2093
    %2975 = vmatpush1.bf16.msra.mxu0 %v2092
    %2976 = vmatprep.subr.bf16.mxu0 %v2091
    %2977 = vmatpush1.bf16.msra.mxu0 %v2090
    %2978 = vmatprep.subr.bf16.mxu0 %v2121
    %2979 = vmatpush2.bf16.msra.mxu0 %v2120
    %2980 = vmatprep.subr.bf16.mxu0 %v2119
    %2981 = vmatpush2.bf16.msra.mxu0 %v2118
    %2982 = vmatprep.subr.bf16.mxu0 %v2117
    %2983 = vmatpush2.bf16.msra.mxu0 %v2116
    %2984 = vmatprep.subr.bf16.mxu0 %v2115
    %2985 = vmatpush2.bf16.msra.mxu0 %v2114
    %2986 = vmatprep.subr.bf16.mxu0 %v2113
    %2987 = vmatpush2.bf16.msra.mxu0 %v2112
    %2988 = vmatprep.subr.bf16.mxu0 %v2111
    %2989 = vmatpush2.bf16.msra.mxu0 %v2110
    %2990 = vmatprep.subr.bf16.mxu0 %v2109
    %2991 = vmatpush2.bf16.msra.mxu0 %v2108
    %2992 = vmatprep.subr.bf16.mxu0 %v2107
    %2993 = vmatpush2.bf16.msra.mxu0 %v2106
    %2994 = vmatprep.mubr.bf16.mxu0 %v583
    %2995 = vmatmul.mubr.bf16.gmra.mxu0 %v569
    %v2996 = vpop.f32.mrf.mxu0
    %v2997 = vadd.f32 %v2956, %v2996
    %v2998 = vpop.f32.mrf.mxu0
    %v2999 = vadd.f32 %v2958, %v2998
    %v3000 = vpop.f32.mrf.mxu0
    %v3001 = vpop.f32.mrf.mxu0
    %3002 = vdwg.mxu0
    %3003 = vmatprep.subr.bf16.mxu0 %v2137
    %3004 = vmatpush1.bf16.msra.mxu0 %v2136
    %3005 = vmatprep.subr.bf16.mxu0 %v2135
    %3006 = vmatpush1.bf16.msra.mxu0 %v2134
    %3007 = vmatprep.subr.bf16.mxu0 %v2133
    %3008 = vmatpush1.bf16.msra.mxu0 %v2132
    %3009 = vmatprep.subr.bf16.mxu0 %v2131
    %3010 = vmatpush1.bf16.msra.mxu0 %v2130
    %3011 = vmatprep.subr.bf16.mxu0 %v2129
    %3012 = vmatpush1.bf16.msra.mxu0 %v2128
    %3013 = vmatprep.subr.bf16.mxu0 %v2127
    %3014 = vmatpush1.bf16.msra.mxu0 %v2126
    %3015 = vmatprep.subr.bf16.mxu0 %v2125
    %3016 = vmatpush1.bf16.msra.mxu0 %v2124
    %3017 = vmatprep.subr.bf16.mxu0 %v2123
    %3018 = vmatpush1.bf16.msra.mxu0 %v2122
    %3019 = vmatprep.subr.bf16.mxu0 %v2153
    %3020 = vmatpush2.bf16.msra.mxu0 %v2152
    %3021 = vmatprep.subr.bf16.mxu0 %v2151
    %3022 = vmatpush2.bf16.msra.mxu0 %v2150
    %3023 = vmatprep.subr.bf16.mxu0 %v2149
    %3024 = vmatpush2.bf16.msra.mxu0 %v2148
    %3025 = vmatprep.subr.bf16.mxu0 %v2147
    %3026 = vmatpush2.bf16.msra.mxu0 %v2146
    %3027 = vmatprep.subr.bf16.mxu0 %v2145
    %3028 = vmatpush2.bf16.msra.mxu0 %v2144
    %3029 = vmatprep.subr.bf16.mxu0 %v2143
    %3030 = vmatpush2.bf16.msra.mxu0 %v2142
    %3031 = vmatprep.subr.bf16.mxu0 %v2141
    %3032 = vmatpush2.bf16.msra.mxu0 %v2140
    %3033 = vmatprep.subr.bf16.mxu0 %v2139
    %3034 = vmatpush2.bf16.msra.mxu0 %v2138
    %3035 = vmatprep.mubr.bf16.mxu0 %v593
    %3036 = vmatmul.mubr.bf16.gmra.mxu0 %v591
    %v3037 = vpop.f32.mrf.mxu0
    %v3038 = vadd.f32 %v2997, %v3037
    %v3039 = vpop.f32.mrf.mxu0
    %v3040 = vadd.f32 %v2999, %v3039
    %v3041 = vpop.f32.mrf.mxu0
    %v3042 = vpop.f32.mrf.mxu0
    %3043 = vdwg.mxu0
    %3044 = vmatprep.subr.bf16.mxu0 %v2169
    %3045 = vmatpush1.bf16.msra.mxu0 %v2168
    %3046 = vmatprep.subr.bf16.mxu0 %v2167
    %3047 = vmatpush1.bf16.msra.mxu0 %v2166
    %3048 = vmatprep.subr.bf16.mxu0 %v2165
    %3049 = vmatpush1.bf16.msra.mxu0 %v2164
    %3050 = vmatprep.subr.bf16.mxu0 %v2163
    %3051 = vmatpush1.bf16.msra.mxu0 %v2162
    %3052 = vmatprep.subr.bf16.mxu0 %v2161
    %3053 = vmatpush1.bf16.msra.mxu0 %v2160
    %3054 = vmatprep.subr.bf16.mxu0 %v2159
    %3055 = vmatpush1.bf16.msra.mxu0 %v2158
    %3056 = vmatprep.subr.bf16.mxu0 %v2157
    %3057 = vmatpush1.bf16.msra.mxu0 %v2156
    %3058 = vmatprep.subr.bf16.mxu0 %v2155
    %3059 = vmatpush1.bf16.msra.mxu0 %v2154
    %3060 = vmatprep.subr.bf16.mxu0 %v2185
    %3061 = vmatpush2.bf16.msra.mxu0 %v2184
    %3062 = vmatprep.subr.bf16.mxu0 %v2183
    %3063 = vmatpush2.bf16.msra.mxu0 %v2182
    %3064 = vmatprep.subr.bf16.mxu0 %v2181
    %3065 = vmatpush2.bf16.msra.mxu0 %v2180
    %3066 = vmatprep.subr.bf16.mxu0 %v2179
    %3067 = vmatpush2.bf16.msra.mxu0 %v2178
    %3068 = vmatprep.subr.bf16.mxu0 %v2177
    %3069 = vmatpush2.bf16.msra.mxu0 %v2176
    %3070 = vmatprep.subr.bf16.mxu0 %v2175
    %3071 = vmatpush2.bf16.msra.mxu0 %v2174
    %3072 = vmatprep.subr.bf16.mxu0 %v2173
    %3073 = vmatpush2.bf16.msra.mxu0 %v2172
    %3074 = vmatprep.subr.bf16.mxu0 %v2171
    %3075 = vmatpush2.bf16.msra.mxu0 %v2170
    %3076 = vmatprep.mubr.bf16.mxu0 %v590
    %3077 = vmatmul.mubr.bf16.gmra.mxu0 %v576
    %v3078 = vpop.f32.mrf.mxu0
    %v3079 = vadd.f32 %v3038, %v3078
    %v3080 = vpop.f32.mrf.mxu0
    %v3081 = vadd.f32 %v3040, %v3080
    %v3082 = vpop.f32.mrf.mxu0
    %v3083 = vpop.f32.mrf.mxu0
    %3084 = vdwg.mxu0
    %3085 = vmatprep.subr.bf16.mxu0 %v2201
    %3086 = vmatpush1.bf16.msra.mxu0 %v2200
    %3087 = vmatprep.subr.bf16.mxu0 %v2199
    %3088 = vmatpush1.bf16.msra.mxu0 %v2198
    %3089 = vmatprep.subr.bf16.mxu0 %v2197
    %3090 = vmatpush1.bf16.msra.mxu0 %v2196
    %3091 = vmatprep.subr.bf16.mxu0 %v2195
    %3092 = vmatpush1.bf16.msra.mxu0 %v2194
    %3093 = vmatprep.subr.bf16.mxu0 %v2193
    %3094 = vmatpush1.bf16.msra.mxu0 %v2192
    %3095 = vmatprep.subr.bf16.mxu0 %v2191
    %3096 = vmatpush1.bf16.msra.mxu0 %v2190
    %3097 = vmatprep.subr.bf16.mxu0 %v2189
    %3098 = vmatpush1.bf16.msra.mxu0 %v2188
    %3099 = vmatprep.subr.bf16.mxu0 %v2187
    %3100 = vmatpush1.bf16.msra.mxu0 %v2186
    %3101 = vmatprep.subr.bf16.mxu0 %v2217
    %3102 = vmatpush2.bf16.msra.mxu0 %v2216
    %3103 = vmatprep.subr.bf16.mxu0 %v2215
    %3104 = vmatpush2.bf16.msra.mxu0 %v2214
    %3105 = vmatprep.subr.bf16.mxu0 %v2213
    %3106 = vmatpush2.bf16.msra.mxu0 %v2212
    %3107 = vmatprep.subr.bf16.mxu0 %v2211
    %3108 = vmatpush2.bf16.msra.mxu0 %v2210
    %3109 = vmatprep.subr.bf16.mxu0 %v2209
    %3110 = vmatpush2.bf16.msra.mxu0 %v2208
    %3111 = vmatprep.subr.bf16.mxu0 %v2207
    %3112 = vmatpush2.bf16.msra.mxu0 %v2206
    %3113 = vmatprep.subr.bf16.mxu0 %v2205
    %3114 = vmatpush2.bf16.msra.mxu0 %v2204
    %3115 = vmatprep.subr.bf16.mxu0 %v2203
    %3116 = vmatpush2.bf16.msra.mxu0 %v2202
    %3117 = vmatprep.mubr.bf16.mxu0 %v594
    %3118 = vmatmul.mubr.bf16.gmra.mxu0 %v592
    %v3119 = vpop.f32.mrf.mxu0
    %v3120 = vadd.f32 %v3079, %v3119
    %v3121 = vpop.f32.mrf.mxu0
    %v3122 = vadd.f32 %v3081, %v3121
    %v3123 = vpop.f32.mrf.mxu0
    %v3124 = vpop.f32.mrf.mxu0
    %3125 = vdwg.mxu0
    %3126 = vmatprep.subr.bf16.mxu0 %v2233
    %3127 = vmatpush1.bf16.msra.mxu0 %v2232
    %3128 = vmatprep.subr.bf16.mxu0 %v2231
    %3129 = vmatpush1.bf16.msra.mxu0 %v2230
    %3130 = vmatprep.subr.bf16.mxu0 %v2229
    %3131 = vmatpush1.bf16.msra.mxu0 %v2228
    %3132 = vmatprep.subr.bf16.mxu0 %v2227
    %3133 = vmatpush1.bf16.msra.mxu0 %v2226
    %3134 = vmatprep.subr.bf16.mxu0 %v2225
    %3135 = vmatpush1.bf16.msra.mxu0 %v2224
    %3136 = vmatprep.subr.bf16.mxu0 %v2223
    %3137 = vmatpush1.bf16.msra.mxu0 %v2222
    %3138 = vmatprep.subr.bf16.mxu0 %v2221
    %3139 = vmatpush1.bf16.msra.mxu0 %v2220
    %3140 = vmatprep.subr.bf16.mxu0 %v2219
    %3141 = vmatpush1.bf16.msra.mxu0 %v2218
    %3142 = vmatprep.subr.bf16.mxu0 0
    %3143 = vmatpush2.bf16.msra.mxu0 0
    %3144 = vmatprep.subr.bf16.mxu0 0
    %3145 = vmatpush2.bf16.msra.mxu0 0
    %3146 = vmatprep.subr.bf16.mxu0 0
    %3147 = vmatpush2.bf16.msra.mxu0 0
    %3148 = vmatprep.subr.bf16.mxu0 0
    %3149 = vmatpush2.bf16.msra.mxu0 0
    %3150 = vmatprep.subr.bf16.mxu0 0
    %3151 = vmatpush2.bf16.msra.mxu0 0
    %3152 = vmatprep.subr.bf16.mxu0 0
    %3153 = vmatpush2.bf16.msra.mxu0 0
    %3154 = vmatprep.subr.bf16.mxu0 0
    %3155 = vmatpush2.bf16.msra.mxu0 0
    %3156 = vmatprep.subr.bf16.mxu0 0
    %3157 = vmatpush2.bf16.msra.mxu0 0
    %3158 = vmatprep.mubr.bf16.mxu0 0
    %3159 = vmatmul.mubr.bf16.gmra.mxu0 %v608
    %v3160 = vpop.f32.mrf.mxu0
    %v3161 = vadd.f32 %v3120, %v3160
    %v3162 = vpop.f32.mrf.mxu0
    %v3163 = vadd.f32 %v3122, %v3162
    %v3164 = vpop.f32.mrf.mxu0
    %v3165 = vpop.f32.mrf.mxu0
    %3166 = vdwg.mxu0
    %v3167 = vmax.f32 %v3161, 0.0
    %v3168 = vmax.f32 %v3163, 0.0
    %v3169 = vpack.c.bf16 %v3167, %v3167
    %v3170 = vpack.c.bf16 %v3168, %v3168
    %v3171 = vld [vmem:[%s3] sm:$0xf]
    %v3172 = vld [vmem:[%s3 + $0x4] sm:$0xf]
    %v3173 = vld [vmem:[%s3 + $0x8] sm:$0xf]
    %v3174 = vld [vmem:[%s3 + $0xc] sm:$0xf]
    %v3175 = vld [vmem:[%s3 + $0x10] sm:$0xf]
    %v3176 = vld [vmem:[%s3 + $0x14] sm:$0xf]
    %v3177 = vld [vmem:[%s3 + $0x18] sm:$0xf]
    %v3178 = vld [vmem:[%s3 + $0x1c] sm:$0xf]
    %v3179 = vld [vmem:[%s3 + $0x20] sm:$0xf]
    %v3180 = vld [vmem:[%s3 + $0x24] sm:$0xf]
    %v3181 = vld [vmem:[%s3 + $0x28] sm:$0xf]
    %v3182 = vld [vmem:[%s3 + $0x2c] sm:$0xf]
    %v3183 = vld [vmem:[%s3 + $0x30] sm:$0xf]
    %v3184 = vld [vmem:[%s3 + $0x34] sm:$0xf]
    %v3185 = vld [vmem:[%s3 + $0x38] sm:$0xf]
    %v3186 = vld [vmem:[%s3 + $0x3c] sm:$0xf]
    %v3187 = vld [vmem:[%s3 + $0x40] sm:$0xf]
    %v3188 = vld [vmem:[%s3 + $0x44] sm:$0xf]
    %v3189 = vld [vmem:[%s3 + $0x48] sm:$0xf]
    %v3190 = vld [vmem:[%s3 + $0x4c] sm:$0xf]
    %v3191 = vld [vmem:[%s3 + $0x50] sm:$0xf]
    %v3192 = vld [vmem:[%s3 + $0x54] sm:$0xf]
    %v3193 = vld [vmem:[%s3 + $0x58] sm:$0xf]
    %v3194 = vld [vmem:[%s3 + $0x5c] sm:$0xf]
    %v3195 = vld [vmem:[%s3 + $0x60] sm:$0xf]
    %v3196 = vld [vmem:[%s3 + $0x64] sm:$0xf]
    %v3197 = vld [vmem:[%s3 + $0x68] sm:$0xf]
    %v3198 = vld [vmem:[%s3 + $0x6c] sm:$0xf]
    %v3199 = vld [vmem:[%s3 + $0x70] sm:$0xf]
    %v3200 = vld [vmem:[%s3 + $0x74] sm:$0xf]
    %v3201 = vld [vmem:[%s3 + $0x78] sm:$0xf]
    %v3202 = vld [vmem:[%s3 + $0x7c] sm:$0xf]
    %v3203 = vld [vmem:[%s4] sm:$0x1]
    %v3205 = vlaneseq
    %v3206 = vshrl.u32 %v3205, 7
    %v3207 = vsub.s32 0, %v3206
    %v3208 = vrot.slane %v3203, %v3207
    %v3242 = vunpack.c.l.b16 %v3171
    %v3243 = vunpack.c.l.b16 %v3172
    %v3244 = vunpack.c.l.b16 %v3173
    %v3245 = vunpack.c.l.b16 %v3174
    %v3246 = vunpack.c.l.b16 %v3175
    %v3247 = vunpack.c.l.b16 %v3176
    %v3248 = vunpack.c.l.b16 %v3177
    %v3249 = vunpack.c.l.b16 %v3178
    %v3250 = vunpack.c.l.b16 %v3179
    %v3251 = vunpack.c.l.b16 %v3180
    %v3252 = vunpack.c.l.b16 %v3181
    %v3253 = vunpack.c.l.b16 %v3182
    %v3254 = vunpack.c.l.b16 %v3183
    %v3255 = vunpack.c.l.b16 %v3184
    %v3256 = vunpack.c.l.b16 %v3185
    %v3257 = vunpack.c.l.b16 %v3186
    %v3258 = vunpack.c.l.b16 %v3187
    %v3259 = vunpack.c.l.b16 %v3188
    %v3260 = vunpack.c.l.b16 %v3189
    %v3261 = vunpack.c.l.b16 %v3190
    %v3262 = vunpack.c.l.b16 %v3191
    %v3263 = vunpack.c.l.b16 %v3192
    %v3264 = vunpack.c.l.b16 %v3193
    %v3265 = vunpack.c.l.b16 %v3194
    %v3266 = vunpack.c.l.b16 %v3195
    %v3267 = vunpack.c.l.b16 %v3196
    %v3268 = vunpack.c.l.b16 %v3197
    %v3269 = vunpack.c.l.b16 %v3198
    %v3270 = vunpack.c.l.b16 %v3199
    %v3271 = vunpack.c.l.b16 %v3200
    %v3272 = vunpack.c.l.b16 %v3201
    %v3273 = vunpack.c.l.b16 %v3202
    %v3274 = vpack.c.b16 %v3243, %v3242
    %v3275 = vpack.c.b16 %v3245, %v3244
    %v3276 = vpack.c.b16 %v3247, %v3246
    %v3277 = vpack.c.b16 %v3249, %v3248
    %v3278 = vpack.c.b16 %v3251, %v3250
    %v3279 = vpack.c.b16 %v3253, %v3252
    %v3280 = vpack.c.b16 %v3255, %v3254
    %v3281 = vpack.c.b16 %v3257, %v3256
    %v3282 = vpack.c.b16 %v3259, %v3258
    %v3283 = vpack.c.b16 %v3261, %v3260
    %v3284 = vpack.c.b16 %v3263, %v3262
    %v3285 = vpack.c.b16 %v3265, %v3264
    %v3286 = vpack.c.b16 %v3267, %v3266
    %v3287 = vpack.c.b16 %v3269, %v3268
    %v3288 = vpack.c.b16 %v3271, %v3270
    %v3289 = vpack.c.b16 %v3273, %v3272
    %3306 = vmatprep.subr.bf16.mxu0 0
    %3307 = vmatpush1.bf16.msra.mxu0 %v3281
    %3308 = vmatprep.subr.bf16.mxu0 0
    %3309 = vmatpush1.bf16.msra.mxu0 %v3280
    %3310 = vmatprep.subr.bf16.mxu0 0
    %3311 = vmatpush1.bf16.msra.mxu0 %v3279
    %3312 = vmatprep.subr.bf16.mxu0 0
    %3313 = vmatpush1.bf16.msra.mxu0 %v3278
    %3314 = vmatprep.subr.bf16.mxu0 0
    %3315 = vmatpush1.bf16.msra.mxu0 %v3277
    %3316 = vmatprep.subr.bf16.mxu0 0
    %3317 = vmatpush1.bf16.msra.mxu0 %v3276
    %3318 = vmatprep.subr.bf16.mxu0 0
    %3319 = vmatpush1.bf16.msra.mxu0 %v3275
    %3320 = vmatprep.subr.bf16.mxu0 0
    %3321 = vmatpush1.bf16.msra.mxu0 %v3274
    %3322 = vmatprep.subr.bf16.mxu0 0
    %3323 = vmatpush2.bf16.msra.mxu0 %v3289
    %3324 = vmatprep.subr.bf16.mxu0 0
    %3325 = vmatpush2.bf16.msra.mxu0 %v3288
    %3326 = vmatprep.subr.bf16.mxu0 0
    %3327 = vmatpush2.bf16.msra.mxu0 %v3287
    %3328 = vmatprep.subr.bf16.mxu0 0
    %3329 = vmatpush2.bf16.msra.mxu0 %v3286
    %3330 = vmatprep.subr.bf16.mxu0 0
    %3331 = vmatpush2.bf16.msra.mxu0 %v3285
    %3332 = vmatprep.subr.bf16.mxu0 0
    %3333 = vmatpush2.bf16.msra.mxu0 %v3284
    %3334 = vmatprep.subr.bf16.mxu0 0
    %3335 = vmatpush2.bf16.msra.mxu0 %v3283
    %3336 = vmatprep.subr.bf16.mxu0 0
    %3337 = vmatpush2.bf16.msra.mxu0 %v3282
    %3338 = vmatprep.mubr.bf16.mxu0 %v3170
    %3339 = vmatmul.mubr.bf16.gmra.mxu0 %v3169
    %v3340 = vpop.f32.mrf.mxu0
    %v3341 = vadd.f32 %v3208, %v3340
    %v3342 = vpop.f32.mrf.mxu0
    %v3343 = vpop.f32.mrf.mxu0
    %v3344 = vpop.f32.mrf.mxu0
    %3345 = vdwg.mxu0
    %v3346 = vmax.f32 %v3341, 0.0
    %v3347 = vpack.c.bf16 %v3346, %v3346
    %v3348 = vld [vmem:[%s5] sm:$0xf]
    %v3349 = vld [vmem:[%s5 + $0x4] sm:$0xf]
    %v3350 = vld [vmem:[%s6] sm:$0x1]
    %v3352 = vlaneseq
    %v3353 = vshrl.u32 %v3352, 7
    %v3354 = vsub.s32 0, %v3353
    %v3355 = vrot.slane %v3350, %v3354
    %v3359 = vunpack.c.l.b16 %v3348
    %v3360 = vunpack.c.l.b16 %v3349
    %v3361 = vpack.c.b16 %v3360, %v3359
    %vm3363 = vcmask 130048
    %v3365 = vsel %vm3363, %v3347, 0
    %3367 = vmatprep.subr.bf16.mxu0 0
    %3368 = vmatpush1.bf16.msra.mxu0 0
    %3369 = vmatprep.subr.bf16.mxu0 0
    %3370 = vmatpush1.bf16.msra.mxu0 0
    %3371 = vmatprep.subr.bf16.mxu0 0
    %3372 = vmatpush1.bf16.msra.mxu0 0
    %3373 = vmatprep.subr.bf16.mxu0 0
    %3374 = vmatpush1.bf16.msra.mxu0 0
    %3375 = vmatprep.subr.bf16.mxu0 0
    %3376 = vmatpush1.bf16.msra.mxu0 0
    %3377 = vmatprep.subr.bf16.mxu0 0
    %3378 = vmatpush1.bf16.msra.mxu0 0
    %3379 = vmatprep.subr.bf16.mxu0 0
    %3380 = vmatpush1.bf16.msra.mxu0 0
    %3381 = vmatprep.subr.bf16.mxu0 0
    %3382 = vmatpush1.bf16.msra.mxu0 %v3361
    %3383 = vmatprep.subr.bf16.mxu0 0
    %3384 = vmatpush2.bf16.msra.mxu0 0
    %3385 = vmatprep.subr.bf16.mxu0 0
    %3386 = vmatpush2.bf16.msra.mxu0 0
    %3387 = vmatprep.subr.bf16.mxu0 0
    %3388 = vmatpush2.bf16.msra.mxu0 0
    %3389 = vmatprep.subr.bf16.mxu0 0
    %3390 = vmatpush2.bf16.msra.mxu0 0
    %3391 = vmatprep.subr.bf16.mxu0 0
    %3392 = vmatpush2.bf16.msra.mxu0 0
    %3393 = vmatprep.subr.bf16.mxu0 0
    %3394 = vmatpush2.bf16.msra.mxu0 0
    %3395 = vmatprep.subr.bf16.mxu0 0
    %3396 = vmatpush2.bf16.msra.mxu0 0
    %3397 = vmatprep.subr.bf16.mxu0 0
    %3398 = vmatpush2.bf16.msra.mxu0 0
    %3399 = vmatprep.mubr.bf16.mxu0 0
    %3400 = vmatmul.mubr.bf16.gmra.mxu0 %v3365
    %v3401 = vpop.f32.mrf.mxu0
    %v3402 = vadd.f32 %v3355, %v3401
    %v3403 = vpop.f32.mrf.mxu0
    %v3404 = vpop.f32.mrf.mxu0
    %v3405 = vpop.f32.mrf.mxu0
    %3406 = vdwg.mxu0
    %vm3407 = vcmask 33792
    %3408 = vst.msk [vmem:[#allocation2] sm:$0x3] %vm3407, %v3402
    // Predicated region
    $region30: #{cnno_forward.7} parent=1 // pred_check
      _
    $region31: #{cnno_forward.7} parent=1 // pred_check_branch
      %3410 = sbr.rel (0) target = $region33
    $region32: #{cnno_forward.7} parent=1 // pred_region
      %s3412 = ssub.s32 32, 32
      %3413 = vsyncadd [#allocation3], %s3412
      %s3415 = sshll.u32 [#allocation2], 4
      %s3416 = int_to_ptr.vmem [resolvable:$true] %s3415
      %3418 = dma.vmem_to_hbm [thread:$0]  %s3416, 32, %s7, [#allocation3]
    $region33: #{cnno_forward.7} parent=1 // pred_fallthru
      _
    // Predicated region
    $region34: #{cnno_forward.7} parent=1 // pred_check
      _
    $region35: #{cnno_forward.7} parent=1 // pred_check_branch
      %3420 = sbr.rel (0) target = $region37
    $region36: #{cnno_forward.7} parent=1 // pred_region
      %3421 = dma.done [#allocation3], 32
    $region37: #{cnno_forward.7} parent=1 // pred_fallthru
      _
    %3422 = vsyncpa [#allocation3], 1

</llo_original>
